<compile_context>
chip_gen: v7x
topology: tpu7x:2x2x1
jax: 0.10.0
libtpu: 0.0.40
codegen_flags: <defaults>
</compile_context>

<pallas_src>
import functools

import jax
import jax.numpy as jnp
from jax import lax
from jax.experimental import pallas as pl
from jax.experimental.pallas import tpu as pltpu


# --------------------------------- kernel -----------------------------------

def _layer_norm(z, g, b, eps=1e-5):
    # fused reductions: var = E[z^2] - mu^2 (one pass over lanes fewer)
    mu = jnp.mean(z, axis=-1, keepdims=True)
    ms = jnp.mean(z * z, axis=-1, keepdims=True)
    var = ms - mu * mu
    return (z - mu) * lax.rsqrt(var + eps) * g + b


def _transformer_kernel(x_ref, amask_ref,
                        embw_ref, embb_ref,
                        wqkv_ref, wu_ref, bu_ref, g1_ref, b1_ref,
                        wf1_ref, bf1_ref, wf2_ref, bf2_ref, g2_ref, b2_ref,
                        outw_ref, outb_ref,
                        tokens_ref, probs_ref,
                        *, heads, emb, depth, bt, seq):
    """One grid step = Bt batch elements; whole network runs VMEM-resident."""
    he = heads * emb
    rows = bt * seq

    x = x_ref[...].reshape(rows, -1)           # (Bt*T, Din)
    amask = amask_ref[...]                      # (Bt, 1, T) additive 0 / -1e9

    # token embedding; emb_w is pre-padded to the tokens lane pad, so the
    # matmul directly produces the lane-dense output slab.
    tok_full = (jnp.dot(x.astype(jnp.bfloat16), embw_ref[...],
                        preferred_element_type=jnp.float32)
                + embb_ref[...])                # (Bt*T, tokens_pad) f32
    tokens_ref[...] = tok_full.reshape(bt, seq, -1)

    y0 = tok_full[:, :emb]                      # (Bt*T, E) f32

    def block_body(d, y):
        # fused QKV projection: ONE (Bt*T, E) @ (E, 3*H*E) MXU pass.
        # q/k 1/e**(1/4) scaling is folded into the packed weight.
        qkv = jnp.dot(y.astype(jnp.bfloat16), wqkv_ref[d],
                      preferred_element_type=jnp.float32)      # (Bt*T, 3*HE)
        q = qkv[:, :he].reshape(bt, seq, he).astype(jnp.bfloat16)
        k = qkv[:, he:2 * he].reshape(bt, seq, he).astype(jnp.bfloat16)
        v = qkv[:, 2 * he:3 * he].reshape(bt, seq, he).astype(jnp.bfloat16)

        ctx_parts = []
        for h in range(heads):                  # static unroll over heads
            sl = slice(h * emb, (h + 1) * emb)
            # transpose-free scores: contract the last dims via batched einsum
            s = jnp.einsum('bqe,bke->bqk', q[:, :, sl], k[:, :, sl],
                           preferred_element_type=jnp.float32)  # (Bt, T, T)
            s = s + amask                                   # additive key mask
            s = s - jnp.max(s, axis=-1, keepdims=True)      # stable softmax
            p = jnp.exp(s)
            p = p * pl.reciprocal(jnp.sum(p, axis=-1, keepdims=True),
                                  approx=True)
            ctx_parts.append(
                jnp.einsum('bqk,bke->bqe', p.astype(jnp.bfloat16),
                           v[:, :, sl],
                           preferred_element_type=jnp.float32))

        # unifyheads: lane-concat heads -> ONE (Bt*T, H*E) @ (H*E, E) matmul
        ctx = jnp.concatenate(ctx_parts, axis=-1).reshape(rows, he)
        attended = (jnp.dot(ctx.astype(jnp.bfloat16), wu_ref[d],
                            preferred_element_type=jnp.float32) + bu_ref[d])

        # residual + LayerNorm 1 (dropout p=0.0 -> identity)
        y = _layer_norm(attended + y, g1_ref[d], b1_ref[d])

        # feed-forward: Linear -> ReLU -> Linear, residual + LayerNorm 2
        hidden = jnp.maximum(
            jnp.dot(y.astype(jnp.bfloat16), wf1_ref[d],
                    preferred_element_type=jnp.float32) + bf1_ref[d], 0.0)
        ff = (jnp.dot(hidden.astype(jnp.bfloat16), wf2_ref[d],
                      preferred_element_type=jnp.float32) + bf2_ref[d])
        return _layer_norm(ff + y, g2_ref[d], b2_ref[d])

    if depth <= 4:
        y = y0
        for d in range(depth):                  # static unroll (small depth)
            y = block_body(d, y)
    else:
        # visible loop: bounds vreg live ranges / instruction memory at depth
        y = lax.fori_loop(0, depth, block_body, y0)

    # toprobs: out_w pre-padded to the probs lane pad -> unmasked 128-wide store
    probs = (jnp.dot(y.astype(jnp.bfloat16), outw_ref[...],
                     preferred_element_type=jnp.float32) + outb_ref[...])
    probs_ref[...] = probs.reshape(bt, seq, -1)


# -------------------------------- wrapper ------------------------------------

def _const_spec(shape):
    """Full-array block whose index_map is constant across the grid."""
    n = len(shape)
    return pl.BlockSpec(shape, lambda i, n=n: (0,) * n)


def _pick_batch_tile(batch, seq, target_rows=256):
    """Largest divisor of `batch` with Bt*T <= target_rows, preferring >=2 steps."""
    divisors = [d for d in range(1, batch + 1) if batch % d == 0]
    cand = [d for d in divisors if batch // d >= 2] or divisors
    fit = [d for d in cand if d * seq <= max(target_rows, seq)]
    return max(fit) if fit else min(cand)


def transformer_forward(x, mask, packed, *, heads, emb, depth, output_dim,
                        batch_tile=None):
    """Matches Transformer.forward: returns (probs, tokens)."""
    B, T, Din = x.shape
    tokens_pad = packed['emb_w'].shape[-1]
    probs_pad = packed['out_w'].shape[-1]

    if batch_tile is None:
        batch_tile = _pick_batch_tile(B, T)
    assert B % batch_tile == 0, "batch must be divisible by the batch tile"
    grid = (B // batch_tile,)

    # additive key mask (hoisted out of the kernel's head/depth loops)
    amask = jnp.where(mask.reshape(B, 1, T) == 0.0,
                      jnp.float32(-1e9), jnp.float32(0.0))

    weights = [packed['emb_w'], packed['emb_b'],
               packed['wqkv'], packed['wu'], packed['bu'],
               packed['g1'], packed['b1'],
               packed['wf1'], packed['bf1'], packed['wf2'], packed['bf2'],
               packed['g2'], packed['b2'],
               packed['out_w'], packed['out_b']]

    in_specs = [pl.BlockSpec((batch_tile, T, Din), lambda i: (i, 0, 0)),
                pl.BlockSpec((batch_tile, 1, T), lambda i: (i, 0, 0))]
    in_specs += [_const_spec(w.shape) for w in weights]

    out_specs = (pl.BlockSpec((batch_tile, T, tokens_pad), lambda i: (i, 0, 0)),
                 pl.BlockSpec((batch_tile, T, probs_pad), lambda i: (i, 0, 0)))

    # VMEM budget: resident (bf16) weights + double-buffered per-step IO tiles.
    weight_bytes = sum(int(w.size) * w.dtype.itemsize for w in weights)
    io_bytes = 2 * 4 * batch_tile * T * (Din + 1 + tokens_pad + probs_pad)
    vmem_limit = int(min(64 << 20, 2 * (weight_bytes + io_bytes) + (32 << 20)))

    he = heads * emb
    flops = 2 * B * T * (Din * tokens_pad
                         + depth * (emb * 3 * he + 2 * heads * T * emb
                                    + he * emb + 8 * emb * emb)
                         + emb * probs_pad)
    cost = pl.CostEstimate(
        flops=int(flops),
        transcendentals=int(B * T * T * heads * depth),
        bytes_accessed=int(x.size * 4 + amask.size * 4 + weight_bytes
                           + B * T * (tokens_pad + probs_pad) * 4))

    tokens_full, probs_full = pl.pallas_call(
        functools.partial(_transformer_kernel, heads=heads, emb=emb,
                          depth=depth, bt=batch_tile, seq=T),
        out_shape=(jax.ShapeDtypeStruct((B, T, tokens_pad), jnp.float32),
                   jax.ShapeDtypeStruct((B, T, probs_pad), jnp.float32)),
        grid=grid,
        in_specs=in_specs,
        out_specs=out_specs,
        compiler_params=pltpu.CompilerParams(
            dimension_semantics=("parallel",),
            vmem_limit_bytes=vmem_limit),
        cost_estimate=cost,
    )(x, amask, *weights)

    probs = probs_full[:, :, :output_dim]
    tokens = tokens_full[:, :, :emb]
    return probs, tokens


# ------------------------- parameters (PyTorch layout) ------------------------

def init_params(key, input_dim, emb, heads, depth, output_dim):
    """Linear weights stored transposed (x @ W), uniform(+-1/sqrt(fan_in))."""
    def u(k, shape, fan_in):
        bound = 1.0 / (fan_in ** 0.5)
        return jax.random.uniform(k, shape, jnp.float32, -bound, bound)

    ks = jax.random.split(key, depth + 2)
    k0, k1 = jax.random.split(ks[0])
    params = {'emb_w': u(k0, (input_dim, emb), input_dim),
              'emb_b': u(k1, (1, emb), input_dim)}
    k0, k1 = jax.random.split(ks[1])
    params['out_w'] = u(k0, (emb, output_dim), emb)
    params['out_b'] = u(k1, (1, output_dim), emb)

    blocks = []
    for d in range(depth):
        kk = jax.random.split(ks[2 + d], 9)
        blocks.append({
            'wq': u(kk[0], (emb, heads * emb), emb),
            'wk': u(kk[1], (emb, heads * emb), emb),
            'wv': u(kk[2], (emb, heads * emb), emb),
            'wu': u(kk[3], (heads * emb, emb), heads * emb),
            'bu': u(kk[4], (1, emb), heads * emb),
            'g1': jnp.ones((1, emb), jnp.float32),
            'b1': jnp.zeros((1, emb), jnp.float32),
            'wf1': u(kk[5], (emb, 4 * emb), emb),
            'bf1': u(kk[6], (1, 4 * emb), emb),
            'wf2': u(kk[7], (4 * emb, emb), 4 * emb),
            'bf2': u(kk[8], (1, emb), 4 * emb),
            'g2': jnp.ones((1, emb), jnp.float32),
            'b2': jnp.zeros((1, emb), jnp.float32),
        })
    params['blocks'] = blocks
    return params


def pack_params(params, *, heads, emb, depth, output_dim):
    """One-time host-side transform into the fused kernel layout.

    Matmul operands (weights) are stored in bf16 for the MXU; biases and
    LayerNorm params stay f32 (added / applied after the f32 accumulation).
    """
    del depth  # implied by len(params['blocks'])
    scale = 1.0 / (emb ** 0.25)
    blocks = params['blocks']
    tokens_pad = 128 * pl.cdiv(emb, 128)
    probs_pad = 128 * pl.cdiv(output_dim, 128)
    bf16 = jnp.bfloat16

    def pad_cols(w, n):
        return jnp.zeros((w.shape[0], n), w.dtype).at[:, :w.shape[1]].set(w)

    return {
        # embedding weight zero-padded to the tokens lane pad (direct 128-lane
        # dense store of the tokens output; extra MXU columns are free).
        'emb_w': pad_cols(params['emb_w'], tokens_pad).astype(bf16),
        'emb_b': pad_cols(params['emb_b'], tokens_pad),
        # fused QKV weight (depth, E, 3*H*E); q/k scaling folded in here.
        'wqkv': jnp.stack([jnp.concatenate(
            [b['wq'] * scale, b['wk'] * scale, b['wv']], axis=-1)
            for b in blocks]).astype(bf16),
        'wu':  jnp.stack([b['wu'] for b in blocks]).astype(bf16),
        'bu':  jnp.stack([b['bu'] for b in blocks]),
        'g1':  jnp.stack([b['g1'] for b in blocks]),
        'b1':  jnp.stack([b['b1'] for b in blocks]),
        'wf1': jnp.stack([b['wf1'] for b in blocks]).astype(bf16),
        'bf1': jnp.stack([b['bf1'] for b in blocks]),
        'wf2': jnp.stack([b['wf2'] for b in blocks]).astype(bf16),
        'bf2': jnp.stack([b['bf2'] for b in blocks]),
        'g2':  jnp.stack([b['g2'] for b in blocks]),
        'b2':  jnp.stack([b['b2'] for b in blocks]),
        # toprobs weight zero-padded to its own 128-lane-dense output width.
        'out_w': pad_cols(params['out_w'], probs_pad).astype(bf16),
        'out_b': pad_cols(params['out_b'], probs_pad),
    }


# --------------------------- pure-JAX reference -------------------------------

def ref_forward(x, mask, params, *, heads, emb, depth):
    del depth
    tokens = x @ params['emb_w'] + params['emb_b'][0]
    y = tokens
    B, T, E = tokens.shape
    scale = 1.0 / (emb ** 0.25)
    maskf = mask.astype(jnp.float32)

    def ln(z, g, b):
        mu = z.mean(-1, keepdims=True)
        var = ((z - mu) ** 2).mean(-1, keepdims=True)
        return (z - mu) / jnp.sqrt(var + 1e-5) * g[0] + b[0]

    for p in params['blocks']:
        q = (y @ p['wq']).reshape(B, T, heads, emb) * scale
        k = (y @ p['wk']).reshape(B, T, heads, emb) * scale
        v = (y @ p['wv']).reshape(B, T, heads, emb)
        dot = jnp.einsum('bqhe,bkhe->bhqk', q, k)
        dot = jnp.where(maskf[:, None, None, :] == 0.0, -1e9, dot)
        a = jax.nn.softmax(dot, axis=-1)
        ctx = jnp.einsum('bhqk,bkhe->bqhe', a, v).reshape(B, T, heads * emb)
        att = ctx @ p['wu'] + p['bu'][0]
        y1 = ln(att + y, p['g1'], p['b1'])
        hid = jnp.maximum(y1 @ p['wf1'] + p['bf1'][0], 0.0)
        ff = hid @ p['wf2'] + p['bf2'][0]
        y = ln(ff + y1, p['g2'], p['b2'])
    probs = y @ params['out_w'] + params['out_b'][0]
    return probs, tokens


# ----------------------------------- main -------------------------------------

if __name__ == "__main__":
    B, T = 8, 8
    input_dim, emb, heads, depth, output_dim = 16, 32, 4, 2, 10

    key = jax.random.PRNGKey(0)
    kx, kp = jax.random.split(key)
    x = jax.random.normal(kx, (B, T, input_dim), jnp.float32)
    # mask: 1 = attend, 0 = masked key position
    mask = jnp.ones((B, T), jnp.float32)
    mask = mask.at[1, -2:].set(0.0).at[5, -3:].set(0.0)

    params = init_params(kp, input_dim, emb, heads, depth, output_dim)
    packed = pack_params(params, heads=heads, emb=emb, depth=depth,
                         output_dim=output_dim)

    fwd = jax.jit(functools.partial(transformer_forward, heads=heads, emb=emb,
                                    depth=depth, output_dim=output_dim))
    probs, tokens = fwd(x, mask, packed)
    jax.block_until_ready((probs, tokens))

    probs_ref, tok_ref = ref_forward(x, mask, params, heads=heads, emb=emb,
                                     depth=depth)
    # bf16 MXU inputs (f32 accumulation) + approximate softmax reciprocal ->
    # compare against the f32 reference with a correspondingly loose tolerance.
    assert jnp.allclose(tokens, tok_ref, atol=5e-2, rtol=5e-2), \
        float(jnp.max(jnp.abs(tokens - tok_ref)))
    assert jnp.allclose(probs, probs_ref, atol=5e-2, rtol=5e-2), \
        float(jnp.max(jnp.abs(probs - probs_ref)))

    print("KERNEL_OK")
</pallas_src>

<mosaic_0001>
module attributes {stable_mosaic.version = 11 : i64} {
  func.func @_transformer_kernel(%arg0: i32, %arg1: memref<4x8x16xf32, #tpu.memory_space<vmem>>, %arg2: memref<4x1x8xf32, #tpu.memory_space<vmem>>, %arg3: memref<16x128xbf16, #tpu.memory_space<vmem>>, %arg4: memref<1x128xf32, #tpu.memory_space<vmem>>, %arg5: memref<2x32x384xbf16, #tpu.memory_space<vmem>>, %arg6: memref<2x128x32xbf16, #tpu.memory_space<vmem>>, %arg7: memref<2x1x32xf32, #tpu.memory_space<vmem>>, %arg8: memref<2x1x32xf32, #tpu.memory_space<vmem>>, %arg9: memref<2x1x32xf32, #tpu.memory_space<vmem>>, %arg10: memref<2x32x128xbf16, #tpu.memory_space<vmem>>, %arg11: memref<2x1x128xf32, #tpu.memory_space<vmem>>, %arg12: memref<2x128x32xbf16, #tpu.memory_space<vmem>>, %arg13: memref<2x1x32xf32, #tpu.memory_space<vmem>>, %arg14: memref<2x1x32xf32, #tpu.memory_space<vmem>>, %arg15: memref<2x1x32xf32, #tpu.memory_space<vmem>>, %arg16: memref<32x128xbf16, #tpu.memory_space<vmem>>, %arg17: memref<1x128xf32, #tpu.memory_space<vmem>>, %arg18: memref<4x8x128xf32, #tpu.memory_space<vmem>>, %arg19: memref<4x8x128xf32, #tpu.memory_space<vmem>>) attributes {dimension_semantics = [#tpu.dimension_semantics<parallel>], iteration_bounds = array<i64: 2>, scalar_prefetch = 0 : i64, scratch_operands = 0 : i64, tpu.core_type = #tpu.core_type<tc>, window_params = [{transform_indices = @transform_0, window_bounds = array<i64: 4, 8, 16>}, {transform_indices = @transform_1, window_bounds = array<i64: 4, 1, 8>}, {pipeline_mode = #tpu.pipeline_mode<synchronous>, transform_indices = @transform_2, window_bounds = array<i64: 16, 128>}, {pipeline_mode = #tpu.pipeline_mode<synchronous>, transform_indices = @transform_3, window_bounds = array<i64: 1, 128>}, {pipeline_mode = #tpu.pipeline_mode<synchronous>, transform_indices = @transform_4, window_bounds = array<i64: 2, 32, 384>}, {pipeline_mode = #tpu.pipeline_mode<synchronous>, transform_indices = @transform_5, window_bounds = array<i64: 2, 128, 32>}, {pipeline_mode = #tpu.pipeline_mode<synchronous>, transform_indices = @transform_6, window_bounds = array<i64: 2, 1, 32>}, {pipeline_mode = #tpu.pipeline_mode<synchronous>, transform_indices = @transform_7, window_bounds = array<i64: 2, 1, 32>}, {pipeline_mode = #tpu.pipeline_mode<synchronous>, transform_indices = @transform_8, window_bounds = array<i64: 2, 1, 32>}, {pipeline_mode = #tpu.pipeline_mode<synchronous>, transform_indices = @transform_9, window_bounds = array<i64: 2, 32, 128>}, {pipeline_mode = #tpu.pipeline_mode<synchronous>, transform_indices = @transform_10, window_bounds = array<i64: 2, 1, 128>}, {pipeline_mode = #tpu.pipeline_mode<synchronous>, transform_indices = @transform_11, window_bounds = array<i64: 2, 128, 32>}, {pipeline_mode = #tpu.pipeline_mode<synchronous>, transform_indices = @transform_12, window_bounds = array<i64: 2, 1, 32>}, {pipeline_mode = #tpu.pipeline_mode<synchronous>, transform_indices = @transform_13, window_bounds = array<i64: 2, 1, 32>}, {pipeline_mode = #tpu.pipeline_mode<synchronous>, transform_indices = @transform_14, window_bounds = array<i64: 2, 1, 32>}, {pipeline_mode = #tpu.pipeline_mode<synchronous>, transform_indices = @transform_15, window_bounds = array<i64: 32, 128>}, {pipeline_mode = #tpu.pipeline_mode<synchronous>, transform_indices = @transform_16, window_bounds = array<i64: 1, 128>}, {transform_indices = @transform_17, window_bounds = array<i64: 4, 8, 128>}, {transform_indices = @transform_18, window_bounds = array<i64: 4, 8, 128>}]} {
    %c0 = arith.constant 0 : index
    %c0_0 = arith.constant 0 : index
    %c0_1 = arith.constant 0 : index
    %0 = vector.load %arg1[%c0, %c0_0, %c0_1] : memref<4x8x16xf32, #tpu.memory_space<vmem>>, vector<4x8x16xf32>
    %1 = vector.shape_cast %0 : vector<4x8x16xf32> to vector<32x16xf32>
    %c0_2 = arith.constant 0 : index
    %c0_3 = arith.constant 0 : index
    %c0_4 = arith.constant 0 : index
    %2 = vector.load %arg2[%c0_2, %c0_3, %c0_4] : memref<4x1x8xf32, #tpu.memory_space<vmem>>, vector<4x1x8xf32>
    %3 = arith.truncf %1 : vector<32x16xf32> to vector<32x16xbf16>
    %c0_5 = arith.constant 0 : index
    %c0_6 = arith.constant 0 : index
    %4 = vector.load %arg3[%c0_5, %c0_6] : memref<16x128xbf16, #tpu.memory_space<vmem>>, vector<16x128xbf16>
    %cst = arith.constant dense<0.000000e+00> : vector<32x128xf32>
    %5 = tpu.matmul %3, %4, %cst {dimension_numbers = #tpu.dot_dimension_numbers<[1], [0], [0], [1], [0, 0, 1, 1], [], []>} : vector<32x16xbf16>, vector<16x128xbf16>, vector<32x128xf32> -> vector<32x128xf32>
    %c0_7 = arith.constant 0 : index
    %c0_8 = arith.constant 0 : index
    %6 = vector.load %arg4[%c0_7, %c0_8] : memref<1x128xf32, #tpu.memory_space<vmem>>, vector<1x128xf32>
    %7 = vector.broadcast %6 : vector<1x128xf32> to vector<32x128xf32>
    %8 = arith.addf %5, %7 : vector<32x128xf32>
    %9 = vector.shape_cast %8 : vector<32x128xf32> to vector<4x8x128xf32>
    %c0_9 = arith.constant 0 : index
    %c0_10 = arith.constant 0 : index
    %c0_11 = arith.constant 0 : index
    %10 = vector.load %arg18[%c0_9, %c0_10, %c0_11] : memref<4x8x128xf32, #tpu.memory_space<vmem>>, vector<4x8x128xf32>
    tpu.vector_store %arg18[%c0_9, %c0_10, %c0_11], %9 {strides = array<i32>} : memref<4x8x128xf32, #tpu.memory_space<vmem>>, vector<4x8x128xf32>,
    %11 = vector.extract_strided_slice %8 {offsets = [0, 0], sizes = [32, 32], strides = [1, 1]} : vector<32x128xf32> to vector<32x32xf32>
    %12 = arith.truncf %11 : vector<32x32xf32> to vector<32x32xbf16>
    %c0_12 = arith.constant 0 : index
    %c0_13 = arith.constant 0 : index
    %c0_14 = arith.constant 0 : index
    %13 = vector.load %arg5[%c0_12, %c0_13, %c0_14] : memref<2x32x384xbf16, #tpu.memory_space<vmem>>, vector<1x32x384xbf16>
    %14 = vector.shape_cast %13 : vector<1x32x384xbf16> to vector<32x384xbf16>
    %cst_15 = arith.constant dense<0.000000e+00> : vector<32x384xf32>
    %15 = tpu.matmul %12, %14, %cst_15 {dimension_numbers = #tpu.dot_dimension_numbers<[1], [0], [0], [1], [0, 0, 1, 1], [], []>} : vector<32x32xbf16>, vector<32x384xbf16>, vector<32x384xf32> -> vector<32x384xf32>
    %16 = vector.extract_strided_slice %15 {offsets = [0, 0], sizes = [32, 128], strides = [1, 1]} : vector<32x384xf32> to vector<32x128xf32>
    %17 = vector.shape_cast %16 : vector<32x128xf32> to vector<4x8x128xf32>
    %18 = arith.truncf %17 : vector<4x8x128xf32> to vector<4x8x128xbf16>
    %19 = vector.extract_strided_slice %15 {offsets = [0, 128], sizes = [32, 128], strides = [1, 1]} : vector<32x384xf32> to vector<32x128xf32>
    %20 = vector.shape_cast %19 : vector<32x128xf32> to vector<4x8x128xf32>
    %21 = arith.truncf %20 : vector<4x8x128xf32> to vector<4x8x128xbf16>
    %22 = vector.extract_strided_slice %15 {offsets = [0, 256], sizes = [32, 128], strides = [1, 1]} : vector<32x384xf32> to vector<32x128xf32>
    %23 = vector.shape_cast %22 : vector<32x128xf32> to vector<4x8x128xf32>
    %24 = arith.truncf %23 : vector<4x8x128xf32> to vector<4x8x128xbf16>
    %25 = vector.extract_strided_slice %18 {offsets = [0, 0, 0], sizes = [4, 8, 32], strides = [1, 1, 1]} : vector<4x8x128xbf16> to vector<4x8x32xbf16>
    %26 = vector.extract_strided_slice %21 {offsets = [0, 0, 0], sizes = [4, 8, 32], strides = [1, 1, 1]} : vector<4x8x128xbf16> to vector<4x8x32xbf16>
    "tpu.trace_start"() <{level = 10 : i32, message = "bqe,bke->bqk"}> : () -> ()
    %cst_16 = arith.constant dense<0.000000e+00> : vector<4x8x8xf32>
    %27 = tpu.matmul %25, %26, %cst_16 {dimension_numbers = #tpu.dot_dimension_numbers<[2], [2], [1], [1], [0, 0, 0, 1, 1, 1], [0], [0]>} : vector<4x8x32xbf16>, vector<4x8x32xbf16>, vector<4x8x8xf32> -> vector<4x8x8xf32>
    "tpu.trace_stop"() : () -> ()
    %28 = vector.broadcast %2 : vector<4x1x8xf32> to vector<4x8x8xf32>
    %29 = arith.addf %27, %28 : vector<4x8x8xf32>
    %cst_17 = arith.constant dense<0xFF800000> : vector<4x8xf32>
    %30 = vector.multi_reduction <maximumf>, %29, %cst_17 [2] : vector<4x8x8xf32> to vector<4x8xf32>
    %31 = vector.shape_cast %30 : vector<4x8xf32> to vector<4x8x1xf32>
    %32 = vector.broadcast %31 : vector<4x8x1xf32> to vector<4x8x8xf32>
    %33 = arith.subf %29, %32 : vector<4x8x8xf32>
    %34 = math.exp %33 : vector<4x8x8xf32>
    %cst_18 = arith.constant dense<0.000000e+00> : vector<4x8xf32>
    %35 = vector.multi_reduction <add>, %34, %cst_18 [2] : vector<4x8x8xf32> to vector<4x8xf32>
    %36 = vector.shape_cast %35 : vector<4x8xf32> to vector<4x8x1xf32>
    %37 = tpu.reciprocal %36 {approx = true} : vector<4x8x1xf32> -> vector<4x8x1xf32>
    %38 = vector.broadcast %37 : vector<4x8x1xf32> to vector<4x8x8xf32>
    %39 = arith.mulf %34, %38 : vector<4x8x8xf32>
    %40 = arith.truncf %39 : vector<4x8x8xf32> to vector<4x8x8xbf16>
    %41 = vector.extract_strided_slice %24 {offsets = [0, 0, 0], sizes = [4, 8, 32], strides = [1, 1, 1]} : vector<4x8x128xbf16> to vector<4x8x32xbf16>
    "tpu.trace_start"() <{level = 10 : i32, message = "bqk,bke->bqe"}> : () -> ()
    %cst_19 = arith.constant dense<0.000000e+00> : vector<4x8x32xf32>
    %42 = tpu.matmul %40, %41, %cst_19 {dimension_numbers = #tpu.dot_dimension_numbers<[2], [1], [1], [2], [0, 0, 0, 1, 1, 2], [0], [0]>} : vector<4x8x8xbf16>, vector<4x8x32xbf16>, vector<4x8x32xf32> -> vector<4x8x32xf32>
    "tpu.trace_stop"() : () -> ()
    %43 = vector.extract_strided_slice %18 {offsets = [0, 0, 32], sizes = [4, 8, 32], strides = [1, 1, 1]} : vector<4x8x128xbf16> to vector<4x8x32xbf16>
    %44 = vector.extract_strided_slice %21 {offsets = [0, 0, 32], sizes = [4, 8, 32], strides = [1, 1, 1]} : vector<4x8x128xbf16> to vector<4x8x32xbf16>
    "tpu.trace_start"() <{level = 10 : i32, message = "bqe,bke->bqk"}> : () -> ()
    %cst_20 = arith.constant dense<0.000000e+00> : vector<4x8x8xf32>
    %45 = tpu.matmul %43, %44, %cst_20 {dimension_numbers = #tpu.dot_dimension_numbers<[2], [2], [1], [1], [0, 0, 0, 1, 1, 1], [0], [0]>} : vector<4x8x32xbf16>, vector<4x8x32xbf16>, vector<4x8x8xf32> -> vector<4x8x8xf32>
    "tpu.trace_stop"() : () -> ()
    %46 = vector.broadcast %2 : vector<4x1x8xf32> to vector<4x8x8xf32>
    %47 = arith.addf %45, %46 : vector<4x8x8xf32>
    %cst_21 = arith.constant dense<0xFF800000> : vector<4x8xf32>
    %48 = vector.multi_reduction <maximumf>, %47, %cst_21 [2] : vector<4x8x8xf32> to vector<4x8xf32>
    %49 = vector.shape_cast %48 : vector<4x8xf32> to vector<4x8x1xf32>
    %50 = vector.broadcast %49 : vector<4x8x1xf32> to vector<4x8x8xf32>
    %51 = arith.subf %47, %50 : vector<4x8x8xf32>
    %52 = math.exp %51 : vector<4x8x8xf32>
    %cst_22 = arith.constant dense<0.000000e+00> : vector<4x8xf32>
    %53 = vector.multi_reduction <add>, %52, %cst_22 [2] : vector<4x8x8xf32> to vector<4x8xf32>
    %54 = vector.shape_cast %53 : vector<4x8xf32> to vector<4x8x1xf32>
    %55 = tpu.reciprocal %54 {approx = true} : vector<4x8x1xf32> -> vector<4x8x1xf32>
    %56 = vector.broadcast %55 : vector<4x8x1xf32> to vector<4x8x8xf32>
    %57 = arith.mulf %52, %56 : vector<4x8x8xf32>
    %58 = arith.truncf %57 : vector<4x8x8xf32> to vector<4x8x8xbf16>
    %59 = vector.extract_strided_slice %24 {offsets = [0, 0, 32], sizes = [4, 8, 32], strides = [1, 1, 1]} : vector<4x8x128xbf16> to vector<4x8x32xbf16>
    "tpu.trace_start"() <{level = 10 : i32, message = "bqk,bke->bqe"}> : () -> ()
    %cst_23 = arith.constant dense<0.000000e+00> : vector<4x8x32xf32>
    %60 = tpu.matmul %58, %59, %cst_23 {dimension_numbers = #tpu.dot_dimension_numbers<[2], [1], [1], [2], [0, 0, 0, 1, 1, 2], [0], [0]>} : vector<4x8x8xbf16>, vector<4x8x32xbf16>, vector<4x8x32xf32> -> vector<4x8x32xf32>
    "tpu.trace_stop"() : () -> ()
    %61 = vector.extract_strided_slice %18 {offsets = [0, 0, 64], sizes = [4, 8, 32], strides = [1, 1, 1]} : vector<4x8x128xbf16> to vector<4x8x32xbf16>
    %62 = vector.extract_strided_slice %21 {offsets = [0, 0, 64], sizes = [4, 8, 32], strides = [1, 1, 1]} : vector<4x8x128xbf16> to vector<4x8x32xbf16>
    "tpu.trace_start"() <{level = 10 : i32, message = "bqe,bke->bqk"}> : () -> ()
    %cst_24 = arith.constant dense<0.000000e+00> : vector<4x8x8xf32>
    %63 = tpu.matmul %61, %62, %cst_24 {dimension_numbers = #tpu.dot_dimension_numbers<[2], [2], [1], [1], [0, 0, 0, 1, 1, 1], [0], [0]>} : vector<4x8x32xbf16>, vector<4x8x32xbf16>, vector<4x8x8xf32> -> vector<4x8x8xf32>
    "tpu.trace_stop"() : () -> ()
    %64 = vector.broadcast %2 : vector<4x1x8xf32> to vector<4x8x8xf32>
    %65 = arith.addf %63, %64 : vector<4x8x8xf32>
    %cst_25 = arith.constant dense<0xFF800000> : vector<4x8xf32>
    %66 = vector.multi_reduction <maximumf>, %65, %cst_25 [2] : vector<4x8x8xf32> to vector<4x8xf32>
    %67 = vector.shape_cast %66 : vector<4x8xf32> to vector<4x8x1xf32>
    %68 = vector.broadcast %67 : vector<4x8x1xf32> to vector<4x8x8xf32>
    %69 = arith.subf %65, %68 : vector<4x8x8xf32>
    %70 = math.exp %69 : vector<4x8x8xf32>
    %cst_26 = arith.constant dense<0.000000e+00> : vector<4x8xf32>
    %71 = vector.multi_reduction <add>, %70, %cst_26 [2] : vector<4x8x8xf32> to vector<4x8xf32>
    %72 = vector.shape_cast %71 : vector<4x8xf32> to vector<4x8x1xf32>
    %73 = tpu.reciprocal %72 {approx = true} : vector<4x8x1xf32> -> vector<4x8x1xf32>
    %74 = vector.broadcast %73 : vector<4x8x1xf32> to vector<4x8x8xf32>
    %75 = arith.mulf %70, %74 : vector<4x8x8xf32>
    %76 = arith.truncf %75 : vector<4x8x8xf32> to vector<4x8x8xbf16>
    %77 = vector.extract_strided_slice %24 {offsets = [0, 0, 64], sizes = [4, 8, 32], strides = [1, 1, 1]} : vector<4x8x128xbf16> to vector<4x8x32xbf16>
    "tpu.trace_start"() <{level = 10 : i32, message = "bqk,bke->bqe"}> : () -> ()
    %cst_27 = arith.constant dense<0.000000e+00> : vector<4x8x32xf32>
    %78 = tpu.matmul %76, %77, %cst_27 {dimension_numbers = #tpu.dot_dimension_numbers<[2], [1], [1], [2], [0, 0, 0, 1, 1, 2], [0], [0]>} : vector<4x8x8xbf16>, vector<4x8x32xbf16>, vector<4x8x32xf32> -> vector<4x8x32xf32>
    "tpu.trace_stop"() : () -> ()
    %79 = vector.extract_strided_slice %18 {offsets = [0, 0, 96], sizes = [4, 8, 32], strides = [1, 1, 1]} : vector<4x8x128xbf16> to vector<4x8x32xbf16>
    %80 = vector.extract_strided_slice %21 {offsets = [0, 0, 96], sizes = [4, 8, 32], strides = [1, 1, 1]} : vector<4x8x128xbf16> to vector<4x8x32xbf16>
    "tpu.trace_start"() <{level = 10 : i32, message = "bqe,bke->bqk"}> : () -> ()
    %cst_28 = arith.constant dense<0.000000e+00> : vector<4x8x8xf32>
    %81 = tpu.matmul %79, %80, %cst_28 {dimension_numbers = #tpu.dot_dimension_numbers<[2], [2], [1], [1], [0, 0, 0, 1, 1, 1], [0], [0]>} : vector<4x8x32xbf16>, vector<4x8x32xbf16>, vector<4x8x8xf32> -> vector<4x8x8xf32>
    "tpu.trace_stop"() : () -> ()
    %82 = vector.broadcast %2 : vector<4x1x8xf32> to vector<4x8x8xf32>
    %83 = arith.addf %81, %82 : vector<4x8x8xf32>
    %cst_29 = arith.constant dense<0xFF800000> : vector<4x8xf32>
    %84 = vector.multi_reduction <maximumf>, %83, %cst_29 [2] : vector<4x8x8xf32> to vector<4x8xf32>
    %85 = vector.shape_cast %84 : vector<4x8xf32> to vector<4x8x1xf32>
    %86 = vector.broadcast %85 : vector<4x8x1xf32> to vector<4x8x8xf32>
    %87 = arith.subf %83, %86 : vector<4x8x8xf32>
    %88 = math.exp %87 : vector<4x8x8xf32>
    %cst_30 = arith.constant dense<0.000000e+00> : vector<4x8xf32>
    %89 = vector.multi_reduction <add>, %88, %cst_30 [2] : vector<4x8x8xf32> to vector<4x8xf32>
    %90 = vector.shape_cast %89 : vector<4x8xf32> to vector<4x8x1xf32>
    %91 = tpu.reciprocal %90 {approx = true} : vector<4x8x1xf32> -> vector<4x8x1xf32>
    %92 = vector.broadcast %91 : vector<4x8x1xf32> to vector<4x8x8xf32>
    %93 = arith.mulf %88, %92 : vector<4x8x8xf32>
    %94 = arith.truncf %93 : vector<4x8x8xf32> to vector<4x8x8xbf16>
    %95 = vector.extract_strided_slice %24 {offsets = [0, 0, 96], sizes = [4, 8, 32], strides = [1, 1, 1]} : vector<4x8x128xbf16> to vector<4x8x32xbf16>
    "tpu.trace_start"() <{level = 10 : i32, message = "bqk,bke->bqe"}> : () -> ()
    %cst_31 = arith.constant dense<0.000000e+00> : vector<4x8x32xf32>
    %96 = tpu.matmul %94, %95, %cst_31 {dimension_numbers = #tpu.dot_dimension_numbers<[2], [1], [1], [2], [0, 0, 0, 1, 1, 2], [0], [0]>} : vector<4x8x8xbf16>, vector<4x8x32xbf16>, vector<4x8x32xf32> -> vector<4x8x32xf32>
    "tpu.trace_stop"() : () -> ()
    %97 = tpu.concatenate %42, %60, %78, %96 in 2 : vector<4x8x32xf32>, vector<4x8x32xf32>, vector<4x8x32xf32>, vector<4x8x32xf32> -> vector<4x8x128xf32>
    %98 = vector.shape_cast %97 : vector<4x8x128xf32> to vector<32x128xf32>
    %99 = arith.truncf %98 : vector<32x128xf32> to vector<32x128xbf16>
    %c0_32 = arith.constant 0 : index
    %c0_33 = arith.constant 0 : index
    %c0_34 = arith.constant 0 : index
    %100 = vector.load %arg6[%c0_32, %c0_33, %c0_34] : memref<2x128x32xbf16, #tpu.memory_space<vmem>>, vector<1x128x32xbf16>
    %101 = vector.shape_cast %100 : vector<1x128x32xbf16> to vector<128x32xbf16>
    %cst_35 = arith.constant dense<0.000000e+00> : vector<32x32xf32>
    %102 = tpu.matmul %99, %101, %cst_35 {dimension_numbers = #tpu.dot_dimension_numbers<[1], [0], [0], [1], [0, 0, 1, 1], [], []>} : vector<32x128xbf16>, vector<128x32xbf16>, vector<32x32xf32> -> vector<32x32xf32>
    %c0_36 = arith.constant 0 : index
    %c0_37 = arith.constant 0 : index
    %c0_38 = arith.constant 0 : index
    %103 = vector.load %arg7[%c0_36, %c0_37, %c0_38] : memref<2x1x32xf32, #tpu.memory_space<vmem>>, vector<1x1x32xf32>
    %104 = vector.shape_cast %103 : vector<1x1x32xf32> to vector<1x32xf32>
    %105 = vector.broadcast %104 : vector<1x32xf32> to vector<32x32xf32>
    %106 = arith.addf %102, %105 : vector<32x32xf32>
    %107 = arith.addf %106, %11 : vector<32x32xf32>
    %c0_39 = arith.constant 0 : index
    %c0_40 = arith.constant 0 : index
    %c0_41 = arith.constant 0 : index
    %108 = vector.load %arg8[%c0_39, %c0_40, %c0_41] : memref<2x1x32xf32, #tpu.memory_space<vmem>>, vector<1x1x32xf32>
    %109 = vector.shape_cast %108 : vector<1x1x32xf32> to vector<1x32xf32>
    %c0_42 = arith.constant 0 : index
    %c0_43 = arith.constant 0 : index
    %c0_44 = arith.constant 0 : index
    %110 = vector.load %arg9[%c0_42, %c0_43, %c0_44] : memref<2x1x32xf32, #tpu.memory_space<vmem>>, vector<1x1x32xf32>
    %111 = vector.shape_cast %110 : vector<1x1x32xf32> to vector<1x32xf32>
    %cst_45 = arith.constant dense<0.000000e+00> : vector<32xf32>
    %112 = vector.multi_reduction <add>, %107, %cst_45 [1] : vector<32x32xf32> to vector<32xf32>
    %113 = vector.shape_cast %112 : vector<32xf32> to vector<32x1xf32>
    %cst_46 = arith.constant 3.200000e+01 : f32
    %114 = vector.broadcast %cst_46 : f32 to vector<32x1xf32>
    %115 = arith.divf %113, %114 : vector<32x1xf32>
    %116 = arith.mulf %107, %107 : vector<32x32xf32>
    %cst_47 = arith.constant dense<0.000000e+00> : vector<32xf32>
    %117 = vector.multi_reduction <add>, %116, %cst_47 [1] : vector<32x32xf32> to vector<32xf32>
    %118 = vector.shape_cast %117 : vector<32xf32> to vector<32x1xf32>
    %cst_48 = arith.constant 3.200000e+01 : f32
    %119 = vector.broadcast %cst_48 : f32 to vector<32x1xf32>
    %120 = arith.divf %118, %119 : vector<32x1xf32>
    %121 = arith.mulf %115, %115 : vector<32x1xf32>
    %122 = arith.subf %120, %121 : vector<32x1xf32>
    %123 = vector.broadcast %115 : vector<32x1xf32> to vector<32x32xf32>
    %124 = arith.subf %107, %123 : vector<32x32xf32>
    %cst_49 = arith.constant 9.99999974E-6 : f32
    %125 = vector.broadcast %cst_49 : f32 to vector<32x1xf32>
    %126 = arith.addf %122, %125 : vector<32x1xf32>
    %127 = math.rsqrt %126 : vector<32x1xf32>
    %128 = vector.broadcast %127 : vector<32x1xf32> to vector<32x32xf32>
    %129 = arith.mulf %124, %128 : vector<32x32xf32>
    %130 = vector.broadcast %109 : vector<1x32xf32> to vector<32x32xf32>
    %131 = arith.mulf %129, %130 : vector<32x32xf32>
    %132 = vector.broadcast %111 : vector<1x32xf32> to vector<32x32xf32>
    %133 = arith.addf %131, %132 : vector<32x32xf32>
    %134 = arith.truncf %133 : vector<32x32xf32> to vector<32x32xbf16>
    %c0_50 = arith.constant 0 : index
    %c0_51 = arith.constant 0 : index
    %c0_52 = arith.constant 0 : index
    %135 = vector.load %arg10[%c0_50, %c0_51, %c0_52] : memref<2x32x128xbf16, #tpu.memory_space<vmem>>, vector<1x32x128xbf16>
    %136 = vector.shape_cast %135 : vector<1x32x128xbf16> to vector<32x128xbf16>
    %cst_53 = arith.constant dense<0.000000e+00> : vector<32x128xf32>
    %137 = tpu.matmul %134, %136, %cst_53 {dimension_numbers = #tpu.dot_dimension_numbers<[1], [0], [0], [1], [0, 0, 1, 1], [], []>} : vector<32x32xbf16>, vector<32x128xbf16>, vector<32x128xf32> -> vector<32x128xf32>
    %c0_54 = arith.constant 0 : index
    %c0_55 = arith.constant 0 : index
    %c0_56 = arith.constant 0 : index
    %138 = vector.load %arg11[%c0_54, %c0_55, %c0_56] : memref<2x1x128xf32, #tpu.memory_space<vmem>>, vector<1x1x128xf32>
    %139 = vector.shape_cast %138 : vector<1x1x128xf32> to vector<1x128xf32>
    %140 = vector.broadcast %139 : vector<1x128xf32> to vector<32x128xf32>
    %141 = arith.addf %137, %140 : vector<32x128xf32>
    %cst_57 = arith.constant 0.000000e+00 : f32
    %142 = vector.broadcast %cst_57 : f32 to vector<32x128xf32>
    %143 = arith.maximumf %141, %142 : vector<32x128xf32>
    %144 = arith.truncf %143 : vector<32x128xf32> to vector<32x128xbf16>
    %c0_58 = arith.constant 0 : index
    %c0_59 = arith.constant 0 : index
    %c0_60 = arith.constant 0 : index
    %145 = vector.load %arg12[%c0_58, %c0_59, %c0_60] : memref<2x128x32xbf16, #tpu.memory_space<vmem>>, vector<1x128x32xbf16>
    %146 = vector.shape_cast %145 : vector<1x128x32xbf16> to vector<128x32xbf16>
    %cst_61 = arith.constant dense<0.000000e+00> : vector<32x32xf32>
    %147 = tpu.matmul %144, %146, %cst_61 {dimension_numbers = #tpu.dot_dimension_numbers<[1], [0], [0], [1], [0, 0, 1, 1], [], []>} : vector<32x128xbf16>, vector<128x32xbf16>, vector<32x32xf32> -> vector<32x32xf32>
    %c0_62 = arith.constant 0 : index
    %c0_63 = arith.constant 0 : index
    %c0_64 = arith.constant 0 : index
    %148 = vector.load %arg13[%c0_62, %c0_63, %c0_64] : memref<2x1x32xf32, #tpu.memory_space<vmem>>, vector<1x1x32xf32>
    %149 = vector.shape_cast %148 : vector<1x1x32xf32> to vector<1x32xf32>
    %150 = vector.broadcast %149 : vector<1x32xf32> to vector<32x32xf32>
    %151 = arith.addf %147, %150 : vector<32x32xf32>
    %152 = arith.addf %151, %133 : vector<32x32xf32>
    %c0_65 = arith.constant 0 : index
    %c0_66 = arith.constant 0 : index
    %c0_67 = arith.constant 0 : index
    %153 = vector.load %arg14[%c0_65, %c0_66, %c0_67] : memref<2x1x32xf32, #tpu.memory_space<vmem>>, vector<1x1x32xf32>
    %154 = vector.shape_cast %153 : vector<1x1x32xf32> to vector<1x32xf32>
    %c0_68 = arith.constant 0 : index
    %c0_69 = arith.constant 0 : index
    %c0_70 = arith.constant 0 : index
    %155 = vector.load %arg15[%c0_68, %c0_69, %c0_70] : memref<2x1x32xf32, #tpu.memory_space<vmem>>, vector<1x1x32xf32>
    %156 = vector.shape_cast %155 : vector<1x1x32xf32> to vector<1x32xf32>
    %cst_71 = arith.constant dense<0.000000e+00> : vector<32xf32>
    %157 = vector.multi_reduction <add>, %152, %cst_71 [1] : vector<32x32xf32> to vector<32xf32>
    %158 = vector.shape_cast %157 : vector<32xf32> to vector<32x1xf32>
    %cst_72 = arith.constant 3.200000e+01 : f32
    %159 = vector.broadcast %cst_72 : f32 to vector<32x1xf32>
    %160 = arith.divf %158, %159 : vector<32x1xf32>
    %161 = arith.mulf %152, %152 : vector<32x32xf32>
    %cst_73 = arith.constant dense<0.000000e+00> : vector<32xf32>
    %162 = vector.multi_reduction <add>, %161, %cst_73 [1] : vector<32x32xf32> to vector<32xf32>
    %163 = vector.shape_cast %162 : vector<32xf32> to vector<32x1xf32>
    %cst_74 = arith.constant 3.200000e+01 : f32
    %164 = vector.broadcast %cst_74 : f32 to vector<32x1xf32>
    %165 = arith.divf %163, %164 : vector<32x1xf32>
    %166 = arith.mulf %160, %160 : vector<32x1xf32>
    %167 = arith.subf %165, %166 : vector<32x1xf32>
    %168 = vector.broadcast %160 : vector<32x1xf32> to vector<32x32xf32>
    %169 = arith.subf %152, %168 : vector<32x32xf32>
    %cst_75 = arith.constant 9.99999974E-6 : f32
    %170 = vector.broadcast %cst_75 : f32 to vector<32x1xf32>
    %171 = arith.addf %167, %170 : vector<32x1xf32>
    %172 = math.rsqrt %171 : vector<32x1xf32>
    %173 = vector.broadcast %172 : vector<32x1xf32> to vector<32x32xf32>
    %174 = arith.mulf %169, %173 : vector<32x32xf32>
    %175 = vector.broadcast %154 : vector<1x32xf32> to vector<32x32xf32>
    %176 = arith.mulf %174, %175 : vector<32x32xf32>
    %177 = vector.broadcast %156 : vector<1x32xf32> to vector<32x32xf32>
    %178 = arith.addf %176, %177 : vector<32x32xf32>
    %179 = arith.truncf %178 : vector<32x32xf32> to vector<32x32xbf16>
    %c1 = arith.constant 1 : index
    %c0_76 = arith.constant 0 : index
    %c0_77 = arith.constant 0 : index
    %180 = vector.load %arg5[%c1, %c0_76, %c0_77] : memref<2x32x384xbf16, #tpu.memory_space<vmem>>, vector<1x32x384xbf16>
    %181 = vector.shape_cast %180 : vector<1x32x384xbf16> to vector<32x384xbf16>
    %cst_78 = arith.constant dense<0.000000e+00> : vector<32x384xf32>
    %182 = tpu.matmul %179, %181, %cst_78 {dimension_numbers = #tpu.dot_dimension_numbers<[1], [0], [0], [1], [0, 0, 1, 1], [], []>} : vector<32x32xbf16>, vector<32x384xbf16>, vector<32x384xf32> -> vector<32x384xf32>
    %183 = vector.extract_strided_slice %182 {offsets = [0, 0], sizes = [32, 128], strides = [1, 1]} : vector<32x384xf32> to vector<32x128xf32>
    %184 = vector.shape_cast %183 : vector<32x128xf32> to vector<4x8x128xf32>
    %185 = arith.truncf %184 : vector<4x8x128xf32> to vector<4x8x128xbf16>
    %186 = vector.extract_strided_slice %182 {offsets = [0, 128], sizes = [32, 128], strides = [1, 1]} : vector<32x384xf32> to vector<32x128xf32>
    %187 = vector.shape_cast %186 : vector<32x128xf32> to vector<4x8x128xf32>
    %188 = arith.truncf %187 : vector<4x8x128xf32> to vector<4x8x128xbf16>
    %189 = vector.extract_strided_slice %182 {offsets = [0, 256], sizes = [32, 128], strides = [1, 1]} : vector<32x384xf32> to vector<32x128xf32>
    %190 = vector.shape_cast %189 : vector<32x128xf32> to vector<4x8x128xf32>
    %191 = arith.truncf %190 : vector<4x8x128xf32> to vector<4x8x128xbf16>
    %192 = vector.extract_strided_slice %185 {offsets = [0, 0, 0], sizes = [4, 8, 32], strides = [1, 1, 1]} : vector<4x8x128xbf16> to vector<4x8x32xbf16>
    %193 = vector.extract_strided_slice %188 {offsets = [0, 0, 0], sizes = [4, 8, 32], strides = [1, 1, 1]} : vector<4x8x128xbf16> to vector<4x8x32xbf16>
    "tpu.trace_start"() <{level = 10 : i32, message = "bqe,bke->bqk"}> : () -> ()
    %cst_79 = arith.constant dense<0.000000e+00> : vector<4x8x8xf32>
    %194 = tpu.matmul %192, %193, %cst_79 {dimension_numbers = #tpu.dot_dimension_numbers<[2], [2], [1], [1], [0, 0, 0, 1, 1, 1], [0], [0]>} : vector<4x8x32xbf16>, vector<4x8x32xbf16>, vector<4x8x8xf32> -> vector<4x8x8xf32>
    "tpu.trace_stop"() : () -> ()
    %195 = vector.broadcast %2 : vector<4x1x8xf32> to vector<4x8x8xf32>
    %196 = arith.addf %194, %195 : vector<4x8x8xf32>
    %cst_80 = arith.constant dense<0xFF800000> : vector<4x8xf32>
    %197 = vector.multi_reduction <maximumf>, %196, %cst_80 [2] : vector<4x8x8xf32> to vector<4x8xf32>
    %198 = vector.shape_cast %197 : vector<4x8xf32> to vector<4x8x1xf32>
    %199 = vector.broadcast %198 : vector<4x8x1xf32> to vector<4x8x8xf32>
    %200 = arith.subf %196, %199 : vector<4x8x8xf32>
    %201 = math.exp %200 : vector<4x8x8xf32>
    %cst_81 = arith.constant dense<0.000000e+00> : vector<4x8xf32>
    %202 = vector.multi_reduction <add>, %201, %cst_81 [2] : vector<4x8x8xf32> to vector<4x8xf32>
    %203 = vector.shape_cast %202 : vector<4x8xf32> to vector<4x8x1xf32>
    %204 = tpu.reciprocal %203 {approx = true} : vector<4x8x1xf32> -> vector<4x8x1xf32>
    %205 = vector.broadcast %204 : vector<4x8x1xf32> to vector<4x8x8xf32>
    %206 = arith.mulf %201, %205 : vector<4x8x8xf32>
    %207 = arith.truncf %206 : vector<4x8x8xf32> to vector<4x8x8xbf16>
    %208 = vector.extract_strided_slice %191 {offsets = [0, 0, 0], sizes = [4, 8, 32], strides = [1, 1, 1]} : vector<4x8x128xbf16> to vector<4x8x32xbf16>
    "tpu.trace_start"() <{level = 10 : i32, message = "bqk,bke->bqe"}> : () -> ()
    %cst_82 = arith.constant dense<0.000000e+00> : vector<4x8x32xf32>
    %209 = tpu.matmul %207, %208, %cst_82 {dimension_numbers = #tpu.dot_dimension_numbers<[2], [1], [1], [2], [0, 0, 0, 1, 1, 2], [0], [0]>} : vector<4x8x8xbf16>, vector<4x8x32xbf16>, vector<4x8x32xf32> -> vector<4x8x32xf32>
    "tpu.trace_stop"() : () -> ()
    %210 = vector.extract_strided_slice %185 {offsets = [0, 0, 32], sizes = [4, 8, 32], strides = [1, 1, 1]} : vector<4x8x128xbf16> to vector<4x8x32xbf16>
    %211 = vector.extract_strided_slice %188 {offsets = [0, 0, 32], sizes = [4, 8, 32], strides = [1, 1, 1]} : vector<4x8x128xbf16> to vector<4x8x32xbf16>
    "tpu.trace_start"() <{level = 10 : i32, message = "bqe,bke->bqk"}> : () -> ()
    %cst_83 = arith.constant dense<0.000000e+00> : vector<4x8x8xf32>
    %212 = tpu.matmul %210, %211, %cst_83 {dimension_numbers = #tpu.dot_dimension_numbers<[2], [2], [1], [1], [0, 0, 0, 1, 1, 1], [0], [0]>} : vector<4x8x32xbf16>, vector<4x8x32xbf16>, vector<4x8x8xf32> -> vector<4x8x8xf32>
    "tpu.trace_stop"() : () -> ()
    %213 = vector.broadcast %2 : vector<4x1x8xf32> to vector<4x8x8xf32>
    %214 = arith.addf %212, %213 : vector<4x8x8xf32>
    %cst_84 = arith.constant dense<0xFF800000> : vector<4x8xf32>
    %215 = vector.multi_reduction <maximumf>, %214, %cst_84 [2] : vector<4x8x8xf32> to vector<4x8xf32>
    %216 = vector.shape_cast %215 : vector<4x8xf32> to vector<4x8x1xf32>
    %217 = vector.broadcast %216 : vector<4x8x1xf32> to vector<4x8x8xf32>
    %218 = arith.subf %214, %217 : vector<4x8x8xf32>
    %219 = math.exp %218 : vector<4x8x8xf32>
    %cst_85 = arith.constant dense<0.000000e+00> : vector<4x8xf32>
    %220 = vector.multi_reduction <add>, %219, %cst_85 [2] : vector<4x8x8xf32> to vector<4x8xf32>
    %221 = vector.shape_cast %220 : vector<4x8xf32> to vector<4x8x1xf32>
    %222 = tpu.reciprocal %221 {approx = true} : vector<4x8x1xf32> -> vector<4x8x1xf32>
    %223 = vector.broadcast %222 : vector<4x8x1xf32> to vector<4x8x8xf32>
    %224 = arith.mulf %219, %223 : vector<4x8x8xf32>
    %225 = arith.truncf %224 : vector<4x8x8xf32> to vector<4x8x8xbf16>
    %226 = vector.extract_strided_slice %191 {offsets = [0, 0, 32], sizes = [4, 8, 32], strides = [1, 1, 1]} : vector<4x8x128xbf16> to vector<4x8x32xbf16>
    "tpu.trace_start"() <{level = 10 : i32, message = "bqk,bke->bqe"}> : () -> ()
    %cst_86 = arith.constant dense<0.000000e+00> : vector<4x8x32xf32>
    %227 = tpu.matmul %225, %226, %cst_86 {dimension_numbers = #tpu.dot_dimension_numbers<[2], [1], [1], [2], [0, 0, 0, 1, 1, 2], [0], [0]>} : vector<4x8x8xbf16>, vector<4x8x32xbf16>, vector<4x8x32xf32> -> vector<4x8x32xf32>
    "tpu.trace_stop"() : () -> ()
    %228 = vector.extract_strided_slice %185 {offsets = [0, 0, 64], sizes = [4, 8, 32], strides = [1, 1, 1]} : vector<4x8x128xbf16> to vector<4x8x32xbf16>
    %229 = vector.extract_strided_slice %188 {offsets = [0, 0, 64], sizes = [4, 8, 32], strides = [1, 1, 1]} : vector<4x8x128xbf16> to vector<4x8x32xbf16>
    "tpu.trace_start"() <{level = 10 : i32, message = "bqe,bke->bqk"}> : () -> ()
    %cst_87 = arith.constant dense<0.000000e+00> : vector<4x8x8xf32>
    %230 = tpu.matmul %228, %229, %cst_87 {dimension_numbers = #tpu.dot_dimension_numbers<[2], [2], [1], [1], [0, 0, 0, 1, 1, 1], [0], [0]>} : vector<4x8x32xbf16>, vector<4x8x32xbf16>, vector<4x8x8xf32> -> vector<4x8x8xf32>
    "tpu.trace_stop"() : () -> ()
    %231 = vector.broadcast %2 : vector<4x1x8xf32> to vector<4x8x8xf32>
    %232 = arith.addf %230, %231 : vector<4x8x8xf32>
    %cst_88 = arith.constant dense<0xFF800000> : vector<4x8xf32>
    %233 = vector.multi_reduction <maximumf>, %232, %cst_88 [2] : vector<4x8x8xf32> to vector<4x8xf32>
    %234 = vector.shape_cast %233 : vector<4x8xf32> to vector<4x8x1xf32>
    %235 = vector.broadcast %234 : vector<4x8x1xf32> to vector<4x8x8xf32>
    %236 = arith.subf %232, %235 : vector<4x8x8xf32>
    %237 = math.exp %236 : vector<4x8x8xf32>
    %cst_89 = arith.constant dense<0.000000e+00> : vector<4x8xf32>
    %238 = vector.multi_reduction <add>, %237, %cst_89 [2] : vector<4x8x8xf32> to vector<4x8xf32>
    %239 = vector.shape_cast %238 : vector<4x8xf32> to vector<4x8x1xf32>
    %240 = tpu.reciprocal %239 {approx = true} : vector<4x8x1xf32> -> vector<4x8x1xf32>
    %241 = vector.broadcast %240 : vector<4x8x1xf32> to vector<4x8x8xf32>
    %242 = arith.mulf %237, %241 : vector<4x8x8xf32>
    %243 = arith.truncf %242 : vector<4x8x8xf32> to vector<4x8x8xbf16>
    %244 = vector.extract_strided_slice %191 {offsets = [0, 0, 64], sizes = [4, 8, 32], strides = [1, 1, 1]} : vector<4x8x128xbf16> to vector<4x8x32xbf16>
    "tpu.trace_start"() <{level = 10 : i32, message = "bqk,bke->bqe"}> : () -> ()
    %cst_90 = arith.constant dense<0.000000e+00> : vector<4x8x32xf32>
    %245 = tpu.matmul %243, %244, %cst_90 {dimension_numbers = #tpu.dot_dimension_numbers<[2], [1], [1], [2], [0, 0, 0, 1, 1, 2], [0], [0]>} : vector<4x8x8xbf16>, vector<4x8x32xbf16>, vector<4x8x32xf32> -> vector<4x8x32xf32>
    "tpu.trace_stop"() : () -> ()
    %246 = vector.extract_strided_slice %185 {offsets = [0, 0, 96], sizes = [4, 8, 32], strides = [1, 1, 1]} : vector<4x8x128xbf16> to vector<4x8x32xbf16>
    %247 = vector.extract_strided_slice %188 {offsets = [0, 0, 96], sizes = [4, 8, 32], strides = [1, 1, 1]} : vector<4x8x128xbf16> to vector<4x8x32xbf16>
    "tpu.trace_start"() <{level = 10 : i32, message = "bqe,bke->bqk"}> : () -> ()
    %cst_91 = arith.constant dense<0.000000e+00> : vector<4x8x8xf32>
    %248 = tpu.matmul %246, %247, %cst_91 {dimension_numbers = #tpu.dot_dimension_numbers<[2], [2], [1], [1], [0, 0, 0, 1, 1, 1], [0], [0]>} : vector<4x8x32xbf16>, vector<4x8x32xbf16>, vector<4x8x8xf32> -> vector<4x8x8xf32>
    "tpu.trace_stop"() : () -> ()
    %249 = vector.broadcast %2 : vector<4x1x8xf32> to vector<4x8x8xf32>
    %250 = arith.addf %248, %249 : vector<4x8x8xf32>
    %cst_92 = arith.constant dense<0xFF800000> : vector<4x8xf32>
    %251 = vector.multi_reduction <maximumf>, %250, %cst_92 [2] : vector<4x8x8xf32> to vector<4x8xf32>
    %252 = vector.shape_cast %251 : vector<4x8xf32> to vector<4x8x1xf32>
    %253 = vector.broadcast %252 : vector<4x8x1xf32> to vector<4x8x8xf32>
    %254 = arith.subf %250, %253 : vector<4x8x8xf32>
    %255 = math.exp %254 : vector<4x8x8xf32>
    %cst_93 = arith.constant dense<0.000000e+00> : vector<4x8xf32>
    %256 = vector.multi_reduction <add>, %255, %cst_93 [2] : vector<4x8x8xf32> to vector<4x8xf32>
    %257 = vector.shape_cast %256 : vector<4x8xf32> to vector<4x8x1xf32>
    %258 = tpu.reciprocal %257 {approx = true} : vector<4x8x1xf32> -> vector<4x8x1xf32>
    %259 = vector.broadcast %258 : vector<4x8x1xf32> to vector<4x8x8xf32>
    %260 = arith.mulf %255, %259 : vector<4x8x8xf32>
    %261 = arith.truncf %260 : vector<4x8x8xf32> to vector<4x8x8xbf16>
    %262 = vector.extract_strided_slice %191 {offsets = [0, 0, 96], sizes = [4, 8, 32], strides = [1, 1, 1]} : vector<4x8x128xbf16> to vector<4x8x32xbf16>
    "tpu.trace_start"() <{level = 10 : i32, message = "bqk,bke->bqe"}> : () -> ()
    %cst_94 = arith.constant dense<0.000000e+00> : vector<4x8x32xf32>
    %263 = tpu.matmul %261, %262, %cst_94 {dimension_numbers = #tpu.dot_dimension_numbers<[2], [1], [1], [2], [0, 0, 0, 1, 1, 2], [0], [0]>} : vector<4x8x8xbf16>, vector<4x8x32xbf16>, vector<4x8x32xf32> -> vector<4x8x32xf32>
    "tpu.trace_stop"() : () -> ()
    %264 = tpu.concatenate %209, %227, %245, %263 in 2 : vector<4x8x32xf32>, vector<4x8x32xf32>, vector<4x8x32xf32>, vector<4x8x32xf32> -> vector<4x8x128xf32>
    %265 = vector.shape_cast %264 : vector<4x8x128xf32> to vector<32x128xf32>
    %266 = arith.truncf %265 : vector<32x128xf32> to vector<32x128xbf16>
    %c1_95 = arith.constant 1 : index
    %c0_96 = arith.constant 0 : index
    %c0_97 = arith.constant 0 : index
    %267 = vector.load %arg6[%c1_95, %c0_96, %c0_97] : memref<2x128x32xbf16, #tpu.memory_space<vmem>>, vector<1x128x32xbf16>
    %268 = vector.shape_cast %267 : vector<1x128x32xbf16> to vector<128x32xbf16>
    %cst_98 = arith.constant dense<0.000000e+00> : vector<32x32xf32>
    %269 = tpu.matmul %266, %268, %cst_98 {dimension_numbers = #tpu.dot_dimension_numbers<[1], [0], [0], [1], [0, 0, 1, 1], [], []>} : vector<32x128xbf16>, vector<128x32xbf16>, vector<32x32xf32> -> vector<32x32xf32>
    %c1_99 = arith.constant 1 : index
    %c0_100 = arith.constant 0 : index
    %c0_101 = arith.constant 0 : index
    %270 = vector.load %arg7[%c1_99, %c0_100, %c0_101] : memref<2x1x32xf32, #tpu.memory_space<vmem>>, vector<1x1x32xf32>
    %271 = vector.shape_cast %270 : vector<1x1x32xf32> to vector<1x32xf32>
    %272 = vector.broadcast %271 : vector<1x32xf32> to vector<32x32xf32>
    %273 = arith.addf %269, %272 : vector<32x32xf32>
    %274 = arith.addf %273, %178 : vector<32x32xf32>
    %c1_102 = arith.constant 1 : index
    %c0_103 = arith.constant 0 : index
    %c0_104 = arith.constant 0 : index
    %275 = vector.load %arg8[%c1_102, %c0_103, %c0_104] : memref<2x1x32xf32, #tpu.memory_space<vmem>>, vector<1x1x32xf32>
    %276 = vector.shape_cast %275 : vector<1x1x32xf32> to vector<1x32xf32>
    %c1_105 = arith.constant 1 : index
    %c0_106 = arith.constant 0 : index
    %c0_107 = arith.constant 0 : index
    %277 = vector.load %arg9[%c1_105, %c0_106, %c0_107] : memref<2x1x32xf32, #tpu.memory_space<vmem>>, vector<1x1x32xf32>
    %278 = vector.shape_cast %277 : vector<1x1x32xf32> to vector<1x32xf32>
    %cst_108 = arith.constant dense<0.000000e+00> : vector<32xf32>
    %279 = vector.multi_reduction <add>, %274, %cst_108 [1] : vector<32x32xf32> to vector<32xf32>
    %280 = vector.shape_cast %279 : vector<32xf32> to vector<32x1xf32>
    %cst_109 = arith.constant 3.200000e+01 : f32
    %281 = vector.broadcast %cst_109 : f32 to vector<32x1xf32>
    %282 = arith.divf %280, %281 : vector<32x1xf32>
    %283 = arith.mulf %274, %274 : vector<32x32xf32>
    %cst_110 = arith.constant dense<0.000000e+00> : vector<32xf32>
    %284 = vector.multi_reduction <add>, %283, %cst_110 [1] : vector<32x32xf32> to vector<32xf32>
    %285 = vector.shape_cast %284 : vector<32xf32> to vector<32x1xf32>
    %cst_111 = arith.constant 3.200000e+01 : f32
    %286 = vector.broadcast %cst_111 : f32 to vector<32x1xf32>
    %287 = arith.divf %285, %286 : vector<32x1xf32>
    %288 = arith.mulf %282, %282 : vector<32x1xf32>
    %289 = arith.subf %287, %288 : vector<32x1xf32>
    %290 = vector.broadcast %282 : vector<32x1xf32> to vector<32x32xf32>
    %291 = arith.subf %274, %290 : vector<32x32xf32>
    %cst_112 = arith.constant 9.99999974E-6 : f32
    %292 = vector.broadcast %cst_112 : f32 to vector<32x1xf32>
    %293 = arith.addf %289, %292 : vector<32x1xf32>
    %294 = math.rsqrt %293 : vector<32x1xf32>
    %295 = vector.broadcast %294 : vector<32x1xf32> to vector<32x32xf32>
    %296 = arith.mulf %291, %295 : vector<32x32xf32>
    %297 = vector.broadcast %276 : vector<1x32xf32> to vector<32x32xf32>
    %298 = arith.mulf %296, %297 : vector<32x32xf32>
    %299 = vector.broadcast %278 : vector<1x32xf32> to vector<32x32xf32>
    %300 = arith.addf %298, %299 : vector<32x32xf32>
    %301 = arith.truncf %300 : vector<32x32xf32> to vector<32x32xbf16>
    %c1_113 = arith.constant 1 : index
    %c0_114 = arith.constant 0 : index
    %c0_115 = arith.constant 0 : index
    %302 = vector.load %arg10[%c1_113, %c0_114, %c0_115] : memref<2x32x128xbf16, #tpu.memory_space<vmem>>, vector<1x32x128xbf16>
    %303 = vector.shape_cast %302 : vector<1x32x128xbf16> to vector<32x128xbf16>
    %cst_116 = arith.constant dense<0.000000e+00> : vector<32x128xf32>
    %304 = tpu.matmul %301, %303, %cst_116 {dimension_numbers = #tpu.dot_dimension_numbers<[1], [0], [0], [1], [0, 0, 1, 1], [], []>} : vector<32x32xbf16>, vector<32x128xbf16>, vector<32x128xf32> -> vector<32x128xf32>
    %c1_117 = arith.constant 1 : index
    %c0_118 = arith.constant 0 : index
    %c0_119 = arith.constant 0 : index
    %305 = vector.load %arg11[%c1_117, %c0_118, %c0_119] : memref<2x1x128xf32, #tpu.memory_space<vmem>>, vector<1x1x128xf32>
    %306 = vector.shape_cast %305 : vector<1x1x128xf32> to vector<1x128xf32>
    %307 = vector.broadcast %306 : vector<1x128xf32> to vector<32x128xf32>
    %308 = arith.addf %304, %307 : vector<32x128xf32>
    %cst_120 = arith.constant 0.000000e+00 : f32
    %309 = vector.broadcast %cst_120 : f32 to vector<32x128xf32>
    %310 = arith.maximumf %308, %309 : vector<32x128xf32>
    %311 = arith.truncf %310 : vector<32x128xf32> to vector<32x128xbf16>
    %c1_121 = arith.constant 1 : index
    %c0_122 = arith.constant 0 : index
    %c0_123 = arith.constant 0 : index
    %312 = vector.load %arg12[%c1_121, %c0_122, %c0_123] : memref<2x128x32xbf16, #tpu.memory_space<vmem>>, vector<1x128x32xbf16>
    %313 = vector.shape_cast %312 : vector<1x128x32xbf16> to vector<128x32xbf16>
    %cst_124 = arith.constant dense<0.000000e+00> : vector<32x32xf32>
    %314 = tpu.matmul %311, %313, %cst_124 {dimension_numbers = #tpu.dot_dimension_numbers<[1], [0], [0], [1], [0, 0, 1, 1], [], []>} : vector<32x128xbf16>, vector<128x32xbf16>, vector<32x32xf32> -> vector<32x32xf32>
    %c1_125 = arith.constant 1 : index
    %c0_126 = arith.constant 0 : index
    %c0_127 = arith.constant 0 : index
    %315 = vector.load %arg13[%c1_125, %c0_126, %c0_127] : memref<2x1x32xf32, #tpu.memory_space<vmem>>, vector<1x1x32xf32>
    %316 = vector.shape_cast %315 : vector<1x1x32xf32> to vector<1x32xf32>
    %317 = vector.broadcast %316 : vector<1x32xf32> to vector<32x32xf32>
    %318 = arith.addf %314, %317 : vector<32x32xf32>
    %319 = arith.addf %318, %300 : vector<32x32xf32>
    %c1_128 = arith.constant 1 : index
    %c0_129 = arith.constant 0 : index
    %c0_130 = arith.constant 0 : index
    %320 = vector.load %arg14[%c1_128, %c0_129, %c0_130] : memref<2x1x32xf32, #tpu.memory_space<vmem>>, vector<1x1x32xf32>
    %321 = vector.shape_cast %320 : vector<1x1x32xf32> to vector<1x32xf32>
    %c1_131 = arith.constant 1 : index
    %c0_132 = arith.constant 0 : index
    %c0_133 = arith.constant 0 : index
    %322 = vector.load %arg15[%c1_131, %c0_132, %c0_133] : memref<2x1x32xf32, #tpu.memory_space<vmem>>, vector<1x1x32xf32>
    %323 = vector.shape_cast %322 : vector<1x1x32xf32> to vector<1x32xf32>
    %cst_134 = arith.constant dense<0.000000e+00> : vector<32xf32>
    %324 = vector.multi_reduction <add>, %319, %cst_134 [1] : vector<32x32xf32> to vector<32xf32>
    %325 = vector.shape_cast %324 : vector<32xf32> to vector<32x1xf32>
    %cst_135 = arith.constant 3.200000e+01 : f32
    %326 = vector.broadcast %cst_135 : f32 to vector<32x1xf32>
    %327 = arith.divf %325, %326 : vector<32x1xf32>
    %328 = arith.mulf %319, %319 : vector<32x32xf32>
    %cst_136 = arith.constant dense<0.000000e+00> : vector<32xf32>
    %329 = vector.multi_reduction <add>, %328, %cst_136 [1] : vector<32x32xf32> to vector<32xf32>
    %330 = vector.shape_cast %329 : vector<32xf32> to vector<32x1xf32>
    %cst_137 = arith.constant 3.200000e+01 : f32
    %331 = vector.broadcast %cst_137 : f32 to vector<32x1xf32>
    %332 = arith.divf %330, %331 : vector<32x1xf32>
    %333 = arith.mulf %327, %327 : vector<32x1xf32>
    %334 = arith.subf %332, %333 : vector<32x1xf32>
    %335 = vector.broadcast %327 : vector<32x1xf32> to vector<32x32xf32>
    %336 = arith.subf %319, %335 : vector<32x32xf32>
    %cst_138 = arith.constant 9.99999974E-6 : f32
    %337 = vector.broadcast %cst_138 : f32 to vector<32x1xf32>
    %338 = arith.addf %334, %337 : vector<32x1xf32>
    %339 = math.rsqrt %338 : vector<32x1xf32>
    %340 = vector.broadcast %339 : vector<32x1xf32> to vector<32x32xf32>
    %341 = arith.mulf %336, %340 : vector<32x32xf32>
    %342 = vector.broadcast %321 : vector<1x32xf32> to vector<32x32xf32>
    %343 = arith.mulf %341, %342 : vector<32x32xf32>
    %344 = vector.broadcast %323 : vector<1x32xf32> to vector<32x32xf32>
    %345 = arith.addf %343, %344 : vector<32x32xf32>
    %346 = arith.truncf %345 : vector<32x32xf32> to vector<32x32xbf16>
    %c0_139 = arith.constant 0 : index
    %c0_140 = arith.constant 0 : index
    %347 = vector.load %arg16[%c0_139, %c0_140] : memref<32x128xbf16, #tpu.memory_space<vmem>>, vector<32x128xbf16>
    %cst_141 = arith.constant dense<0.000000e+00> : vector<32x128xf32>
    %348 = tpu.matmul %346, %347, %cst_141 {dimension_numbers = #tpu.dot_dimension_numbers<[1], [0], [0], [1], [0, 0, 1, 1], [], []>} : vector<32x32xbf16>, vector<32x128xbf16>, vector<32x128xf32> -> vector<32x128xf32>
    %c0_142 = arith.constant 0 : index
    %c0_143 = arith.constant 0 : index
    %349 = vector.load %arg17[%c0_142, %c0_143] : memref<1x128xf32, #tpu.memory_space<vmem>>, vector<1x128xf32>
    %350 = vector.broadcast %349 : vector<1x128xf32> to vector<32x128xf32>
    %351 = arith.addf %348, %350 : vector<32x128xf32>
    %352 = vector.shape_cast %351 : vector<32x128xf32> to vector<4x8x128xf32>
    %c0_144 = arith.constant 0 : index
    %c0_145 = arith.constant 0 : index
    %c0_146 = arith.constant 0 : index
    %353 = vector.load %arg19[%c0_144, %c0_145, %c0_146] : memref<4x8x128xf32, #tpu.memory_space<vmem>>, vector<4x8x128xf32>
    tpu.vector_store %arg19[%c0_144, %c0_145, %c0_146], %352 {strides = array<i32>} : memref<4x8x128xf32, #tpu.memory_space<vmem>>, vector<4x8x128xf32>,
    return
  }
  func.func @transform_0(%arg0: i32) -> (i32, i32, i32) {
    %c0_i32 = arith.constant 0 : i32
    %c0_i32_0 = arith.constant 0 : i32
    %c0_i32_1 = arith.constant 0 : i32
    return %arg0, %c0_i32, %c0_i32_0 : i32, i32, i32
  }
  func.func @transform_1(%arg0: i32) -> (i32, i32, i32) {
    %c0_i32 = arith.constant 0 : i32
    %c0_i32_0 = arith.constant 0 : i32
    %c0_i32_1 = arith.constant 0 : i32
    return %arg0, %c0_i32, %c0_i32_0 : i32, i32, i32
  }
  func.func @transform_2(%arg0: i32) -> (i32, i32) {
    %c0_i32 = arith.constant 0 : i32
    %c0_i32_0 = arith.constant 0 : i32
    %c0_i32_1 = arith.constant 0 : i32
    return %c0_i32, %c0_i32_0 : i32, i32
  }
  func.func @transform_3(%arg0: i32) -> (i32, i32) {
    %c0_i32 = arith.constant 0 : i32
    %c0_i32_0 = arith.constant 0 : i32
    %c0_i32_1 = arith.constant 0 : i32
    return %c0_i32, %c0_i32_0 : i32, i32
  }
  func.func @transform_4(%arg0: i32) -> (i32, i32, i32) {
    %c0_i32 = arith.constant 0 : i32
    %c0_i32_0 = arith.constant 0 : i32
    %c0_i32_1 = arith.constant 0 : i32
    %c0_i32_2 = arith.constant 0 : i32
    return %c0_i32, %c0_i32_0, %c0_i32_1 : i32, i32, i32
  }
  func.func @transform_5(%arg0: i32) -> (i32, i32, i32) {
    %c0_i32 = arith.constant 0 : i32
    %c0_i32_0 = arith.constant 0 : i32
    %c0_i32_1 = arith.constant 0 : i32
    %c0_i32_2 = arith.constant 0 : i32
    return %c0_i32, %c0_i32_0, %c0_i32_1 : i32, i32, i32
  }
  func.func @transform_6(%arg0: i32) -> (i32, i32, i32) {
    %c0_i32 = arith.constant 0 : i32
    %c0_i32_0 = arith.constant 0 : i32
    %c0_i32_1 = arith.constant 0 : i32
    %c0_i32_2 = arith.constant 0 : i32
    return %c0_i32, %c0_i32_0, %c0_i32_1 : i32, i32, i32
  }
  func.func @transform_7(%arg0: i32) -> (i32, i32, i32) {
    %c0_i32 = arith.constant 0 : i32
    %c0_i32_0 = arith.constant 0 : i32
    %c0_i32_1 = arith.constant 0 : i32
    %c0_i32_2 = arith.constant 0 : i32
    return %c0_i32, %c0_i32_0, %c0_i32_1 : i32, i32, i32
  }
  func.func @transform_8(%arg0: i32) -> (i32, i32, i32) {
    %c0_i32 = arith.constant 0 : i32
    %c0_i32_0 = arith.constant 0 : i32
    %c0_i32_1 = arith.constant 0 : i32
    %c0_i32_2 = arith.constant 0 : i32
    return %c0_i32, %c0_i32_0, %c0_i32_1 : i32, i32, i32
  }
  func.func @transform_9(%arg0: i32) -> (i32, i32, i32) {
    %c0_i32 = arith.constant 0 : i32
    %c0_i32_0 = arith.constant 0 : i32
    %c0_i32_1 = arith.constant 0 : i32
    %c0_i32_2 = arith.constant 0 : i32
    return %c0_i32, %c0_i32_0, %c0_i32_1 : i32, i32, i32
  }
  func.func @transform_10(%arg0: i32) -> (i32, i32, i32) {
    %c0_i32 = arith.constant 0 : i32
    %c0_i32_0 = arith.constant 0 : i32
    %c0_i32_1 = arith.constant 0 : i32
    %c0_i32_2 = arith.constant 0 : i32
    return %c0_i32, %c0_i32_0, %c0_i32_1 : i32, i32, i32
  }
  func.func @transform_11(%arg0: i32) -> (i32, i32, i32) {
    %c0_i32 = arith.constant 0 : i32
    %c0_i32_0 = arith.constant 0 : i32
    %c0_i32_1 = arith.constant 0 : i32
    %c0_i32_2 = arith.constant 0 : i32
    return %c0_i32, %c0_i32_0, %c0_i32_1 : i32, i32, i32
  }
  func.func @transform_12(%arg0: i32) -> (i32, i32, i32) {
    %c0_i32 = arith.constant 0 : i32
    %c0_i32_0 = arith.constant 0 : i32
    %c0_i32_1 = arith.constant 0 : i32
    %c0_i32_2 = arith.constant 0 : i32
    return %c0_i32, %c0_i32_0, %c0_i32_1 : i32, i32, i32
  }
  func.func @transform_13(%arg0: i32) -> (i32, i32, i32) {
    %c0_i32 = arith.constant 0 : i32
    %c0_i32_0 = arith.constant 0 : i32
    %c0_i32_1 = arith.constant 0 : i32
    %c0_i32_2 = arith.constant 0 : i32
    return %c0_i32, %c0_i32_0, %c0_i32_1 : i32, i32, i32
  }
  func.func @transform_14(%arg0: i32) -> (i32, i32, i32) {
    %c0_i32 = arith.constant 0 : i32
    %c0_i32_0 = arith.constant 0 : i32
    %c0_i32_1 = arith.constant 0 : i32
    %c0_i32_2 = arith.constant 0 : i32
    return %c0_i32, %c0_i32_0, %c0_i32_1 : i32, i32, i32
  }
  func.func @transform_15(%arg0: i32) -> (i32, i32) {
    %c0_i32 = arith.constant 0 : i32
    %c0_i32_0 = arith.constant 0 : i32
    %c0_i32_1 = arith.constant 0 : i32
    return %c0_i32, %c0_i32_0 : i32, i32
  }
  func.func @transform_16(%arg0: i32) -> (i32, i32) {
    %c0_i32 = arith.constant 0 : i32
    %c0_i32_0 = arith.constant 0 : i32
    %c0_i32_1 = arith.constant 0 : i32
    return %c0_i32, %c0_i32_0 : i32, i32
  }
  func.func @transform_17(%arg0: i32) -> (i32, i32, i32) {
    %c0_i32 = arith.constant 0 : i32
    %c0_i32_0 = arith.constant 0 : i32
    %c0_i32_1 = arith.constant 0 : i32
    return %arg0, %c0_i32, %c0_i32_0 : i32, i32, i32
  }
  func.func @transform_18(%arg0: i32) -> (i32, i32, i32) {
    %c0_i32 = arith.constant 0 : i32
    %c0_i32_0 = arith.constant 0 : i32
    %c0_i32_1 = arith.constant 0 : i32
    return %arg0, %c0_i32, %c0_i32_0 : i32, i32, i32
  }
}

</mosaic_0001>

<llo_original>
// kernel: transformer_forward.1
$region0: #{transformer_forward.1}
  #allocation0 [shape = 'u32[]', space=smem, size = 0x4, offset = 0x4, fixed_abs, tag = 'smem constant byte address 0x4 - core index']
  #allocation1 [shape = 'u32[144,128]{1,0:T(1,128)}', space=vmem, size = 0x12000, scoped, tag = 'internal scratch']
  %s0 = inlined_call_operand.vmem [shape: f32[8,8,16], index: 0, kind: input, shape index: {}]
  %s1 = inlined_call_operand.vmem [shape: f32[8,1,8], index: 1, kind: input, shape index: {}]
  %s2 = inlined_call_operand.vmem [shape: bf16[16,128], index: 2, kind: input, shape index: {}]
  %s3 = inlined_call_operand.vmem [shape: f32[1,128], index: 3, kind: input, shape index: {}]
  %s4 = inlined_call_operand.vmem [shape: bf16[2,32,384], index: 4, kind: input, shape index: {}]
  %s5 = inlined_call_operand.vmem [shape: bf16[2,128,32], index: 5, kind: input, shape index: {}]
  %s6 = inlined_call_operand.vmem [shape: f32[2,1,32], index: 6, kind: input, shape index: {}]
  %s7 = inlined_call_operand.vmem [shape: f32[2,1,32], index: 7, kind: input, shape index: {}]
  %s8 = inlined_call_operand.vmem [shape: f32[2,1,32], index: 8, kind: input, shape index: {}]
  %s9 = inlined_call_operand.vmem [shape: bf16[2,32,128], index: 9, kind: input, shape index: {}]
  %s10 = inlined_call_operand.vmem [shape: f32[2,1,128], index: 10, kind: input, shape index: {}]
  %s11 = inlined_call_operand.vmem [shape: bf16[2,128,32], index: 11, kind: input, shape index: {}]
  %s12 = inlined_call_operand.vmem [shape: f32[2,1,32], index: 12, kind: input, shape index: {}]
  %s13 = inlined_call_operand.vmem [shape: f32[2,1,32], index: 13, kind: input, shape index: {}]
  %s14 = inlined_call_operand.vmem [shape: f32[2,1,32], index: 14, kind: input, shape index: {}]
  %s15 = inlined_call_operand.vmem [shape: bf16[32,128], index: 15, kind: input, shape index: {}]
  %s16 = inlined_call_operand.vmem [shape: f32[1,128], index: 16, kind: input, shape index: {}]
  %s17 = inlined_call_operand.hbm [shape: f32[8,8,128], index: 17, kind: output, shape index: {0}]
  %s18 = inlined_call_operand.hbm [shape: f32[8,8,128], index: 18, kind: output, shape index: {1}]
  %19 = xla_tuple %s17, %s18
  %s20 = sld [smem:[#allocation0]]
  $region109: #{transformer_forward.1} parent=0
    _
  %s22 = ssub.s32 1, %s20
  %s23 = scalar_select 0, %s22, %s20
  $region1: #{transformer_forward.1} parent=0
    #allocation2 [shape = 'u8[32768]{0}', space=vmem, size = 0x8000, scoped, tag = 'output window, operand 0']
    #allocation3 [shape = 's32[2]{0}', space=sflag, size = 0x8, scoped, tag = 'scoped memory for transformer_forward.1']
    #allocation4 [shape = 'u8[32768]{0}', space=vmem, size = 0x8000, scoped, tag = 'output window, operand 1']
    #allocation5 [shape = 's32[2]{0}', space=sflag, size = 0x8, scoped, tag = 'scoped memory for transformer_forward.1']
    %24 = vsyncpa [#allocation3], 0
    %s25 = scalar_lea.sflag [#allocation3], 1
    %26 = vsyncpa %s25, 0
    %27 = vsyncpa [#allocation5], 0
    %s28 = scalar_lea.sflag [#allocation5], 1
    %29 = vsyncpa %s28, 0
    loop: start=0, step=1, limit=4
    $region2: #{transformer_forward.1} parent=1 // loop_pre_header
      _
    $region3: #{transformer_forward.1} parent=1 // loop_header
      %s31 = sphi 0, %s35
      %p32 = scmp.ge.s32.totalorder %s31, 4
      %s41 = sphi 0, %s43
      %s44 = sphi 0, %s41
      %s45 = sphi 0, %s44
      %s61 = sphi 0, %s45
      %s67 = sphi 0, %s69
      %s70 = sphi 0, %s67
      %s71 = sphi 0, %s70
      %s87 = sphi 0, %s71
      %s91 = sphi 0, %s91
      %s93 = sphi 0, %s91
      %s94 = sphi 0, %s93
      %s108 = sphi 0, %s94
      %s112 = sphi 0, %s112
      %s114 = sphi 0, %s112
      %s115 = sphi 0, %s114
      %s129 = sphi 0, %s115
      %s133 = sphi 0, %s133
      %s135 = sphi 0, %s133
      %s136 = sphi 0, %s135
      %s150 = sphi 0, %s136
      %s154 = sphi 0, %s154
      %s156 = sphi 0, %s154
      %s157 = sphi 0, %s156
      %s171 = sphi 0, %s157
      %s175 = sphi 0, %s175
      %s177 = sphi 0, %s175
      %s178 = sphi 0, %s177
      %s192 = sphi 0, %s178
      %s196 = sphi 0, %s196
      %s198 = sphi 0, %s196
      %s199 = sphi 0, %s198
      %s213 = sphi 0, %s199
      %s217 = sphi 0, %s217
      %s219 = sphi 0, %s217
      %s220 = sphi 0, %s219
      %s234 = sphi 0, %s220
      %s238 = sphi 0, %s238
      %s240 = sphi 0, %s238
      %s241 = sphi 0, %s240
      %s255 = sphi 0, %s241
      %s259 = sphi 0, %s259
      %s261 = sphi 0, %s259
      %s262 = sphi 0, %s261
      %s276 = sphi 0, %s262
      %s280 = sphi 0, %s280
      %s282 = sphi 0, %s280
      %s283 = sphi 0, %s282
      %s297 = sphi 0, %s283
      %s301 = sphi 0, %s301
      %s303 = sphi 0, %s301
      %s304 = sphi 0, %s303
      %s318 = sphi 0, %s304
      %s322 = sphi 0, %s322
      %s324 = sphi 0, %s322
      %s325 = sphi 0, %s324
      %s339 = sphi 0, %s325
      %s343 = sphi 0, %s343
      %s345 = sphi 0, %s343
      %s346 = sphi 0, %s345
      %s360 = sphi 0, %s346
      %s364 = sphi 0, %s364
      %s366 = sphi 0, %s364
      %s367 = sphi 0, %s366
      %s381 = sphi 0, %s367
      %s385 = sphi 0, %s385
      %s387 = sphi 0, %s385
      %s388 = sphi 0, %s387
      %s402 = sphi 0, %s388
      %s408 = sphi 0, %s410
      %s411 = sphi 0, %s408
      %s412 = sphi 0, %s411
      %s428 = sphi 0, %s412
      %s434 = sphi 0, %s436
      %s437 = sphi 0, %s434
      %s438 = sphi 0, %s437
      %s454 = sphi 0, %s438
    $region4: #{transformer_forward.1} parent=1 // loop_header_branch
      %34 = sbr.rel (%p32) target = $region8
    $region5: #{transformer_forward.1} parent=1 // loop_body
      %s36 = ssub.s32 %s31, 1
      %s37 = ssub.s32 %s31, 2
      %s38 = sadd.s32 %s31, 1
      %s39 = ssub.s32 %s31, %s38
      %p40 = scmp.eq.s32.totalorder %s39, 0
      %s42 = sadd.s32 %s41, 1
      %s43 = scalar_select %p40, %s41, %s42
      %p46 = pneg %p40
      %p47 = scmp.eq.s32.totalorder %s31, 1
      %p48 = por %p46, %p47
      %p49 = scmp.ne.s32.totalorder %s41, %s44
      %p50 = scmp.eq.s32.totalorder %s31, 0
      %p51 = por %p49, %p50
      %p52 = scmp.ne.s32.totalorder %s41, %s44
      %p53 = scmp.eq.s32.totalorder %s36, 1
      %p54 = por %p52, %p53
      %p55 = scmp.ne.s32.totalorder %s44, %s45
      %p56 = scmp.eq.s32.totalorder %s36, 0
      %p57 = por %p55, %p56
      %p58 = scmp.ne.s32.totalorder %s44, %s45
      %p59 = scmp.eq.s32.totalorder %s37, 1
      %p60 = por %p58, %p59
      %p62 = scmp.ne.s32.totalorder %s45, %s61
      %p63 = scmp.eq.s32.totalorder %s37, 0
      %p64 = por %p62, %p63
      %s65 = ssub.s32 %s31, %s38
      %p66 = scmp.eq.s32.totalorder %s65, 0
      %s68 = sadd.s32 %s67, 1
      %s69 = scalar_select %p66, %s67, %s68
      %p72 = pneg %p66
      %p73 = scmp.eq.s32.totalorder %s31, 1
      %p74 = por %p72, %p73
      %p75 = scmp.ne.s32.totalorder %s67, %s70
      %p76 = scmp.eq.s32.totalorder %s31, 0
      %p77 = por %p75, %p76
      %p78 = scmp.ne.s32.totalorder %s67, %s70
      %p79 = scmp.eq.s32.totalorder %s36, 1
      %p80 = por %p78, %p79
      %p81 = scmp.ne.s32.totalorder %s70, %s71
      %p82 = scmp.eq.s32.totalorder %s36, 0
      %p83 = por %p81, %p82
      %p84 = scmp.ne.s32.totalorder %s70, %s71
      %p85 = scmp.eq.s32.totalorder %s37, 1
      %p86 = por %p84, %p85
      %p88 = scmp.ne.s32.totalorder %s71, %s87
      %p89 = scmp.eq.s32.totalorder %s37, 0
      %p90 = por %p88, %p89
      %s92 = sadd.s32 %s91, 1
      %p95 = scmp.eq.s32.totalorder %s31, 1
      %p96 = scmp.ne.s32.totalorder %s91, %s93
      %p97 = scmp.eq.s32.totalorder %s31, 0
      %p98 = por %p96, %p97
      %p99 = scmp.ne.s32.totalorder %s91, %s93
      %p100 = scmp.eq.s32.totalorder %s36, 1
      %p101 = por %p99, %p100
      %p102 = scmp.ne.s32.totalorder %s93, %s94
      %p103 = scmp.eq.s32.totalorder %s36, 0
      %p104 = por %p102, %p103
      %p105 = scmp.ne.s32.totalorder %s93, %s94
      %p106 = scmp.eq.s32.totalorder %s37, 1
      %p107 = por %p105, %p106
      %p109 = scmp.ne.s32.totalorder %s94, %s108
      %p110 = scmp.eq.s32.totalorder %s37, 0
      %p111 = por %p109, %p110
      %s113 = sadd.s32 %s112, 1
      %p116 = scmp.eq.s32.totalorder %s31, 1
      %p117 = scmp.ne.s32.totalorder %s112, %s114
      %p118 = scmp.eq.s32.totalorder %s31, 0
      %p119 = por %p117, %p118
      %p120 = scmp.ne.s32.totalorder %s112, %s114
      %p121 = scmp.eq.s32.totalorder %s36, 1
      %p122 = por %p120, %p121
      %p123 = scmp.ne.s32.totalorder %s114, %s115
      %p124 = scmp.eq.s32.totalorder %s36, 0
      %p125 = por %p123, %p124
      %p126 = scmp.ne.s32.totalorder %s114, %s115
      %p127 = scmp.eq.s32.totalorder %s37, 1
      %p128 = por %p126, %p127
      %p130 = scmp.ne.s32.totalorder %s115, %s129
      %p131 = scmp.eq.s32.totalorder %s37, 0
      %p132 = por %p130, %p131
      %s134 = sadd.s32 %s133, 1
      %p137 = scmp.eq.s32.totalorder %s31, 1
      %p138 = scmp.ne.s32.totalorder %s133, %s135
      %p139 = scmp.eq.s32.totalorder %s31, 0
      %p140 = por %p138, %p139
      %p141 = scmp.ne.s32.totalorder %s133, %s135
      %p142 = scmp.eq.s32.totalorder %s36, 1
      %p143 = por %p141, %p142
      %p144 = scmp.ne.s32.totalorder %s135, %s136
      %p145 = scmp.eq.s32.totalorder %s36, 0
      %p146 = por %p144, %p145
      %p147 = scmp.ne.s32.totalorder %s135, %s136
      %p148 = scmp.eq.s32.totalorder %s37, 1
      %p149 = por %p147, %p148
      %p151 = scmp.ne.s32.totalorder %s136, %s150
      %p152 = scmp.eq.s32.totalorder %s37, 0
      %p153 = por %p151, %p152
      %s155 = sadd.s32 %s154, 1
      %p158 = scmp.eq.s32.totalorder %s31, 1
      %p159 = scmp.ne.s32.totalorder %s154, %s156
      %p160 = scmp.eq.s32.totalorder %s31, 0
      %p161 = por %p159, %p160
      %p162 = scmp.ne.s32.totalorder %s154, %s156
      %p163 = scmp.eq.s32.totalorder %s36, 1
      %p164 = por %p162, %p163
      %p165 = scmp.ne.s32.totalorder %s156, %s157
      %p166 = scmp.eq.s32.totalorder %s36, 0
      %p167 = por %p165, %p166
      %p168 = scmp.ne.s32.totalorder %s156, %s157
      %p169 = scmp.eq.s32.totalorder %s37, 1
      %p170 = por %p168, %p169
      %p172 = scmp.ne.s32.totalorder %s157, %s171
      %p173 = scmp.eq.s32.totalorder %s37, 0
      %p174 = por %p172, %p173
      %s176 = sadd.s32 %s175, 1
      %p179 = scmp.eq.s32.totalorder %s31, 1
      %p180 = scmp.ne.s32.totalorder %s175, %s177
      %p181 = scmp.eq.s32.totalorder %s31, 0
      %p182 = por %p180, %p181
      %p183 = scmp.ne.s32.totalorder %s175, %s177
      %p184 = scmp.eq.s32.totalorder %s36, 1
      %p185 = por %p183, %p184
      %p186 = scmp.ne.s32.totalorder %s177, %s178
      %p187 = scmp.eq.s32.totalorder %s36, 0
      %p188 = por %p186, %p187
      %p189 = scmp.ne.s32.totalorder %s177, %s178
      %p190 = scmp.eq.s32.totalorder %s37, 1
      %p191 = por %p189, %p190
      %p193 = scmp.ne.s32.totalorder %s178, %s192
      %p194 = scmp.eq.s32.totalorder %s37, 0
      %p195 = por %p193, %p194
      %s197 = sadd.s32 %s196, 1
      %p200 = scmp.eq.s32.totalorder %s31, 1
      %p201 = scmp.ne.s32.totalorder %s196, %s198
      %p202 = scmp.eq.s32.totalorder %s31, 0
      %p203 = por %p201, %p202
      %p204 = scmp.ne.s32.totalorder %s196, %s198
      %p205 = scmp.eq.s32.totalorder %s36, 1
      %p206 = por %p204, %p205
      %p207 = scmp.ne.s32.totalorder %s198, %s199
      %p208 = scmp.eq.s32.totalorder %s36, 0
      %p209 = por %p207, %p208
      %p210 = scmp.ne.s32.totalorder %s198, %s199
      %p211 = scmp.eq.s32.totalorder %s37, 1
      %p212 = por %p210, %p211
      %p214 = scmp.ne.s32.totalorder %s199, %s213
      %p215 = scmp.eq.s32.totalorder %s37, 0
      %p216 = por %p214, %p215
      %s218 = sadd.s32 %s217, 1
      %p221 = scmp.eq.s32.totalorder %s31, 1
      %p222 = scmp.ne.s32.totalorder %s217, %s219
      %p223 = scmp.eq.s32.totalorder %s31, 0
      %p224 = por %p222, %p223
      %p225 = scmp.ne.s32.totalorder %s217, %s219
      %p226 = scmp.eq.s32.totalorder %s36, 1
      %p227 = por %p225, %p226
      %p228 = scmp.ne.s32.totalorder %s219, %s220
      %p229 = scmp.eq.s32.totalorder %s36, 0
      %p230 = por %p228, %p229
      %p231 = scmp.ne.s32.totalorder %s219, %s220
      %p232 = scmp.eq.s32.totalorder %s37, 1
      %p233 = por %p231, %p232
      %p235 = scmp.ne.s32.totalorder %s220, %s234
      %p236 = scmp.eq.s32.totalorder %s37, 0
      %p237 = por %p235, %p236
      %s239 = sadd.s32 %s238, 1
      %p242 = scmp.eq.s32.totalorder %s31, 1
      %p243 = scmp.ne.s32.totalorder %s238, %s240
      %p244 = scmp.eq.s32.totalorder %s31, 0
      %p245 = por %p243, %p244
      %p246 = scmp.ne.s32.totalorder %s238, %s240
      %p247 = scmp.eq.s32.totalorder %s36, 1
      %p248 = por %p246, %p247
      %p249 = scmp.ne.s32.totalorder %s240, %s241
      %p250 = scmp.eq.s32.totalorder %s36, 0
      %p251 = por %p249, %p250
      %p252 = scmp.ne.s32.totalorder %s240, %s241
      %p253 = scmp.eq.s32.totalorder %s37, 1
      %p254 = por %p252, %p253
      %p256 = scmp.ne.s32.totalorder %s241, %s255
      %p257 = scmp.eq.s32.totalorder %s37, 0
      %p258 = por %p256, %p257
      %s260 = sadd.s32 %s259, 1
      %p263 = scmp.eq.s32.totalorder %s31, 1
      %p264 = scmp.ne.s32.totalorder %s259, %s261
      %p265 = scmp.eq.s32.totalorder %s31, 0
      %p266 = por %p264, %p265
      %p267 = scmp.ne.s32.totalorder %s259, %s261
      %p268 = scmp.eq.s32.totalorder %s36, 1
      %p269 = por %p267, %p268
      %p270 = scmp.ne.s32.totalorder %s261, %s262
      %p271 = scmp.eq.s32.totalorder %s36, 0
      %p272 = por %p270, %p271
      %p273 = scmp.ne.s32.totalorder %s261, %s262
      %p274 = scmp.eq.s32.totalorder %s37, 1
      %p275 = por %p273, %p274
      %p277 = scmp.ne.s32.totalorder %s262, %s276
      %p278 = scmp.eq.s32.totalorder %s37, 0
      %p279 = por %p277, %p278
      %s281 = sadd.s32 %s280, 1
      %p284 = scmp.eq.s32.totalorder %s31, 1
      %p285 = scmp.ne.s32.totalorder %s280, %s282
      %p286 = scmp.eq.s32.totalorder %s31, 0
      %p287 = por %p285, %p286
      %p288 = scmp.ne.s32.totalorder %s280, %s282
      %p289 = scmp.eq.s32.totalorder %s36, 1
      %p290 = por %p288, %p289
      %p291 = scmp.ne.s32.totalorder %s282, %s283
      %p292 = scmp.eq.s32.totalorder %s36, 0
      %p293 = por %p291, %p292
      %p294 = scmp.ne.s32.totalorder %s282, %s283
      %p295 = scmp.eq.s32.totalorder %s37, 1
      %p296 = por %p294, %p295
      %p298 = scmp.ne.s32.totalorder %s283, %s297
      %p299 = scmp.eq.s32.totalorder %s37, 0
      %p300 = por %p298, %p299
      %s302 = sadd.s32 %s301, 1
      %p305 = scmp.eq.s32.totalorder %s31, 1
      %p306 = scmp.ne.s32.totalorder %s301, %s303
      %p307 = scmp.eq.s32.totalorder %s31, 0
      %p308 = por %p306, %p307
      %p309 = scmp.ne.s32.totalorder %s301, %s303
      %p310 = scmp.eq.s32.totalorder %s36, 1
      %p311 = por %p309, %p310
      %p312 = scmp.ne.s32.totalorder %s303, %s304
      %p313 = scmp.eq.s32.totalorder %s36, 0
      %p314 = por %p312, %p313
      %p315 = scmp.ne.s32.totalorder %s303, %s304
      %p316 = scmp.eq.s32.totalorder %s37, 1
      %p317 = por %p315, %p316
      %p319 = scmp.ne.s32.totalorder %s304, %s318
      %p320 = scmp.eq.s32.totalorder %s37, 0
      %p321 = por %p319, %p320
      %s323 = sadd.s32 %s322, 1
      %p326 = scmp.eq.s32.totalorder %s31, 1
      %p327 = scmp.ne.s32.totalorder %s322, %s324
      %p328 = scmp.eq.s32.totalorder %s31, 0
      %p329 = por %p327, %p328
      %p330 = scmp.ne.s32.totalorder %s322, %s324
      %p331 = scmp.eq.s32.totalorder %s36, 1
      %p332 = por %p330, %p331
      %p333 = scmp.ne.s32.totalorder %s324, %s325
      %p334 = scmp.eq.s32.totalorder %s36, 0
      %p335 = por %p333, %p334
      %p336 = scmp.ne.s32.totalorder %s324, %s325
      %p337 = scmp.eq.s32.totalorder %s37, 1
      %p338 = por %p336, %p337
      %p340 = scmp.ne.s32.totalorder %s325, %s339
      %p341 = scmp.eq.s32.totalorder %s37, 0
      %p342 = por %p340, %p341
      %s344 = sadd.s32 %s343, 1
      %p347 = scmp.eq.s32.totalorder %s31, 1
      %p348 = scmp.ne.s32.totalorder %s343, %s345
      %p349 = scmp.eq.s32.totalorder %s31, 0
      %p350 = por %p348, %p349
      %p351 = scmp.ne.s32.totalorder %s343, %s345
      %p352 = scmp.eq.s32.totalorder %s36, 1
      %p353 = por %p351, %p352
      %p354 = scmp.ne.s32.totalorder %s345, %s346
      %p355 = scmp.eq.s32.totalorder %s36, 0
      %p356 = por %p354, %p355
      %p357 = scmp.ne.s32.totalorder %s345, %s346
      %p358 = scmp.eq.s32.totalorder %s37, 1
      %p359 = por %p357, %p358
      %p361 = scmp.ne.s32.totalorder %s346, %s360
      %p362 = scmp.eq.s32.totalorder %s37, 0
      %p363 = por %p361, %p362
      %s365 = sadd.s32 %s364, 1
      %p368 = scmp.eq.s32.totalorder %s31, 1
      %p369 = scmp.ne.s32.totalorder %s364, %s366
      %p370 = scmp.eq.s32.totalorder %s31, 0
      %p371 = por %p369, %p370
      %p372 = scmp.ne.s32.totalorder %s364, %s366
      %p373 = scmp.eq.s32.totalorder %s36, 1
      %p374 = por %p372, %p373
      %p375 = scmp.ne.s32.totalorder %s366, %s367
      %p376 = scmp.eq.s32.totalorder %s36, 0
      %p377 = por %p375, %p376
      %p378 = scmp.ne.s32.totalorder %s366, %s367
      %p379 = scmp.eq.s32.totalorder %s37, 1
      %p380 = por %p378, %p379
      %p382 = scmp.ne.s32.totalorder %s367, %s381
      %p383 = scmp.eq.s32.totalorder %s37, 0
      %p384 = por %p382, %p383
      %s386 = sadd.s32 %s385, 1
      %p389 = scmp.eq.s32.totalorder %s31, 1
      %p390 = scmp.ne.s32.totalorder %s385, %s387
      %p391 = scmp.eq.s32.totalorder %s31, 0
      %p392 = por %p390, %p391
      %p393 = scmp.ne.s32.totalorder %s385, %s387
      %p394 = scmp.eq.s32.totalorder %s36, 1
      %p395 = por %p393, %p394
      %p396 = scmp.ne.s32.totalorder %s387, %s388
      %p397 = scmp.eq.s32.totalorder %s36, 0
      %p398 = por %p396, %p397
      %p399 = scmp.ne.s32.totalorder %s387, %s388
      %p400 = scmp.eq.s32.totalorder %s37, 1
      %p401 = por %p399, %p400
      %p403 = scmp.ne.s32.totalorder %s388, %s402
      %p404 = scmp.eq.s32.totalorder %s37, 0
      %p405 = por %p403, %p404
      %s406 = ssub.s32 %s31, %s38
      %p407 = scmp.eq.s32.totalorder %s406, 0
      %s409 = sadd.s32 %s408, 1
      %s410 = scalar_select %p407, %s408, %s409
      %p413 = pneg %p407
      %p414 = scmp.eq.s32.totalorder %s31, 1
      %p415 = por %p413, %p414
      %p416 = scmp.ne.s32.totalorder %s408, %s411
      %p417 = scmp.eq.s32.totalorder %s31, 0
      %p418 = por %p416, %p417
      %p419 = scmp.ne.s32.totalorder %s408, %s411
      %p420 = scmp.eq.s32.totalorder %s36, 1
      %p421 = por %p419, %p420
      %p422 = scmp.ne.s32.totalorder %s411, %s412
      %p423 = scmp.eq.s32.totalorder %s36, 0
      %p424 = por %p422, %p423
      %p425 = scmp.ne.s32.totalorder %s411, %s412
      %p426 = scmp.eq.s32.totalorder %s37, 1
      %p427 = por %p425, %p426
      %p429 = scmp.ne.s32.totalorder %s412, %s428
      %p430 = scmp.eq.s32.totalorder %s37, 0
      %p431 = por %p429, %p430
      %s432 = ssub.s32 %s31, %s38
      %p433 = scmp.eq.s32.totalorder %s432, 0
      %s435 = sadd.s32 %s434, 1
      %s436 = scalar_select %p433, %s434, %s435
      %p439 = pneg %p433
      %p440 = scmp.eq.s32.totalorder %s31, 1
      %p441 = por %p439, %p440
      %p442 = scmp.ne.s32.totalorder %s434, %s437
      %p443 = scmp.eq.s32.totalorder %s31, 0
      %p444 = por %p442, %p443
      %p445 = scmp.ne.s32.totalorder %s434, %s437
      %p446 = scmp.eq.s32.totalorder %s36, 1
      %p447 = por %p445, %p446
      %p448 = scmp.ne.s32.totalorder %s437, %s438
      %p449 = scmp.eq.s32.totalorder %s36, 0
      %p450 = por %p448, %p449
      %p451 = scmp.ne.s32.totalorder %s437, %s438
      %p452 = scmp.eq.s32.totalorder %s37, 1
      %p453 = por %p451, %p452
      %p455 = scmp.ne.s32.totalorder %s438, %s454
      %p456 = scmp.eq.s32.totalorder %s37, 0
      %p457 = por %p455, %p456
      %p458 = scmp.le.s32.totalorder 1, %s31
      %p459 = scmp.lt.s32.totalorder %s31, 3
      %p460 = pnand %p458, %p459
      %p461 = pneg %p460
      // Predicated region
      $region9: #{transformer_forward.1} parent=5 // pred_check
        _
      $region10: #{transformer_forward.1} parent=5 // pred_check_branch
        %463 = sbr.rel (%p460) target = $region12
      $region11: #{transformer_forward.1} parent=5 // pred_region
        %s464 = ssub.s32 %s31, 1
        // Predicated region
        $region13: #{transformer_forward.1} parent=11 // pred_check
          %p465 = pneg %p104
        $region14: #{transformer_forward.1} parent=11 // pred_check_branch
          %467 = sbr.rel (%p465) target = $region16
        $region15: #{transformer_forward.1} parent=11 // pred_region
          _
        $region16: #{transformer_forward.1} parent=11 // pred_fallthru
          _
        // Predicated region
        $region17: #{transformer_forward.1} parent=11 // pred_check
          %p468 = pneg %p125
        $region18: #{transformer_forward.1} parent=11 // pred_check_branch
          %470 = sbr.rel (%p468) target = $region20
        $region19: #{transformer_forward.1} parent=11 // pred_region
          _
        $region20: #{transformer_forward.1} parent=11 // pred_fallthru
          _
        // Predicated region
        $region21: #{transformer_forward.1} parent=11 // pred_check
          %p471 = pneg %p146
        $region22: #{transformer_forward.1} parent=11 // pred_check_branch
          %473 = sbr.rel (%p471) target = $region24
        $region23: #{transformer_forward.1} parent=11 // pred_region
          _
        $region24: #{transformer_forward.1} parent=11 // pred_fallthru
          _
        // Predicated region
        $region25: #{transformer_forward.1} parent=11 // pred_check
          %p474 = pneg %p167
        $region26: #{transformer_forward.1} parent=11 // pred_check_branch
          %476 = sbr.rel (%p474) target = $region28
        $region27: #{transformer_forward.1} parent=11 // pred_region
          _
        $region28: #{transformer_forward.1} parent=11 // pred_fallthru
          _
        // Predicated region
        $region29: #{transformer_forward.1} parent=11 // pred_check
          %p477 = pneg %p188
        $region30: #{transformer_forward.1} parent=11 // pred_check_branch
          %479 = sbr.rel (%p477) target = $region32
        $region31: #{transformer_forward.1} parent=11 // pred_region
          _
        $region32: #{transformer_forward.1} parent=11 // pred_fallthru
          _
        // Predicated region
        $region33: #{transformer_forward.1} parent=11 // pred_check
          %p480 = pneg %p209
        $region34: #{transformer_forward.1} parent=11 // pred_check_branch
          %482 = sbr.rel (%p480) target = $region36
        $region35: #{transformer_forward.1} parent=11 // pred_region
          _
        $region36: #{transformer_forward.1} parent=11 // pred_fallthru
          _
        // Predicated region
        $region37: #{transformer_forward.1} parent=11 // pred_check
          %p483 = pneg %p230
        $region38: #{transformer_forward.1} parent=11 // pred_check_branch
          %485 = sbr.rel (%p483) target = $region40
        $region39: #{transformer_forward.1} parent=11 // pred_region
          _
        $region40: #{transformer_forward.1} parent=11 // pred_fallthru
          _
        // Predicated region
        $region41: #{transformer_forward.1} parent=11 // pred_check
          %p486 = pneg %p251
        $region42: #{transformer_forward.1} parent=11 // pred_check_branch
          %488 = sbr.rel (%p486) target = $region44
        $region43: #{transformer_forward.1} parent=11 // pred_region
          _
        $region44: #{transformer_forward.1} parent=11 // pred_fallthru
          _
        // Predicated region
        $region45: #{transformer_forward.1} parent=11 // pred_check
          %p489 = pneg %p272
        $region46: #{transformer_forward.1} parent=11 // pred_check_branch
          %491 = sbr.rel (%p489) target = $region48
        $region47: #{transformer_forward.1} parent=11 // pred_region
          _
        $region48: #{transformer_forward.1} parent=11 // pred_fallthru
          _
        // Predicated region
        $region49: #{transformer_forward.1} parent=11 // pred_check
          %p492 = pneg %p293
        $region50: #{transformer_forward.1} parent=11 // pred_check_branch
          %494 = sbr.rel (%p492) target = $region52
        $region51: #{transformer_forward.1} parent=11 // pred_region
          _
        $region52: #{transformer_forward.1} parent=11 // pred_fallthru
          _
        // Predicated region
        $region53: #{transformer_forward.1} parent=11 // pred_check
          %p495 = pneg %p314
        $region54: #{transformer_forward.1} parent=11 // pred_check_branch
          %497 = sbr.rel (%p495) target = $region56
        $region55: #{transformer_forward.1} parent=11 // pred_region
          _
        $region56: #{transformer_forward.1} parent=11 // pred_fallthru
          _
        // Predicated region
        $region57: #{transformer_forward.1} parent=11 // pred_check
          %p498 = pneg %p335
        $region58: #{transformer_forward.1} parent=11 // pred_check_branch
          %500 = sbr.rel (%p498) target = $region60
        $region59: #{transformer_forward.1} parent=11 // pred_region
          _
        $region60: #{transformer_forward.1} parent=11 // pred_fallthru
          _
        // Predicated region
        $region61: #{transformer_forward.1} parent=11 // pred_check
          %p501 = pneg %p356
        $region62: #{transformer_forward.1} parent=11 // pred_check_branch
          %503 = sbr.rel (%p501) target = $region64
        $region63: #{transformer_forward.1} parent=11 // pred_region
          _
        $region64: #{transformer_forward.1} parent=11 // pred_fallthru
          _
        // Predicated region
        $region65: #{transformer_forward.1} parent=11 // pred_check
          %p504 = pneg %p377
        $region66: #{transformer_forward.1} parent=11 // pred_check_branch
          %506 = sbr.rel (%p504) target = $region68
        $region67: #{transformer_forward.1} parent=11 // pred_region
          _
        $region68: #{transformer_forward.1} parent=11 // pred_fallthru
          _
        // Predicated region
        $region69: #{transformer_forward.1} parent=11 // pred_check
          %p507 = pneg %p398
        $region70: #{transformer_forward.1} parent=11 // pred_check_branch
          %509 = sbr.rel (%p507) target = $region72
        $region71: #{transformer_forward.1} parent=11 // pred_region
          _
        $region72: #{transformer_forward.1} parent=11 // pred_fallthru
          _
      $region12: #{transformer_forward.1} parent=5 // pred_fallthru
        _
      %p510 = scmp.lt.s32.totalorder %s31, 2
      // Predicated region
      $region73: #{transformer_forward.1} parent=5 // pred_check
        %p511 = pneg %p510
      $region74: #{transformer_forward.1} parent=5 // pred_check_branch
        %513 = sbr.rel (%p511) target = $region76
      $region75: #{transformer_forward.1} parent=5 // pred_region
        // Predicated region
        $region77: #{transformer_forward.1} parent=75 // pred_check
          %p514 = pneg %p51
        $region78: #{transformer_forward.1} parent=75 // pred_check_branch
          %516 = sbr.rel (%p514) target = $region80
        $region79: #{transformer_forward.1} parent=75 // pred_region
          %s517 = smul.u32 4, %s31
          %p518 = scmp.lt.s32.totalorder %s517, 7
          %s519 = scalar_select %p518, %s517, 7
          %s520 = smul.addr %s519, 8
          %s521 = scalar_lea.vmem %s0, %s520
          %s522 = smul.u32 4, %s31
        $region80: #{transformer_forward.1} parent=75 // pred_fallthru
          _
        // Predicated region
        $region81: #{transformer_forward.1} parent=75 // pred_check
          %p523 = pneg %p77
        $region82: #{transformer_forward.1} parent=75 // pred_check_branch
          %525 = sbr.rel (%p523) target = $region84
        $region83: #{transformer_forward.1} parent=75 // pred_region
          %s526 = smul.u32 4, %s31
          %p527 = scmp.lt.s32.totalorder %s526, 7
          %s528 = scalar_select %p527, %s526, 7
          %s529 = scalar_lea.vmem %s1, %s528
          %s530 = smul.u32 4, %s31
        $region84: #{transformer_forward.1} parent=75 // pred_fallthru
          _
      $region76: #{transformer_forward.1} parent=5 // pred_fallthru
        _
      %p531 = scmp.le.s32.totalorder 1, %s31
      %p532 = scmp.lt.s32.totalorder %s31, 3
      %p533 = pnand %p531, %p532
      %p534 = pneg %p533
      // Predicated region
      $region85: #{transformer_forward.1} parent=5 // pred_check
        _
      $region86: #{transformer_forward.1} parent=5 // pred_check_branch
        %536 = sbr.rel (%p533) target = $region88
      $region87: #{transformer_forward.1} parent=5 // pred_region
        %s537 = ssub.s32 %s31, 1
        %s538 = smul.u32 4, %s36
        %p539 = scmp.lt.s32.totalorder %s538, 7
        %s540 = scalar_select %p539, %s538, 7
        %s541 = smul.addr %s540, 8
        %s542 = scalar_lea.vmem %s0, %s541
        %p543 = pneg %p57
        %p544 = pneg %p54
        %s545 = smul.u32 4, %s36
        %p546 = scmp.lt.s32.totalorder %s545, 7
        %s547 = scalar_select %p546, %s545, 7
        %s548 = scalar_lea.vmem %s1, %s547
        %p549 = pneg %p83
        %p550 = pneg %p80
        %p551 = pneg %p104
        %p552 = pneg %p101
        %p553 = pneg %p125
        %p554 = pneg %p122
        %p555 = pneg %p146
        %p556 = pneg %p143
        %p557 = pneg %p167
        %p558 = pneg %p164
        %p559 = pneg %p188
        %p560 = pneg %p185
        %p561 = pneg %p209
        %p562 = pneg %p206
        %p563 = pneg %p230
        %p564 = pneg %p227
        %p565 = pneg %p251
        %p566 = pneg %p248
        %p567 = pneg %p272
        %p568 = pneg %p269
        %p569 = pneg %p293
        %p570 = pneg %p290
        %p571 = pneg %p314
        %p572 = pneg %p311
        %p573 = pneg %p335
        %p574 = pneg %p332
        %p575 = pneg %p356
        %p576 = pneg %p353
        %p577 = pneg %p377
        %p578 = pneg %p374
        %p579 = pneg %p398
        %p580 = pneg %p395
        %p581 = pneg %p424
        %p582 = pneg %p421
        %s583 = sand.u32 %s411, 1
        %s584 = scalar_lea.sflag [#allocation3], %s583
        %s585 = sand.u32 %s411, 1
        %s586 = smul.addr %s585, 32
        %s587 = scalar_lea.vmem [#allocation2], %s586
        %p588 = pneg %p450
        %p589 = pneg %p447
        %s590 = sand.u32 %s437, 1
        %s591 = scalar_lea.sflag [#allocation5], %s590
        %s592 = sand.u32 %s437, 1
        %s593 = smul.addr %s592, 32
        %s594 = scalar_lea.vmem [#allocation4], %s593
        %s595 = smul.u32 4, %s36
        %p596 = scmp.lt.s32.totalorder %s595, 7
        %s597 = scalar_select %p596, %s595, 7
        %s598 = smul.addr %s597, 8
        %s599 = scalar_lea.vmem %s0, %s598
        %s600 = smul.u32 4, %s36
        %s601 = smul.u32 4, %s36
        %p602 = scmp.lt.s32.totalorder %s601, 7
        %s603 = scalar_select %p602, %s601, 7
        %s604 = scalar_lea.vmem %s1, %s603
        %s605 = smul.u32 4, %s36
        %s606 = smul.u32 4, %s36
        %s607 = smul.u32 4, %s36
        %v609 = vld [vmem:[%s599] sm:$0xff]
        %v610 = vld [vmem:[%s599 + $0x8] sm:$0xff]
        %v611 = vld [vmem:[%s599 + $0x10] sm:$0xff]
        %v612 = vld [vmem:[%s599 + $0x18] sm:$0xff]
        %v613 = vld [vmem:[%s604] sm:$0x1]
        %v614 = vld [vmem:[%s604 + $0x1] sm:$0x1]
        %v615 = vld [vmem:[%s604 + $0x2] sm:$0x1]
        %v616 = vld [vmem:[%s604 + $0x3] sm:$0x1]
        %v617 = vpack.c.bf16 %v610, %v609
        %v618 = vpack.c.bf16 %v612, %v611
        %v619 = vld [vmem:[%s2] sm:$0xf]
        %v620 = vld [vmem:[%s2 + $0x4] sm:$0xf]
        %v621 = vld [vmem:[%s3] sm:$0x1]
        %v623 = vlaneseq
        %v624 = vshrl.u32 %v623, 7
        %v625 = vsub.s32 0, %v624
        %v626 = vrot.slane %v621, %v625
        %v630 = vunpack.c.l.b16 %v619
        %v631 = vunpack.c.l.b16 %v620
        %v632 = vpack.c.b16 %v631, %v630
        %vm634 = vcmask 130048
        %v636 = vsel %vm634, %v617, 0
        %v639 = vsel %vm634, %v618, 0
        %641 = vmatprep.subr.bf16.mxu0 0
        %642 = vmatpush1.bf16.msra.mxu0 %v632
        %643 = vmatprep.subr.bf16.mxu0 0
        %644 = vmatpush1.bf16.msra.mxu0 0
        %645 = vmatprep.subr.bf16.mxu0 0
        %646 = vmatpush1.bf16.msra.mxu0 0
        %647 = vmatprep.subr.bf16.mxu0 0
        %648 = vmatpush1.bf16.msra.mxu0 0
        %649 = vmatprep.subr.bf16.mxu0 0
        %650 = vmatpush1.bf16.msra.mxu0 0
        %651 = vmatprep.subr.bf16.mxu0 0
        %652 = vmatpush1.bf16.msra.mxu0 0
        %653 = vmatprep.subr.bf16.mxu0 0
        %654 = vmatpush1.bf16.msra.mxu0 0
        %655 = vmatprep.subr.bf16.mxu0 0
        %656 = vmatpush1.bf16.msra.mxu0 0
        %657 = vmatprep.subr.bf16.mxu0 0
        %658 = vmatpush1.bf16.msra.mxu0 0
        %659 = vmatprep.subr.bf16.mxu0 0
        %660 = vmatpush1.bf16.msra.mxu0 0
        %661 = vmatprep.subr.bf16.mxu0 0
        %662 = vmatpush1.bf16.msra.mxu0 0
        %663 = vmatprep.subr.bf16.mxu0 0
        %664 = vmatpush1.bf16.msra.mxu0 0
        %665 = vmatprep.subr.bf16.mxu0 0
        %666 = vmatpush1.bf16.msra.mxu0 0
        %667 = vmatprep.subr.bf16.mxu0 0
        %668 = vmatpush1.bf16.msra.mxu0 0
        %669 = vmatprep.subr.bf16.mxu0 0
        %670 = vmatpush1.bf16.msra.mxu0 0
        %671 = vmatprep.subr.bf16.mxu0 0
        %672 = vmatpush1.bf16.msra.mxu0 0
        %673 = vmatprep.mubr.bf16.mxu0 0
        %674 = vmatmul.mubr.bf16.gmra.mrb[0].mxu0 %v636
        %v675 = vpop.f32.mrb[0].mxu0
        %v676 = vadd.f32 %v626, %v675
        %v677 = vpop.f32.mrb[0].mxu0
        %v678 = vpop.f32.mrb[0].mxu0
        %v679 = vadd.f32 %v626, %v678
        %v680 = vpop.f32.mrb[0].mxu0
        %681 = vmatprep.mubr.bf16.mxu0 0
        %682 = vmatmul.mubr.bf16.gmra.mrb[0].mxu0 %v639
        %v683 = vpop.f32.mrb[0].mxu0
        %v684 = vadd.f32 %v626, %v683
        %v685 = vpop.f32.mrb[0].mxu0
        %v686 = vpop.f32.mrb[0].mxu0
        %v687 = vadd.f32 %v626, %v686
        %v688 = vpop.f32.mrb[0].mxu0
        %689 = vdwg.mxu0
        %690 = vst [vmem:[%s587] sm:$0xff] %v676
        %691 = vst [vmem:[%s587 + $0x8] sm:$0xff] %v679
        %692 = vst [vmem:[%s587 + $0x10] sm:$0xff] %v684
        %693 = vst [vmem:[%s587 + $0x18] sm:$0xff] %v687
        %v694 = vpack.c.bf16 %v679, %v676
        %v695 = vpack.c.bf16 %v687, %v684
        %v696 = vld [vmem:[%s4] sm:$0xff]
        %v697 = vld [vmem:[%s4 + $0x8] sm:$0xf]
        %v698 = vld [vmem:[%s4 + $0xc] sm:$0xff]
        %v699 = vld [vmem:[%s4 + $0x14] sm:$0xf]
        %v700 = vld [vmem:[%s4 + $0x18] sm:$0xff]
        %v701 = vld [vmem:[%s4 + $0x20] sm:$0xf]
        %v702 = vld [vmem:[%s4 + $0x24] sm:$0xff]
        %v703 = vld [vmem:[%s4 + $0x2c] sm:$0xf]
        %v712 = vunpack.c.l.b16 %v696
        %v713 = vunpack.c.h.b16 %v696
        %v714 = vunpack.c.l.b16 %v697
        %v715 = vunpack.c.l.b16 %v698
        %v716 = vunpack.c.h.b16 %v698
        %v717 = vunpack.c.l.b16 %v699
        %v718 = vunpack.c.l.b16 %v700
        %v719 = vunpack.c.h.b16 %v700
        %v720 = vunpack.c.l.b16 %v701
        %v721 = vunpack.c.l.b16 %v702
        %v722 = vunpack.c.h.b16 %v702
        %v723 = vunpack.c.l.b16 %v703
        %v724 = vpack.c.b16 %v715, %v712
        %v725 = vpack.c.b16 %v716, %v713
        %v726 = vpack.c.b16 %v717, %v714
        %v727 = vpack.c.b16 %v721, %v718
        %v728 = vpack.c.b16 %v722, %v719
        %v729 = vpack.c.b16 %v723, %v720
        %vm736 = vcmask 261120
        %v738 = vsel %vm736, %v694, 0
        %v741 = vsel %vm736, %v695, 0
        %743 = vmatprep.subr.bf16.mxu0 %v725
        %744 = vmatpush1.bf16.msra.mxu0 %v724
        %745 = vmatprep.subr.bf16.mxu0 %v728
        %746 = vmatpush1.bf16.msra.mxu0 %v727
        %747 = vmatprep.subr.bf16.mxu0 0
        %748 = vmatpush1.bf16.msra.mxu0 0
        %749 = vmatprep.subr.bf16.mxu0 0
        %750 = vmatpush1.bf16.msra.mxu0 0
        %751 = vmatprep.subr.bf16.mxu0 0
        %752 = vmatpush1.bf16.msra.mxu0 0
        %753 = vmatprep.subr.bf16.mxu0 0
        %754 = vmatpush1.bf16.msra.mxu0 0
        %755 = vmatprep.subr.bf16.mxu0 0
        %756 = vmatpush1.bf16.msra.mxu0 0
        %757 = vmatprep.subr.bf16.mxu0 0
        %758 = vmatpush1.bf16.msra.mxu0 0
        %759 = vmatprep.subr.bf16.mxu0 0
        %760 = vmatpush1.bf16.msra.mxu0 0
        %761 = vmatprep.subr.bf16.mxu0 0
        %762 = vmatpush1.bf16.msra.mxu0 0
        %763 = vmatprep.subr.bf16.mxu0 0
        %764 = vmatpush1.bf16.msra.mxu0 0
        %765 = vmatprep.subr.bf16.mxu0 0
        %766 = vmatpush1.bf16.msra.mxu0 0
        %767 = vmatprep.subr.bf16.mxu0 0
        %768 = vmatpush1.bf16.msra.mxu0 0
        %769 = vmatprep.subr.bf16.mxu0 0
        %770 = vmatpush1.bf16.msra.mxu0 0
        %771 = vmatprep.subr.bf16.mxu0 0
        %772 = vmatpush1.bf16.msra.mxu0 0
        %773 = vmatprep.subr.bf16.mxu0 0
        %774 = vmatpush1.bf16.msra.mxu0 0
        %775 = vmatprep.mubr.bf16.mxu0 0
        %776 = vmatmul.mubr.bf16.gmra.mrb[0].mxu0 %v738
        %v777 = vpop.f32.mrb[0].mxu0
        %v778 = vadd.f32 0.0, %v777
        %v779 = vpop.f32.mrb[0].mxu0
        %v780 = vadd.f32 0.0, %v779
        %v781 = vpop.f32.mrb[0].mxu0
        %v782 = vadd.f32 0.0, %v781
        %v783 = vpop.f32.mrb[0].mxu0
        %v784 = vadd.f32 0.0, %v783
        %785 = vmatprep.mubr.bf16.mxu0 0
        %786 = vmatmul.mubr.bf16.gmra.mrb[0].mxu0 %v741
        %v787 = vpop.f32.mrb[0].mxu0
        %v788 = vadd.f32 0.0, %v787
        %v789 = vpop.f32.mrb[0].mxu0
        %v790 = vadd.f32 0.0, %v789
        %v791 = vpop.f32.mrb[0].mxu0
        %v792 = vadd.f32 0.0, %v791
        %v793 = vpop.f32.mrb[0].mxu0
        %v794 = vadd.f32 0.0, %v793
        %795 = vdwg.mxu0
        %796 = vmatprep.subr.bf16.mxu0 0
        %797 = vmatpush1.bf16.msra.mxu0 %v726
        %798 = vmatprep.subr.bf16.mxu0 0
        %799 = vmatpush1.bf16.msra.mxu0 %v729
        %800 = vmatprep.subr.bf16.mxu0 0
        %801 = vmatpush1.bf16.msra.mxu0 0
        %802 = vmatprep.subr.bf16.mxu0 0
        %803 = vmatpush1.bf16.msra.mxu0 0
        %804 = vmatprep.subr.bf16.mxu0 0
        %805 = vmatpush1.bf16.msra.mxu0 0
        %806 = vmatprep.subr.bf16.mxu0 0
        %807 = vmatpush1.bf16.msra.mxu0 0
        %808 = vmatprep.subr.bf16.mxu0 0
        %809 = vmatpush1.bf16.msra.mxu0 0
        %810 = vmatprep.subr.bf16.mxu0 0
        %811 = vmatpush1.bf16.msra.mxu0 0
        %812 = vmatprep.subr.bf16.mxu0 0
        %813 = vmatpush1.bf16.msra.mxu0 0
        %814 = vmatprep.subr.bf16.mxu0 0
        %815 = vmatpush1.bf16.msra.mxu0 0
        %816 = vmatprep.subr.bf16.mxu0 0
        %817 = vmatpush1.bf16.msra.mxu0 0
        %818 = vmatprep.subr.bf16.mxu0 0
        %819 = vmatpush1.bf16.msra.mxu0 0
        %820 = vmatprep.subr.bf16.mxu0 0
        %821 = vmatpush1.bf16.msra.mxu0 0
        %822 = vmatprep.subr.bf16.mxu0 0
        %823 = vmatpush1.bf16.msra.mxu0 0
        %824 = vmatprep.subr.bf16.mxu0 0
        %825 = vmatpush1.bf16.msra.mxu0 0
        %826 = vmatprep.subr.bf16.mxu0 0
        %827 = vmatpush1.bf16.msra.mxu0 0
        %828 = vmatprep.mubr.bf16.mxu0 0
        %829 = vmatmul.mubr.bf16.gmra.mrb[0].mxu0 %v738
        %v830 = vpop.f32.mrb[0].mxu0
        %v831 = vadd.f32 0.0, %v830
        %v832 = vpop.f32.mrb[0].mxu0
        %v833 = vpop.f32.mrb[0].mxu0
        %v834 = vadd.f32 0.0, %v833
        %v835 = vpop.f32.mrb[0].mxu0
        %836 = vmatprep.mubr.bf16.mxu0 0
        %837 = vmatmul.mubr.bf16.gmra.mrb[0].mxu0 %v741
        %v838 = vpop.f32.mrb[0].mxu0
        %v839 = vadd.f32 0.0, %v838
        %v840 = vpop.f32.mrb[0].mxu0
        %v841 = vpop.f32.mrb[0].mxu0
        %v842 = vadd.f32 0.0, %v841
        %v843 = vpop.f32.mrb[0].mxu0
        %844 = vdwg.mxu0
        %v845 = vpack.c.bf16 %v778, %v778
        %v846 = vpack.c.bf16 %v782, %v782
        %v847 = vpack.c.bf16 %v788, %v788
        %v848 = vpack.c.bf16 %v792, %v792
        %v849 = vpack.c.bf16 %v780, %v780
        %v850 = vpack.c.bf16 %v784, %v784
        %v851 = vpack.c.bf16 %v790, %v790
        %v852 = vpack.c.bf16 %v794, %v794
        %v853 = vpack.c.bf16 %v831, %v831
        %v854 = vpack.c.bf16 %v834, %v834
        %v855 = vpack.c.bf16 %v839, %v839
        %v856 = vpack.c.bf16 %v842, %v842
        %v861 = vlaneseq
        %v862 = vshrl.u32 %v861, 7
        %v863 = vsub.s32 0, %v862
        %v864 = vrot.slane %v613, %v863
        %v865 = vlaneseq
        %v866 = vshrl.u32 %v865, 7
        %v867 = vsub.s32 0, %v866
        %v868 = vrot.slane %v614, %v867
        %v869 = vlaneseq
        %v870 = vshrl.u32 %v869, 7
        %v871 = vsub.s32 0, %v870
        %v872 = vrot.slane %v615, %v871
        %v873 = vlaneseq
        %v874 = vshrl.u32 %v873, 7
        %v875 = vsub.s32 0, %v874
        %v876 = vrot.slane %v616, %v875
        %v882 = vsel %vm736, %v845, 0
        %v885 = vsel %vm736, %v849, 0
        %887 = vmatprep.subr.bf16.mxu0 0
        %888 = vmatpush1.bf16.xpose.msra.mxu0 %v885
        %889 = vmatprep.subr.bf16.mxu0 0
        %890 = vmatpush1.bf16.xpose.msra.mxu0 0
        %891 = vmatprep.subr.bf16.mxu0 0
        %892 = vmatpush1.bf16.xpose.msra.mxu0 0
        %893 = vmatprep.subr.bf16.mxu0 0
        %894 = vmatpush1.bf16.xpose.msra.mxu0 0
        %895 = vmatprep.subr.bf16.mxu0 0
        %896 = vmatpush1.bf16.xpose.msra.mxu0 0
        %897 = vmatprep.subr.bf16.mxu0 0
        %898 = vmatpush1.bf16.xpose.msra.mxu0 0
        %899 = vmatprep.subr.bf16.mxu0 0
        %900 = vmatpush1.bf16.xpose.msra.mxu0 0
        %901 = vmatprep.subr.bf16.mxu0 0
        %902 = vmatpush1.bf16.xpose.msra.mxu0 0
        %903 = vmatprep.subr.bf16.mxu0 0
        %904 = vmatpush1.bf16.xpose.msra.mxu0 0
        %905 = vmatprep.subr.bf16.mxu0 0
        %906 = vmatpush1.bf16.xpose.msra.mxu0 0
        %907 = vmatprep.subr.bf16.mxu0 0
        %908 = vmatpush1.bf16.xpose.msra.mxu0 0
        %909 = vmatprep.subr.bf16.mxu0 0
        %910 = vmatpush1.bf16.xpose.msra.mxu0 0
        %911 = vmatprep.subr.bf16.mxu0 0
        %912 = vmatpush1.bf16.xpose.msra.mxu0 0
        %913 = vmatprep.subr.bf16.mxu0 0
        %914 = vmatpush1.bf16.xpose.msra.mxu0 0
        %915 = vmatprep.subr.bf16.mxu0 0
        %916 = vmatpush1.bf16.xpose.msra.mxu0 0
        %917 = vmatprep.subr.bf16.mxu0 0
        %918 = vmatpush1.bf16.xpose.msra.mxu0 0
        %919 = vmatprep.mubr.bf16.mxu0 0
        %920 = vmatmul.mubr.bf16.gmra.mrb[0].mxu0 %v882
        %v921 = vpop.f32.mrb[0].mxu0
        %v922 = vadd.f32 %v864, %v921
        %v923 = vpop.f32.mrb[0].mxu0
        %v924 = vpop.f32.mrb[0].mxu0
        %v925 = vpop.f32.mrb[0].mxu0
        %926 = vdwg.mxu0
        %v928 = vsel %vm736, %v846, 0
        %v931 = vsel %vm736, %v850, 0
        %933 = vmatprep.subr.bf16.mxu0 0
        %934 = vmatpush1.bf16.xpose.msra.mxu0 %v931
        %935 = vmatprep.subr.bf16.mxu0 0
        %936 = vmatpush1.bf16.xpose.msra.mxu0 0
        %937 = vmatprep.subr.bf16.mxu0 0
        %938 = vmatpush1.bf16.xpose.msra.mxu0 0
        %939 = vmatprep.subr.bf16.mxu0 0
        %940 = vmatpush1.bf16.xpose.msra.mxu0 0
        %941 = vmatprep.subr.bf16.mxu0 0
        %942 = vmatpush1.bf16.xpose.msra.mxu0 0
        %943 = vmatprep.subr.bf16.mxu0 0
        %944 = vmatpush1.bf16.xpose.msra.mxu0 0
        %945 = vmatprep.subr.bf16.mxu0 0
        %946 = vmatpush1.bf16.xpose.msra.mxu0 0
        %947 = vmatprep.subr.bf16.mxu0 0
        %948 = vmatpush1.bf16.xpose.msra.mxu0 0
        %949 = vmatprep.subr.bf16.mxu0 0
        %950 = vmatpush1.bf16.xpose.msra.mxu0 0
        %951 = vmatprep.subr.bf16.mxu0 0
        %952 = vmatpush1.bf16.xpose.msra.mxu0 0
        %953 = vmatprep.subr.bf16.mxu0 0
        %954 = vmatpush1.bf16.xpose.msra.mxu0 0
        %955 = vmatprep.subr.bf16.mxu0 0
        %956 = vmatpush1.bf16.xpose.msra.mxu0 0
        %957 = vmatprep.subr.bf16.mxu0 0
        %958 = vmatpush1.bf16.xpose.msra.mxu0 0
        %959 = vmatprep.subr.bf16.mxu0 0
        %960 = vmatpush1.bf16.xpose.msra.mxu0 0
        %961 = vmatprep.subr.bf16.mxu0 0
        %962 = vmatpush1.bf16.xpose.msra.mxu0 0
        %963 = vmatprep.subr.bf16.mxu0 0
        %964 = vmatpush1.bf16.xpose.msra.mxu0 0
        %965 = vmatprep.mubr.bf16.mxu0 0
        %966 = vmatmul.mubr.bf16.gmra.mrb[0].mxu0 %v928
        %v967 = vpop.f32.mrb[0].mxu0
        %v968 = vadd.f32 %v868, %v967
        %v969 = vpop.f32.mrb[0].mxu0
        %v970 = vpop.f32.mrb[0].mxu0
        %v971 = vpop.f32.mrb[0].mxu0
        %972 = vdwg.mxu0
        %v974 = vsel %vm736, %v847, 0
        %v977 = vsel %vm736, %v851, 0
        %979 = vmatprep.subr.bf16.mxu0 0
        %980 = vmatpush1.bf16.xpose.msra.mxu0 %v977
        %981 = vmatprep.subr.bf16.mxu0 0
        %982 = vmatpush1.bf16.xpose.msra.mxu0 0
        %983 = vmatprep.subr.bf16.mxu0 0
        %984 = vmatpush1.bf16.xpose.msra.mxu0 0
        %985 = vmatprep.subr.bf16.mxu0 0
        %986 = vmatpush1.bf16.xpose.msra.mxu0 0
        %987 = vmatprep.subr.bf16.mxu0 0
        %988 = vmatpush1.bf16.xpose.msra.mxu0 0
        %989 = vmatprep.subr.bf16.mxu0 0
        %990 = vmatpush1.bf16.xpose.msra.mxu0 0
        %991 = vmatprep.subr.bf16.mxu0 0
        %992 = vmatpush1.bf16.xpose.msra.mxu0 0
        %993 = vmatprep.subr.bf16.mxu0 0
        %994 = vmatpush1.bf16.xpose.msra.mxu0 0
        %995 = vmatprep.subr.bf16.mxu0 0
        %996 = vmatpush1.bf16.xpose.msra.mxu0 0
        %997 = vmatprep.subr.bf16.mxu0 0
        %998 = vmatpush1.bf16.xpose.msra.mxu0 0
        %999 = vmatprep.subr.bf16.mxu0 0
        %1000 = vmatpush1.bf16.xpose.msra.mxu0 0
        %1001 = vmatprep.subr.bf16.mxu0 0
        %1002 = vmatpush1.bf16.xpose.msra.mxu0 0
        %1003 = vmatprep.subr.bf16.mxu0 0
        %1004 = vmatpush1.bf16.xpose.msra.mxu0 0
        %1005 = vmatprep.subr.bf16.mxu0 0
        %1006 = vmatpush1.bf16.xpose.msra.mxu0 0
        %1007 = vmatprep.subr.bf16.mxu0 0
        %1008 = vmatpush1.bf16.xpose.msra.mxu0 0
        %1009 = vmatprep.subr.bf16.mxu0 0
        %1010 = vmatpush1.bf16.xpose.msra.mxu0 0
        %1011 = vmatprep.mubr.bf16.mxu0 0
        %1012 = vmatmul.mubr.bf16.gmra.mrb[0].mxu0 %v974
        %v1013 = vpop.f32.mrb[0].mxu0
        %v1014 = vadd.f32 %v872, %v1013
        %v1015 = vpop.f32.mrb[0].mxu0
        %v1016 = vpop.f32.mrb[0].mxu0
        %v1017 = vpop.f32.mrb[0].mxu0
        %1018 = vdwg.mxu0
        %v1020 = vsel %vm736, %v848, 0
        %v1023 = vsel %vm736, %v852, 0
        %1025 = vmatprep.subr.bf16.mxu0 0
        %1026 = vmatpush1.bf16.xpose.msra.mxu0 %v1023
        %1027 = vmatprep.subr.bf16.mxu0 0
        %1028 = vmatpush1.bf16.xpose.msra.mxu0 0
        %1029 = vmatprep.subr.bf16.mxu0 0
        %1030 = vmatpush1.bf16.xpose.msra.mxu0 0
        %1031 = vmatprep.subr.bf16.mxu0 0
        %1032 = vmatpush1.bf16.xpose.msra.mxu0 0
        %1033 = vmatprep.subr.bf16.mxu0 0
        %1034 = vmatpush1.bf16.xpose.msra.mxu0 0
        %1035 = vmatprep.subr.bf16.mxu0 0
        %1036 = vmatpush1.bf16.xpose.msra.mxu0 0
        %1037 = vmatprep.subr.bf16.mxu0 0
        %1038 = vmatpush1.bf16.xpose.msra.mxu0 0
        %1039 = vmatprep.subr.bf16.mxu0 0
        %1040 = vmatpush1.bf16.xpose.msra.mxu0 0
        %1041 = vmatprep.subr.bf16.mxu0 0
        %1042 = vmatpush1.bf16.xpose.msra.mxu0 0
        %1043 = vmatprep.subr.bf16.mxu0 0
        %1044 = vmatpush1.bf16.xpose.msra.mxu0 0
        %1045 = vmatprep.subr.bf16.mxu0 0
        %1046 = vmatpush1.bf16.xpose.msra.mxu0 0
        %1047 = vmatprep.subr.bf16.mxu0 0
        %1048 = vmatpush1.bf16.xpose.msra.mxu0 0
        %1049 = vmatprep.subr.bf16.mxu0 0
        %1050 = vmatpush1.bf16.xpose.msra.mxu0 0
        %1051 = vmatprep.subr.bf16.mxu0 0
        %1052 = vmatpush1.bf16.xpose.msra.mxu0 0
        %1053 = vmatprep.subr.bf16.mxu0 0
        %1054 = vmatpush1.bf16.xpose.msra.mxu0 0
        %1055 = vmatprep.subr.bf16.mxu0 0
        %1056 = vmatpush1.bf16.xpose.msra.mxu0 0
        %1057 = vmatprep.mubr.bf16.mxu0 0
        %1058 = vmatmul.mubr.bf16.gmra.mrb[0].mxu0 %v1020
        %v1059 = vpop.f32.mrb[0].mxu0
        %v1060 = vadd.f32 %v876, %v1059
        %v1061 = vpop.f32.mrb[0].mxu0
        %v1062 = vpop.f32.mrb[0].mxu0
        %v1063 = vpop.f32.mrb[0].mxu0
        %1064 = vdwg.mxu0
        %vm1065 = vcmask 64512
        %v1066 = vsel %vm1065, %v922, -inf
        %1067 = vmax.xlane.f32.xlu0 %v1066
        %v1068 = vpop.xlane.xlu0 %1067
        %v1069 = vsel %vm1065, %v968, -inf
        %1070 = vmax.xlane.f32.xlu0 %v1069
        %v1071 = vpop.xlane.xlu0 %1070
        %v1072 = vsel %vm1065, %v1014, -inf
        %1073 = vmax.xlane.f32.xlu0 %v1072
        %v1074 = vpop.xlane.xlu0 %1073
        %v1075 = vsel %vm1065, %v1060, -inf
        %1076 = vmax.xlane.f32.xlu0 %v1075
        %v1077 = vpop.xlane.xlu0 %1076
        %v1078 = vsub.f32 %v922, %v1068
        %v1079 = vsub.f32 %v968, %v1071
        %v1080 = vsub.f32 %v1014, %v1074
        %v1081 = vsub.f32 %v1060, %v1077
        %v1082 = vmul.f32 %v1078, 1.442695
        %v1083 = vpow.pop %v1082
        %v1084 = vmul.f32 %v1079, 1.442695
        %v1085 = vpow.pop %v1084
        %v1086 = vmul.f32 %v1080, 1.442695
        %v1087 = vpow.pop %v1086
        %v1088 = vmul.f32 %v1081, 1.442695
        %v1089 = vpow.pop %v1088
        %v1090 = vsel %vm1065, %v1083, 0.0
        %1091 = vadd.xlane.f32.xlu0 %v1090
        %v1092 = vpop.xlane.xlu0 %1091
        %v1093 = vsel %vm1065, %v1085, 0.0
        %1094 = vadd.xlane.f32.xlu0 %v1093
        %v1095 = vpop.xlane.xlu0 %1094
        %v1096 = vsel %vm1065, %v1087, 0.0
        %1097 = vadd.xlane.f32.xlu0 %v1096
        %v1098 = vpop.xlane.xlu0 %1097
        %v1099 = vsel %vm1065, %v1089, 0.0
        %1100 = vadd.xlane.f32.xlu0 %v1099
        %v1101 = vpop.xlane.xlu0 %1100
        %v1102 = vrcp.pop %v1092
        %v1103 = vrcp.pop %v1095
        %v1104 = vrcp.pop %v1098
        %v1105 = vrcp.pop %v1101
        %v1106 = vmul.f32 %v1083, %v1102
        %v1107 = vmul.f32 %v1085, %v1103
        %v1108 = vmul.f32 %v1087, %v1104
        %v1109 = vmul.f32 %v1089, %v1105
        %v1110 = vpack.c.bf16 %v1106, %v1106
        %v1111 = vpack.c.bf16 %v1107, %v1107
        %v1112 = vpack.c.bf16 %v1108, %v1108
        %v1113 = vpack.c.bf16 %v1109, %v1109
        %v1115 = vsel %vm1065, %v1110, 0
        %vm1117 = vcmask 1043456
        %v1119 = vsel %vm1117, %v853, 0
        %1121 = vmatprep.subr.bf16.mxu0 0
        %1122 = vmatpush1.bf16.msra.mxu0 %v1119
        %1123 = vmatprep.subr.bf16.mxu0 0
        %1124 = vmatpush1.bf16.msra.mxu0 0
        %1125 = vmatprep.subr.bf16.mxu0 0
        %1126 = vmatpush1.bf16.msra.mxu0 0
        %1127 = vmatprep.subr.bf16.mxu0 0
        %1128 = vmatpush1.bf16.msra.mxu0 0
        %1129 = vmatprep.subr.bf16.mxu0 0
        %1130 = vmatpush1.bf16.msra.mxu0 0
        %1131 = vmatprep.subr.bf16.mxu0 0
        %1132 = vmatpush1.bf16.msra.mxu0 0
        %1133 = vmatprep.subr.bf16.mxu0 0
        %1134 = vmatpush1.bf16.msra.mxu0 0
        %1135 = vmatprep.subr.bf16.mxu0 0
        %1136 = vmatpush1.bf16.msra.mxu0 0
        %1137 = vmatprep.subr.bf16.mxu0 0
        %1138 = vmatpush1.bf16.msra.mxu0 0
        %1139 = vmatprep.subr.bf16.mxu0 0
        %1140 = vmatpush1.bf16.msra.mxu0 0
        %1141 = vmatprep.subr.bf16.mxu0 0
        %1142 = vmatpush1.bf16.msra.mxu0 0
        %1143 = vmatprep.subr.bf16.mxu0 0
        %1144 = vmatpush1.bf16.msra.mxu0 0
        %1145 = vmatprep.subr.bf16.mxu0 0
        %1146 = vmatpush1.bf16.msra.mxu0 0
        %1147 = vmatprep.subr.bf16.mxu0 0
        %1148 = vmatpush1.bf16.msra.mxu0 0
        %1149 = vmatprep.subr.bf16.mxu0 0
        %1150 = vmatpush1.bf16.msra.mxu0 0
        %1151 = vmatprep.subr.bf16.mxu0 0
        %1152 = vmatpush1.bf16.msra.mxu0 0
        %1153 = vmatprep.mubr.bf16.mxu0 0
        %1154 = vmatmul.mubr.bf16.gmra.mrb[0].mxu0 %v1115
        %v1155 = vpop.f32.mrb[0].mxu0
        %v1156 = vadd.f32 0.0, %v1155
        %v1157 = vpop.f32.mrb[0].mxu0
        %v1158 = vpop.f32.mrb[0].mxu0
        %v1159 = vpop.f32.mrb[0].mxu0
        %1160 = vdwg.mxu0
        %v1162 = vsel %vm1065, %v1111, 0
        %v1165 = vsel %vm1117, %v854, 0
        %1167 = vmatprep.subr.bf16.mxu0 0
        %1168 = vmatpush1.bf16.msra.mxu0 %v1165
        %1169 = vmatprep.subr.bf16.mxu0 0
        %1170 = vmatpush1.bf16.msra.mxu0 0
        %1171 = vmatprep.subr.bf16.mxu0 0
        %1172 = vmatpush1.bf16.msra.mxu0 0
        %1173 = vmatprep.subr.bf16.mxu0 0
        %1174 = vmatpush1.bf16.msra.mxu0 0
        %1175 = vmatprep.subr.bf16.mxu0 0
        %1176 = vmatpush1.bf16.msra.mxu0 0
        %1177 = vmatprep.subr.bf16.mxu0 0
        %1178 = vmatpush1.bf16.msra.mxu0 0
        %1179 = vmatprep.subr.bf16.mxu0 0
        %1180 = vmatpush1.bf16.msra.mxu0 0
        %1181 = vmatprep.subr.bf16.mxu0 0
        %1182 = vmatpush1.bf16.msra.mxu0 0
        %1183 = vmatprep.subr.bf16.mxu0 0
        %1184 = vmatpush1.bf16.msra.mxu0 0
        %1185 = vmatprep.subr.bf16.mxu0 0
        %1186 = vmatpush1.bf16.msra.mxu0 0
        %1187 = vmatprep.subr.bf16.mxu0 0
        %1188 = vmatpush1.bf16.msra.mxu0 0
        %1189 = vmatprep.subr.bf16.mxu0 0
        %1190 = vmatpush1.bf16.msra.mxu0 0
        %1191 = vmatprep.subr.bf16.mxu0 0
        %1192 = vmatpush1.bf16.msra.mxu0 0
        %1193 = vmatprep.subr.bf16.mxu0 0
        %1194 = vmatpush1.bf16.msra.mxu0 0
        %1195 = vmatprep.subr.bf16.mxu0 0
        %1196 = vmatpush1.bf16.msra.mxu0 0
        %1197 = vmatprep.subr.bf16.mxu0 0
        %1198 = vmatpush1.bf16.msra.mxu0 0
        %1199 = vmatprep.mubr.bf16.mxu0 0
        %1200 = vmatmul.mubr.bf16.gmra.mrb[0].mxu0 %v1162
        %v1201 = vpop.f32.mrb[0].mxu0
        %v1202 = vadd.f32 0.0, %v1201
        %v1203 = vpop.f32.mrb[0].mxu0
        %v1204 = vpop.f32.mrb[0].mxu0
        %v1205 = vpop.f32.mrb[0].mxu0
        %1206 = vdwg.mxu0
        %v1208 = vsel %vm1065, %v1112, 0
        %v1211 = vsel %vm1117, %v855, 0
        %1213 = vmatprep.subr.bf16.mxu0 0
        %1214 = vmatpush1.bf16.msra.mxu0 %v1211
        %1215 = vmatprep.subr.bf16.mxu0 0
        %1216 = vmatpush1.bf16.msra.mxu0 0
        %1217 = vmatprep.subr.bf16.mxu0 0
        %1218 = vmatpush1.bf16.msra.mxu0 0
        %1219 = vmatprep.subr.bf16.mxu0 0
        %1220 = vmatpush1.bf16.msra.mxu0 0
        %1221 = vmatprep.subr.bf16.mxu0 0
        %1222 = vmatpush1.bf16.msra.mxu0 0
        %1223 = vmatprep.subr.bf16.mxu0 0
        %1224 = vmatpush1.bf16.msra.mxu0 0
        %1225 = vmatprep.subr.bf16.mxu0 0
        %1226 = vmatpush1.bf16.msra.mxu0 0
        %1227 = vmatprep.subr.bf16.mxu0 0
        %1228 = vmatpush1.bf16.msra.mxu0 0
        %1229 = vmatprep.subr.bf16.mxu0 0
        %1230 = vmatpush1.bf16.msra.mxu0 0
        %1231 = vmatprep.subr.bf16.mxu0 0
        %1232 = vmatpush1.bf16.msra.mxu0 0
        %1233 = vmatprep.subr.bf16.mxu0 0
        %1234 = vmatpush1.bf16.msra.mxu0 0
        %1235 = vmatprep.subr.bf16.mxu0 0
        %1236 = vmatpush1.bf16.msra.mxu0 0
        %1237 = vmatprep.subr.bf16.mxu0 0
        %1238 = vmatpush1.bf16.msra.mxu0 0
        %1239 = vmatprep.subr.bf16.mxu0 0
        %1240 = vmatpush1.bf16.msra.mxu0 0
        %1241 = vmatprep.subr.bf16.mxu0 0
        %1242 = vmatpush1.bf16.msra.mxu0 0
        %1243 = vmatprep.subr.bf16.mxu0 0
        %1244 = vmatpush1.bf16.msra.mxu0 0
        %1245 = vmatprep.mubr.bf16.mxu0 0
        %1246 = vmatmul.mubr.bf16.gmra.mrb[0].mxu0 %v1208
        %v1247 = vpop.f32.mrb[0].mxu0
        %v1248 = vadd.f32 0.0, %v1247
        %v1249 = vpop.f32.mrb[0].mxu0
        %v1250 = vpop.f32.mrb[0].mxu0
        %v1251 = vpop.f32.mrb[0].mxu0
        %1252 = vdwg.mxu0
        %v1254 = vsel %vm1065, %v1113, 0
        %v1257 = vsel %vm1117, %v856, 0
        %1259 = vmatprep.subr.bf16.mxu0 0
        %1260 = vmatpush1.bf16.msra.mxu0 %v1257
        %1261 = vmatprep.subr.bf16.mxu0 0
        %1262 = vmatpush1.bf16.msra.mxu0 0
        %1263 = vmatprep.subr.bf16.mxu0 0
        %1264 = vmatpush1.bf16.msra.mxu0 0
        %1265 = vmatprep.subr.bf16.mxu0 0
        %1266 = vmatpush1.bf16.msra.mxu0 0
        %1267 = vmatprep.subr.bf16.mxu0 0
        %1268 = vmatpush1.bf16.msra.mxu0 0
        %1269 = vmatprep.subr.bf16.mxu0 0
        %1270 = vmatpush1.bf16.msra.mxu0 0
        %1271 = vmatprep.subr.bf16.mxu0 0
        %1272 = vmatpush1.bf16.msra.mxu0 0
        %1273 = vmatprep.subr.bf16.mxu0 0
        %1274 = vmatpush1.bf16.msra.mxu0 0
        %1275 = vmatprep.subr.bf16.mxu0 0
        %1276 = vmatpush1.bf16.msra.mxu0 0
        %1277 = vmatprep.subr.bf16.mxu0 0
        %1278 = vmatpush1.bf16.msra.mxu0 0
        %1279 = vmatprep.subr.bf16.mxu0 0
        %1280 = vmatpush1.bf16.msra.mxu0 0
        %1281 = vmatprep.subr.bf16.mxu0 0
        %1282 = vmatpush1.bf16.msra.mxu0 0
        %1283 = vmatprep.subr.bf16.mxu0 0
        %1284 = vmatpush1.bf16.msra.mxu0 0
        %1285 = vmatprep.subr.bf16.mxu0 0
        %1286 = vmatpush1.bf16.msra.mxu0 0
        %1287 = vmatprep.subr.bf16.mxu0 0
        %1288 = vmatpush1.bf16.msra.mxu0 0
        %1289 = vmatprep.subr.bf16.mxu0 0
        %1290 = vmatpush1.bf16.msra.mxu0 0
        %1291 = vmatprep.mubr.bf16.mxu0 0
        %1292 = vmatmul.mubr.bf16.gmra.mrb[0].mxu0 %v1254
        %v1293 = vpop.f32.mrb[0].mxu0
        %v1294 = vadd.f32 0.0, %v1293
        %v1295 = vpop.f32.mrb[0].mxu0
        %v1296 = vpop.f32.mrb[0].mxu0
        %v1297 = vpop.f32.mrb[0].mxu0
        %1298 = vdwg.mxu0
        %1300 = vrot.lane.b32.xlu0 %v845, 96
        %v1301 = vpop.permute.xlu0 %1300
        %1303 = vrot.lane.b32.xlu0 %v849, 96
        %v1304 = vpop.permute.xlu0 %1303
        %v1306 = vsel %vm736, %v1301, 0
        %v1309 = vsel %vm736, %v1304, 0
        %1311 = vmatprep.subr.bf16.mxu0 0
        %1312 = vmatpush1.bf16.xpose.msra.mxu0 %v1309
        %1313 = vmatprep.subr.bf16.mxu0 0
        %1314 = vmatpush1.bf16.xpose.msra.mxu0 0
        %1315 = vmatprep.subr.bf16.mxu0 0
        %1316 = vmatpush1.bf16.xpose.msra.mxu0 0
        %1317 = vmatprep.subr.bf16.mxu0 0
        %1318 = vmatpush1.bf16.xpose.msra.mxu0 0
        %1319 = vmatprep.subr.bf16.mxu0 0
        %1320 = vmatpush1.bf16.xpose.msra.mxu0 0
        %1321 = vmatprep.subr.bf16.mxu0 0
        %1322 = vmatpush1.bf16.xpose.msra.mxu0 0
        %1323 = vmatprep.subr.bf16.mxu0 0
        %1324 = vmatpush1.bf16.xpose.msra.mxu0 0
        %1325 = vmatprep.subr.bf16.mxu0 0
        %1326 = vmatpush1.bf16.xpose.msra.mxu0 0
        %1327 = vmatprep.subr.bf16.mxu0 0
        %1328 = vmatpush1.bf16.xpose.msra.mxu0 0
        %1329 = vmatprep.subr.bf16.mxu0 0
        %1330 = vmatpush1.bf16.xpose.msra.mxu0 0
        %1331 = vmatprep.subr.bf16.mxu0 0
        %1332 = vmatpush1.bf16.xpose.msra.mxu0 0
        %1333 = vmatprep.subr.bf16.mxu0 0
        %1334 = vmatpush1.bf16.xpose.msra.mxu0 0
        %1335 = vmatprep.subr.bf16.mxu0 0
        %1336 = vmatpush1.bf16.xpose.msra.mxu0 0
        %1337 = vmatprep.subr.bf16.mxu0 0
        %1338 = vmatpush1.bf16.xpose.msra.mxu0 0
        %1339 = vmatprep.subr.bf16.mxu0 0
        %1340 = vmatpush1.bf16.xpose.msra.mxu0 0
        %1341 = vmatprep.subr.bf16.mxu0 0
        %1342 = vmatpush1.bf16.xpose.msra.mxu0 0
        %1343 = vmatprep.mubr.bf16.mxu0 0
        %1344 = vmatmul.mubr.bf16.gmra.mrb[0].mxu0 %v1306
        %v1345 = vpop.f32.mrb[0].mxu0
        %v1346 = vadd.f32 %v864, %v1345
        %v1347 = vpop.f32.mrb[0].mxu0
        %v1348 = vpop.f32.mrb[0].mxu0
        %v1349 = vpop.f32.mrb[0].mxu0
        %1350 = vdwg.mxu0
        %1352 = vrot.lane.b32.xlu0 %v846, 96
        %v1353 = vpop.permute.xlu0 %1352
        %1355 = vrot.lane.b32.xlu0 %v850, 96
        %v1356 = vpop.permute.xlu0 %1355
        %v1358 = vsel %vm736, %v1353, 0
        %v1361 = vsel %vm736, %v1356, 0
        %1363 = vmatprep.subr.bf16.mxu0 0
        %1364 = vmatpush1.bf16.xpose.msra.mxu0 %v1361
        %1365 = vmatprep.subr.bf16.mxu0 0
        %1366 = vmatpush1.bf16.xpose.msra.mxu0 0
        %1367 = vmatprep.subr.bf16.mxu0 0
        %1368 = vmatpush1.bf16.xpose.msra.mxu0 0
        %1369 = vmatprep.subr.bf16.mxu0 0
        %1370 = vmatpush1.bf16.xpose.msra.mxu0 0
        %1371 = vmatprep.subr.bf16.mxu0 0
        %1372 = vmatpush1.bf16.xpose.msra.mxu0 0
        %1373 = vmatprep.subr.bf16.mxu0 0
        %1374 = vmatpush1.bf16.xpose.msra.mxu0 0
        %1375 = vmatprep.subr.bf16.mxu0 0
        %1376 = vmatpush1.bf16.xpose.msra.mxu0 0
        %1377 = vmatprep.subr.bf16.mxu0 0
        %1378 = vmatpush1.bf16.xpose.msra.mxu0 0
        %1379 = vmatprep.subr.bf16.mxu0 0
        %1380 = vmatpush1.bf16.xpose.msra.mxu0 0
        %1381 = vmatprep.subr.bf16.mxu0 0
        %1382 = vmatpush1.bf16.xpose.msra.mxu0 0
        %1383 = vmatprep.subr.bf16.mxu0 0
        %1384 = vmatpush1.bf16.xpose.msra.mxu0 0
        %1385 = vmatprep.subr.bf16.mxu0 0
        %1386 = vmatpush1.bf16.xpose.msra.mxu0 0
        %1387 = vmatprep.subr.bf16.mxu0 0
        %1388 = vmatpush1.bf16.xpose.msra.mxu0 0
        %1389 = vmatprep.subr.bf16.mxu0 0
        %1390 = vmatpush1.bf16.xpose.msra.mxu0 0
        %1391 = vmatprep.subr.bf16.mxu0 0
        %1392 = vmatpush1.bf16.xpose.msra.mxu0 0
        %1393 = vmatprep.subr.bf16.mxu0 0
        %1394 = vmatpush1.bf16.xpose.msra.mxu0 0
        %1395 = vmatprep.mubr.bf16.mxu0 0
        %1396 = vmatmul.mubr.bf16.gmra.mrb[0].mxu0 %v1358
        %v1397 = vpop.f32.mrb[0].mxu0
        %v1398 = vadd.f32 %v868, %v1397
        %v1399 = vpop.f32.mrb[0].mxu0
        %v1400 = vpop.f32.mrb[0].mxu0
        %v1401 = vpop.f32.mrb[0].mxu0
        %1402 = vdwg.mxu0
        %1404 = vrot.lane.b32.xlu0 %v847, 96
        %v1405 = vpop.permute.xlu0 %1404
        %1407 = vrot.lane.b32.xlu0 %v851, 96
        %v1408 = vpop.permute.xlu0 %1407
        %v1410 = vsel %vm736, %v1405, 0
        %v1413 = vsel %vm736, %v1408, 0
        %1415 = vmatprep.subr.bf16.mxu0 0
        %1416 = vmatpush1.bf16.xpose.msra.mxu0 %v1413
        %1417 = vmatprep.subr.bf16.mxu0 0
        %1418 = vmatpush1.bf16.xpose.msra.mxu0 0
        %1419 = vmatprep.subr.bf16.mxu0 0
        %1420 = vmatpush1.bf16.xpose.msra.mxu0 0
        %1421 = vmatprep.subr.bf16.mxu0 0
        %1422 = vmatpush1.bf16.xpose.msra.mxu0 0
        %1423 = vmatprep.subr.bf16.mxu0 0
        %1424 = vmatpush1.bf16.xpose.msra.mxu0 0
        %1425 = vmatprep.subr.bf16.mxu0 0
        %1426 = vmatpush1.bf16.xpose.msra.mxu0 0
        %1427 = vmatprep.subr.bf16.mxu0 0
        %1428 = vmatpush1.bf16.xpose.msra.mxu0 0
        %1429 = vmatprep.subr.bf16.mxu0 0
        %1430 = vmatpush1.bf16.xpose.msra.mxu0 0
        %1431 = vmatprep.subr.bf16.mxu0 0
        %1432 = vmatpush1.bf16.xpose.msra.mxu0 0
        %1433 = vmatprep.subr.bf16.mxu0 0
        %1434 = vmatpush1.bf16.xpose.msra.mxu0 0
        %1435 = vmatprep.subr.bf16.mxu0 0
        %1436 = vmatpush1.bf16.xpose.msra.mxu0 0
        %1437 = vmatprep.subr.bf16.mxu0 0
        %1438 = vmatpush1.bf16.xpose.msra.mxu0 0
        %1439 = vmatprep.subr.bf16.mxu0 0
        %1440 = vmatpush1.bf16.xpose.msra.mxu0 0
        %1441 = vmatprep.subr.bf16.mxu0 0
        %1442 = vmatpush1.bf16.xpose.msra.mxu0 0
        %1443 = vmatprep.subr.bf16.mxu0 0
        %1444 = vmatpush1.bf16.xpose.msra.mxu0 0
        %1445 = vmatprep.subr.bf16.mxu0 0
        %1446 = vmatpush1.bf16.xpose.msra.mxu0 0
        %1447 = vmatprep.mubr.bf16.mxu0 0
        %1448 = vmatmul.mubr.bf16.gmra.mrb[0].mxu0 %v1410
        %v1449 = vpop.f32.mrb[0].mxu0
        %v1450 = vadd.f32 %v872, %v1449
        %v1451 = vpop.f32.mrb[0].mxu0
        %v1452 = vpop.f32.mrb[0].mxu0
        %v1453 = vpop.f32.mrb[0].mxu0
        %1454 = vdwg.mxu0
        %1456 = vrot.lane.b32.xlu0 %v848, 96
        %v1457 = vpop.permute.xlu0 %1456
        %1459 = vrot.lane.b32.xlu0 %v852, 96
        %v1460 = vpop.permute.xlu0 %1459
        %v1462 = vsel %vm736, %v1457, 0
        %v1465 = vsel %vm736, %v1460, 0
        %1467 = vmatprep.subr.bf16.mxu0 0
        %1468 = vmatpush1.bf16.xpose.msra.mxu0 %v1465
        %1469 = vmatprep.subr.bf16.mxu0 0
        %1470 = vmatpush1.bf16.xpose.msra.mxu0 0
        %1471 = vmatprep.subr.bf16.mxu0 0
        %1472 = vmatpush1.bf16.xpose.msra.mxu0 0
        %1473 = vmatprep.subr.bf16.mxu0 0
        %1474 = vmatpush1.bf16.xpose.msra.mxu0 0
        %1475 = vmatprep.subr.bf16.mxu0 0
        %1476 = vmatpush1.bf16.xpose.msra.mxu0 0
        %1477 = vmatprep.subr.bf16.mxu0 0
        %1478 = vmatpush1.bf16.xpose.msra.mxu0 0
        %1479 = vmatprep.subr.bf16.mxu0 0
        %1480 = vmatpush1.bf16.xpose.msra.mxu0 0
        %1481 = vmatprep.subr.bf16.mxu0 0
        %1482 = vmatpush1.bf16.xpose.msra.mxu0 0
        %1483 = vmatprep.subr.bf16.mxu0 0
        %1484 = vmatpush1.bf16.xpose.msra.mxu0 0
        %1485 = vmatprep.subr.bf16.mxu0 0
        %1486 = vmatpush1.bf16.xpose.msra.mxu0 0
        %1487 = vmatprep.subr.bf16.mxu0 0
        %1488 = vmatpush1.bf16.xpose.msra.mxu0 0
        %1489 = vmatprep.subr.bf16.mxu0 0
        %1490 = vmatpush1.bf16.xpose.msra.mxu0 0
        %1491 = vmatprep.subr.bf16.mxu0 0
        %1492 = vmatpush1.bf16.xpose.msra.mxu0 0
        %1493 = vmatprep.subr.bf16.mxu0 0
        %1494 = vmatpush1.bf16.xpose.msra.mxu0 0
        %1495 = vmatprep.subr.bf16.mxu0 0
        %1496 = vmatpush1.bf16.xpose.msra.mxu0 0
        %1497 = vmatprep.subr.bf16.mxu0 0
        %1498 = vmatpush1.bf16.xpose.msra.mxu0 0
        %1499 = vmatprep.mubr.bf16.mxu0 0
        %1500 = vmatmul.mubr.bf16.gmra.mrb[0].mxu0 %v1462
        %v1501 = vpop.f32.mrb[0].mxu0
        %v1502 = vadd.f32 %v876, %v1501
        %v1503 = vpop.f32.mrb[0].mxu0
        %v1504 = vpop.f32.mrb[0].mxu0
        %v1505 = vpop.f32.mrb[0].mxu0
        %1506 = vdwg.mxu0
        %v1507 = vsel %vm1065, %v1346, -inf
        %1508 = vmax.xlane.f32.xlu0 %v1507
        %v1509 = vpop.xlane.xlu0 %1508
        %v1510 = vsel %vm1065, %v1398, -inf
        %1511 = vmax.xlane.f32.xlu0 %v1510
        %v1512 = vpop.xlane.xlu0 %1511
        %v1513 = vsel %vm1065, %v1450, -inf
        %1514 = vmax.xlane.f32.xlu0 %v1513
        %v1515 = vpop.xlane.xlu0 %1514
        %v1516 = vsel %vm1065, %v1502, -inf
        %1517 = vmax.xlane.f32.xlu0 %v1516
        %v1518 = vpop.xlane.xlu0 %1517
        %v1519 = vsub.f32 %v1346, %v1509
        %v1520 = vsub.f32 %v1398, %v1512
        %v1521 = vsub.f32 %v1450, %v1515
        %v1522 = vsub.f32 %v1502, %v1518
        %v1523 = vmul.f32 %v1519, 1.442695
        %v1524 = vpow.pop %v1523
        %v1525 = vmul.f32 %v1520, 1.442695
        %v1526 = vpow.pop %v1525
        %v1527 = vmul.f32 %v1521, 1.442695
        %v1528 = vpow.pop %v1527
        %v1529 = vmul.f32 %v1522, 1.442695
        %v1530 = vpow.pop %v1529
        %v1531 = vsel %vm1065, %v1524, 0.0
        %1532 = vadd.xlane.f32.xlu0 %v1531
        %v1533 = vpop.xlane.xlu0 %1532
        %v1534 = vsel %vm1065, %v1526, 0.0
        %1535 = vadd.xlane.f32.xlu0 %v1534
        %v1536 = vpop.xlane.xlu0 %1535
        %v1537 = vsel %vm1065, %v1528, 0.0
        %1538 = vadd.xlane.f32.xlu0 %v1537
        %v1539 = vpop.xlane.xlu0 %1538
        %v1540 = vsel %vm1065, %v1530, 0.0
        %1541 = vadd.xlane.f32.xlu0 %v1540
        %v1542 = vpop.xlane.xlu0 %1541
        %v1543 = vrcp.pop %v1533
        %v1544 = vrcp.pop %v1536
        %v1545 = vrcp.pop %v1539
        %v1546 = vrcp.pop %v1542
        %v1547 = vmul.f32 %v1524, %v1543
        %v1548 = vmul.f32 %v1526, %v1544
        %v1549 = vmul.f32 %v1528, %v1545
        %v1550 = vmul.f32 %v1530, %v1546
        %v1551 = vpack.c.bf16 %v1547, %v1547
        %v1552 = vpack.c.bf16 %v1548, %v1548
        %v1553 = vpack.c.bf16 %v1549, %v1549
        %v1554 = vpack.c.bf16 %v1550, %v1550
        %1556 = vrot.lane.b32.xlu0 %v853, 96
        %v1557 = vpop.permute.xlu0 %1556
        %v1559 = vsel %vm1065, %v1551, 0
        %v1562 = vsel %vm1117, %v1557, 0
        %1564 = vmatprep.subr.bf16.mxu0 0
        %1565 = vmatpush1.bf16.msra.mxu0 %v1562
        %1566 = vmatprep.subr.bf16.mxu0 0
        %1567 = vmatpush1.bf16.msra.mxu0 0
        %1568 = vmatprep.subr.bf16.mxu0 0
        %1569 = vmatpush1.bf16.msra.mxu0 0
        %1570 = vmatprep.subr.bf16.mxu0 0
        %1571 = vmatpush1.bf16.msra.mxu0 0
        %1572 = vmatprep.subr.bf16.mxu0 0
        %1573 = vmatpush1.bf16.msra.mxu0 0
        %1574 = vmatprep.subr.bf16.mxu0 0
        %1575 = vmatpush1.bf16.msra.mxu0 0
        %1576 = vmatprep.subr.bf16.mxu0 0
        %1577 = vmatpush1.bf16.msra.mxu0 0
        %1578 = vmatprep.subr.bf16.mxu0 0
        %1579 = vmatpush1.bf16.msra.mxu0 0
        %1580 = vmatprep.subr.bf16.mxu0 0
        %1581 = vmatpush1.bf16.msra.mxu0 0
        %1582 = vmatprep.subr.bf16.mxu0 0
        %1583 = vmatpush1.bf16.msra.mxu0 0
        %1584 = vmatprep.subr.bf16.mxu0 0
        %1585 = vmatpush1.bf16.msra.mxu0 0
        %1586 = vmatprep.subr.bf16.mxu0 0
        %1587 = vmatpush1.bf16.msra.mxu0 0
        %1588 = vmatprep.subr.bf16.mxu0 0
        %1589 = vmatpush1.bf16.msra.mxu0 0
        %1590 = vmatprep.subr.bf16.mxu0 0
        %1591 = vmatpush1.bf16.msra.mxu0 0
        %1592 = vmatprep.subr.bf16.mxu0 0
        %1593 = vmatpush1.bf16.msra.mxu0 0
        %1594 = vmatprep.subr.bf16.mxu0 0
        %1595 = vmatpush1.bf16.msra.mxu0 0
        %1596 = vmatprep.mubr.bf16.mxu0 0
        %1597 = vmatmul.mubr.bf16.gmra.mrb[0].mxu0 %v1559
        %v1598 = vpop.f32.mrb[0].mxu0
        %v1599 = vadd.f32 0.0, %v1598
        %v1600 = vpop.f32.mrb[0].mxu0
        %v1601 = vpop.f32.mrb[0].mxu0
        %v1602 = vpop.f32.mrb[0].mxu0
        %1603 = vdwg.mxu0
        %1605 = vrot.lane.b32.xlu0 %v854, 96
        %v1606 = vpop.permute.xlu0 %1605
        %v1608 = vsel %vm1065, %v1552, 0
        %v1611 = vsel %vm1117, %v1606, 0
        %1613 = vmatprep.subr.bf16.mxu0 0
        %1614 = vmatpush1.bf16.msra.mxu0 %v1611
        %1615 = vmatprep.subr.bf16.mxu0 0
        %1616 = vmatpush1.bf16.msra.mxu0 0
        %1617 = vmatprep.subr.bf16.mxu0 0
        %1618 = vmatpush1.bf16.msra.mxu0 0
        %1619 = vmatprep.subr.bf16.mxu0 0
        %1620 = vmatpush1.bf16.msra.mxu0 0
        %1621 = vmatprep.subr.bf16.mxu0 0
        %1622 = vmatpush1.bf16.msra.mxu0 0
        %1623 = vmatprep.subr.bf16.mxu0 0
        %1624 = vmatpush1.bf16.msra.mxu0 0
        %1625 = vmatprep.subr.bf16.mxu0 0
        %1626 = vmatpush1.bf16.msra.mxu0 0
        %1627 = vmatprep.subr.bf16.mxu0 0
        %1628 = vmatpush1.bf16.msra.mxu0 0
        %1629 = vmatprep.subr.bf16.mxu0 0
        %1630 = vmatpush1.bf16.msra.mxu0 0
        %1631 = vmatprep.subr.bf16.mxu0 0
        %1632 = vmatpush1.bf16.msra.mxu0 0
        %1633 = vmatprep.subr.bf16.mxu0 0
        %1634 = vmatpush1.bf16.msra.mxu0 0
        %1635 = vmatprep.subr.bf16.mxu0 0
        %1636 = vmatpush1.bf16.msra.mxu0 0
        %1637 = vmatprep.subr.bf16.mxu0 0
        %1638 = vmatpush1.bf16.msra.mxu0 0
        %1639 = vmatprep.subr.bf16.mxu0 0
        %1640 = vmatpush1.bf16.msra.mxu0 0
        %1641 = vmatprep.subr.bf16.mxu0 0
        %1642 = vmatpush1.bf16.msra.mxu0 0
        %1643 = vmatprep.subr.bf16.mxu0 0
        %1644 = vmatpush1.bf16.msra.mxu0 0
        %1645 = vmatprep.mubr.bf16.mxu0 0
        %1646 = vmatmul.mubr.bf16.gmra.mrb[0].mxu0 %v1608
        %v1647 = vpop.f32.mrb[0].mxu0
        %v1648 = vadd.f32 0.0, %v1647
        %v1649 = vpop.f32.mrb[0].mxu0
        %v1650 = vpop.f32.mrb[0].mxu0
        %v1651 = vpop.f32.mrb[0].mxu0
        %1652 = vdwg.mxu0
        %1654 = vrot.lane.b32.xlu0 %v855, 96
        %v1655 = vpop.permute.xlu0 %1654
        %v1657 = vsel %vm1065, %v1553, 0
        %v1660 = vsel %vm1117, %v1655, 0
        %1662 = vmatprep.subr.bf16.mxu0 0
        %1663 = vmatpush1.bf16.msra.mxu0 %v1660
        %1664 = vmatprep.subr.bf16.mxu0 0
        %1665 = vmatpush1.bf16.msra.mxu0 0
        %1666 = vmatprep.subr.bf16.mxu0 0
        %1667 = vmatpush1.bf16.msra.mxu0 0
        %1668 = vmatprep.subr.bf16.mxu0 0
        %1669 = vmatpush1.bf16.msra.mxu0 0
        %1670 = vmatprep.subr.bf16.mxu0 0
        %1671 = vmatpush1.bf16.msra.mxu0 0
        %1672 = vmatprep.subr.bf16.mxu0 0
        %1673 = vmatpush1.bf16.msra.mxu0 0
        %1674 = vmatprep.subr.bf16.mxu0 0
        %1675 = vmatpush1.bf16.msra.mxu0 0
        %1676 = vmatprep.subr.bf16.mxu0 0
        %1677 = vmatpush1.bf16.msra.mxu0 0
        %1678 = vmatprep.subr.bf16.mxu0 0
        %1679 = vmatpush1.bf16.msra.mxu0 0
        %1680 = vmatprep.subr.bf16.mxu0 0
        %1681 = vmatpush1.bf16.msra.mxu0 0
        %1682 = vmatprep.subr.bf16.mxu0 0
        %1683 = vmatpush1.bf16.msra.mxu0 0
        %1684 = vmatprep.subr.bf16.mxu0 0
        %1685 = vmatpush1.bf16.msra.mxu0 0
        %1686 = vmatprep.subr.bf16.mxu0 0
        %1687 = vmatpush1.bf16.msra.mxu0 0
        %1688 = vmatprep.subr.bf16.mxu0 0
        %1689 = vmatpush1.bf16.msra.mxu0 0
        %1690 = vmatprep.subr.bf16.mxu0 0
        %1691 = vmatpush1.bf16.msra.mxu0 0
        %1692 = vmatprep.subr.bf16.mxu0 0
        %1693 = vmatpush1.bf16.msra.mxu0 0
        %1694 = vmatprep.mubr.bf16.mxu0 0
        %1695 = vmatmul.mubr.bf16.gmra.mrb[0].mxu0 %v1657
        %v1696 = vpop.f32.mrb[0].mxu0
        %v1697 = vadd.f32 0.0, %v1696
        %v1698 = vpop.f32.mrb[0].mxu0
        %v1699 = vpop.f32.mrb[0].mxu0
        %v1700 = vpop.f32.mrb[0].mxu0
        %1701 = vdwg.mxu0
        %1703 = vrot.lane.b32.xlu0 %v856, 96
        %v1704 = vpop.permute.xlu0 %1703
        %v1706 = vsel %vm1065, %v1554, 0
        %v1709 = vsel %vm1117, %v1704, 0
        %1711 = vmatprep.subr.bf16.mxu0 0
        %1712 = vmatpush1.bf16.msra.mxu0 %v1709
        %1713 = vmatprep.subr.bf16.mxu0 0
        %1714 = vmatpush1.bf16.msra.mxu0 0
        %1715 = vmatprep.subr.bf16.mxu0 0
        %1716 = vmatpush1.bf16.msra.mxu0 0
        %1717 = vmatprep.subr.bf16.mxu0 0
        %1718 = vmatpush1.bf16.msra.mxu0 0
        %1719 = vmatprep.subr.bf16.mxu0 0
        %1720 = vmatpush1.bf16.msra.mxu0 0
        %1721 = vmatprep.subr.bf16.mxu0 0
        %1722 = vmatpush1.bf16.msra.mxu0 0
        %1723 = vmatprep.subr.bf16.mxu0 0
        %1724 = vmatpush1.bf16.msra.mxu0 0
        %1725 = vmatprep.subr.bf16.mxu0 0
        %1726 = vmatpush1.bf16.msra.mxu0 0
        %1727 = vmatprep.subr.bf16.mxu0 0
        %1728 = vmatpush1.bf16.msra.mxu0 0
        %1729 = vmatprep.subr.bf16.mxu0 0
        %1730 = vmatpush1.bf16.msra.mxu0 0
        %1731 = vmatprep.subr.bf16.mxu0 0
        %1732 = vmatpush1.bf16.msra.mxu0 0
        %1733 = vmatprep.subr.bf16.mxu0 0
        %1734 = vmatpush1.bf16.msra.mxu0 0
        %1735 = vmatprep.subr.bf16.mxu0 0
        %1736 = vmatpush1.bf16.msra.mxu0 0
        %1737 = vmatprep.subr.bf16.mxu0 0
        %1738 = vmatpush1.bf16.msra.mxu0 0
        %1739 = vmatprep.subr.bf16.mxu0 0
        %1740 = vmatpush1.bf16.msra.mxu0 0
        %1741 = vmatprep.subr.bf16.mxu0 0
        %1742 = vmatpush1.bf16.msra.mxu0 0
        %1743 = vmatprep.mubr.bf16.mxu0 0
        %1744 = vmatmul.mubr.bf16.gmra.mrb[0].mxu0 %v1706
        %v1745 = vpop.f32.mrb[0].mxu0
        %v1746 = vadd.f32 0.0, %v1745
        %v1747 = vpop.f32.mrb[0].mxu0
        %v1748 = vpop.f32.mrb[0].mxu0
        %v1749 = vpop.f32.mrb[0].mxu0
        %1750 = vdwg.mxu0
        %1751 = vrot.lane.b32.xlu0 %v845, 64
        %v1752 = vpop.permute.xlu0 %1751
        %1753 = vrot.lane.b32.xlu0 %v849, 64
        %v1754 = vpop.permute.xlu0 %1753
        %v1756 = vsel %vm736, %v1752, 0
        %v1759 = vsel %vm736, %v1754, 0
        %1761 = vmatprep.subr.bf16.mxu0 0
        %1762 = vmatpush1.bf16.xpose.msra.mxu0 %v1759
        %1763 = vmatprep.subr.bf16.mxu0 0
        %1764 = vmatpush1.bf16.xpose.msra.mxu0 0
        %1765 = vmatprep.subr.bf16.mxu0 0
        %1766 = vmatpush1.bf16.xpose.msra.mxu0 0
        %1767 = vmatprep.subr.bf16.mxu0 0
        %1768 = vmatpush1.bf16.xpose.msra.mxu0 0
        %1769 = vmatprep.subr.bf16.mxu0 0
        %1770 = vmatpush1.bf16.xpose.msra.mxu0 0
        %1771 = vmatprep.subr.bf16.mxu0 0
        %1772 = vmatpush1.bf16.xpose.msra.mxu0 0
        %1773 = vmatprep.subr.bf16.mxu0 0
        %1774 = vmatpush1.bf16.xpose.msra.mxu0 0
        %1775 = vmatprep.subr.bf16.mxu0 0
        %1776 = vmatpush1.bf16.xpose.msra.mxu0 0
        %1777 = vmatprep.subr.bf16.mxu0 0
        %1778 = vmatpush1.bf16.xpose.msra.mxu0 0
        %1779 = vmatprep.subr.bf16.mxu0 0
        %1780 = vmatpush1.bf16.xpose.msra.mxu0 0
        %1781 = vmatprep.subr.bf16.mxu0 0
        %1782 = vmatpush1.bf16.xpose.msra.mxu0 0
        %1783 = vmatprep.subr.bf16.mxu0 0
        %1784 = vmatpush1.bf16.xpose.msra.mxu0 0
        %1785 = vmatprep.subr.bf16.mxu0 0
        %1786 = vmatpush1.bf16.xpose.msra.mxu0 0
        %1787 = vmatprep.subr.bf16.mxu0 0
        %1788 = vmatpush1.bf16.xpose.msra.mxu0 0
        %1789 = vmatprep.subr.bf16.mxu0 0
        %1790 = vmatpush1.bf16.xpose.msra.mxu0 0
        %1791 = vmatprep.subr.bf16.mxu0 0
        %1792 = vmatpush1.bf16.xpose.msra.mxu0 0
        %1793 = vmatprep.mubr.bf16.mxu0 0
        %1794 = vmatmul.mubr.bf16.gmra.mrb[0].mxu0 %v1756
        %v1795 = vpop.f32.mrb[0].mxu0
        %v1796 = vadd.f32 %v864, %v1795
        %v1797 = vpop.f32.mrb[0].mxu0
        %v1798 = vpop.f32.mrb[0].mxu0
        %v1799 = vpop.f32.mrb[0].mxu0
        %1800 = vdwg.mxu0
        %1801 = vrot.lane.b32.xlu0 %v846, 64
        %v1802 = vpop.permute.xlu0 %1801
        %1803 = vrot.lane.b32.xlu0 %v850, 64
        %v1804 = vpop.permute.xlu0 %1803
        %v1806 = vsel %vm736, %v1802, 0
        %v1809 = vsel %vm736, %v1804, 0
        %1811 = vmatprep.subr.bf16.mxu0 0
        %1812 = vmatpush1.bf16.xpose.msra.mxu0 %v1809
        %1813 = vmatprep.subr.bf16.mxu0 0
        %1814 = vmatpush1.bf16.xpose.msra.mxu0 0
        %1815 = vmatprep.subr.bf16.mxu0 0
        %1816 = vmatpush1.bf16.xpose.msra.mxu0 0
        %1817 = vmatprep.subr.bf16.mxu0 0
        %1818 = vmatpush1.bf16.xpose.msra.mxu0 0
        %1819 = vmatprep.subr.bf16.mxu0 0
        %1820 = vmatpush1.bf16.xpose.msra.mxu0 0
        %1821 = vmatprep.subr.bf16.mxu0 0
        %1822 = vmatpush1.bf16.xpose.msra.mxu0 0
        %1823 = vmatprep.subr.bf16.mxu0 0
        %1824 = vmatpush1.bf16.xpose.msra.mxu0 0
        %1825 = vmatprep.subr.bf16.mxu0 0
        %1826 = vmatpush1.bf16.xpose.msra.mxu0 0
        %1827 = vmatprep.subr.bf16.mxu0 0
        %1828 = vmatpush1.bf16.xpose.msra.mxu0 0
        %1829 = vmatprep.subr.bf16.mxu0 0
        %1830 = vmatpush1.bf16.xpose.msra.mxu0 0
        %1831 = vmatprep.subr.bf16.mxu0 0
        %1832 = vmatpush1.bf16.xpose.msra.mxu0 0
        %1833 = vmatprep.subr.bf16.mxu0 0
        %1834 = vmatpush1.bf16.xpose.msra.mxu0 0
        %1835 = vmatprep.subr.bf16.mxu0 0
        %1836 = vmatpush1.bf16.xpose.msra.mxu0 0
        %1837 = vmatprep.subr.bf16.mxu0 0
        %1838 = vmatpush1.bf16.xpose.msra.mxu0 0
        %1839 = vmatprep.subr.bf16.mxu0 0
        %1840 = vmatpush1.bf16.xpose.msra.mxu0 0
        %1841 = vmatprep.subr.bf16.mxu0 0
        %1842 = vmatpush1.bf16.xpose.msra.mxu0 0
        %1843 = vmatprep.mubr.bf16.mxu0 0
        %1844 = vmatmul.mubr.bf16.gmra.mrb[0].mxu0 %v1806
        %v1845 = vpop.f32.mrb[0].mxu0
        %v1846 = vadd.f32 %v868, %v1845
        %v1847 = vpop.f32.mrb[0].mxu0
        %v1848 = vpop.f32.mrb[0].mxu0
        %v1849 = vpop.f32.mrb[0].mxu0
        %1850 = vdwg.mxu0
        %1851 = vrot.lane.b32.xlu0 %v847, 64
        %v1852 = vpop.permute.xlu0 %1851
        %1853 = vrot.lane.b32.xlu0 %v851, 64
        %v1854 = vpop.permute.xlu0 %1853
        %v1856 = vsel %vm736, %v1852, 0
        %v1859 = vsel %vm736, %v1854, 0
        %1861 = vmatprep.subr.bf16.mxu0 0
        %1862 = vmatpush1.bf16.xpose.msra.mxu0 %v1859
        %1863 = vmatprep.subr.bf16.mxu0 0
        %1864 = vmatpush1.bf16.xpose.msra.mxu0 0
        %1865 = vmatprep.subr.bf16.mxu0 0
        %1866 = vmatpush1.bf16.xpose.msra.mxu0 0
        %1867 = vmatprep.subr.bf16.mxu0 0
        %1868 = vmatpush1.bf16.xpose.msra.mxu0 0
        %1869 = vmatprep.subr.bf16.mxu0 0
        %1870 = vmatpush1.bf16.xpose.msra.mxu0 0
        %1871 = vmatprep.subr.bf16.mxu0 0
        %1872 = vmatpush1.bf16.xpose.msra.mxu0 0
        %1873 = vmatprep.subr.bf16.mxu0 0
        %1874 = vmatpush1.bf16.xpose.msra.mxu0 0
        %1875 = vmatprep.subr.bf16.mxu0 0
        %1876 = vmatpush1.bf16.xpose.msra.mxu0 0
        %1877 = vmatprep.subr.bf16.mxu0 0
        %1878 = vmatpush1.bf16.xpose.msra.mxu0 0
        %1879 = vmatprep.subr.bf16.mxu0 0
        %1880 = vmatpush1.bf16.xpose.msra.mxu0 0
        %1881 = vmatprep.subr.bf16.mxu0 0
        %1882 = vmatpush1.bf16.xpose.msra.mxu0 0
        %1883 = vmatprep.subr.bf16.mxu0 0
        %1884 = vmatpush1.bf16.xpose.msra.mxu0 0
        %1885 = vmatprep.subr.bf16.mxu0 0
        %1886 = vmatpush1.bf16.xpose.msra.mxu0 0
        %1887 = vmatprep.subr.bf16.mxu0 0
        %1888 = vmatpush1.bf16.xpose.msra.mxu0 0
        %1889 = vmatprep.subr.bf16.mxu0 0
        %1890 = vmatpush1.bf16.xpose.msra.mxu0 0
        %1891 = vmatprep.subr.bf16.mxu0 0
        %1892 = vmatpush1.bf16.xpose.msra.mxu0 0
        %1893 = vmatprep.mubr.bf16.mxu0 0
        %1894 = vmatmul.mubr.bf16.gmra.mrb[0].mxu0 %v1856
        %v1895 = vpop.f32.mrb[0].mxu0
        %v1896 = vadd.f32 %v872, %v1895
        %v1897 = vpop.f32.mrb[0].mxu0
        %v1898 = vpop.f32.mrb[0].mxu0
        %v1899 = vpop.f32.mrb[0].mxu0
        %1900 = vdwg.mxu0
        %1901 = vrot.lane.b32.xlu0 %v848, 64
        %v1902 = vpop.permute.xlu0 %1901
        %1903 = vrot.lane.b32.xlu0 %v852, 64
        %v1904 = vpop.permute.xlu0 %1903
        %v1906 = vsel %vm736, %v1902, 0
        %v1909 = vsel %vm736, %v1904, 0
        %1911 = vmatprep.subr.bf16.mxu0 0
        %1912 = vmatpush1.bf16.xpose.msra.mxu0 %v1909
        %1913 = vmatprep.subr.bf16.mxu0 0
        %1914 = vmatpush1.bf16.xpose.msra.mxu0 0
        %1915 = vmatprep.subr.bf16.mxu0 0
        %1916 = vmatpush1.bf16.xpose.msra.mxu0 0
        %1917 = vmatprep.subr.bf16.mxu0 0
        %1918 = vmatpush1.bf16.xpose.msra.mxu0 0
        %1919 = vmatprep.subr.bf16.mxu0 0
        %1920 = vmatpush1.bf16.xpose.msra.mxu0 0
        %1921 = vmatprep.subr.bf16.mxu0 0
        %1922 = vmatpush1.bf16.xpose.msra.mxu0 0
        %1923 = vmatprep.subr.bf16.mxu0 0
        %1924 = vmatpush1.bf16.xpose.msra.mxu0 0
        %1925 = vmatprep.subr.bf16.mxu0 0
        %1926 = vmatpush1.bf16.xpose.msra.mxu0 0
        %1927 = vmatprep.subr.bf16.mxu0 0
        %1928 = vmatpush1.bf16.xpose.msra.mxu0 0
        %1929 = vmatprep.subr.bf16.mxu0 0
        %1930 = vmatpush1.bf16.xpose.msra.mxu0 0
        %1931 = vmatprep.subr.bf16.mxu0 0
        %1932 = vmatpush1.bf16.xpose.msra.mxu0 0
        %1933 = vmatprep.subr.bf16.mxu0 0
        %1934 = vmatpush1.bf16.xpose.msra.mxu0 0
        %1935 = vmatprep.subr.bf16.mxu0 0
        %1936 = vmatpush1.bf16.xpose.msra.mxu0 0
        %1937 = vmatprep.subr.bf16.mxu0 0
        %1938 = vmatpush1.bf16.xpose.msra.mxu0 0
        %1939 = vmatprep.subr.bf16.mxu0 0
        %1940 = vmatpush1.bf16.xpose.msra.mxu0 0
        %1941 = vmatprep.subr.bf16.mxu0 0
        %1942 = vmatpush1.bf16.xpose.msra.mxu0 0
        %1943 = vmatprep.mubr.bf16.mxu0 0
        %1944 = vmatmul.mubr.bf16.gmra.mrb[0].mxu0 %v1906
        %v1945 = vpop.f32.mrb[0].mxu0
        %v1946 = vadd.f32 %v876, %v1945
        %v1947 = vpop.f32.mrb[0].mxu0
        %v1948 = vpop.f32.mrb[0].mxu0
        %v1949 = vpop.f32.mrb[0].mxu0
        %1950 = vdwg.mxu0
        %v1951 = vsel %vm1065, %v1796, -inf
        %1952 = vmax.xlane.f32.xlu0 %v1951
        %v1953 = vpop.xlane.xlu0 %1952
        %v1954 = vsel %vm1065, %v1846, -inf
        %1955 = vmax.xlane.f32.xlu0 %v1954
        %v1956 = vpop.xlane.xlu0 %1955
        %v1957 = vsel %vm1065, %v1896, -inf
        %1958 = vmax.xlane.f32.xlu0 %v1957
        %v1959 = vpop.xlane.xlu0 %1958
        %v1960 = vsel %vm1065, %v1946, -inf
        %1961 = vmax.xlane.f32.xlu0 %v1960
        %v1962 = vpop.xlane.xlu0 %1961
        %v1963 = vsub.f32 %v1796, %v1953
        %v1964 = vsub.f32 %v1846, %v1956
        %v1965 = vsub.f32 %v1896, %v1959
        %v1966 = vsub.f32 %v1946, %v1962
        %v1967 = vmul.f32 %v1963, 1.442695
        %v1968 = vpow.pop %v1967
        %v1969 = vmul.f32 %v1964, 1.442695
        %v1970 = vpow.pop %v1969
        %v1971 = vmul.f32 %v1965, 1.442695
        %v1972 = vpow.pop %v1971
        %v1973 = vmul.f32 %v1966, 1.442695
        %v1974 = vpow.pop %v1973
        %v1975 = vsel %vm1065, %v1968, 0.0
        %1976 = vadd.xlane.f32.xlu0 %v1975
        %v1977 = vpop.xlane.xlu0 %1976
        %v1978 = vsel %vm1065, %v1970, 0.0
        %1979 = vadd.xlane.f32.xlu0 %v1978
        %v1980 = vpop.xlane.xlu0 %1979
        %v1981 = vsel %vm1065, %v1972, 0.0
        %1982 = vadd.xlane.f32.xlu0 %v1981
        %v1983 = vpop.xlane.xlu0 %1982
        %v1984 = vsel %vm1065, %v1974, 0.0
        %1985 = vadd.xlane.f32.xlu0 %v1984
        %v1986 = vpop.xlane.xlu0 %1985
        %v1987 = vrcp.pop %v1977
        %v1988 = vrcp.pop %v1980
        %v1989 = vrcp.pop %v1983
        %v1990 = vrcp.pop %v1986
        %v1991 = vmul.f32 %v1968, %v1987
        %v1992 = vmul.f32 %v1970, %v1988
        %v1993 = vmul.f32 %v1972, %v1989
        %v1994 = vmul.f32 %v1974, %v1990
        %v1995 = vpack.c.bf16 %v1991, %v1991
        %v1996 = vpack.c.bf16 %v1992, %v1992
        %v1997 = vpack.c.bf16 %v1993, %v1993
        %v1998 = vpack.c.bf16 %v1994, %v1994
        %1999 = vrot.lane.b32.xlu0 %v853, 64
        %v2000 = vpop.permute.xlu0 %1999
        %v2002 = vsel %vm1065, %v1995, 0
        %v2005 = vsel %vm1117, %v2000, 0
        %2007 = vmatprep.subr.bf16.mxu0 0
        %2008 = vmatpush1.bf16.msra.mxu0 %v2005
        %2009 = vmatprep.subr.bf16.mxu0 0
        %2010 = vmatpush1.bf16.msra.mxu0 0
        %2011 = vmatprep.subr.bf16.mxu0 0
        %2012 = vmatpush1.bf16.msra.mxu0 0
        %2013 = vmatprep.subr.bf16.mxu0 0
        %2014 = vmatpush1.bf16.msra.mxu0 0
        %2015 = vmatprep.subr.bf16.mxu0 0
        %2016 = vmatpush1.bf16.msra.mxu0 0
        %2017 = vmatprep.subr.bf16.mxu0 0
        %2018 = vmatpush1.bf16.msra.mxu0 0
        %2019 = vmatprep.subr.bf16.mxu0 0
        %2020 = vmatpush1.bf16.msra.mxu0 0
        %2021 = vmatprep.subr.bf16.mxu0 0
        %2022 = vmatpush1.bf16.msra.mxu0 0
        %2023 = vmatprep.subr.bf16.mxu0 0
        %2024 = vmatpush1.bf16.msra.mxu0 0
        %2025 = vmatprep.subr.bf16.mxu0 0
        %2026 = vmatpush1.bf16.msra.mxu0 0
        %2027 = vmatprep.subr.bf16.mxu0 0
        %2028 = vmatpush1.bf16.msra.mxu0 0
        %2029 = vmatprep.subr.bf16.mxu0 0
        %2030 = vmatpush1.bf16.msra.mxu0 0
        %2031 = vmatprep.subr.bf16.mxu0 0
        %2032 = vmatpush1.bf16.msra.mxu0 0
        %2033 = vmatprep.subr.bf16.mxu0 0
        %2034 = vmatpush1.bf16.msra.mxu0 0
        %2035 = vmatprep.subr.bf16.mxu0 0
        %2036 = vmatpush1.bf16.msra.mxu0 0
        %2037 = vmatprep.subr.bf16.mxu0 0
        %2038 = vmatpush1.bf16.msra.mxu0 0
        %2039 = vmatprep.mubr.bf16.mxu0 0
        %2040 = vmatmul.mubr.bf16.gmra.mrb[0].mxu0 %v2002
        %v2041 = vpop.f32.mrb[0].mxu0
        %v2042 = vadd.f32 0.0, %v2041
        %v2043 = vpop.f32.mrb[0].mxu0
        %v2044 = vpop.f32.mrb[0].mxu0
        %v2045 = vpop.f32.mrb[0].mxu0
        %2046 = vdwg.mxu0
        %2047 = vrot.lane.b32.xlu0 %v854, 64
        %v2048 = vpop.permute.xlu0 %2047
        %v2050 = vsel %vm1065, %v1996, 0
        %v2053 = vsel %vm1117, %v2048, 0
        %2055 = vmatprep.subr.bf16.mxu0 0
        %2056 = vmatpush1.bf16.msra.mxu0 %v2053
        %2057 = vmatprep.subr.bf16.mxu0 0
        %2058 = vmatpush1.bf16.msra.mxu0 0
        %2059 = vmatprep.subr.bf16.mxu0 0
        %2060 = vmatpush1.bf16.msra.mxu0 0
        %2061 = vmatprep.subr.bf16.mxu0 0
        %2062 = vmatpush1.bf16.msra.mxu0 0
        %2063 = vmatprep.subr.bf16.mxu0 0
        %2064 = vmatpush1.bf16.msra.mxu0 0
        %2065 = vmatprep.subr.bf16.mxu0 0
        %2066 = vmatpush1.bf16.msra.mxu0 0
        %2067 = vmatprep.subr.bf16.mxu0 0
        %2068 = vmatpush1.bf16.msra.mxu0 0
        %2069 = vmatprep.subr.bf16.mxu0 0
        %2070 = vmatpush1.bf16.msra.mxu0 0
        %2071 = vmatprep.subr.bf16.mxu0 0
        %2072 = vmatpush1.bf16.msra.mxu0 0
        %2073 = vmatprep.subr.bf16.mxu0 0
        %2074 = vmatpush1.bf16.msra.mxu0 0
        %2075 = vmatprep.subr.bf16.mxu0 0
        %2076 = vmatpush1.bf16.msra.mxu0 0
        %2077 = vmatprep.subr.bf16.mxu0 0
        %2078 = vmatpush1.bf16.msra.mxu0 0
        %2079 = vmatprep.subr.bf16.mxu0 0
        %2080 = vmatpush1.bf16.msra.mxu0 0
        %2081 = vmatprep.subr.bf16.mxu0 0
        %2082 = vmatpush1.bf16.msra.mxu0 0
        %2083 = vmatprep.subr.bf16.mxu0 0
        %2084 = vmatpush1.bf16.msra.mxu0 0
        %2085 = vmatprep.subr.bf16.mxu0 0
        %2086 = vmatpush1.bf16.msra.mxu0 0
        %2087 = vmatprep.mubr.bf16.mxu0 0
        %2088 = vmatmul.mubr.bf16.gmra.mrb[0].mxu0 %v2050
        %v2089 = vpop.f32.mrb[0].mxu0
        %v2090 = vadd.f32 0.0, %v2089
        %v2091 = vpop.f32.mrb[0].mxu0
        %v2092 = vpop.f32.mrb[0].mxu0
        %v2093 = vpop.f32.mrb[0].mxu0
        %2094 = vdwg.mxu0
        %2095 = vrot.lane.b32.xlu0 %v855, 64
        %v2096 = vpop.permute.xlu0 %2095
        %v2098 = vsel %vm1065, %v1997, 0
        %v2101 = vsel %vm1117, %v2096, 0
        %2103 = vmatprep.subr.bf16.mxu0 0
        %2104 = vmatpush1.bf16.msra.mxu0 %v2101
        %2105 = vmatprep.subr.bf16.mxu0 0
        %2106 = vmatpush1.bf16.msra.mxu0 0
        %2107 = vmatprep.subr.bf16.mxu0 0
        %2108 = vmatpush1.bf16.msra.mxu0 0
        %2109 = vmatprep.subr.bf16.mxu0 0
        %2110 = vmatpush1.bf16.msra.mxu0 0
        %2111 = vmatprep.subr.bf16.mxu0 0
        %2112 = vmatpush1.bf16.msra.mxu0 0
        %2113 = vmatprep.subr.bf16.mxu0 0
        %2114 = vmatpush1.bf16.msra.mxu0 0
        %2115 = vmatprep.subr.bf16.mxu0 0
        %2116 = vmatpush1.bf16.msra.mxu0 0
        %2117 = vmatprep.subr.bf16.mxu0 0
        %2118 = vmatpush1.bf16.msra.mxu0 0
        %2119 = vmatprep.subr.bf16.mxu0 0
        %2120 = vmatpush1.bf16.msra.mxu0 0
        %2121 = vmatprep.subr.bf16.mxu0 0
        %2122 = vmatpush1.bf16.msra.mxu0 0
        %2123 = vmatprep.subr.bf16.mxu0 0
        %2124 = vmatpush1.bf16.msra.mxu0 0
        %2125 = vmatprep.subr.bf16.mxu0 0
        %2126 = vmatpush1.bf16.msra.mxu0 0
        %2127 = vmatprep.subr.bf16.mxu0 0
        %2128 = vmatpush1.bf16.msra.mxu0 0
        %2129 = vmatprep.subr.bf16.mxu0 0
        %2130 = vmatpush1.bf16.msra.mxu0 0
        %2131 = vmatprep.subr.bf16.mxu0 0
        %2132 = vmatpush1.bf16.msra.mxu0 0
        %2133 = vmatprep.subr.bf16.mxu0 0
        %2134 = vmatpush1.bf16.msra.mxu0 0
        %2135 = vmatprep.mubr.bf16.mxu0 0
        %2136 = vmatmul.mubr.bf16.gmra.mrb[0].mxu0 %v2098
        %v2137 = vpop.f32.mrb[0].mxu0
        %v2138 = vadd.f32 0.0, %v2137
        %v2139 = vpop.f32.mrb[0].mxu0
        %v2140 = vpop.f32.mrb[0].mxu0
        %v2141 = vpop.f32.mrb[0].mxu0
        %2142 = vdwg.mxu0
        %2143 = vrot.lane.b32.xlu0 %v856, 64
        %v2144 = vpop.permute.xlu0 %2143
        %v2146 = vsel %vm1065, %v1998, 0
        %v2149 = vsel %vm1117, %v2144, 0
        %2151 = vmatprep.subr.bf16.mxu0 0
        %2152 = vmatpush1.bf16.msra.mxu0 %v2149
        %2153 = vmatprep.subr.bf16.mxu0 0
        %2154 = vmatpush1.bf16.msra.mxu0 0
        %2155 = vmatprep.subr.bf16.mxu0 0
        %2156 = vmatpush1.bf16.msra.mxu0 0
        %2157 = vmatprep.subr.bf16.mxu0 0
        %2158 = vmatpush1.bf16.msra.mxu0 0
        %2159 = vmatprep.subr.bf16.mxu0 0
        %2160 = vmatpush1.bf16.msra.mxu0 0
        %2161 = vmatprep.subr.bf16.mxu0 0
        %2162 = vmatpush1.bf16.msra.mxu0 0
        %2163 = vmatprep.subr.bf16.mxu0 0
        %2164 = vmatpush1.bf16.msra.mxu0 0
        %2165 = vmatprep.subr.bf16.mxu0 0
        %2166 = vmatpush1.bf16.msra.mxu0 0
        %2167 = vmatprep.subr.bf16.mxu0 0
        %2168 = vmatpush1.bf16.msra.mxu0 0
        %2169 = vmatprep.subr.bf16.mxu0 0
        %2170 = vmatpush1.bf16.msra.mxu0 0
        %2171 = vmatprep.subr.bf16.mxu0 0
        %2172 = vmatpush1.bf16.msra.mxu0 0
        %2173 = vmatprep.subr.bf16.mxu0 0
        %2174 = vmatpush1.bf16.msra.mxu0 0
        %2175 = vmatprep.subr.bf16.mxu0 0
        %2176 = vmatpush1.bf16.msra.mxu0 0
        %2177 = vmatprep.subr.bf16.mxu0 0
        %2178 = vmatpush1.bf16.msra.mxu0 0
        %2179 = vmatprep.subr.bf16.mxu0 0
        %2180 = vmatpush1.bf16.msra.mxu0 0
        %2181 = vmatprep.subr.bf16.mxu0 0
        %2182 = vmatpush1.bf16.msra.mxu0 0
        %2183 = vmatprep.mubr.bf16.mxu0 0
        %2184 = vmatmul.mubr.bf16.gmra.mrb[0].mxu0 %v2146
        %v2185 = vpop.f32.mrb[0].mxu0
        %v2186 = vadd.f32 0.0, %v2185
        %v2187 = vpop.f32.mrb[0].mxu0
        %v2188 = vpop.f32.mrb[0].mxu0
        %v2189 = vpop.f32.mrb[0].mxu0
        %2190 = vdwg.mxu0
        %2191 = vrot.lane.b32.xlu0 %v845, 32
        %v2192 = vpop.permute.xlu0 %2191
        %2193 = vrot.lane.b32.xlu0 %v849, 32
        %v2194 = vpop.permute.xlu0 %2193
        %v2196 = vsel %vm736, %v2192, 0
        %v2199 = vsel %vm736, %v2194, 0
        %2201 = vmatprep.subr.bf16.mxu0 0
        %2202 = vmatpush1.bf16.xpose.msra.mxu0 %v2199
        %2203 = vmatprep.subr.bf16.mxu0 0
        %2204 = vmatpush1.bf16.xpose.msra.mxu0 0
        %2205 = vmatprep.subr.bf16.mxu0 0
        %2206 = vmatpush1.bf16.xpose.msra.mxu0 0
        %2207 = vmatprep.subr.bf16.mxu0 0
        %2208 = vmatpush1.bf16.xpose.msra.mxu0 0
        %2209 = vmatprep.subr.bf16.mxu0 0
        %2210 = vmatpush1.bf16.xpose.msra.mxu0 0
        %2211 = vmatprep.subr.bf16.mxu0 0
        %2212 = vmatpush1.bf16.xpose.msra.mxu0 0
        %2213 = vmatprep.subr.bf16.mxu0 0
        %2214 = vmatpush1.bf16.xpose.msra.mxu0 0
        %2215 = vmatprep.subr.bf16.mxu0 0
        %2216 = vmatpush1.bf16.xpose.msra.mxu0 0
        %2217 = vmatprep.subr.bf16.mxu0 0
        %2218 = vmatpush1.bf16.xpose.msra.mxu0 0
        %2219 = vmatprep.subr.bf16.mxu0 0
        %2220 = vmatpush1.bf16.xpose.msra.mxu0 0
        %2221 = vmatprep.subr.bf16.mxu0 0
        %2222 = vmatpush1.bf16.xpose.msra.mxu0 0
        %2223 = vmatprep.subr.bf16.mxu0 0
        %2224 = vmatpush1.bf16.xpose.msra.mxu0 0
        %2225 = vmatprep.subr.bf16.mxu0 0
        %2226 = vmatpush1.bf16.xpose.msra.mxu0 0
        %2227 = vmatprep.subr.bf16.mxu0 0
        %2228 = vmatpush1.bf16.xpose.msra.mxu0 0
        %2229 = vmatprep.subr.bf16.mxu0 0
        %2230 = vmatpush1.bf16.xpose.msra.mxu0 0
        %2231 = vmatprep.subr.bf16.mxu0 0
        %2232 = vmatpush1.bf16.xpose.msra.mxu0 0
        %2233 = vmatprep.mubr.bf16.mxu0 0
        %2234 = vmatmul.mubr.bf16.gmra.mrb[0].mxu0 %v2196
        %v2235 = vpop.f32.mrb[0].mxu0
        %v2236 = vadd.f32 %v864, %v2235
        %v2237 = vpop.f32.mrb[0].mxu0
        %v2238 = vpop.f32.mrb[0].mxu0
        %v2239 = vpop.f32.mrb[0].mxu0
        %2240 = vdwg.mxu0
        %2241 = vrot.lane.b32.xlu0 %v846, 32
        %v2242 = vpop.permute.xlu0 %2241
        %2243 = vrot.lane.b32.xlu0 %v850, 32
        %v2244 = vpop.permute.xlu0 %2243
        %v2246 = vsel %vm736, %v2242, 0
        %v2249 = vsel %vm736, %v2244, 0
        %2251 = vmatprep.subr.bf16.mxu0 0
        %2252 = vmatpush1.bf16.xpose.msra.mxu0 %v2249
        %2253 = vmatprep.subr.bf16.mxu0 0
        %2254 = vmatpush1.bf16.xpose.msra.mxu0 0
        %2255 = vmatprep.subr.bf16.mxu0 0
        %2256 = vmatpush1.bf16.xpose.msra.mxu0 0
        %2257 = vmatprep.subr.bf16.mxu0 0
        %2258 = vmatpush1.bf16.xpose.msra.mxu0 0
        %2259 = vmatprep.subr.bf16.mxu0 0
        %2260 = vmatpush1.bf16.xpose.msra.mxu0 0
        %2261 = vmatprep.subr.bf16.mxu0 0
        %2262 = vmatpush1.bf16.xpose.msra.mxu0 0
        %2263 = vmatprep.subr.bf16.mxu0 0
        %2264 = vmatpush1.bf16.xpose.msra.mxu0 0
        %2265 = vmatprep.subr.bf16.mxu0 0
        %2266 = vmatpush1.bf16.xpose.msra.mxu0 0
        %2267 = vmatprep.subr.bf16.mxu0 0
        %2268 = vmatpush1.bf16.xpose.msra.mxu0 0
        %2269 = vmatprep.subr.bf16.mxu0 0
        %2270 = vmatpush1.bf16.xpose.msra.mxu0 0
        %2271 = vmatprep.subr.bf16.mxu0 0
        %2272 = vmatpush1.bf16.xpose.msra.mxu0 0
        %2273 = vmatprep.subr.bf16.mxu0 0
        %2274 = vmatpush1.bf16.xpose.msra.mxu0 0
        %2275 = vmatprep.subr.bf16.mxu0 0
        %2276 = vmatpush1.bf16.xpose.msra.mxu0 0
        %2277 = vmatprep.subr.bf16.mxu0 0
        %2278 = vmatpush1.bf16.xpose.msra.mxu0 0
        %2279 = vmatprep.subr.bf16.mxu0 0
        %2280 = vmatpush1.bf16.xpose.msra.mxu0 0
        %2281 = vmatprep.subr.bf16.mxu0 0
        %2282 = vmatpush1.bf16.xpose.msra.mxu0 0
        %2283 = vmatprep.mubr.bf16.mxu0 0
        %2284 = vmatmul.mubr.bf16.gmra.mrb[0].mxu0 %v2246
        %v2285 = vpop.f32.mrb[0].mxu0
        %v2286 = vadd.f32 %v868, %v2285
        %v2287 = vpop.f32.mrb[0].mxu0
        %v2288 = vpop.f32.mrb[0].mxu0
        %v2289 = vpop.f32.mrb[0].mxu0
        %2290 = vdwg.mxu0
        %2291 = vrot.lane.b32.xlu0 %v847, 32
        %v2292 = vpop.permute.xlu0 %2291
        %2293 = vrot.lane.b32.xlu0 %v851, 32
        %v2294 = vpop.permute.xlu0 %2293
        %v2296 = vsel %vm736, %v2292, 0
        %v2299 = vsel %vm736, %v2294, 0
        %2301 = vmatprep.subr.bf16.mxu0 0
        %2302 = vmatpush1.bf16.xpose.msra.mxu0 %v2299
        %2303 = vmatprep.subr.bf16.mxu0 0
        %2304 = vmatpush1.bf16.xpose.msra.mxu0 0
        %2305 = vmatprep.subr.bf16.mxu0 0
        %2306 = vmatpush1.bf16.xpose.msra.mxu0 0
        %2307 = vmatprep.subr.bf16.mxu0 0
        %2308 = vmatpush1.bf16.xpose.msra.mxu0 0
        %2309 = vmatprep.subr.bf16.mxu0 0
        %2310 = vmatpush1.bf16.xpose.msra.mxu0 0
        %2311 = vmatprep.subr.bf16.mxu0 0
        %2312 = vmatpush1.bf16.xpose.msra.mxu0 0
        %2313 = vmatprep.subr.bf16.mxu0 0
        %2314 = vmatpush1.bf16.xpose.msra.mxu0 0
        %2315 = vmatprep.subr.bf16.mxu0 0
        %2316 = vmatpush1.bf16.xpose.msra.mxu0 0
        %2317 = vmatprep.subr.bf16.mxu0 0
        %2318 = vmatpush1.bf16.xpose.msra.mxu0 0
        %2319 = vmatprep.subr.bf16.mxu0 0
        %2320 = vmatpush1.bf16.xpose.msra.mxu0 0
        %2321 = vmatprep.subr.bf16.mxu0 0
        %2322 = vmatpush1.bf16.xpose.msra.mxu0 0
        %2323 = vmatprep.subr.bf16.mxu0 0
        %2324 = vmatpush1.bf16.xpose.msra.mxu0 0
        %2325 = vmatprep.subr.bf16.mxu0 0
        %2326 = vmatpush1.bf16.xpose.msra.mxu0 0
        %2327 = vmatprep.subr.bf16.mxu0 0
        %2328 = vmatpush1.bf16.xpose.msra.mxu0 0
        %2329 = vmatprep.subr.bf16.mxu0 0
        %2330 = vmatpush1.bf16.xpose.msra.mxu0 0
        %2331 = vmatprep.subr.bf16.mxu0 0
        %2332 = vmatpush1.bf16.xpose.msra.mxu0 0
        %2333 = vmatprep.mubr.bf16.mxu0 0
        %2334 = vmatmul.mubr.bf16.gmra.mrb[0].mxu0 %v2296
        %v2335 = vpop.f32.mrb[0].mxu0
        %v2336 = vadd.f32 %v872, %v2335
        %v2337 = vpop.f32.mrb[0].mxu0
        %v2338 = vpop.f32.mrb[0].mxu0
        %v2339 = vpop.f32.mrb[0].mxu0
        %2340 = vdwg.mxu0
        %2341 = vrot.lane.b32.xlu0 %v848, 32
        %v2342 = vpop.permute.xlu0 %2341
        %2343 = vrot.lane.b32.xlu0 %v852, 32
        %v2344 = vpop.permute.xlu0 %2343
        %v2346 = vsel %vm736, %v2342, 0
        %v2349 = vsel %vm736, %v2344, 0
        %2351 = vmatprep.subr.bf16.mxu0 0
        %2352 = vmatpush1.bf16.xpose.msra.mxu0 %v2349
        %2353 = vmatprep.subr.bf16.mxu0 0
        %2354 = vmatpush1.bf16.xpose.msra.mxu0 0
        %2355 = vmatprep.subr.bf16.mxu0 0
        %2356 = vmatpush1.bf16.xpose.msra.mxu0 0
        %2357 = vmatprep.subr.bf16.mxu0 0
        %2358 = vmatpush1.bf16.xpose.msra.mxu0 0
        %2359 = vmatprep.subr.bf16.mxu0 0
        %2360 = vmatpush1.bf16.xpose.msra.mxu0 0
        %2361 = vmatprep.subr.bf16.mxu0 0
        %2362 = vmatpush1.bf16.xpose.msra.mxu0 0
        %2363 = vmatprep.subr.bf16.mxu0 0
        %2364 = vmatpush1.bf16.xpose.msra.mxu0 0
        %2365 = vmatprep.subr.bf16.mxu0 0
        %2366 = vmatpush1.bf16.xpose.msra.mxu0 0
        %2367 = vmatprep.subr.bf16.mxu0 0
        %2368 = vmatpush1.bf16.xpose.msra.mxu0 0
        %2369 = vmatprep.subr.bf16.mxu0 0
        %2370 = vmatpush1.bf16.xpose.msra.mxu0 0
        %2371 = vmatprep.subr.bf16.mxu0 0
        %2372 = vmatpush1.bf16.xpose.msra.mxu0 0
        %2373 = vmatprep.subr.bf16.mxu0 0
        %2374 = vmatpush1.bf16.xpose.msra.mxu0 0
        %2375 = vmatprep.subr.bf16.mxu0 0
        %2376 = vmatpush1.bf16.xpose.msra.mxu0 0
        %2377 = vmatprep.subr.bf16.mxu0 0
        %2378 = vmatpush1.bf16.xpose.msra.mxu0 0
        %2379 = vmatprep.subr.bf16.mxu0 0
        %2380 = vmatpush1.bf16.xpose.msra.mxu0 0
        %2381 = vmatprep.subr.bf16.mxu0 0
        %2382 = vmatpush1.bf16.xpose.msra.mxu0 0
        %2383 = vmatprep.mubr.bf16.mxu0 0
        %2384 = vmatmul.mubr.bf16.gmra.mrb[0].mxu0 %v2346
        %v2385 = vpop.f32.mrb[0].mxu0
        %v2386 = vadd.f32 %v876, %v2385
        %v2387 = vpop.f32.mrb[0].mxu0
        %v2388 = vpop.f32.mrb[0].mxu0
        %v2389 = vpop.f32.mrb[0].mxu0
        %2390 = vdwg.mxu0
        %v2391 = vsel %vm1065, %v2236, -inf
        %2392 = vmax.xlane.f32.xlu0 %v2391
        %v2393 = vpop.xlane.xlu0 %2392
        %v2394 = vsel %vm1065, %v2286, -inf
        %2395 = vmax.xlane.f32.xlu0 %v2394
        %v2396 = vpop.xlane.xlu0 %2395
        %v2397 = vsel %vm1065, %v2336, -inf
        %2398 = vmax.xlane.f32.xlu0 %v2397
        %v2399 = vpop.xlane.xlu0 %2398
        %v2400 = vsel %vm1065, %v2386, -inf
        %2401 = vmax.xlane.f32.xlu0 %v2400
        %v2402 = vpop.xlane.xlu0 %2401
        %v2403 = vsub.f32 %v2236, %v2393
        %v2404 = vsub.f32 %v2286, %v2396
        %v2405 = vsub.f32 %v2336, %v2399
        %v2406 = vsub.f32 %v2386, %v2402
        %v2407 = vmul.f32 %v2403, 1.442695
        %v2408 = vpow.pop %v2407
        %v2409 = vmul.f32 %v2404, 1.442695
        %v2410 = vpow.pop %v2409
        %v2411 = vmul.f32 %v2405, 1.442695
        %v2412 = vpow.pop %v2411
        %v2413 = vmul.f32 %v2406, 1.442695
        %v2414 = vpow.pop %v2413
        %v2415 = vsel %vm1065, %v2408, 0.0
        %2416 = vadd.xlane.f32.xlu0 %v2415
        %v2417 = vpop.xlane.xlu0 %2416
        %v2418 = vsel %vm1065, %v2410, 0.0
        %2419 = vadd.xlane.f32.xlu0 %v2418
        %v2420 = vpop.xlane.xlu0 %2419
        %v2421 = vsel %vm1065, %v2412, 0.0
        %2422 = vadd.xlane.f32.xlu0 %v2421
        %v2423 = vpop.xlane.xlu0 %2422
        %v2424 = vsel %vm1065, %v2414, 0.0
        %2425 = vadd.xlane.f32.xlu0 %v2424
        %v2426 = vpop.xlane.xlu0 %2425
        %v2427 = vrcp.pop %v2417
        %v2428 = vrcp.pop %v2420
        %v2429 = vrcp.pop %v2423
        %v2430 = vrcp.pop %v2426
        %v2431 = vmul.f32 %v2408, %v2427
        %v2432 = vmul.f32 %v2410, %v2428
        %v2433 = vmul.f32 %v2412, %v2429
        %v2434 = vmul.f32 %v2414, %v2430
        %v2435 = vpack.c.bf16 %v2431, %v2431
        %v2436 = vpack.c.bf16 %v2432, %v2432
        %v2437 = vpack.c.bf16 %v2433, %v2433
        %v2438 = vpack.c.bf16 %v2434, %v2434
        %2439 = vrot.lane.b32.xlu0 %v853, 32
        %v2440 = vpop.permute.xlu0 %2439
        %v2442 = vsel %vm1065, %v2435, 0
        %v2445 = vsel %vm1117, %v2440, 0
        %2447 = vmatprep.subr.bf16.mxu0 0
        %2448 = vmatpush1.bf16.msra.mxu0 %v2445
        %2449 = vmatprep.subr.bf16.mxu0 0
        %2450 = vmatpush1.bf16.msra.mxu0 0
        %2451 = vmatprep.subr.bf16.mxu0 0
        %2452 = vmatpush1.bf16.msra.mxu0 0
        %2453 = vmatprep.subr.bf16.mxu0 0
        %2454 = vmatpush1.bf16.msra.mxu0 0
        %2455 = vmatprep.subr.bf16.mxu0 0
        %2456 = vmatpush1.bf16.msra.mxu0 0
        %2457 = vmatprep.subr.bf16.mxu0 0
        %2458 = vmatpush1.bf16.msra.mxu0 0
        %2459 = vmatprep.subr.bf16.mxu0 0
        %2460 = vmatpush1.bf16.msra.mxu0 0
        %2461 = vmatprep.subr.bf16.mxu0 0
        %2462 = vmatpush1.bf16.msra.mxu0 0
        %2463 = vmatprep.subr.bf16.mxu0 0
        %2464 = vmatpush1.bf16.msra.mxu0 0
        %2465 = vmatprep.subr.bf16.mxu0 0
        %2466 = vmatpush1.bf16.msra.mxu0 0
        %2467 = vmatprep.subr.bf16.mxu0 0
        %2468 = vmatpush1.bf16.msra.mxu0 0
        %2469 = vmatprep.subr.bf16.mxu0 0
        %2470 = vmatpush1.bf16.msra.mxu0 0
        %2471 = vmatprep.subr.bf16.mxu0 0
        %2472 = vmatpush1.bf16.msra.mxu0 0
        %2473 = vmatprep.subr.bf16.mxu0 0
        %2474 = vmatpush1.bf16.msra.mxu0 0
        %2475 = vmatprep.subr.bf16.mxu0 0
        %2476 = vmatpush1.bf16.msra.mxu0 0
        %2477 = vmatprep.subr.bf16.mxu0 0
        %2478 = vmatpush1.bf16.msra.mxu0 0
        %2479 = vmatprep.mubr.bf16.mxu0 0
        %2480 = vmatmul.mubr.bf16.gmra.mrb[0].mxu0 %v2442
        %v2481 = vpop.f32.mrb[0].mxu0
        %v2482 = vadd.f32 0.0, %v2481
        %v2483 = vpop.f32.mrb[0].mxu0
        %v2484 = vpop.f32.mrb[0].mxu0
        %v2485 = vpop.f32.mrb[0].mxu0
        %2486 = vdwg.mxu0
        %2487 = vrot.lane.b32.xlu0 %v854, 32
        %v2488 = vpop.permute.xlu0 %2487
        %v2490 = vsel %vm1065, %v2436, 0
        %v2493 = vsel %vm1117, %v2488, 0
        %2495 = vmatprep.subr.bf16.mxu0 0
        %2496 = vmatpush1.bf16.msra.mxu0 %v2493
        %2497 = vmatprep.subr.bf16.mxu0 0
        %2498 = vmatpush1.bf16.msra.mxu0 0
        %2499 = vmatprep.subr.bf16.mxu0 0
        %2500 = vmatpush1.bf16.msra.mxu0 0
        %2501 = vmatprep.subr.bf16.mxu0 0
        %2502 = vmatpush1.bf16.msra.mxu0 0
        %2503 = vmatprep.subr.bf16.mxu0 0
        %2504 = vmatpush1.bf16.msra.mxu0 0
        %2505 = vmatprep.subr.bf16.mxu0 0
        %2506 = vmatpush1.bf16.msra.mxu0 0
        %2507 = vmatprep.subr.bf16.mxu0 0
        %2508 = vmatpush1.bf16.msra.mxu0 0
        %2509 = vmatprep.subr.bf16.mxu0 0
        %2510 = vmatpush1.bf16.msra.mxu0 0
        %2511 = vmatprep.subr.bf16.mxu0 0
        %2512 = vmatpush1.bf16.msra.mxu0 0
        %2513 = vmatprep.subr.bf16.mxu0 0
        %2514 = vmatpush1.bf16.msra.mxu0 0
        %2515 = vmatprep.subr.bf16.mxu0 0
        %2516 = vmatpush1.bf16.msra.mxu0 0
        %2517 = vmatprep.subr.bf16.mxu0 0
        %2518 = vmatpush1.bf16.msra.mxu0 0
        %2519 = vmatprep.subr.bf16.mxu0 0
        %2520 = vmatpush1.bf16.msra.mxu0 0
        %2521 = vmatprep.subr.bf16.mxu0 0
        %2522 = vmatpush1.bf16.msra.mxu0 0
        %2523 = vmatprep.subr.bf16.mxu0 0
        %2524 = vmatpush1.bf16.msra.mxu0 0
        %2525 = vmatprep.subr.bf16.mxu0 0
        %2526 = vmatpush1.bf16.msra.mxu0 0
        %2527 = vmatprep.mubr.bf16.mxu0 0
        %2528 = vmatmul.mubr.bf16.gmra.mrb[0].mxu0 %v2490
        %v2529 = vpop.f32.mrb[0].mxu0
        %v2530 = vadd.f32 0.0, %v2529
        %v2531 = vpop.f32.mrb[0].mxu0
        %v2532 = vpop.f32.mrb[0].mxu0
        %v2533 = vpop.f32.mrb[0].mxu0
        %2534 = vdwg.mxu0
        %2535 = vrot.lane.b32.xlu0 %v855, 32
        %v2536 = vpop.permute.xlu0 %2535
        %v2538 = vsel %vm1065, %v2437, 0
        %v2541 = vsel %vm1117, %v2536, 0
        %2543 = vmatprep.subr.bf16.mxu0 0
        %2544 = vmatpush1.bf16.msra.mxu0 %v2541
        %2545 = vmatprep.subr.bf16.mxu0 0
        %2546 = vmatpush1.bf16.msra.mxu0 0
        %2547 = vmatprep.subr.bf16.mxu0 0
        %2548 = vmatpush1.bf16.msra.mxu0 0
        %2549 = vmatprep.subr.bf16.mxu0 0
        %2550 = vmatpush1.bf16.msra.mxu0 0
        %2551 = vmatprep.subr.bf16.mxu0 0
        %2552 = vmatpush1.bf16.msra.mxu0 0
        %2553 = vmatprep.subr.bf16.mxu0 0
        %2554 = vmatpush1.bf16.msra.mxu0 0
        %2555 = vmatprep.subr.bf16.mxu0 0
        %2556 = vmatpush1.bf16.msra.mxu0 0
        %2557 = vmatprep.subr.bf16.mxu0 0
        %2558 = vmatpush1.bf16.msra.mxu0 0
        %2559 = vmatprep.subr.bf16.mxu0 0
        %2560 = vmatpush1.bf16.msra.mxu0 0
        %2561 = vmatprep.subr.bf16.mxu0 0
        %2562 = vmatpush1.bf16.msra.mxu0 0
        %2563 = vmatprep.subr.bf16.mxu0 0
        %2564 = vmatpush1.bf16.msra.mxu0 0
        %2565 = vmatprep.subr.bf16.mxu0 0
        %2566 = vmatpush1.bf16.msra.mxu0 0
        %2567 = vmatprep.subr.bf16.mxu0 0
        %2568 = vmatpush1.bf16.msra.mxu0 0
        %2569 = vmatprep.subr.bf16.mxu0 0
        %2570 = vmatpush1.bf16.msra.mxu0 0
        %2571 = vmatprep.subr.bf16.mxu0 0
        %2572 = vmatpush1.bf16.msra.mxu0 0
        %2573 = vmatprep.subr.bf16.mxu0 0
        %2574 = vmatpush1.bf16.msra.mxu0 0
        %2575 = vmatprep.mubr.bf16.mxu0 0
        %2576 = vmatmul.mubr.bf16.gmra.mrb[0].mxu0 %v2538
        %v2577 = vpop.f32.mrb[0].mxu0
        %v2578 = vadd.f32 0.0, %v2577
        %v2579 = vpop.f32.mrb[0].mxu0
        %v2580 = vpop.f32.mrb[0].mxu0
        %v2581 = vpop.f32.mrb[0].mxu0
        %2582 = vdwg.mxu0
        %2583 = vrot.lane.b32.xlu0 %v856, 32
        %v2584 = vpop.permute.xlu0 %2583
        %v2586 = vsel %vm1065, %v2438, 0
        %v2589 = vsel %vm1117, %v2584, 0
        %2591 = vmatprep.subr.bf16.mxu0 0
        %2592 = vmatpush1.bf16.msra.mxu0 %v2589
        %2593 = vmatprep.subr.bf16.mxu0 0
        %2594 = vmatpush1.bf16.msra.mxu0 0
        %2595 = vmatprep.subr.bf16.mxu0 0
        %2596 = vmatpush1.bf16.msra.mxu0 0
        %2597 = vmatprep.subr.bf16.mxu0 0
        %2598 = vmatpush1.bf16.msra.mxu0 0
        %2599 = vmatprep.subr.bf16.mxu0 0
        %2600 = vmatpush1.bf16.msra.mxu0 0
        %2601 = vmatprep.subr.bf16.mxu0 0
        %2602 = vmatpush1.bf16.msra.mxu0 0
        %2603 = vmatprep.subr.bf16.mxu0 0
        %2604 = vmatpush1.bf16.msra.mxu0 0
        %2605 = vmatprep.subr.bf16.mxu0 0
        %2606 = vmatpush1.bf16.msra.mxu0 0
        %2607 = vmatprep.subr.bf16.mxu0 0
        %2608 = vmatpush1.bf16.msra.mxu0 0
        %2609 = vmatprep.subr.bf16.mxu0 0
        %2610 = vmatpush1.bf16.msra.mxu0 0
        %2611 = vmatprep.subr.bf16.mxu0 0
        %2612 = vmatpush1.bf16.msra.mxu0 0
        %2613 = vmatprep.subr.bf16.mxu0 0
        %2614 = vmatpush1.bf16.msra.mxu0 0
        %2615 = vmatprep.subr.bf16.mxu0 0
        %2616 = vmatpush1.bf16.msra.mxu0 0
        %2617 = vmatprep.subr.bf16.mxu0 0
        %2618 = vmatpush1.bf16.msra.mxu0 0
        %2619 = vmatprep.subr.bf16.mxu0 0
        %2620 = vmatpush1.bf16.msra.mxu0 0
        %2621 = vmatprep.subr.bf16.mxu0 0
        %2622 = vmatpush1.bf16.msra.mxu0 0
        %2623 = vmatprep.mubr.bf16.mxu0 0
        %2624 = vmatmul.mubr.bf16.gmra.mrb[0].mxu0 %v2586
        %v2625 = vpop.f32.mrb[0].mxu0
        %v2626 = vadd.f32 0.0, %v2625
        %v2627 = vpop.f32.mrb[0].mxu0
        %v2628 = vpop.f32.mrb[0].mxu0
        %v2629 = vpop.f32.mrb[0].mxu0
        %2630 = vdwg.mxu0
        %2635 = vrot.lane.b32.xlu0 %v1599, 32
        %v2636 = vpop.permute.xlu0 %2635
        %2637 = vrot.lane.b32.xlu0 %v1648, 32
        %v2638 = vpop.permute.xlu0 %2637
        %2639 = vrot.lane.b32.xlu0 %v1697, 32
        %v2640 = vpop.permute.xlu0 %2639
        %2641 = vrot.lane.b32.xlu0 %v1746, 32
        %v2642 = vpop.permute.xlu0 %2641
        %2651 = vrot.lane.b32.xlu0 %v2042, 64
        %v2652 = vpop.permute.xlu0 %2651
        %2653 = vrot.lane.b32.xlu0 %v2090, 64
        %v2654 = vpop.permute.xlu0 %2653
        %2655 = vrot.lane.b32.xlu0 %v2138, 64
        %v2656 = vpop.permute.xlu0 %2655
        %2657 = vrot.lane.b32.xlu0 %v2186, 64
        %v2658 = vpop.permute.xlu0 %2657
        %2667 = vrot.lane.b32.xlu0 %v2482, 96
        %v2668 = vpop.permute.xlu0 %2667
        %2669 = vrot.lane.b32.xlu0 %v2530, 96
        %v2670 = vpop.permute.xlu0 %2669
        %2671 = vrot.lane.b32.xlu0 %v2578, 96
        %v2672 = vpop.permute.xlu0 %2671
        %2673 = vrot.lane.b32.xlu0 %v2626, 96
        %v2674 = vpop.permute.xlu0 %2673
        %v2679 = vsel %vm736, %v1156, %v2636
        %v2680 = vsel %vm736, %v1202, %v2638
        %v2681 = vsel %vm736, %v1248, %v2640
        %v2682 = vsel %vm736, %v1294, %v2642
        %vm2683 = vcmask 523264
        %v2684 = vsel %vm2683, %v2679, %v2652
        %v2685 = vsel %vm2683, %v2680, %v2654
        %v2686 = vsel %vm2683, %v2681, %v2656
        %v2687 = vsel %vm2683, %v2682, %v2658
        %vm2688 = vcmask 785408
        %v2689 = vsel %vm2688, %v2684, %v2668
        %v2690 = vsel %vm2688, %v2685, %v2670
        %v2691 = vsel %vm2688, %v2686, %v2672
        %v2692 = vsel %vm2688, %v2687, %v2674
        %v2693 = vpack.c.bf16 %v2690, %v2689
        %v2694 = vpack.c.bf16 %v2692, %v2691
        %v2695 = vld [vmem:[%s5] sm:$0xf]
        %v2696 = vld [vmem:[%s5 + $0x4] sm:$0xf]
        %v2697 = vld [vmem:[%s5 + $0x8] sm:$0xf]
        %v2698 = vld [vmem:[%s5 + $0xc] sm:$0xf]
        %v2699 = vld [vmem:[%s5 + $0x10] sm:$0xf]
        %v2700 = vld [vmem:[%s5 + $0x14] sm:$0xf]
        %v2701 = vld [vmem:[%s5 + $0x18] sm:$0xf]
        %v2702 = vld [vmem:[%s5 + $0x1c] sm:$0xf]
        %v2703 = vld [vmem:[%s5 + $0x20] sm:$0xf]
        %v2704 = vld [vmem:[%s5 + $0x24] sm:$0xf]
        %v2705 = vld [vmem:[%s5 + $0x28] sm:$0xf]
        %v2706 = vld [vmem:[%s5 + $0x2c] sm:$0xf]
        %v2707 = vld [vmem:[%s5 + $0x30] sm:$0xf]
        %v2708 = vld [vmem:[%s5 + $0x34] sm:$0xf]
        %v2709 = vld [vmem:[%s5 + $0x38] sm:$0xf]
        %v2710 = vld [vmem:[%s5 + $0x3c] sm:$0xf]
        %v2711 = vld [vmem:[%s6] sm:$0x1]
        %v2713 = vlaneseq
        %v2714 = vshrl.u32 %v2713, 7
        %v2715 = vsub.s32 0, %v2714
        %v2716 = vrot.slane %v2711, %v2715
        %v2734 = vunpack.c.l.b16 %v2695
        %v2735 = vunpack.c.l.b16 %v2696
        %v2736 = vunpack.c.l.b16 %v2697
        %v2737 = vunpack.c.l.b16 %v2698
        %v2738 = vunpack.c.l.b16 %v2699
        %v2739 = vunpack.c.l.b16 %v2700
        %v2740 = vunpack.c.l.b16 %v2701
        %v2741 = vunpack.c.l.b16 %v2702
        %v2742 = vunpack.c.l.b16 %v2703
        %v2743 = vunpack.c.l.b16 %v2704
        %v2744 = vunpack.c.l.b16 %v2705
        %v2745 = vunpack.c.l.b16 %v2706
        %v2746 = vunpack.c.l.b16 %v2707
        %v2747 = vunpack.c.l.b16 %v2708
        %v2748 = vunpack.c.l.b16 %v2709
        %v2749 = vunpack.c.l.b16 %v2710
        %v2750 = vpack.c.b16 %v2735, %v2734
        %v2751 = vpack.c.b16 %v2737, %v2736
        %v2752 = vpack.c.b16 %v2739, %v2738
        %v2753 = vpack.c.b16 %v2741, %v2740
        %v2754 = vpack.c.b16 %v2743, %v2742
        %v2755 = vpack.c.b16 %v2745, %v2744
        %v2756 = vpack.c.b16 %v2747, %v2746
        %v2757 = vpack.c.b16 %v2749, %v2748
        %2766 = vmatprep.subr.bf16.mxu0 0
        %2767 = vmatpush1.bf16.msra.mxu0 %v2750
        %2768 = vmatprep.subr.bf16.mxu0 0
        %2769 = vmatpush1.bf16.msra.mxu0 %v2751
        %2770 = vmatprep.subr.bf16.mxu0 0
        %2771 = vmatpush1.bf16.msra.mxu0 %v2752
        %2772 = vmatprep.subr.bf16.mxu0 0
        %2773 = vmatpush1.bf16.msra.mxu0 %v2753
        %2774 = vmatprep.subr.bf16.mxu0 0
        %2775 = vmatpush1.bf16.msra.mxu0 %v2754
        %2776 = vmatprep.subr.bf16.mxu0 0
        %2777 = vmatpush1.bf16.msra.mxu0 %v2755
        %2778 = vmatprep.subr.bf16.mxu0 0
        %2779 = vmatpush1.bf16.msra.mxu0 %v2756
        %2780 = vmatprep.subr.bf16.mxu0 0
        %2781 = vmatpush1.bf16.msra.mxu0 %v2757
        %2782 = vmatprep.subr.bf16.mxu0 0
        %2783 = vmatpush1.bf16.msra.mxu0 0
        %2784 = vmatprep.subr.bf16.mxu0 0
        %2785 = vmatpush1.bf16.msra.mxu0 0
        %2786 = vmatprep.subr.bf16.mxu0 0
        %2787 = vmatpush1.bf16.msra.mxu0 0
        %2788 = vmatprep.subr.bf16.mxu0 0
        %2789 = vmatpush1.bf16.msra.mxu0 0
        %2790 = vmatprep.subr.bf16.mxu0 0
        %2791 = vmatpush1.bf16.msra.mxu0 0
        %2792 = vmatprep.subr.bf16.mxu0 0
        %2793 = vmatpush1.bf16.msra.mxu0 0
        %2794 = vmatprep.subr.bf16.mxu0 0
        %2795 = vmatpush1.bf16.msra.mxu0 0
        %2796 = vmatprep.subr.bf16.mxu0 0
        %2797 = vmatpush1.bf16.msra.mxu0 0
        %2798 = vmatprep.mubr.bf16.mxu0 0
        %2799 = vmatmul.mubr.bf16.gmra.mrb[0].mxu0 %v2693
        %v2800 = vpop.f32.mrb[0].mxu0
        %v2801 = vadd.f32 %v2716, %v2800
        %v2802 = vpop.f32.mrb[0].mxu0
        %v2803 = vpop.f32.mrb[0].mxu0
        %v2804 = vadd.f32 %v2716, %v2803
        %v2805 = vpop.f32.mrb[0].mxu0
        %2806 = vmatprep.mubr.bf16.mxu0 0
        %2807 = vmatmul.mubr.bf16.gmra.mrb[0].mxu0 %v2694
        %v2808 = vpop.f32.mrb[0].mxu0
        %v2809 = vadd.f32 %v2716, %v2808
        %v2810 = vpop.f32.mrb[0].mxu0
        %v2811 = vpop.f32.mrb[0].mxu0
        %v2812 = vadd.f32 %v2716, %v2811
        %v2813 = vpop.f32.mrb[0].mxu0
        %2814 = vdwg.mxu0
        %v2815 = vadd.f32 %v2801, %v676
        %v2816 = vadd.f32 %v2804, %v679
        %v2817 = vadd.f32 %v2809, %v684
        %v2818 = vadd.f32 %v2812, %v687
        %v2819 = vld [vmem:[%s7] sm:$0x1]
        %v2820 = vld [vmem:[%s8] sm:$0x1]
        %v2821 = vsel %vm736, %v2815, 0.0
        %2822 = vadd.xlane.f32.xlu0 %v2821
        %v2823 = vpop.xlane.xlu0 %2822
        %v2824 = vsel %vm736, %v2816, 0.0
        %2825 = vadd.xlane.f32.xlu0 %v2824
        %v2826 = vpop.xlane.xlu0 %2825
        %v2827 = vsel %vm736, %v2817, 0.0
        %2828 = vadd.xlane.f32.xlu0 %v2827
        %v2829 = vpop.xlane.xlu0 %2828
        %v2830 = vsel %vm736, %v2818, 0.0
        %2831 = vadd.xlane.f32.xlu0 %v2830
        %v2832 = vpop.xlane.xlu0 %2831
        %v2833 = vrcp.pop 32.0
        %v2834 = vmul.f32 %v2823, %v2833
        %v2835 = vmul.f32 %v2826, %v2833
        %v2836 = vmul.f32 %v2829, %v2833
        %v2837 = vmul.f32 %v2832, %v2833
        %v2838 = vmul.f32 %v2815, %v2815
        %v2839 = vmul.f32 %v2816, %v2816
        %v2840 = vmul.f32 %v2817, %v2817
        %v2841 = vmul.f32 %v2818, %v2818
        %v2842 = vsel %vm736, %v2838, 0.0
        %2843 = vadd.xlane.f32.xlu0 %v2842
        %v2844 = vpop.xlane.xlu0 %2843
        %v2845 = vsel %vm736, %v2839, 0.0
        %2846 = vadd.xlane.f32.xlu0 %v2845
        %v2847 = vpop.xlane.xlu0 %2846
        %v2848 = vsel %vm736, %v2840, 0.0
        %2849 = vadd.xlane.f32.xlu0 %v2848
        %v2850 = vpop.xlane.xlu0 %2849
        %v2851 = vsel %vm736, %v2841, 0.0
        %2852 = vadd.xlane.f32.xlu0 %v2851
        %v2853 = vpop.xlane.xlu0 %2852
        %v2854 = vmul.f32 %v2844, %v2833
        %v2855 = vmul.f32 %v2847, %v2833
        %v2856 = vmul.f32 %v2850, %v2833
        %v2857 = vmul.f32 %v2853, %v2833
        %v2858 = vmul.f32 %v2834, %v2834
        %v2859 = vmul.f32 %v2835, %v2835
        %v2860 = vmul.f32 %v2836, %v2836
        %v2861 = vmul.f32 %v2837, %v2837
        %v2862 = vsub.f32 %v2854, %v2858
        %v2863 = vsub.f32 %v2855, %v2859
        %v2864 = vsub.f32 %v2856, %v2860
        %v2865 = vsub.f32 %v2857, %v2861
        %v2866 = vsub.f32 %v2815, %v2834
        %v2867 = vsub.f32 %v2816, %v2835
        %v2868 = vsub.f32 %v2817, %v2836
        %v2869 = vsub.f32 %v2818, %v2837
        %v2870 = vadd.f32 %v2862, 1e-05
        %v2871 = vadd.f32 %v2863, 1e-05
        %v2872 = vadd.f32 %v2864, 1e-05
        %v2873 = vadd.f32 %v2865, 1e-05
        %v2874 = vrsqrt.pop %v2870
        %v2875 = vrsqrt.pop %v2871
        %v2876 = vrsqrt.pop %v2872
        %v2877 = vrsqrt.pop %v2873
        %v2878 = vmul.f32 %v2866, %v2874
        %v2879 = vmul.f32 %v2867, %v2875
        %v2880 = vmul.f32 %v2868, %v2876
        %v2881 = vmul.f32 %v2869, %v2877
        %v2883 = vlaneseq
        %v2884 = vshrl.u32 %v2883, 7
        %v2885 = vsub.s32 0, %v2884
        %v2886 = vrot.slane %v2819, %v2885
        %v2888 = vmul.f32 %v2878, %v2886
        %v2889 = vmul.f32 %v2879, %v2886
        %v2890 = vmul.f32 %v2880, %v2886
        %v2891 = vmul.f32 %v2881, %v2886
        %v2893 = vlaneseq
        %v2894 = vshrl.u32 %v2893, 7
        %v2895 = vsub.s32 0, %v2894
        %v2896 = vrot.slane %v2820, %v2895
        %v2898 = vadd.f32 %v2888, %v2896
        %v2899 = vadd.f32 %v2889, %v2896
        %v2900 = vadd.f32 %v2890, %v2896
        %v2901 = vadd.f32 %v2891, %v2896
        %v2902 = vpack.c.bf16 %v2899, %v2898
        %v2903 = vpack.c.bf16 %v2901, %v2900
        %v2904 = vld [vmem:[%s9] sm:$0xf]
        %v2905 = vld [vmem:[%s9 + $0x4] sm:$0xf]
        %v2906 = vld [vmem:[%s9 + $0x8] sm:$0xf]
        %v2907 = vld [vmem:[%s9 + $0xc] sm:$0xf]
        %v2908 = vld [vmem:[%s10] sm:$0x1]
        %v2910 = vlaneseq
        %v2911 = vshrl.u32 %v2910, 7
        %v2912 = vsub.s32 0, %v2911
        %v2913 = vrot.slane %v2908, %v2912
        %v2919 = vunpack.c.l.b16 %v2904
        %v2920 = vunpack.c.l.b16 %v2905
        %v2921 = vunpack.c.l.b16 %v2906
        %v2922 = vunpack.c.l.b16 %v2907
        %v2923 = vpack.c.b16 %v2920, %v2919
        %v2924 = vpack.c.b16 %v2922, %v2921
        %v2928 = vsel %vm736, %v2902, 0
        %v2931 = vsel %vm736, %v2903, 0
        %2933 = vmatprep.subr.bf16.mxu0 0
        %2934 = vmatpush1.bf16.msra.mxu0 %v2923
        %2935 = vmatprep.subr.bf16.mxu0 0
        %2936 = vmatpush1.bf16.msra.mxu0 %v2924
        %2937 = vmatprep.subr.bf16.mxu0 0
        %2938 = vmatpush1.bf16.msra.mxu0 0
        %2939 = vmatprep.subr.bf16.mxu0 0
        %2940 = vmatpush1.bf16.msra.mxu0 0
        %2941 = vmatprep.subr.bf16.mxu0 0
        %2942 = vmatpush1.bf16.msra.mxu0 0
        %2943 = vmatprep.subr.bf16.mxu0 0
        %2944 = vmatpush1.bf16.msra.mxu0 0
        %2945 = vmatprep.subr.bf16.mxu0 0
        %2946 = vmatpush1.bf16.msra.mxu0 0
        %2947 = vmatprep.subr.bf16.mxu0 0
        %2948 = vmatpush1.bf16.msra.mxu0 0
        %2949 = vmatprep.subr.bf16.mxu0 0
        %2950 = vmatpush1.bf16.msra.mxu0 0
        %2951 = vmatprep.subr.bf16.mxu0 0
        %2952 = vmatpush1.bf16.msra.mxu0 0
        %2953 = vmatprep.subr.bf16.mxu0 0
        %2954 = vmatpush1.bf16.msra.mxu0 0
        %2955 = vmatprep.subr.bf16.mxu0 0
        %2956 = vmatpush1.bf16.msra.mxu0 0
        %2957 = vmatprep.subr.bf16.mxu0 0
        %2958 = vmatpush1.bf16.msra.mxu0 0
        %2959 = vmatprep.subr.bf16.mxu0 0
        %2960 = vmatpush1.bf16.msra.mxu0 0
        %2961 = vmatprep.subr.bf16.mxu0 0
        %2962 = vmatpush1.bf16.msra.mxu0 0
        %2963 = vmatprep.subr.bf16.mxu0 0
        %2964 = vmatpush1.bf16.msra.mxu0 0
        %2965 = vmatprep.mubr.bf16.mxu0 0
        %2966 = vmatmul.mubr.bf16.gmra.mrb[0].mxu0 %v2928
        %v2967 = vpop.f32.mrb[0].mxu0
        %v2968 = vadd.f32 %v2913, %v2967
        %v2969 = vpop.f32.mrb[0].mxu0
        %v2970 = vpop.f32.mrb[0].mxu0
        %v2971 = vadd.f32 %v2913, %v2970
        %v2972 = vpop.f32.mrb[0].mxu0
        %2973 = vmatprep.mubr.bf16.mxu0 0
        %2974 = vmatmul.mubr.bf16.gmra.mrb[0].mxu0 %v2931
        %v2975 = vpop.f32.mrb[0].mxu0
        %v2976 = vadd.f32 %v2913, %v2975
        %v2977 = vpop.f32.mrb[0].mxu0
        %v2978 = vpop.f32.mrb[0].mxu0
        %v2979 = vadd.f32 %v2913, %v2978
        %v2980 = vpop.f32.mrb[0].mxu0
        %2981 = vdwg.mxu0
        %v2982 = vmax.f32 %v2968, 0.0
        %v2983 = vmax.f32 %v2971, 0.0
        %v2984 = vmax.f32 %v2976, 0.0
        %v2985 = vmax.f32 %v2979, 0.0
        %v2986 = vpack.c.bf16 %v2983, %v2982
        %v2987 = vpack.c.bf16 %v2985, %v2984
        %v2988 = vld [vmem:[%s11] sm:$0xf]
        %v2989 = vld [vmem:[%s11 + $0x4] sm:$0xf]
        %v2990 = vld [vmem:[%s11 + $0x8] sm:$0xf]
        %v2991 = vld [vmem:[%s11 + $0xc] sm:$0xf]
        %v2992 = vld [vmem:[%s11 + $0x10] sm:$0xf]
        %v2993 = vld [vmem:[%s11 + $0x14] sm:$0xf]
        %v2994 = vld [vmem:[%s11 + $0x18] sm:$0xf]
        %v2995 = vld [vmem:[%s11 + $0x1c] sm:$0xf]
        %v2996 = vld [vmem:[%s11 + $0x20] sm:$0xf]
        %v2997 = vld [vmem:[%s11 + $0x24] sm:$0xf]
        %v2998 = vld [vmem:[%s11 + $0x28] sm:$0xf]
        %v2999 = vld [vmem:[%s11 + $0x2c] sm:$0xf]
        %v3000 = vld [vmem:[%s11 + $0x30] sm:$0xf]
        %v3001 = vld [vmem:[%s11 + $0x34] sm:$0xf]
        %v3002 = vld [vmem:[%s11 + $0x38] sm:$0xf]
        %v3003 = vld [vmem:[%s11 + $0x3c] sm:$0xf]
        %v3004 = vld [vmem:[%s12] sm:$0x1]
        %v3006 = vlaneseq
        %v3007 = vshrl.u32 %v3006, 7
        %v3008 = vsub.s32 0, %v3007
        %v3009 = vrot.slane %v3004, %v3008
        %v3027 = vunpack.c.l.b16 %v2988
        %v3028 = vunpack.c.l.b16 %v2989
        %v3029 = vunpack.c.l.b16 %v2990
        %v3030 = vunpack.c.l.b16 %v2991
        %v3031 = vunpack.c.l.b16 %v2992
        %v3032 = vunpack.c.l.b16 %v2993
        %v3033 = vunpack.c.l.b16 %v2994
        %v3034 = vunpack.c.l.b16 %v2995
        %v3035 = vunpack.c.l.b16 %v2996
        %v3036 = vunpack.c.l.b16 %v2997
        %v3037 = vunpack.c.l.b16 %v2998
        %v3038 = vunpack.c.l.b16 %v2999
        %v3039 = vunpack.c.l.b16 %v3000
        %v3040 = vunpack.c.l.b16 %v3001
        %v3041 = vunpack.c.l.b16 %v3002
        %v3042 = vunpack.c.l.b16 %v3003
        %v3043 = vpack.c.b16 %v3028, %v3027
        %v3044 = vpack.c.b16 %v3030, %v3029
        %v3045 = vpack.c.b16 %v3032, %v3031
        %v3046 = vpack.c.b16 %v3034, %v3033
        %v3047 = vpack.c.b16 %v3036, %v3035
        %v3048 = vpack.c.b16 %v3038, %v3037
        %v3049 = vpack.c.b16 %v3040, %v3039
        %v3050 = vpack.c.b16 %v3042, %v3041
        %3059 = vmatprep.subr.bf16.mxu0 0
        %3060 = vmatpush1.bf16.msra.mxu0 %v3043
        %3061 = vmatprep.subr.bf16.mxu0 0
        %3062 = vmatpush1.bf16.msra.mxu0 %v3044
        %3063 = vmatprep.subr.bf16.mxu0 0
        %3064 = vmatpush1.bf16.msra.mxu0 %v3045
        %3065 = vmatprep.subr.bf16.mxu0 0
        %3066 = vmatpush1.bf16.msra.mxu0 %v3046
        %3067 = vmatprep.subr.bf16.mxu0 0
        %3068 = vmatpush1.bf16.msra.mxu0 %v3047
        %3069 = vmatprep.subr.bf16.mxu0 0
        %3070 = vmatpush1.bf16.msra.mxu0 %v3048
        %3071 = vmatprep.subr.bf16.mxu0 0
        %3072 = vmatpush1.bf16.msra.mxu0 %v3049
        %3073 = vmatprep.subr.bf16.mxu0 0
        %3074 = vmatpush1.bf16.msra.mxu0 %v3050
        %3075 = vmatprep.subr.bf16.mxu0 0
        %3076 = vmatpush1.bf16.msra.mxu0 0
        %3077 = vmatprep.subr.bf16.mxu0 0
        %3078 = vmatpush1.bf16.msra.mxu0 0
        %3079 = vmatprep.subr.bf16.mxu0 0
        %3080 = vmatpush1.bf16.msra.mxu0 0
        %3081 = vmatprep.subr.bf16.mxu0 0
        %3082 = vmatpush1.bf16.msra.mxu0 0
        %3083 = vmatprep.subr.bf16.mxu0 0
        %3084 = vmatpush1.bf16.msra.mxu0 0
        %3085 = vmatprep.subr.bf16.mxu0 0
        %3086 = vmatpush1.bf16.msra.mxu0 0
        %3087 = vmatprep.subr.bf16.mxu0 0
        %3088 = vmatpush1.bf16.msra.mxu0 0
        %3089 = vmatprep.subr.bf16.mxu0 0
        %3090 = vmatpush1.bf16.msra.mxu0 0
        %3091 = vmatprep.mubr.bf16.mxu0 0
        %3092 = vmatmul.mubr.bf16.gmra.mrb[0].mxu0 %v2986
        %v3093 = vpop.f32.mrb[0].mxu0
        %v3094 = vadd.f32 %v3009, %v3093
        %v3095 = vpop.f32.mrb[0].mxu0
        %v3096 = vpop.f32.mrb[0].mxu0
        %v3097 = vadd.f32 %v3009, %v3096
        %v3098 = vpop.f32.mrb[0].mxu0
        %3099 = vmatprep.mubr.bf16.mxu0 0
        %3100 = vmatmul.mubr.bf16.gmra.mrb[0].mxu0 %v2987
        %v3101 = vpop.f32.mrb[0].mxu0
        %v3102 = vadd.f32 %v3009, %v3101
        %v3103 = vpop.f32.mrb[0].mxu0
        %v3104 = vpop.f32.mrb[0].mxu0
        %v3105 = vadd.f32 %v3009, %v3104
        %v3106 = vpop.f32.mrb[0].mxu0
        %3107 = vdwg.mxu0
        %v3108 = vadd.f32 %v3094, %v2898
        %v3109 = vadd.f32 %v3097, %v2899
        %v3110 = vadd.f32 %v3102, %v2900
        %v3111 = vadd.f32 %v3105, %v2901
        %v3112 = vld [vmem:[%s13] sm:$0x1]
        %v3113 = vld [vmem:[%s14] sm:$0x1]
        %v3114 = vsel %vm736, %v3108, 0.0
        %3115 = vadd.xlane.f32.xlu0 %v3114
        %v3116 = vpop.xlane.xlu0 %3115
        %v3117 = vsel %vm736, %v3109, 0.0
        %3118 = vadd.xlane.f32.xlu0 %v3117
        %v3119 = vpop.xlane.xlu0 %3118
        %v3120 = vsel %vm736, %v3110, 0.0
        %3121 = vadd.xlane.f32.xlu0 %v3120
        %v3122 = vpop.xlane.xlu0 %3121
        %v3123 = vsel %vm736, %v3111, 0.0
        %3124 = vadd.xlane.f32.xlu0 %v3123
        %v3125 = vpop.xlane.xlu0 %3124
        %v3126 = vmul.f32 %v3116, %v2833
        %v3127 = vmul.f32 %v3119, %v2833
        %v3128 = vmul.f32 %v3122, %v2833
        %v3129 = vmul.f32 %v3125, %v2833
        %v3130 = vmul.f32 %v3108, %v3108
        %v3131 = vmul.f32 %v3109, %v3109
        %v3132 = vmul.f32 %v3110, %v3110
        %v3133 = vmul.f32 %v3111, %v3111
        %v3134 = vsel %vm736, %v3130, 0.0
        %3135 = vadd.xlane.f32.xlu0 %v3134
        %v3136 = vpop.xlane.xlu0 %3135
        %v3137 = vsel %vm736, %v3131, 0.0
        %3138 = vadd.xlane.f32.xlu0 %v3137
        %v3139 = vpop.xlane.xlu0 %3138
        %v3140 = vsel %vm736, %v3132, 0.0
        %3141 = vadd.xlane.f32.xlu0 %v3140
        %v3142 = vpop.xlane.xlu0 %3141
        %v3143 = vsel %vm736, %v3133, 0.0
        %3144 = vadd.xlane.f32.xlu0 %v3143
        %v3145 = vpop.xlane.xlu0 %3144
        %v3146 = vmul.f32 %v3136, %v2833
        %v3147 = vmul.f32 %v3139, %v2833
        %v3148 = vmul.f32 %v3142, %v2833
        %v3149 = vmul.f32 %v3145, %v2833
        %v3150 = vmul.f32 %v3126, %v3126
        %v3151 = vmul.f32 %v3127, %v3127
        %v3152 = vmul.f32 %v3128, %v3128
        %v3153 = vmul.f32 %v3129, %v3129
        %v3154 = vsub.f32 %v3146, %v3150
        %v3155 = vsub.f32 %v3147, %v3151
        %v3156 = vsub.f32 %v3148, %v3152
        %v3157 = vsub.f32 %v3149, %v3153
        %v3158 = vsub.f32 %v3108, %v3126
        %v3159 = vsub.f32 %v3109, %v3127
        %v3160 = vsub.f32 %v3110, %v3128
        %v3161 = vsub.f32 %v3111, %v3129
        %v3162 = vadd.f32 %v3154, 1e-05
        %v3163 = vadd.f32 %v3155, 1e-05
        %v3164 = vadd.f32 %v3156, 1e-05
        %v3165 = vadd.f32 %v3157, 1e-05
        %v3166 = vrsqrt.pop %v3162
        %v3167 = vrsqrt.pop %v3163
        %v3168 = vrsqrt.pop %v3164
        %v3169 = vrsqrt.pop %v3165
        %v3170 = vmul.f32 %v3158, %v3166
        %v3171 = vmul.f32 %v3159, %v3167
        %v3172 = vmul.f32 %v3160, %v3168
        %v3173 = vmul.f32 %v3161, %v3169
        %v3175 = vlaneseq
        %v3176 = vshrl.u32 %v3175, 7
        %v3177 = vsub.s32 0, %v3176
        %v3178 = vrot.slane %v3112, %v3177
        %v3180 = vmul.f32 %v3170, %v3178
        %v3181 = vmul.f32 %v3171, %v3178
        %v3182 = vmul.f32 %v3172, %v3178
        %v3183 = vmul.f32 %v3173, %v3178
        %v3185 = vlaneseq
        %v3186 = vshrl.u32 %v3185, 7
        %v3187 = vsub.s32 0, %v3186
        %v3188 = vrot.slane %v3113, %v3187
        %v3190 = vadd.f32 %v3180, %v3188
        %v3191 = vadd.f32 %v3181, %v3188
        %v3192 = vadd.f32 %v3182, %v3188
        %v3193 = vadd.f32 %v3183, %v3188
        %v3194 = vpack.c.bf16 %v3191, %v3190
        %v3195 = vpack.c.bf16 %v3193, %v3192
        %s3196 = scalar_lea.vmem %s4, 48
        %v3197 = vld [vmem:[%s3196] sm:$0xff]
        %v3198 = vld [vmem:[%s3196 + $0x8] sm:$0xf]
        %v3199 = vld [vmem:[%s3196 + $0xc] sm:$0xff]
        %v3200 = vld [vmem:[%s3196 + $0x14] sm:$0xf]
        %v3201 = vld [vmem:[%s3196 + $0x18] sm:$0xff]
        %v3202 = vld [vmem:[%s3196 + $0x20] sm:$0xf]
        %v3203 = vld [vmem:[%s3196 + $0x24] sm:$0xff]
        %v3204 = vld [vmem:[%s3196 + $0x2c] sm:$0xf]
        %v3213 = vunpack.c.l.b16 %v3197
        %v3214 = vunpack.c.h.b16 %v3197
        %v3215 = vunpack.c.l.b16 %v3198
        %v3216 = vunpack.c.l.b16 %v3199
        %v3217 = vunpack.c.h.b16 %v3199
        %v3218 = vunpack.c.l.b16 %v3200
        %v3219 = vunpack.c.l.b16 %v3201
        %v3220 = vunpack.c.h.b16 %v3201
        %v3221 = vunpack.c.l.b16 %v3202
        %v3222 = vunpack.c.l.b16 %v3203
        %v3223 = vunpack.c.h.b16 %v3203
        %v3224 = vunpack.c.l.b16 %v3204
        %v3225 = vpack.c.b16 %v3216, %v3213
        %v3226 = vpack.c.b16 %v3217, %v3214
        %v3227 = vpack.c.b16 %v3218, %v3215
        %v3228 = vpack.c.b16 %v3222, %v3219
        %v3229 = vpack.c.b16 %v3223, %v3220
        %v3230 = vpack.c.b16 %v3224, %v3221
        %v3238 = vsel %vm736, %v3194, 0
        %v3241 = vsel %vm736, %v3195, 0
        %3243 = vmatprep.subr.bf16.mxu0 %v3226
        %3244 = vmatpush1.bf16.msra.mxu0 %v3225
        %3245 = vmatprep.subr.bf16.mxu0 %v3229
        %3246 = vmatpush1.bf16.msra.mxu0 %v3228
        %3247 = vmatprep.subr.bf16.mxu0 0
        %3248 = vmatpush1.bf16.msra.mxu0 0
        %3249 = vmatprep.subr.bf16.mxu0 0
        %3250 = vmatpush1.bf16.msra.mxu0 0
        %3251 = vmatprep.subr.bf16.mxu0 0
        %3252 = vmatpush1.bf16.msra.mxu0 0
        %3253 = vmatprep.subr.bf16.mxu0 0
        %3254 = vmatpush1.bf16.msra.mxu0 0
        %3255 = vmatprep.subr.bf16.mxu0 0
        %3256 = vmatpush1.bf16.msra.mxu0 0
        %3257 = vmatprep.subr.bf16.mxu0 0
        %3258 = vmatpush1.bf16.msra.mxu0 0
        %3259 = vmatprep.subr.bf16.mxu0 0
        %3260 = vmatpush1.bf16.msra.mxu0 0
        %3261 = vmatprep.subr.bf16.mxu0 0
        %3262 = vmatpush1.bf16.msra.mxu0 0
        %3263 = vmatprep.subr.bf16.mxu0 0
        %3264 = vmatpush1.bf16.msra.mxu0 0
        %3265 = vmatprep.subr.bf16.mxu0 0
        %3266 = vmatpush1.bf16.msra.mxu0 0
        %3267 = vmatprep.subr.bf16.mxu0 0
        %3268 = vmatpush1.bf16.msra.mxu0 0
        %3269 = vmatprep.subr.bf16.mxu0 0
        %3270 = vmatpush1.bf16.msra.mxu0 0
        %3271 = vmatprep.subr.bf16.mxu0 0
        %3272 = vmatpush1.bf16.msra.mxu0 0
        %3273 = vmatprep.subr.bf16.mxu0 0
        %3274 = vmatpush1.bf16.msra.mxu0 0
        %3275 = vmatprep.mubr.bf16.mxu0 0
        %3276 = vmatmul.mubr.bf16.gmra.mrb[0].mxu0 %v3238
        %v3277 = vpop.f32.mrb[0].mxu0
        %v3278 = vadd.f32 0.0, %v3277
        %v3279 = vpop.f32.mrb[0].mxu0
        %v3280 = vadd.f32 0.0, %v3279
        %v3281 = vpop.f32.mrb[0].mxu0
        %v3282 = vadd.f32 0.0, %v3281
        %v3283 = vpop.f32.mrb[0].mxu0
        %v3284 = vadd.f32 0.0, %v3283
        %3285 = vmatprep.mubr.bf16.mxu0 0
        %3286 = vmatmul.mubr.bf16.gmra.mrb[0].mxu0 %v3241
        %v3287 = vpop.f32.mrb[0].mxu0
        %v3288 = vadd.f32 0.0, %v3287
        %v3289 = vpop.f32.mrb[0].mxu0
        %v3290 = vadd.f32 0.0, %v3289
        %v3291 = vpop.f32.mrb[0].mxu0
        %v3292 = vadd.f32 0.0, %v3291
        %v3293 = vpop.f32.mrb[0].mxu0
        %v3294 = vadd.f32 0.0, %v3293
        %3295 = vdwg.mxu0
        %3296 = vmatprep.subr.bf16.mxu0 0
        %3297 = vmatpush1.bf16.msra.mxu0 %v3227
        %3298 = vmatprep.subr.bf16.mxu0 0
        %3299 = vmatpush1.bf16.msra.mxu0 %v3230
        %3300 = vmatprep.subr.bf16.mxu0 0
        %3301 = vmatpush1.bf16.msra.mxu0 0
        %3302 = vmatprep.subr.bf16.mxu0 0
        %3303 = vmatpush1.bf16.msra.mxu0 0
        %3304 = vmatprep.subr.bf16.mxu0 0
        %3305 = vmatpush1.bf16.msra.mxu0 0
        %3306 = vmatprep.subr.bf16.mxu0 0
        %3307 = vmatpush1.bf16.msra.mxu0 0
        %3308 = vmatprep.subr.bf16.mxu0 0
        %3309 = vmatpush1.bf16.msra.mxu0 0
        %3310 = vmatprep.subr.bf16.mxu0 0
        %3311 = vmatpush1.bf16.msra.mxu0 0
        %3312 = vmatprep.subr.bf16.mxu0 0
        %3313 = vmatpush1.bf16.msra.mxu0 0
        %3314 = vmatprep.subr.bf16.mxu0 0
        %3315 = vmatpush1.bf16.msra.mxu0 0
        %3316 = vmatprep.subr.bf16.mxu0 0
        %3317 = vmatpush1.bf16.msra.mxu0 0
        %3318 = vmatprep.subr.bf16.mxu0 0
        %3319 = vmatpush1.bf16.msra.mxu0 0
        %3320 = vmatprep.subr.bf16.mxu0 0
        %3321 = vmatpush1.bf16.msra.mxu0 0
        %3322 = vmatprep.subr.bf16.mxu0 0
        %3323 = vmatpush1.bf16.msra.mxu0 0
        %3324 = vmatprep.subr.bf16.mxu0 0
        %3325 = vmatpush1.bf16.msra.mxu0 0
        %3326 = vmatprep.subr.bf16.mxu0 0
        %3327 = vmatpush1.bf16.msra.mxu0 0
        %3328 = vmatprep.mubr.bf16.mxu0 0
        %3329 = vmatmul.mubr.bf16.gmra.mrb[0].mxu0 %v3238
        %v3330 = vpop.f32.mrb[0].mxu0
        %v3331 = vadd.f32 0.0, %v3330
        %v3332 = vpop.f32.mrb[0].mxu0
        %v3333 = vpop.f32.mrb[0].mxu0
        %v3334 = vadd.f32 0.0, %v3333
        %v3335 = vpop.f32.mrb[0].mxu0
        %3336 = vmatprep.mubr.bf16.mxu0 0
        %3337 = vmatmul.mubr.bf16.gmra.mrb[0].mxu0 %v3241
        %v3338 = vpop.f32.mrb[0].mxu0
        %v3339 = vadd.f32 0.0, %v3338
        %v3340 = vpop.f32.mrb[0].mxu0
        %v3341 = vpop.f32.mrb[0].mxu0
        %v3342 = vadd.f32 0.0, %v3341
        %v3343 = vpop.f32.mrb[0].mxu0
        %3344 = vdwg.mxu0
        %v3345 = vpack.c.bf16 %v3278, %v3278
        %v3346 = vpack.c.bf16 %v3282, %v3282
        %v3347 = vpack.c.bf16 %v3288, %v3288
        %v3348 = vpack.c.bf16 %v3292, %v3292
        %v3349 = vpack.c.bf16 %v3280, %v3280
        %v3350 = vpack.c.bf16 %v3284, %v3284
        %v3351 = vpack.c.bf16 %v3290, %v3290
        %v3352 = vpack.c.bf16 %v3294, %v3294
        %v3353 = vpack.c.bf16 %v3331, %v3331
        %v3354 = vpack.c.bf16 %v3334, %v3334
        %v3355 = vpack.c.bf16 %v3339, %v3339
        %v3356 = vpack.c.bf16 %v3342, %v3342
        %v3358 = vsel %vm736, %v3345, 0
        %v3361 = vsel %vm736, %v3349, 0
        %3363 = vmatprep.subr.bf16.mxu0 0
        %3364 = vmatpush1.bf16.xpose.msra.mxu0 %v3361
        %3365 = vmatprep.subr.bf16.mxu0 0
        %3366 = vmatpush1.bf16.xpose.msra.mxu0 0
        %3367 = vmatprep.subr.bf16.mxu0 0
        %3368 = vmatpush1.bf16.xpose.msra.mxu0 0
        %3369 = vmatprep.subr.bf16.mxu0 0
        %3370 = vmatpush1.bf16.xpose.msra.mxu0 0
        %3371 = vmatprep.subr.bf16.mxu0 0
        %3372 = vmatpush1.bf16.xpose.msra.mxu0 0
        %3373 = vmatprep.subr.bf16.mxu0 0
        %3374 = vmatpush1.bf16.xpose.msra.mxu0 0
        %3375 = vmatprep.subr.bf16.mxu0 0
        %3376 = vmatpush1.bf16.xpose.msra.mxu0 0
        %3377 = vmatprep.subr.bf16.mxu0 0
        %3378 = vmatpush1.bf16.xpose.msra.mxu0 0
        %3379 = vmatprep.subr.bf16.mxu0 0
        %3380 = vmatpush1.bf16.xpose.msra.mxu0 0
        %3381 = vmatprep.subr.bf16.mxu0 0
        %3382 = vmatpush1.bf16.xpose.msra.mxu0 0
        %3383 = vmatprep.subr.bf16.mxu0 0
        %3384 = vmatpush1.bf16.xpose.msra.mxu0 0
        %3385 = vmatprep.subr.bf16.mxu0 0
        %3386 = vmatpush1.bf16.xpose.msra.mxu0 0
        %3387 = vmatprep.subr.bf16.mxu0 0
        %3388 = vmatpush1.bf16.xpose.msra.mxu0 0
        %3389 = vmatprep.subr.bf16.mxu0 0
        %3390 = vmatpush1.bf16.xpose.msra.mxu0 0
        %3391 = vmatprep.subr.bf16.mxu0 0
        %3392 = vmatpush1.bf16.xpose.msra.mxu0 0
        %3393 = vmatprep.subr.bf16.mxu0 0
        %3394 = vmatpush1.bf16.xpose.msra.mxu0 0
        %3395 = vmatprep.mubr.bf16.mxu0 0
        %3396 = vmatmul.mubr.bf16.gmra.mrb[0].mxu0 %v3358
        %v3397 = vpop.f32.mrb[0].mxu0
        %v3398 = vadd.f32 %v864, %v3397
        %v3399 = vpop.f32.mrb[0].mxu0
        %v3400 = vpop.f32.mrb[0].mxu0
        %v3401 = vpop.f32.mrb[0].mxu0
        %3402 = vdwg.mxu0
        %v3404 = vsel %vm736, %v3346, 0
        %v3407 = vsel %vm736, %v3350, 0
        %3409 = vmatprep.subr.bf16.mxu0 0
        %3410 = vmatpush1.bf16.xpose.msra.mxu0 %v3407
        %3411 = vmatprep.subr.bf16.mxu0 0
        %3412 = vmatpush1.bf16.xpose.msra.mxu0 0
        %3413 = vmatprep.subr.bf16.mxu0 0
        %3414 = vmatpush1.bf16.xpose.msra.mxu0 0
        %3415 = vmatprep.subr.bf16.mxu0 0
        %3416 = vmatpush1.bf16.xpose.msra.mxu0 0
        %3417 = vmatprep.subr.bf16.mxu0 0
        %3418 = vmatpush1.bf16.xpose.msra.mxu0 0
        %3419 = vmatprep.subr.bf16.mxu0 0
        %3420 = vmatpush1.bf16.xpose.msra.mxu0 0
        %3421 = vmatprep.subr.bf16.mxu0 0
        %3422 = vmatpush1.bf16.xpose.msra.mxu0 0
        %3423 = vmatprep.subr.bf16.mxu0 0
        %3424 = vmatpush1.bf16.xpose.msra.mxu0 0
        %3425 = vmatprep.subr.bf16.mxu0 0
        %3426 = vmatpush1.bf16.xpose.msra.mxu0 0
        %3427 = vmatprep.subr.bf16.mxu0 0
        %3428 = vmatpush1.bf16.xpose.msra.mxu0 0
        %3429 = vmatprep.subr.bf16.mxu0 0
        %3430 = vmatpush1.bf16.xpose.msra.mxu0 0
        %3431 = vmatprep.subr.bf16.mxu0 0
        %3432 = vmatpush1.bf16.xpose.msra.mxu0 0
        %3433 = vmatprep.subr.bf16.mxu0 0
        %3434 = vmatpush1.bf16.xpose.msra.mxu0 0
        %3435 = vmatprep.subr.bf16.mxu0 0
        %3436 = vmatpush1.bf16.xpose.msra.mxu0 0
        %3437 = vmatprep.subr.bf16.mxu0 0
        %3438 = vmatpush1.bf16.xpose.msra.mxu0 0
        %3439 = vmatprep.subr.bf16.mxu0 0
        %3440 = vmatpush1.bf16.xpose.msra.mxu0 0
        %3441 = vmatprep.mubr.bf16.mxu0 0
        %3442 = vmatmul.mubr.bf16.gmra.mrb[0].mxu0 %v3404
        %v3443 = vpop.f32.mrb[0].mxu0
        %v3444 = vadd.f32 %v868, %v3443
        %v3445 = vpop.f32.mrb[0].mxu0
        %v3446 = vpop.f32.mrb[0].mxu0
        %v3447 = vpop.f32.mrb[0].mxu0
        %3448 = vdwg.mxu0
        %v3450 = vsel %vm736, %v3347, 0
        %v3453 = vsel %vm736, %v3351, 0
        %3455 = vmatprep.subr.bf16.mxu0 0
        %3456 = vmatpush1.bf16.xpose.msra.mxu0 %v3453
        %3457 = vmatprep.subr.bf16.mxu0 0
        %3458 = vmatpush1.bf16.xpose.msra.mxu0 0
        %3459 = vmatprep.subr.bf16.mxu0 0
        %3460 = vmatpush1.bf16.xpose.msra.mxu0 0
        %3461 = vmatprep.subr.bf16.mxu0 0
        %3462 = vmatpush1.bf16.xpose.msra.mxu0 0
        %3463 = vmatprep.subr.bf16.mxu0 0
        %3464 = vmatpush1.bf16.xpose.msra.mxu0 0
        %3465 = vmatprep.subr.bf16.mxu0 0
        %3466 = vmatpush1.bf16.xpose.msra.mxu0 0
        %3467 = vmatprep.subr.bf16.mxu0 0
        %3468 = vmatpush1.bf16.xpose.msra.mxu0 0
        %3469 = vmatprep.subr.bf16.mxu0 0
        %3470 = vmatpush1.bf16.xpose.msra.mxu0 0
        %3471 = vmatprep.subr.bf16.mxu0 0
        %3472 = vmatpush1.bf16.xpose.msra.mxu0 0
        %3473 = vmatprep.subr.bf16.mxu0 0
        %3474 = vmatpush1.bf16.xpose.msra.mxu0 0
        %3475 = vmatprep.subr.bf16.mxu0 0
        %3476 = vmatpush1.bf16.xpose.msra.mxu0 0
        %3477 = vmatprep.subr.bf16.mxu0 0
        %3478 = vmatpush1.bf16.xpose.msra.mxu0 0
        %3479 = vmatprep.subr.bf16.mxu0 0
        %3480 = vmatpush1.bf16.xpose.msra.mxu0 0
        %3481 = vmatprep.subr.bf16.mxu0 0
        %3482 = vmatpush1.bf16.xpose.msra.mxu0 0
        %3483 = vmatprep.subr.bf16.mxu0 0
        %3484 = vmatpush1.bf16.xpose.msra.mxu0 0
        %3485 = vmatprep.subr.bf16.mxu0 0
        %3486 = vmatpush1.bf16.xpose.msra.mxu0 0
        %3487 = vmatprep.mubr.bf16.mxu0 0
        %3488 = vmatmul.mubr.bf16.gmra.mrb[0].mxu0 %v3450
        %v3489 = vpop.f32.mrb[0].mxu0
        %v3490 = vadd.f32 %v872, %v3489
        %v3491 = vpop.f32.mrb[0].mxu0
        %v3492 = vpop.f32.mrb[0].mxu0
        %v3493 = vpop.f32.mrb[0].mxu0
        %3494 = vdwg.mxu0
        %v3496 = vsel %vm736, %v3348, 0
        %v3499 = vsel %vm736, %v3352, 0
        %3501 = vmatprep.subr.bf16.mxu0 0
        %3502 = vmatpush1.bf16.xpose.msra.mxu0 %v3499
        %3503 = vmatprep.subr.bf16.mxu0 0
        %3504 = vmatpush1.bf16.xpose.msra.mxu0 0
        %3505 = vmatprep.subr.bf16.mxu0 0
        %3506 = vmatpush1.bf16.xpose.msra.mxu0 0
        %3507 = vmatprep.subr.bf16.mxu0 0
        %3508 = vmatpush1.bf16.xpose.msra.mxu0 0
        %3509 = vmatprep.subr.bf16.mxu0 0
        %3510 = vmatpush1.bf16.xpose.msra.mxu0 0
        %3511 = vmatprep.subr.bf16.mxu0 0
        %3512 = vmatpush1.bf16.xpose.msra.mxu0 0
        %3513 = vmatprep.subr.bf16.mxu0 0
        %3514 = vmatpush1.bf16.xpose.msra.mxu0 0
        %3515 = vmatprep.subr.bf16.mxu0 0
        %3516 = vmatpush1.bf16.xpose.msra.mxu0 0
        %3517 = vmatprep.subr.bf16.mxu0 0
        %3518 = vmatpush1.bf16.xpose.msra.mxu0 0
        %3519 = vmatprep.subr.bf16.mxu0 0
        %3520 = vmatpush1.bf16.xpose.msra.mxu0 0
        %3521 = vmatprep.subr.bf16.mxu0 0
        %3522 = vmatpush1.bf16.xpose.msra.mxu0 0
        %3523 = vmatprep.subr.bf16.mxu0 0
        %3524 = vmatpush1.bf16.xpose.msra.mxu0 0
        %3525 = vmatprep.subr.bf16.mxu0 0
        %3526 = vmatpush1.bf16.xpose.msra.mxu0 0
        %3527 = vmatprep.subr.bf16.mxu0 0
        %3528 = vmatpush1.bf16.xpose.msra.mxu0 0
        %3529 = vmatprep.subr.bf16.mxu0 0
        %3530 = vmatpush1.bf16.xpose.msra.mxu0 0
        %3531 = vmatprep.subr.bf16.mxu0 0
        %3532 = vmatpush1.bf16.xpose.msra.mxu0 0
        %3533 = vmatprep.mubr.bf16.mxu0 0
        %3534 = vmatmul.mubr.bf16.gmra.mrb[0].mxu0 %v3496
        %v3535 = vpop.f32.mrb[0].mxu0
        %v3536 = vadd.f32 %v876, %v3535
        %v3537 = vpop.f32.mrb[0].mxu0
        %v3538 = vpop.f32.mrb[0].mxu0
        %v3539 = vpop.f32.mrb[0].mxu0
        %3540 = vdwg.mxu0
        %v3541 = vsel %vm1065, %v3398, -inf
        %3542 = vmax.xlane.f32.xlu0 %v3541
        %v3543 = vpop.xlane.xlu0 %3542
        %v3544 = vsel %vm1065, %v3444, -inf
        %3545 = vmax.xlane.f32.xlu0 %v3544
        %v3546 = vpop.xlane.xlu0 %3545
        %v3547 = vsel %vm1065, %v3490, -inf
        %3548 = vmax.xlane.f32.xlu0 %v3547
        %v3549 = vpop.xlane.xlu0 %3548
        %v3550 = vsel %vm1065, %v3536, -inf
        %3551 = vmax.xlane.f32.xlu0 %v3550
        %v3552 = vpop.xlane.xlu0 %3551
        %v3553 = vsub.f32 %v3398, %v3543
        %v3554 = vsub.f32 %v3444, %v3546
        %v3555 = vsub.f32 %v3490, %v3549
        %v3556 = vsub.f32 %v3536, %v3552
        %v3557 = vmul.f32 %v3553, 1.442695
        %v3558 = vpow.pop %v3557
        %v3559 = vmul.f32 %v3554, 1.442695
        %v3560 = vpow.pop %v3559
        %v3561 = vmul.f32 %v3555, 1.442695
        %v3562 = vpow.pop %v3561
        %v3563 = vmul.f32 %v3556, 1.442695
        %v3564 = vpow.pop %v3563
        %v3565 = vsel %vm1065, %v3558, 0.0
        %3566 = vadd.xlane.f32.xlu0 %v3565
        %v3567 = vpop.xlane.xlu0 %3566
        %v3568 = vsel %vm1065, %v3560, 0.0
        %3569 = vadd.xlane.f32.xlu0 %v3568
        %v3570 = vpop.xlane.xlu0 %3569
        %v3571 = vsel %vm1065, %v3562, 0.0
        %3572 = vadd.xlane.f32.xlu0 %v3571
        %v3573 = vpop.xlane.xlu0 %3572
        %v3574 = vsel %vm1065, %v3564, 0.0
        %3575 = vadd.xlane.f32.xlu0 %v3574
        %v3576 = vpop.xlane.xlu0 %3575
        %v3577 = vrcp.pop %v3567
        %v3578 = vrcp.pop %v3570
        %v3579 = vrcp.pop %v3573
        %v3580 = vrcp.pop %v3576
        %v3581 = vmul.f32 %v3558, %v3577
        %v3582 = vmul.f32 %v3560, %v3578
        %v3583 = vmul.f32 %v3562, %v3579
        %v3584 = vmul.f32 %v3564, %v3580
        %v3585 = vpack.c.bf16 %v3581, %v3581
        %v3586 = vpack.c.bf16 %v3582, %v3582
        %v3587 = vpack.c.bf16 %v3583, %v3583
        %v3588 = vpack.c.bf16 %v3584, %v3584
        %v3590 = vsel %vm1065, %v3585, 0
        %v3593 = vsel %vm1117, %v3353, 0
        %3595 = vmatprep.subr.bf16.mxu0 0
        %3596 = vmatpush1.bf16.msra.mxu0 %v3593
        %3597 = vmatprep.subr.bf16.mxu0 0
        %3598 = vmatpush1.bf16.msra.mxu0 0
        %3599 = vmatprep.subr.bf16.mxu0 0
        %3600 = vmatpush1.bf16.msra.mxu0 0
        %3601 = vmatprep.subr.bf16.mxu0 0
        %3602 = vmatpush1.bf16.msra.mxu0 0
        %3603 = vmatprep.subr.bf16.mxu0 0
        %3604 = vmatpush1.bf16.msra.mxu0 0
        %3605 = vmatprep.subr.bf16.mxu0 0
        %3606 = vmatpush1.bf16.msra.mxu0 0
        %3607 = vmatprep.subr.bf16.mxu0 0
        %3608 = vmatpush1.bf16.msra.mxu0 0
        %3609 = vmatprep.subr.bf16.mxu0 0
        %3610 = vmatpush1.bf16.msra.mxu0 0
        %3611 = vmatprep.subr.bf16.mxu0 0
        %3612 = vmatpush1.bf16.msra.mxu0 0
        %3613 = vmatprep.subr.bf16.mxu0 0
        %3614 = vmatpush1.bf16.msra.mxu0 0
        %3615 = vmatprep.subr.bf16.mxu0 0
        %3616 = vmatpush1.bf16.msra.mxu0 0
        %3617 = vmatprep.subr.bf16.mxu0 0
        %3618 = vmatpush1.bf16.msra.mxu0 0
        %3619 = vmatprep.subr.bf16.mxu0 0
        %3620 = vmatpush1.bf16.msra.mxu0 0
        %3621 = vmatprep.subr.bf16.mxu0 0
        %3622 = vmatpush1.bf16.msra.mxu0 0
        %3623 = vmatprep.subr.bf16.mxu0 0
        %3624 = vmatpush1.bf16.msra.mxu0 0
        %3625 = vmatprep.subr.bf16.mxu0 0
        %3626 = vmatpush1.bf16.msra.mxu0 0
        %3627 = vmatprep.mubr.bf16.mxu0 0
        %3628 = vmatmul.mubr.bf16.gmra.mrb[0].mxu0 %v3590
        %v3629 = vpop.f32.mrb[0].mxu0
        %v3630 = vadd.f32 0.0, %v3629
        %v3631 = vpop.f32.mrb[0].mxu0
        %v3632 = vpop.f32.mrb[0].mxu0
        %v3633 = vpop.f32.mrb[0].mxu0
        %3634 = vdwg.mxu0
        %v3636 = vsel %vm1065, %v3586, 0
        %v3639 = vsel %vm1117, %v3354, 0
        %3641 = vmatprep.subr.bf16.mxu0 0
        %3642 = vmatpush1.bf16.msra.mxu0 %v3639
        %3643 = vmatprep.subr.bf16.mxu0 0
        %3644 = vmatpush1.bf16.msra.mxu0 0
        %3645 = vmatprep.subr.bf16.mxu0 0
        %3646 = vmatpush1.bf16.msra.mxu0 0
        %3647 = vmatprep.subr.bf16.mxu0 0
        %3648 = vmatpush1.bf16.msra.mxu0 0
        %3649 = vmatprep.subr.bf16.mxu0 0
        %3650 = vmatpush1.bf16.msra.mxu0 0
        %3651 = vmatprep.subr.bf16.mxu0 0
        %3652 = vmatpush1.bf16.msra.mxu0 0
        %3653 = vmatprep.subr.bf16.mxu0 0
        %3654 = vmatpush1.bf16.msra.mxu0 0
        %3655 = vmatprep.subr.bf16.mxu0 0
        %3656 = vmatpush1.bf16.msra.mxu0 0
        %3657 = vmatprep.subr.bf16.mxu0 0
        %3658 = vmatpush1.bf16.msra.mxu0 0
        %3659 = vmatprep.subr.bf16.mxu0 0
        %3660 = vmatpush1.bf16.msra.mxu0 0
        %3661 = vmatprep.subr.bf16.mxu0 0
        %3662 = vmatpush1.bf16.msra.mxu0 0
        %3663 = vmatprep.subr.bf16.mxu0 0
        %3664 = vmatpush1.bf16.msra.mxu0 0
        %3665 = vmatprep.subr.bf16.mxu0 0
        %3666 = vmatpush1.bf16.msra.mxu0 0
        %3667 = vmatprep.subr.bf16.mxu0 0
        %3668 = vmatpush1.bf16.msra.mxu0 0
        %3669 = vmatprep.subr.bf16.mxu0 0
        %3670 = vmatpush1.bf16.msra.mxu0 0
        %3671 = vmatprep.subr.bf16.mxu0 0
        %3672 = vmatpush1.bf16.msra.mxu0 0
        %3673 = vmatprep.mubr.bf16.mxu0 0
        %3674 = vmatmul.mubr.bf16.gmra.mrb[0].mxu0 %v3636
        %v3675 = vpop.f32.mrb[0].mxu0
        %v3676 = vadd.f32 0.0, %v3675
        %v3677 = vpop.f32.mrb[0].mxu0
        %v3678 = vpop.f32.mrb[0].mxu0
        %v3679 = vpop.f32.mrb[0].mxu0
        %3680 = vdwg.mxu0
        %v3682 = vsel %vm1065, %v3587, 0
        %v3685 = vsel %vm1117, %v3355, 0
        %3687 = vmatprep.subr.bf16.mxu0 0
        %3688 = vmatpush1.bf16.msra.mxu0 %v3685
        %3689 = vmatprep.subr.bf16.mxu0 0
        %3690 = vmatpush1.bf16.msra.mxu0 0
        %3691 = vmatprep.subr.bf16.mxu0 0
        %3692 = vmatpush1.bf16.msra.mxu0 0
        %3693 = vmatprep.subr.bf16.mxu0 0
        %3694 = vmatpush1.bf16.msra.mxu0 0
        %3695 = vmatprep.subr.bf16.mxu0 0
        %3696 = vmatpush1.bf16.msra.mxu0 0
        %3697 = vmatprep.subr.bf16.mxu0 0
        %3698 = vmatpush1.bf16.msra.mxu0 0
        %3699 = vmatprep.subr.bf16.mxu0 0
        %3700 = vmatpush1.bf16.msra.mxu0 0
        %3701 = vmatprep.subr.bf16.mxu0 0
        %3702 = vmatpush1.bf16.msra.mxu0 0
        %3703 = vmatprep.subr.bf16.mxu0 0
        %3704 = vmatpush1.bf16.msra.mxu0 0
        %3705 = vmatprep.subr.bf16.mxu0 0
        %3706 = vmatpush1.bf16.msra.mxu0 0
        %3707 = vmatprep.subr.bf16.mxu0 0
        %3708 = vmatpush1.bf16.msra.mxu0 0
        %3709 = vmatprep.subr.bf16.mxu0 0
        %3710 = vmatpush1.bf16.msra.mxu0 0
        %3711 = vmatprep.subr.bf16.mxu0 0
        %3712 = vmatpush1.bf16.msra.mxu0 0
        %3713 = vmatprep.subr.bf16.mxu0 0
        %3714 = vmatpush1.bf16.msra.mxu0 0
        %3715 = vmatprep.subr.bf16.mxu0 0
        %3716 = vmatpush1.bf16.msra.mxu0 0
        %3717 = vmatprep.subr.bf16.mxu0 0
        %3718 = vmatpush1.bf16.msra.mxu0 0
        %3719 = vmatprep.mubr.bf16.mxu0 0
        %3720 = vmatmul.mubr.bf16.gmra.mrb[0].mxu0 %v3682
        %v3721 = vpop.f32.mrb[0].mxu0
        %v3722 = vadd.f32 0.0, %v3721
        %v3723 = vpop.f32.mrb[0].mxu0
        %v3724 = vpop.f32.mrb[0].mxu0
        %v3725 = vpop.f32.mrb[0].mxu0
        %3726 = vdwg.mxu0
        %v3728 = vsel %vm1065, %v3588, 0
        %v3731 = vsel %vm1117, %v3356, 0
        %3733 = vmatprep.subr.bf16.mxu0 0
        %3734 = vmatpush1.bf16.msra.mxu0 %v3731
        %3735 = vmatprep.subr.bf16.mxu0 0
        %3736 = vmatpush1.bf16.msra.mxu0 0
        %3737 = vmatprep.subr.bf16.mxu0 0
        %3738 = vmatpush1.bf16.msra.mxu0 0
        %3739 = vmatprep.subr.bf16.mxu0 0
        %3740 = vmatpush1.bf16.msra.mxu0 0
        %3741 = vmatprep.subr.bf16.mxu0 0
        %3742 = vmatpush1.bf16.msra.mxu0 0
        %3743 = vmatprep.subr.bf16.mxu0 0
        %3744 = vmatpush1.bf16.msra.mxu0 0
        %3745 = vmatprep.subr.bf16.mxu0 0
        %3746 = vmatpush1.bf16.msra.mxu0 0
        %3747 = vmatprep.subr.bf16.mxu0 0
        %3748 = vmatpush1.bf16.msra.mxu0 0
        %3749 = vmatprep.subr.bf16.mxu0 0
        %3750 = vmatpush1.bf16.msra.mxu0 0
        %3751 = vmatprep.subr.bf16.mxu0 0
        %3752 = vmatpush1.bf16.msra.mxu0 0
        %3753 = vmatprep.subr.bf16.mxu0 0
        %3754 = vmatpush1.bf16.msra.mxu0 0
        %3755 = vmatprep.subr.bf16.mxu0 0
        %3756 = vmatpush1.bf16.msra.mxu0 0
        %3757 = vmatprep.subr.bf16.mxu0 0
        %3758 = vmatpush1.bf16.msra.mxu0 0
        %3759 = vmatprep.subr.bf16.mxu0 0
        %3760 = vmatpush1.bf16.msra.mxu0 0
        %3761 = vmatprep.subr.bf16.mxu0 0
        %3762 = vmatpush1.bf16.msra.mxu0 0
        %3763 = vmatprep.subr.bf16.mxu0 0
        %3764 = vmatpush1.bf16.msra.mxu0 0
        %3765 = vmatprep.mubr.bf16.mxu0 0
        %3766 = vmatmul.mubr.bf16.gmra.mrb[0].mxu0 %v3728
        %v3767 = vpop.f32.mrb[0].mxu0
        %v3768 = vadd.f32 0.0, %v3767
        %v3769 = vpop.f32.mrb[0].mxu0
        %v3770 = vpop.f32.mrb[0].mxu0
        %v3771 = vpop.f32.mrb[0].mxu0
        %3772 = vdwg.mxu0
        %3774 = vrot.lane.b32.xlu0 %v3345, 96
        %v3775 = vpop.permute.xlu0 %3774
        %3777 = vrot.lane.b32.xlu0 %v3349, 96
        %v3778 = vpop.permute.xlu0 %3777
        %v3780 = vsel %vm736, %v3775, 0
        %v3783 = vsel %vm736, %v3778, 0
        %3785 = vmatprep.subr.bf16.mxu0 0
        %3786 = vmatpush1.bf16.xpose.msra.mxu0 %v3783
        %3787 = vmatprep.subr.bf16.mxu0 0
        %3788 = vmatpush1.bf16.xpose.msra.mxu0 0
        %3789 = vmatprep.subr.bf16.mxu0 0
        %3790 = vmatpush1.bf16.xpose.msra.mxu0 0
        %3791 = vmatprep.subr.bf16.mxu0 0
        %3792 = vmatpush1.bf16.xpose.msra.mxu0 0
        %3793 = vmatprep.subr.bf16.mxu0 0
        %3794 = vmatpush1.bf16.xpose.msra.mxu0 0
        %3795 = vmatprep.subr.bf16.mxu0 0
        %3796 = vmatpush1.bf16.xpose.msra.mxu0 0
        %3797 = vmatprep.subr.bf16.mxu0 0
        %3798 = vmatpush1.bf16.xpose.msra.mxu0 0
        %3799 = vmatprep.subr.bf16.mxu0 0
        %3800 = vmatpush1.bf16.xpose.msra.mxu0 0
        %3801 = vmatprep.subr.bf16.mxu0 0
        %3802 = vmatpush1.bf16.xpose.msra.mxu0 0
        %3803 = vmatprep.subr.bf16.mxu0 0
        %3804 = vmatpush1.bf16.xpose.msra.mxu0 0
        %3805 = vmatprep.subr.bf16.mxu0 0
        %3806 = vmatpush1.bf16.xpose.msra.mxu0 0
        %3807 = vmatprep.subr.bf16.mxu0 0
        %3808 = vmatpush1.bf16.xpose.msra.mxu0 0
        %3809 = vmatprep.subr.bf16.mxu0 0
        %3810 = vmatpush1.bf16.xpose.msra.mxu0 0
        %3811 = vmatprep.subr.bf16.mxu0 0
        %3812 = vmatpush1.bf16.xpose.msra.mxu0 0
        %3813 = vmatprep.subr.bf16.mxu0 0
        %3814 = vmatpush1.bf16.xpose.msra.mxu0 0
        %3815 = vmatprep.subr.bf16.mxu0 0
        %3816 = vmatpush1.bf16.xpose.msra.mxu0 0
        %3817 = vmatprep.mubr.bf16.mxu0 0
        %3818 = vmatmul.mubr.bf16.gmra.mrb[0].mxu0 %v3780
        %v3819 = vpop.f32.mrb[0].mxu0
        %v3820 = vadd.f32 %v864, %v3819
        %v3821 = vpop.f32.mrb[0].mxu0
        %v3822 = vpop.f32.mrb[0].mxu0
        %v3823 = vpop.f32.mrb[0].mxu0
        %3824 = vdwg.mxu0
        %3826 = vrot.lane.b32.xlu0 %v3346, 96
        %v3827 = vpop.permute.xlu0 %3826
        %3829 = vrot.lane.b32.xlu0 %v3350, 96
        %v3830 = vpop.permute.xlu0 %3829
        %v3832 = vsel %vm736, %v3827, 0
        %v3835 = vsel %vm736, %v3830, 0
        %3837 = vmatprep.subr.bf16.mxu0 0
        %3838 = vmatpush1.bf16.xpose.msra.mxu0 %v3835
        %3839 = vmatprep.subr.bf16.mxu0 0
        %3840 = vmatpush1.bf16.xpose.msra.mxu0 0
        %3841 = vmatprep.subr.bf16.mxu0 0
        %3842 = vmatpush1.bf16.xpose.msra.mxu0 0
        %3843 = vmatprep.subr.bf16.mxu0 0
        %3844 = vmatpush1.bf16.xpose.msra.mxu0 0
        %3845 = vmatprep.subr.bf16.mxu0 0
        %3846 = vmatpush1.bf16.xpose.msra.mxu0 0
        %3847 = vmatprep.subr.bf16.mxu0 0
        %3848 = vmatpush1.bf16.xpose.msra.mxu0 0
        %3849 = vmatprep.subr.bf16.mxu0 0
        %3850 = vmatpush1.bf16.xpose.msra.mxu0 0
        %3851 = vmatprep.subr.bf16.mxu0 0
        %3852 = vmatpush1.bf16.xpose.msra.mxu0 0
        %3853 = vmatprep.subr.bf16.mxu0 0
        %3854 = vmatpush1.bf16.xpose.msra.mxu0 0
        %3855 = vmatprep.subr.bf16.mxu0 0
        %3856 = vmatpush1.bf16.xpose.msra.mxu0 0
        %3857 = vmatprep.subr.bf16.mxu0 0
        %3858 = vmatpush1.bf16.xpose.msra.mxu0 0
        %3859 = vmatprep.subr.bf16.mxu0 0
        %3860 = vmatpush1.bf16.xpose.msra.mxu0 0
        %3861 = vmatprep.subr.bf16.mxu0 0
        %3862 = vmatpush1.bf16.xpose.msra.mxu0 0
        %3863 = vmatprep.subr.bf16.mxu0 0
        %3864 = vmatpush1.bf16.xpose.msra.mxu0 0
        %3865 = vmatprep.subr.bf16.mxu0 0
        %3866 = vmatpush1.bf16.xpose.msra.mxu0 0
        %3867 = vmatprep.subr.bf16.mxu0 0
        %3868 = vmatpush1.bf16.xpose.msra.mxu0 0
        %3869 = vmatprep.mubr.bf16.mxu0 0
        %3870 = vmatmul.mubr.bf16.gmra.mrb[0].mxu0 %v3832
        %v3871 = vpop.f32.mrb[0].mxu0
        %v3872 = vadd.f32 %v868, %v3871
        %v3873 = vpop.f32.mrb[0].mxu0
        %v3874 = vpop.f32.mrb[0].mxu0
        %v3875 = vpop.f32.mrb[0].mxu0
        %3876 = vdwg.mxu0
        %3878 = vrot.lane.b32.xlu0 %v3347, 96
        %v3879 = vpop.permute.xlu0 %3878
        %3881 = vrot.lane.b32.xlu0 %v3351, 96
        %v3882 = vpop.permute.xlu0 %3881
        %v3884 = vsel %vm736, %v3879, 0
        %v3887 = vsel %vm736, %v3882, 0
        %3889 = vmatprep.subr.bf16.mxu0 0
        %3890 = vmatpush1.bf16.xpose.msra.mxu0 %v3887
        %3891 = vmatprep.subr.bf16.mxu0 0
        %3892 = vmatpush1.bf16.xpose.msra.mxu0 0
        %3893 = vmatprep.subr.bf16.mxu0 0
        %3894 = vmatpush1.bf16.xpose.msra.mxu0 0
        %3895 = vmatprep.subr.bf16.mxu0 0
        %3896 = vmatpush1.bf16.xpose.msra.mxu0 0
        %3897 = vmatprep.subr.bf16.mxu0 0
        %3898 = vmatpush1.bf16.xpose.msra.mxu0 0
        %3899 = vmatprep.subr.bf16.mxu0 0
        %3900 = vmatpush1.bf16.xpose.msra.mxu0 0
        %3901 = vmatprep.subr.bf16.mxu0 0
        %3902 = vmatpush1.bf16.xpose.msra.mxu0 0
        %3903 = vmatprep.subr.bf16.mxu0 0
        %3904 = vmatpush1.bf16.xpose.msra.mxu0 0
        %3905 = vmatprep.subr.bf16.mxu0 0
        %3906 = vmatpush1.bf16.xpose.msra.mxu0 0
        %3907 = vmatprep.subr.bf16.mxu0 0
        %3908 = vmatpush1.bf16.xpose.msra.mxu0 0
        %3909 = vmatprep.subr.bf16.mxu0 0
        %3910 = vmatpush1.bf16.xpose.msra.mxu0 0
        %3911 = vmatprep.subr.bf16.mxu0 0
        %3912 = vmatpush1.bf16.xpose.msra.mxu0 0
        %3913 = vmatprep.subr.bf16.mxu0 0
        %3914 = vmatpush1.bf16.xpose.msra.mxu0 0
        %3915 = vmatprep.subr.bf16.mxu0 0
        %3916 = vmatpush1.bf16.xpose.msra.mxu0 0
        %3917 = vmatprep.subr.bf16.mxu0 0
        %3918 = vmatpush1.bf16.xpose.msra.mxu0 0
        %3919 = vmatprep.subr.bf16.mxu0 0
        %3920 = vmatpush1.bf16.xpose.msra.mxu0 0
        %3921 = vmatprep.mubr.bf16.mxu0 0
        %3922 = vmatmul.mubr.bf16.gmra.mrb[0].mxu0 %v3884
        %v3923 = vpop.f32.mrb[0].mxu0
        %v3924 = vadd.f32 %v872, %v3923
        %v3925 = vpop.f32.mrb[0].mxu0
        %v3926 = vpop.f32.mrb[0].mxu0
        %v3927 = vpop.f32.mrb[0].mxu0
        %3928 = vdwg.mxu0
        %3930 = vrot.lane.b32.xlu0 %v3348, 96
        %v3931 = vpop.permute.xlu0 %3930
        %3933 = vrot.lane.b32.xlu0 %v3352, 96
        %v3934 = vpop.permute.xlu0 %3933
        %v3936 = vsel %vm736, %v3931, 0
        %v3939 = vsel %vm736, %v3934, 0
        %3941 = vmatprep.subr.bf16.mxu0 0
        %3942 = vmatpush1.bf16.xpose.msra.mxu0 %v3939
        %3943 = vmatprep.subr.bf16.mxu0 0
        %3944 = vmatpush1.bf16.xpose.msra.mxu0 0
        %3945 = vmatprep.subr.bf16.mxu0 0
        %3946 = vmatpush1.bf16.xpose.msra.mxu0 0
        %3947 = vmatprep.subr.bf16.mxu0 0
        %3948 = vmatpush1.bf16.xpose.msra.mxu0 0
        %3949 = vmatprep.subr.bf16.mxu0 0
        %3950 = vmatpush1.bf16.xpose.msra.mxu0 0
        %3951 = vmatprep.subr.bf16.mxu0 0
        %3952 = vmatpush1.bf16.xpose.msra.mxu0 0
        %3953 = vmatprep.subr.bf16.mxu0 0
        %3954 = vmatpush1.bf16.xpose.msra.mxu0 0
        %3955 = vmatprep.subr.bf16.mxu0 0
        %3956 = vmatpush1.bf16.xpose.msra.mxu0 0
        %3957 = vmatprep.subr.bf16.mxu0 0
        %3958 = vmatpush1.bf16.xpose.msra.mxu0 0
        %3959 = vmatprep.subr.bf16.mxu0 0
        %3960 = vmatpush1.bf16.xpose.msra.mxu0 0
        %3961 = vmatprep.subr.bf16.mxu0 0
        %3962 = vmatpush1.bf16.xpose.msra.mxu0 0
        %3963 = vmatprep.subr.bf16.mxu0 0
        %3964 = vmatpush1.bf16.xpose.msra.mxu0 0
        %3965 = vmatprep.subr.bf16.mxu0 0
        %3966 = vmatpush1.bf16.xpose.msra.mxu0 0
        %3967 = vmatprep.subr.bf16.mxu0 0
        %3968 = vmatpush1.bf16.xpose.msra.mxu0 0
        %3969 = vmatprep.subr.bf16.mxu0 0
        %3970 = vmatpush1.bf16.xpose.msra.mxu0 0
        %3971 = vmatprep.subr.bf16.mxu0 0
        %3972 = vmatpush1.bf16.xpose.msra.mxu0 0
        %3973 = vmatprep.mubr.bf16.mxu0 0
        %3974 = vmatmul.mubr.bf16.gmra.mrb[0].mxu0 %v3936
        %v3975 = vpop.f32.mrb[0].mxu0
        %v3976 = vadd.f32 %v876, %v3975
        %v3977 = vpop.f32.mrb[0].mxu0
        %v3978 = vpop.f32.mrb[0].mxu0
        %v3979 = vpop.f32.mrb[0].mxu0
        %3980 = vdwg.mxu0
        %v3981 = vsel %vm1065, %v3820, -inf
        %3982 = vmax.xlane.f32.xlu0 %v3981
        %v3983 = vpop.xlane.xlu0 %3982
        %v3984 = vsel %vm1065, %v3872, -inf
        %3985 = vmax.xlane.f32.xlu0 %v3984
        %v3986 = vpop.xlane.xlu0 %3985
        %v3987 = vsel %vm1065, %v3924, -inf
        %3988 = vmax.xlane.f32.xlu0 %v3987
        %v3989 = vpop.xlane.xlu0 %3988
        %v3990 = vsel %vm1065, %v3976, -inf
        %3991 = vmax.xlane.f32.xlu0 %v3990
        %v3992 = vpop.xlane.xlu0 %3991
        %v3993 = vsub.f32 %v3820, %v3983
        %v3994 = vsub.f32 %v3872, %v3986
        %v3995 = vsub.f32 %v3924, %v3989
        %v3996 = vsub.f32 %v3976, %v3992
        %v3997 = vmul.f32 %v3993, 1.442695
        %v3998 = vpow.pop %v3997
        %v3999 = vmul.f32 %v3994, 1.442695
        %v4000 = vpow.pop %v3999
        %v4001 = vmul.f32 %v3995, 1.442695
        %v4002 = vpow.pop %v4001
        %v4003 = vmul.f32 %v3996, 1.442695
        %v4004 = vpow.pop %v4003
        %v4005 = vsel %vm1065, %v3998, 0.0
        %4006 = vadd.xlane.f32.xlu0 %v4005
        %v4007 = vpop.xlane.xlu0 %4006
        %v4008 = vsel %vm1065, %v4000, 0.0
        %4009 = vadd.xlane.f32.xlu0 %v4008
        %v4010 = vpop.xlane.xlu0 %4009
        %v4011 = vsel %vm1065, %v4002, 0.0
        %4012 = vadd.xlane.f32.xlu0 %v4011
        %v4013 = vpop.xlane.xlu0 %4012
        %v4014 = vsel %vm1065, %v4004, 0.0
        %4015 = vadd.xlane.f32.xlu0 %v4014
        %v4016 = vpop.xlane.xlu0 %4015
        %v4017 = vrcp.pop %v4007
        %v4018 = vrcp.pop %v4010
        %v4019 = vrcp.pop %v4013
        %v4020 = vrcp.pop %v4016
        %v4021 = vmul.f32 %v3998, %v4017
        %v4022 = vmul.f32 %v4000, %v4018
        %v4023 = vmul.f32 %v4002, %v4019
        %v4024 = vmul.f32 %v4004, %v4020
        %v4025 = vpack.c.bf16 %v4021, %v4021
        %v4026 = vpack.c.bf16 %v4022, %v4022
        %v4027 = vpack.c.bf16 %v4023, %v4023
        %v4028 = vpack.c.bf16 %v4024, %v4024
        %4030 = vrot.lane.b32.xlu0 %v3353, 96
        %v4031 = vpop.permute.xlu0 %4030
        %v4033 = vsel %vm1065, %v4025, 0
        %v4036 = vsel %vm1117, %v4031, 0
        %4038 = vmatprep.subr.bf16.mxu0 0
        %4039 = vmatpush1.bf16.msra.mxu0 %v4036
        %4040 = vmatprep.subr.bf16.mxu0 0
        %4041 = vmatpush1.bf16.msra.mxu0 0
        %4042 = vmatprep.subr.bf16.mxu0 0
        %4043 = vmatpush1.bf16.msra.mxu0 0
        %4044 = vmatprep.subr.bf16.mxu0 0
        %4045 = vmatpush1.bf16.msra.mxu0 0
        %4046 = vmatprep.subr.bf16.mxu0 0
        %4047 = vmatpush1.bf16.msra.mxu0 0
        %4048 = vmatprep.subr.bf16.mxu0 0
        %4049 = vmatpush1.bf16.msra.mxu0 0
        %4050 = vmatprep.subr.bf16.mxu0 0
        %4051 = vmatpush1.bf16.msra.mxu0 0
        %4052 = vmatprep.subr.bf16.mxu0 0
        %4053 = vmatpush1.bf16.msra.mxu0 0
        %4054 = vmatprep.subr.bf16.mxu0 0
        %4055 = vmatpush1.bf16.msra.mxu0 0
        %4056 = vmatprep.subr.bf16.mxu0 0
        %4057 = vmatpush1.bf16.msra.mxu0 0
        %4058 = vmatprep.subr.bf16.mxu0 0
        %4059 = vmatpush1.bf16.msra.mxu0 0
        %4060 = vmatprep.subr.bf16.mxu0 0
        %4061 = vmatpush1.bf16.msra.mxu0 0
        %4062 = vmatprep.subr.bf16.mxu0 0
        %4063 = vmatpush1.bf16.msra.mxu0 0
        %4064 = vmatprep.subr.bf16.mxu0 0
        %4065 = vmatpush1.bf16.msra.mxu0 0
        %4066 = vmatprep.subr.bf16.mxu0 0
        %4067 = vmatpush1.bf16.msra.mxu0 0
        %4068 = vmatprep.subr.bf16.mxu0 0
        %4069 = vmatpush1.bf16.msra.mxu0 0
        %4070 = vmatprep.mubr.bf16.mxu0 0
        %4071 = vmatmul.mubr.bf16.gmra.mrb[0].mxu0 %v4033
        %v4072 = vpop.f32.mrb[0].mxu0
        %v4073 = vadd.f32 0.0, %v4072
        %v4074 = vpop.f32.mrb[0].mxu0
        %v4075 = vpop.f32.mrb[0].mxu0
        %v4076 = vpop.f32.mrb[0].mxu0
        %4077 = vdwg.mxu0
        %4079 = vrot.lane.b32.xlu0 %v3354, 96
        %v4080 = vpop.permute.xlu0 %4079
        %v4082 = vsel %vm1065, %v4026, 0
        %v4085 = vsel %vm1117, %v4080, 0
        %4087 = vmatprep.subr.bf16.mxu0 0
        %4088 = vmatpush1.bf16.msra.mxu0 %v4085
        %4089 = vmatprep.subr.bf16.mxu0 0
        %4090 = vmatpush1.bf16.msra.mxu0 0
        %4091 = vmatprep.subr.bf16.mxu0 0
        %4092 = vmatpush1.bf16.msra.mxu0 0
        %4093 = vmatprep.subr.bf16.mxu0 0
        %4094 = vmatpush1.bf16.msra.mxu0 0
        %4095 = vmatprep.subr.bf16.mxu0 0
        %4096 = vmatpush1.bf16.msra.mxu0 0
        %4097 = vmatprep.subr.bf16.mxu0 0
        %4098 = vmatpush1.bf16.msra.mxu0 0
        %4099 = vmatprep.subr.bf16.mxu0 0
        %4100 = vmatpush1.bf16.msra.mxu0 0
        %4101 = vmatprep.subr.bf16.mxu0 0
        %4102 = vmatpush1.bf16.msra.mxu0 0
        %4103 = vmatprep.subr.bf16.mxu0 0
        %4104 = vmatpush1.bf16.msra.mxu0 0
        %4105 = vmatprep.subr.bf16.mxu0 0
        %4106 = vmatpush1.bf16.msra.mxu0 0
        %4107 = vmatprep.subr.bf16.mxu0 0
        %4108 = vmatpush1.bf16.msra.mxu0 0
        %4109 = vmatprep.subr.bf16.mxu0 0
        %4110 = vmatpush1.bf16.msra.mxu0 0
        %4111 = vmatprep.subr.bf16.mxu0 0
        %4112 = vmatpush1.bf16.msra.mxu0 0
        %4113 = vmatprep.subr.bf16.mxu0 0
        %4114 = vmatpush1.bf16.msra.mxu0 0
        %4115 = vmatprep.subr.bf16.mxu0 0
        %4116 = vmatpush1.bf16.msra.mxu0 0
        %4117 = vmatprep.subr.bf16.mxu0 0
        %4118 = vmatpush1.bf16.msra.mxu0 0
        %4119 = vmatprep.mubr.bf16.mxu0 0
        %4120 = vmatmul.mubr.bf16.gmra.mrb[0].mxu0 %v4082
        %v4121 = vpop.f32.mrb[0].mxu0
        %v4122 = vadd.f32 0.0, %v4121
        %v4123 = vpop.f32.mrb[0].mxu0
        %v4124 = vpop.f32.mrb[0].mxu0
        %v4125 = vpop.f32.mrb[0].mxu0
        %4126 = vdwg.mxu0
        %4128 = vrot.lane.b32.xlu0 %v3355, 96
        %v4129 = vpop.permute.xlu0 %4128
        %v4131 = vsel %vm1065, %v4027, 0
        %v4134 = vsel %vm1117, %v4129, 0
        %4136 = vmatprep.subr.bf16.mxu0 0
        %4137 = vmatpush1.bf16.msra.mxu0 %v4134
        %4138 = vmatprep.subr.bf16.mxu0 0
        %4139 = vmatpush1.bf16.msra.mxu0 0
        %4140 = vmatprep.subr.bf16.mxu0 0
        %4141 = vmatpush1.bf16.msra.mxu0 0
        %4142 = vmatprep.subr.bf16.mxu0 0
        %4143 = vmatpush1.bf16.msra.mxu0 0
        %4144 = vmatprep.subr.bf16.mxu0 0
        %4145 = vmatpush1.bf16.msra.mxu0 0
        %4146 = vmatprep.subr.bf16.mxu0 0
        %4147 = vmatpush1.bf16.msra.mxu0 0
        %4148 = vmatprep.subr.bf16.mxu0 0
        %4149 = vmatpush1.bf16.msra.mxu0 0
        %4150 = vmatprep.subr.bf16.mxu0 0
        %4151 = vmatpush1.bf16.msra.mxu0 0
        %4152 = vmatprep.subr.bf16.mxu0 0
        %4153 = vmatpush1.bf16.msra.mxu0 0
        %4154 = vmatprep.subr.bf16.mxu0 0
        %4155 = vmatpush1.bf16.msra.mxu0 0
        %4156 = vmatprep.subr.bf16.mxu0 0
        %4157 = vmatpush1.bf16.msra.mxu0 0
        %4158 = vmatprep.subr.bf16.mxu0 0
        %4159 = vmatpush1.bf16.msra.mxu0 0
        %4160 = vmatprep.subr.bf16.mxu0 0
        %4161 = vmatpush1.bf16.msra.mxu0 0
        %4162 = vmatprep.subr.bf16.mxu0 0
        %4163 = vmatpush1.bf16.msra.mxu0 0
        %4164 = vmatprep.subr.bf16.mxu0 0
        %4165 = vmatpush1.bf16.msra.mxu0 0
        %4166 = vmatprep.subr.bf16.mxu0 0
        %4167 = vmatpush1.bf16.msra.mxu0 0
        %4168 = vmatprep.mubr.bf16.mxu0 0
        %4169 = vmatmul.mubr.bf16.gmra.mrb[0].mxu0 %v4131
        %v4170 = vpop.f32.mrb[0].mxu0
        %v4171 = vadd.f32 0.0, %v4170
        %v4172 = vpop.f32.mrb[0].mxu0
        %v4173 = vpop.f32.mrb[0].mxu0
        %v4174 = vpop.f32.mrb[0].mxu0
        %4175 = vdwg.mxu0
        %4177 = vrot.lane.b32.xlu0 %v3356, 96
        %v4178 = vpop.permute.xlu0 %4177
        %v4180 = vsel %vm1065, %v4028, 0
        %v4183 = vsel %vm1117, %v4178, 0
        %4185 = vmatprep.subr.bf16.mxu0 0
        %4186 = vmatpush1.bf16.msra.mxu0 %v4183
        %4187 = vmatprep.subr.bf16.mxu0 0
        %4188 = vmatpush1.bf16.msra.mxu0 0
        %4189 = vmatprep.subr.bf16.mxu0 0
        %4190 = vmatpush1.bf16.msra.mxu0 0
        %4191 = vmatprep.subr.bf16.mxu0 0
        %4192 = vmatpush1.bf16.msra.mxu0 0
        %4193 = vmatprep.subr.bf16.mxu0 0
        %4194 = vmatpush1.bf16.msra.mxu0 0
        %4195 = vmatprep.subr.bf16.mxu0 0
        %4196 = vmatpush1.bf16.msra.mxu0 0
        %4197 = vmatprep.subr.bf16.mxu0 0
        %4198 = vmatpush1.bf16.msra.mxu0 0
        %4199 = vmatprep.subr.bf16.mxu0 0
        %4200 = vmatpush1.bf16.msra.mxu0 0
        %4201 = vmatprep.subr.bf16.mxu0 0
        %4202 = vmatpush1.bf16.msra.mxu0 0
        %4203 = vmatprep.subr.bf16.mxu0 0
        %4204 = vmatpush1.bf16.msra.mxu0 0
        %4205 = vmatprep.subr.bf16.mxu0 0
        %4206 = vmatpush1.bf16.msra.mxu0 0
        %4207 = vmatprep.subr.bf16.mxu0 0
        %4208 = vmatpush1.bf16.msra.mxu0 0
        %4209 = vmatprep.subr.bf16.mxu0 0
        %4210 = vmatpush1.bf16.msra.mxu0 0
        %4211 = vmatprep.subr.bf16.mxu0 0
        %4212 = vmatpush1.bf16.msra.mxu0 0
        %4213 = vmatprep.subr.bf16.mxu0 0
        %4214 = vmatpush1.bf16.msra.mxu0 0
        %4215 = vmatprep.subr.bf16.mxu0 0
        %4216 = vmatpush1.bf16.msra.mxu0 0
        %4217 = vmatprep.mubr.bf16.mxu0 0
        %4218 = vmatmul.mubr.bf16.gmra.mrb[0].mxu0 %v4180
        %v4219 = vpop.f32.mrb[0].mxu0
        %v4220 = vadd.f32 0.0, %v4219
        %v4221 = vpop.f32.mrb[0].mxu0
        %v4222 = vpop.f32.mrb[0].mxu0
        %v4223 = vpop.f32.mrb[0].mxu0
        %4224 = vdwg.mxu0
        %4225 = vrot.lane.b32.xlu0 %v3345, 64
        %v4226 = vpop.permute.xlu0 %4225
        %4227 = vrot.lane.b32.xlu0 %v3349, 64
        %v4228 = vpop.permute.xlu0 %4227
        %v4230 = vsel %vm736, %v4226, 0
        %v4233 = vsel %vm736, %v4228, 0
        %4235 = vmatprep.subr.bf16.mxu0 0
        %4236 = vmatpush1.bf16.xpose.msra.mxu0 %v4233
        %4237 = vmatprep.subr.bf16.mxu0 0
        %4238 = vmatpush1.bf16.xpose.msra.mxu0 0
        %4239 = vmatprep.subr.bf16.mxu0 0
        %4240 = vmatpush1.bf16.xpose.msra.mxu0 0
        %4241 = vmatprep.subr.bf16.mxu0 0
        %4242 = vmatpush1.bf16.xpose.msra.mxu0 0
        %4243 = vmatprep.subr.bf16.mxu0 0
        %4244 = vmatpush1.bf16.xpose.msra.mxu0 0
        %4245 = vmatprep.subr.bf16.mxu0 0
        %4246 = vmatpush1.bf16.xpose.msra.mxu0 0
        %4247 = vmatprep.subr.bf16.mxu0 0
        %4248 = vmatpush1.bf16.xpose.msra.mxu0 0
        %4249 = vmatprep.subr.bf16.mxu0 0
        %4250 = vmatpush1.bf16.xpose.msra.mxu0 0
        %4251 = vmatprep.subr.bf16.mxu0 0
        %4252 = vmatpush1.bf16.xpose.msra.mxu0 0
        %4253 = vmatprep.subr.bf16.mxu0 0
        %4254 = vmatpush1.bf16.xpose.msra.mxu0 0
        %4255 = vmatprep.subr.bf16.mxu0 0
        %4256 = vmatpush1.bf16.xpose.msra.mxu0 0
        %4257 = vmatprep.subr.bf16.mxu0 0
        %4258 = vmatpush1.bf16.xpose.msra.mxu0 0
        %4259 = vmatprep.subr.bf16.mxu0 0
        %4260 = vmatpush1.bf16.xpose.msra.mxu0 0
        %4261 = vmatprep.subr.bf16.mxu0 0
        %4262 = vmatpush1.bf16.xpose.msra.mxu0 0
        %4263 = vmatprep.subr.bf16.mxu0 0
        %4264 = vmatpush1.bf16.xpose.msra.mxu0 0
        %4265 = vmatprep.subr.bf16.mxu0 0
        %4266 = vmatpush1.bf16.xpose.msra.mxu0 0
        %4267 = vmatprep.mubr.bf16.mxu0 0
        %4268 = vmatmul.mubr.bf16.gmra.mrb[0].mxu0 %v4230
        %v4269 = vpop.f32.mrb[0].mxu0
        %v4270 = vadd.f32 %v864, %v4269
        %v4271 = vpop.f32.mrb[0].mxu0
        %v4272 = vpop.f32.mrb[0].mxu0
        %v4273 = vpop.f32.mrb[0].mxu0
        %4274 = vdwg.mxu0
        %4275 = vrot.lane.b32.xlu0 %v3346, 64
        %v4276 = vpop.permute.xlu0 %4275
        %4277 = vrot.lane.b32.xlu0 %v3350, 64
        %v4278 = vpop.permute.xlu0 %4277
        %v4280 = vsel %vm736, %v4276, 0
        %v4283 = vsel %vm736, %v4278, 0
        %4285 = vmatprep.subr.bf16.mxu0 0
        %4286 = vmatpush1.bf16.xpose.msra.mxu0 %v4283
        %4287 = vmatprep.subr.bf16.mxu0 0
        %4288 = vmatpush1.bf16.xpose.msra.mxu0 0
        %4289 = vmatprep.subr.bf16.mxu0 0
        %4290 = vmatpush1.bf16.xpose.msra.mxu0 0
        %4291 = vmatprep.subr.bf16.mxu0 0
        %4292 = vmatpush1.bf16.xpose.msra.mxu0 0
        %4293 = vmatprep.subr.bf16.mxu0 0
        %4294 = vmatpush1.bf16.xpose.msra.mxu0 0
        %4295 = vmatprep.subr.bf16.mxu0 0
        %4296 = vmatpush1.bf16.xpose.msra.mxu0 0
        %4297 = vmatprep.subr.bf16.mxu0 0
        %4298 = vmatpush1.bf16.xpose.msra.mxu0 0
        %4299 = vmatprep.subr.bf16.mxu0 0
        %4300 = vmatpush1.bf16.xpose.msra.mxu0 0
        %4301 = vmatprep.subr.bf16.mxu0 0
        %4302 = vmatpush1.bf16.xpose.msra.mxu0 0
        %4303 = vmatprep.subr.bf16.mxu0 0
        %4304 = vmatpush1.bf16.xpose.msra.mxu0 0
        %4305 = vmatprep.subr.bf16.mxu0 0
        %4306 = vmatpush1.bf16.xpose.msra.mxu0 0
        %4307 = vmatprep.subr.bf16.mxu0 0
        %4308 = vmatpush1.bf16.xpose.msra.mxu0 0
        %4309 = vmatprep.subr.bf16.mxu0 0
        %4310 = vmatpush1.bf16.xpose.msra.mxu0 0
        %4311 = vmatprep.subr.bf16.mxu0 0
        %4312 = vmatpush1.bf16.xpose.msra.mxu0 0
        %4313 = vmatprep.subr.bf16.mxu0 0
        %4314 = vmatpush1.bf16.xpose.msra.mxu0 0
        %4315 = vmatprep.subr.bf16.mxu0 0
        %4316 = vmatpush1.bf16.xpose.msra.mxu0 0
        %4317 = vmatprep.mubr.bf16.mxu0 0
        %4318 = vmatmul.mubr.bf16.gmra.mrb[0].mxu0 %v4280
        %v4319 = vpop.f32.mrb[0].mxu0
        %v4320 = vadd.f32 %v868, %v4319
        %v4321 = vpop.f32.mrb[0].mxu0
        %v4322 = vpop.f32.mrb[0].mxu0
        %v4323 = vpop.f32.mrb[0].mxu0
        %4324 = vdwg.mxu0
        %4325 = vrot.lane.b32.xlu0 %v3347, 64
        %v4326 = vpop.permute.xlu0 %4325
        %4327 = vrot.lane.b32.xlu0 %v3351, 64
        %v4328 = vpop.permute.xlu0 %4327
        %v4330 = vsel %vm736, %v4326, 0
        %v4333 = vsel %vm736, %v4328, 0
        %4335 = vmatprep.subr.bf16.mxu0 0
        %4336 = vmatpush1.bf16.xpose.msra.mxu0 %v4333
        %4337 = vmatprep.subr.bf16.mxu0 0
        %4338 = vmatpush1.bf16.xpose.msra.mxu0 0
        %4339 = vmatprep.subr.bf16.mxu0 0
        %4340 = vmatpush1.bf16.xpose.msra.mxu0 0
        %4341 = vmatprep.subr.bf16.mxu0 0
        %4342 = vmatpush1.bf16.xpose.msra.mxu0 0
        %4343 = vmatprep.subr.bf16.mxu0 0
        %4344 = vmatpush1.bf16.xpose.msra.mxu0 0
        %4345 = vmatprep.subr.bf16.mxu0 0
        %4346 = vmatpush1.bf16.xpose.msra.mxu0 0
        %4347 = vmatprep.subr.bf16.mxu0 0
        %4348 = vmatpush1.bf16.xpose.msra.mxu0 0
        %4349 = vmatprep.subr.bf16.mxu0 0
        %4350 = vmatpush1.bf16.xpose.msra.mxu0 0
        %4351 = vmatprep.subr.bf16.mxu0 0
        %4352 = vmatpush1.bf16.xpose.msra.mxu0 0
        %4353 = vmatprep.subr.bf16.mxu0 0
        %4354 = vmatpush1.bf16.xpose.msra.mxu0 0
        %4355 = vmatprep.subr.bf16.mxu0 0
        %4356 = vmatpush1.bf16.xpose.msra.mxu0 0
        %4357 = vmatprep.subr.bf16.mxu0 0
        %4358 = vmatpush1.bf16.xpose.msra.mxu0 0
        %4359 = vmatprep.subr.bf16.mxu0 0
        %4360 = vmatpush1.bf16.xpose.msra.mxu0 0
        %4361 = vmatprep.subr.bf16.mxu0 0
        %4362 = vmatpush1.bf16.xpose.msra.mxu0 0
        %4363 = vmatprep.subr.bf16.mxu0 0
        %4364 = vmatpush1.bf16.xpose.msra.mxu0 0
        %4365 = vmatprep.subr.bf16.mxu0 0
        %4366 = vmatpush1.bf16.xpose.msra.mxu0 0
        %4367 = vmatprep.mubr.bf16.mxu0 0
        %4368 = vmatmul.mubr.bf16.gmra.mrb[0].mxu0 %v4330
        %v4369 = vpop.f32.mrb[0].mxu0
        %v4370 = vadd.f32 %v872, %v4369
        %v4371 = vpop.f32.mrb[0].mxu0
        %v4372 = vpop.f32.mrb[0].mxu0
        %v4373 = vpop.f32.mrb[0].mxu0
        %4374 = vdwg.mxu0
        %4375 = vrot.lane.b32.xlu0 %v3348, 64
        %v4376 = vpop.permute.xlu0 %4375
        %4377 = vrot.lane.b32.xlu0 %v3352, 64
        %v4378 = vpop.permute.xlu0 %4377
        %v4380 = vsel %vm736, %v4376, 0
        %v4383 = vsel %vm736, %v4378, 0
        %4385 = vmatprep.subr.bf16.mxu0 0
        %4386 = vmatpush1.bf16.xpose.msra.mxu0 %v4383
        %4387 = vmatprep.subr.bf16.mxu0 0
        %4388 = vmatpush1.bf16.xpose.msra.mxu0 0
        %4389 = vmatprep.subr.bf16.mxu0 0
        %4390 = vmatpush1.bf16.xpose.msra.mxu0 0
        %4391 = vmatprep.subr.bf16.mxu0 0
        %4392 = vmatpush1.bf16.xpose.msra.mxu0 0
        %4393 = vmatprep.subr.bf16.mxu0 0
        %4394 = vmatpush1.bf16.xpose.msra.mxu0 0
        %4395 = vmatprep.subr.bf16.mxu0 0
        %4396 = vmatpush1.bf16.xpose.msra.mxu0 0
        %4397 = vmatprep.subr.bf16.mxu0 0
        %4398 = vmatpush1.bf16.xpose.msra.mxu0 0
        %4399 = vmatprep.subr.bf16.mxu0 0
        %4400 = vmatpush1.bf16.xpose.msra.mxu0 0
        %4401 = vmatprep.subr.bf16.mxu0 0
        %4402 = vmatpush1.bf16.xpose.msra.mxu0 0
        %4403 = vmatprep.subr.bf16.mxu0 0
        %4404 = vmatpush1.bf16.xpose.msra.mxu0 0
        %4405 = vmatprep.subr.bf16.mxu0 0
        %4406 = vmatpush1.bf16.xpose.msra.mxu0 0
        %4407 = vmatprep.subr.bf16.mxu0 0
        %4408 = vmatpush1.bf16.xpose.msra.mxu0 0
        %4409 = vmatprep.subr.bf16.mxu0 0
        %4410 = vmatpush1.bf16.xpose.msra.mxu0 0
        %4411 = vmatprep.subr.bf16.mxu0 0
        %4412 = vmatpush1.bf16.xpose.msra.mxu0 0
        %4413 = vmatprep.subr.bf16.mxu0 0
        %4414 = vmatpush1.bf16.xpose.msra.mxu0 0
        %4415 = vmatprep.subr.bf16.mxu0 0
        %4416 = vmatpush1.bf16.xpose.msra.mxu0 0
        %4417 = vmatprep.mubr.bf16.mxu0 0
        %4418 = vmatmul.mubr.bf16.gmra.mrb[0].mxu0 %v4380
        %v4419 = vpop.f32.mrb[0].mxu0
        %v4420 = vadd.f32 %v876, %v4419
        %v4421 = vpop.f32.mrb[0].mxu0
        %v4422 = vpop.f32.mrb[0].mxu0
        %v4423 = vpop.f32.mrb[0].mxu0
        %4424 = vdwg.mxu0
        %v4425 = vsel %vm1065, %v4270, -inf
        %4426 = vmax.xlane.f32.xlu0 %v4425
        %v4427 = vpop.xlane.xlu0 %4426
        %v4428 = vsel %vm1065, %v4320, -inf
        %4429 = vmax.xlane.f32.xlu0 %v4428
        %v4430 = vpop.xlane.xlu0 %4429
        %v4431 = vsel %vm1065, %v4370, -inf
        %4432 = vmax.xlane.f32.xlu0 %v4431
        %v4433 = vpop.xlane.xlu0 %4432
        %v4434 = vsel %vm1065, %v4420, -inf
        %4435 = vmax.xlane.f32.xlu0 %v4434
        %v4436 = vpop.xlane.xlu0 %4435
        %v4437 = vsub.f32 %v4270, %v4427
        %v4438 = vsub.f32 %v4320, %v4430
        %v4439 = vsub.f32 %v4370, %v4433
        %v4440 = vsub.f32 %v4420, %v4436
        %v4441 = vmul.f32 %v4437, 1.442695
        %v4442 = vpow.pop %v4441
        %v4443 = vmul.f32 %v4438, 1.442695
        %v4444 = vpow.pop %v4443
        %v4445 = vmul.f32 %v4439, 1.442695
        %v4446 = vpow.pop %v4445
        %v4447 = vmul.f32 %v4440, 1.442695
        %v4448 = vpow.pop %v4447
        %v4449 = vsel %vm1065, %v4442, 0.0
        %4450 = vadd.xlane.f32.xlu0 %v4449
        %v4451 = vpop.xlane.xlu0 %4450
        %v4452 = vsel %vm1065, %v4444, 0.0
        %4453 = vadd.xlane.f32.xlu0 %v4452
        %v4454 = vpop.xlane.xlu0 %4453
        %v4455 = vsel %vm1065, %v4446, 0.0
        %4456 = vadd.xlane.f32.xlu0 %v4455
        %v4457 = vpop.xlane.xlu0 %4456
        %v4458 = vsel %vm1065, %v4448, 0.0
        %4459 = vadd.xlane.f32.xlu0 %v4458
        %v4460 = vpop.xlane.xlu0 %4459
        %v4461 = vrcp.pop %v4451
        %v4462 = vrcp.pop %v4454
        %v4463 = vrcp.pop %v4457
        %v4464 = vrcp.pop %v4460
        %v4465 = vmul.f32 %v4442, %v4461
        %v4466 = vmul.f32 %v4444, %v4462
        %v4467 = vmul.f32 %v4446, %v4463
        %v4468 = vmul.f32 %v4448, %v4464
        %v4469 = vpack.c.bf16 %v4465, %v4465
        %v4470 = vpack.c.bf16 %v4466, %v4466
        %v4471 = vpack.c.bf16 %v4467, %v4467
        %v4472 = vpack.c.bf16 %v4468, %v4468
        %4473 = vrot.lane.b32.xlu0 %v3353, 64
        %v4474 = vpop.permute.xlu0 %4473
        %v4476 = vsel %vm1065, %v4469, 0
        %v4479 = vsel %vm1117, %v4474, 0
        %4481 = vmatprep.subr.bf16.mxu0 0
        %4482 = vmatpush1.bf16.msra.mxu0 %v4479
        %4483 = vmatprep.subr.bf16.mxu0 0
        %4484 = vmatpush1.bf16.msra.mxu0 0
        %4485 = vmatprep.subr.bf16.mxu0 0
        %4486 = vmatpush1.bf16.msra.mxu0 0
        %4487 = vmatprep.subr.bf16.mxu0 0
        %4488 = vmatpush1.bf16.msra.mxu0 0
        %4489 = vmatprep.subr.bf16.mxu0 0
        %4490 = vmatpush1.bf16.msra.mxu0 0
        %4491 = vmatprep.subr.bf16.mxu0 0
        %4492 = vmatpush1.bf16.msra.mxu0 0
        %4493 = vmatprep.subr.bf16.mxu0 0
        %4494 = vmatpush1.bf16.msra.mxu0 0
        %4495 = vmatprep.subr.bf16.mxu0 0
        %4496 = vmatpush1.bf16.msra.mxu0 0
        %4497 = vmatprep.subr.bf16.mxu0 0
        %4498 = vmatpush1.bf16.msra.mxu0 0
        %4499 = vmatprep.subr.bf16.mxu0 0
        %4500 = vmatpush1.bf16.msra.mxu0 0
        %4501 = vmatprep.subr.bf16.mxu0 0
        %4502 = vmatpush1.bf16.msra.mxu0 0
        %4503 = vmatprep.subr.bf16.mxu0 0
        %4504 = vmatpush1.bf16.msra.mxu0 0
        %4505 = vmatprep.subr.bf16.mxu0 0
        %4506 = vmatpush1.bf16.msra.mxu0 0
        %4507 = vmatprep.subr.bf16.mxu0 0
        %4508 = vmatpush1.bf16.msra.mxu0 0
        %4509 = vmatprep.subr.bf16.mxu0 0
        %4510 = vmatpush1.bf16.msra.mxu0 0
        %4511 = vmatprep.subr.bf16.mxu0 0
        %4512 = vmatpush1.bf16.msra.mxu0 0
        %4513 = vmatprep.mubr.bf16.mxu0 0
        %4514 = vmatmul.mubr.bf16.gmra.mrb[0].mxu0 %v4476
        %v4515 = vpop.f32.mrb[0].mxu0
        %v4516 = vadd.f32 0.0, %v4515
        %v4517 = vpop.f32.mrb[0].mxu0
        %v4518 = vpop.f32.mrb[0].mxu0
        %v4519 = vpop.f32.mrb[0].mxu0
        %4520 = vdwg.mxu0
        %4521 = vrot.lane.b32.xlu0 %v3354, 64
        %v4522 = vpop.permute.xlu0 %4521
        %v4524 = vsel %vm1065, %v4470, 0
        %v4527 = vsel %vm1117, %v4522, 0
        %4529 = vmatprep.subr.bf16.mxu0 0
        %4530 = vmatpush1.bf16.msra.mxu0 %v4527
        %4531 = vmatprep.subr.bf16.mxu0 0
        %4532 = vmatpush1.bf16.msra.mxu0 0
        %4533 = vmatprep.subr.bf16.mxu0 0
        %4534 = vmatpush1.bf16.msra.mxu0 0
        %4535 = vmatprep.subr.bf16.mxu0 0
        %4536 = vmatpush1.bf16.msra.mxu0 0
        %4537 = vmatprep.subr.bf16.mxu0 0
        %4538 = vmatpush1.bf16.msra.mxu0 0
        %4539 = vmatprep.subr.bf16.mxu0 0
        %4540 = vmatpush1.bf16.msra.mxu0 0
        %4541 = vmatprep.subr.bf16.mxu0 0
        %4542 = vmatpush1.bf16.msra.mxu0 0
        %4543 = vmatprep.subr.bf16.mxu0 0
        %4544 = vmatpush1.bf16.msra.mxu0 0
        %4545 = vmatprep.subr.bf16.mxu0 0
        %4546 = vmatpush1.bf16.msra.mxu0 0
        %4547 = vmatprep.subr.bf16.mxu0 0
        %4548 = vmatpush1.bf16.msra.mxu0 0
        %4549 = vmatprep.subr.bf16.mxu0 0
        %4550 = vmatpush1.bf16.msra.mxu0 0
        %4551 = vmatprep.subr.bf16.mxu0 0
        %4552 = vmatpush1.bf16.msra.mxu0 0
        %4553 = vmatprep.subr.bf16.mxu0 0
        %4554 = vmatpush1.bf16.msra.mxu0 0
        %4555 = vmatprep.subr.bf16.mxu0 0
        %4556 = vmatpush1.bf16.msra.mxu0 0
        %4557 = vmatprep.subr.bf16.mxu0 0
        %4558 = vmatpush1.bf16.msra.mxu0 0
        %4559 = vmatprep.subr.bf16.mxu0 0
        %4560 = vmatpush1.bf16.msra.mxu0 0
        %4561 = vmatprep.mubr.bf16.mxu0 0
        %4562 = vmatmul.mubr.bf16.gmra.mrb[0].mxu0 %v4524
        %v4563 = vpop.f32.mrb[0].mxu0
        %v4564 = vadd.f32 0.0, %v4563
        %v4565 = vpop.f32.mrb[0].mxu0
        %v4566 = vpop.f32.mrb[0].mxu0
        %v4567 = vpop.f32.mrb[0].mxu0
        %4568 = vdwg.mxu0
        %4569 = vrot.lane.b32.xlu0 %v3355, 64
        %v4570 = vpop.permute.xlu0 %4569
        %v4572 = vsel %vm1065, %v4471, 0
        %v4575 = vsel %vm1117, %v4570, 0
        %4577 = vmatprep.subr.bf16.mxu0 0
        %4578 = vmatpush1.bf16.msra.mxu0 %v4575
        %4579 = vmatprep.subr.bf16.mxu0 0
        %4580 = vmatpush1.bf16.msra.mxu0 0
        %4581 = vmatprep.subr.bf16.mxu0 0
        %4582 = vmatpush1.bf16.msra.mxu0 0
        %4583 = vmatprep.subr.bf16.mxu0 0
        %4584 = vmatpush1.bf16.msra.mxu0 0
        %4585 = vmatprep.subr.bf16.mxu0 0
        %4586 = vmatpush1.bf16.msra.mxu0 0
        %4587 = vmatprep.subr.bf16.mxu0 0
        %4588 = vmatpush1.bf16.msra.mxu0 0
        %4589 = vmatprep.subr.bf16.mxu0 0
        %4590 = vmatpush1.bf16.msra.mxu0 0
        %4591 = vmatprep.subr.bf16.mxu0 0
        %4592 = vmatpush1.bf16.msra.mxu0 0
        %4593 = vmatprep.subr.bf16.mxu0 0
        %4594 = vmatpush1.bf16.msra.mxu0 0
        %4595 = vmatprep.subr.bf16.mxu0 0
        %4596 = vmatpush1.bf16.msra.mxu0 0
        %4597 = vmatprep.subr.bf16.mxu0 0
        %4598 = vmatpush1.bf16.msra.mxu0 0
        %4599 = vmatprep.subr.bf16.mxu0 0
        %4600 = vmatpush1.bf16.msra.mxu0 0
        %4601 = vmatprep.subr.bf16.mxu0 0
        %4602 = vmatpush1.bf16.msra.mxu0 0
        %4603 = vmatprep.subr.bf16.mxu0 0
        %4604 = vmatpush1.bf16.msra.mxu0 0
        %4605 = vmatprep.subr.bf16.mxu0 0
        %4606 = vmatpush1.bf16.msra.mxu0 0
        %4607 = vmatprep.subr.bf16.mxu0 0
        %4608 = vmatpush1.bf16.msra.mxu0 0
        %4609 = vmatprep.mubr.bf16.mxu0 0
        %4610 = vmatmul.mubr.bf16.gmra.mrb[0].mxu0 %v4572
        %v4611 = vpop.f32.mrb[0].mxu0
        %v4612 = vadd.f32 0.0, %v4611
        %v4613 = vpop.f32.mrb[0].mxu0
        %v4614 = vpop.f32.mrb[0].mxu0
        %v4615 = vpop.f32.mrb[0].mxu0
        %4616 = vdwg.mxu0
        %4617 = vrot.lane.b32.xlu0 %v3356, 64
        %v4618 = vpop.permute.xlu0 %4617
        %v4620 = vsel %vm1065, %v4472, 0
        %v4623 = vsel %vm1117, %v4618, 0
        %4625 = vmatprep.subr.bf16.mxu0 0
        %4626 = vmatpush1.bf16.msra.mxu0 %v4623
        %4627 = vmatprep.subr.bf16.mxu0 0
        %4628 = vmatpush1.bf16.msra.mxu0 0
        %4629 = vmatprep.subr.bf16.mxu0 0
        %4630 = vmatpush1.bf16.msra.mxu0 0
        %4631 = vmatprep.subr.bf16.mxu0 0
        %4632 = vmatpush1.bf16.msra.mxu0 0
        %4633 = vmatprep.subr.bf16.mxu0 0
        %4634 = vmatpush1.bf16.msra.mxu0 0
        %4635 = vmatprep.subr.bf16.mxu0 0
        %4636 = vmatpush1.bf16.msra.mxu0 0
        %4637 = vmatprep.subr.bf16.mxu0 0
        %4638 = vmatpush1.bf16.msra.mxu0 0
        %4639 = vmatprep.subr.bf16.mxu0 0
        %4640 = vmatpush1.bf16.msra.mxu0 0
        %4641 = vmatprep.subr.bf16.mxu0 0
        %4642 = vmatpush1.bf16.msra.mxu0 0
        %4643 = vmatprep.subr.bf16.mxu0 0
        %4644 = vmatpush1.bf16.msra.mxu0 0
        %4645 = vmatprep.subr.bf16.mxu0 0
        %4646 = vmatpush1.bf16.msra.mxu0 0
        %4647 = vmatprep.subr.bf16.mxu0 0
        %4648 = vmatpush1.bf16.msra.mxu0 0
        %4649 = vmatprep.subr.bf16.mxu0 0
        %4650 = vmatpush1.bf16.msra.mxu0 0
        %4651 = vmatprep.subr.bf16.mxu0 0
        %4652 = vmatpush1.bf16.msra.mxu0 0
        %4653 = vmatprep.subr.bf16.mxu0 0
        %4654 = vmatpush1.bf16.msra.mxu0 0
        %4655 = vmatprep.subr.bf16.mxu0 0
        %4656 = vmatpush1.bf16.msra.mxu0 0
        %4657 = vmatprep.mubr.bf16.mxu0 0
        %4658 = vmatmul.mubr.bf16.gmra.mrb[0].mxu0 %v4620
        %v4659 = vpop.f32.mrb[0].mxu0
        %v4660 = vadd.f32 0.0, %v4659
        %v4661 = vpop.f32.mrb[0].mxu0
        %v4662 = vpop.f32.mrb[0].mxu0
        %v4663 = vpop.f32.mrb[0].mxu0
        %4664 = vdwg.mxu0
        %4665 = vrot.lane.b32.xlu0 %v3345, 32
        %v4666 = vpop.permute.xlu0 %4665
        %4667 = vrot.lane.b32.xlu0 %v3349, 32
        %v4668 = vpop.permute.xlu0 %4667
        %v4670 = vsel %vm736, %v4666, 0
        %v4673 = vsel %vm736, %v4668, 0
        %4675 = vmatprep.subr.bf16.mxu0 0
        %4676 = vmatpush1.bf16.xpose.msra.mxu0 %v4673
        %4677 = vmatprep.subr.bf16.mxu0 0
        %4678 = vmatpush1.bf16.xpose.msra.mxu0 0
        %4679 = vmatprep.subr.bf16.mxu0 0
        %4680 = vmatpush1.bf16.xpose.msra.mxu0 0
        %4681 = vmatprep.subr.bf16.mxu0 0
        %4682 = vmatpush1.bf16.xpose.msra.mxu0 0
        %4683 = vmatprep.subr.bf16.mxu0 0
        %4684 = vmatpush1.bf16.xpose.msra.mxu0 0
        %4685 = vmatprep.subr.bf16.mxu0 0
        %4686 = vmatpush1.bf16.xpose.msra.mxu0 0
        %4687 = vmatprep.subr.bf16.mxu0 0
        %4688 = vmatpush1.bf16.xpose.msra.mxu0 0
        %4689 = vmatprep.subr.bf16.mxu0 0
        %4690 = vmatpush1.bf16.xpose.msra.mxu0 0
        %4691 = vmatprep.subr.bf16.mxu0 0
        %4692 = vmatpush1.bf16.xpose.msra.mxu0 0
        %4693 = vmatprep.subr.bf16.mxu0 0
        %4694 = vmatpush1.bf16.xpose.msra.mxu0 0
        %4695 = vmatprep.subr.bf16.mxu0 0
        %4696 = vmatpush1.bf16.xpose.msra.mxu0 0
        %4697 = vmatprep.subr.bf16.mxu0 0
        %4698 = vmatpush1.bf16.xpose.msra.mxu0 0
        %4699 = vmatprep.subr.bf16.mxu0 0
        %4700 = vmatpush1.bf16.xpose.msra.mxu0 0
        %4701 = vmatprep.subr.bf16.mxu0 0
        %4702 = vmatpush1.bf16.xpose.msra.mxu0 0
        %4703 = vmatprep.subr.bf16.mxu0 0
        %4704 = vmatpush1.bf16.xpose.msra.mxu0 0
        %4705 = vmatprep.subr.bf16.mxu0 0
        %4706 = vmatpush1.bf16.xpose.msra.mxu0 0
        %4707 = vmatprep.mubr.bf16.mxu0 0
        %4708 = vmatmul.mubr.bf16.gmra.mrb[0].mxu0 %v4670
        %v4709 = vpop.f32.mrb[0].mxu0
        %v4710 = vadd.f32 %v864, %v4709
        %v4711 = vpop.f32.mrb[0].mxu0
        %v4712 = vpop.f32.mrb[0].mxu0
        %v4713 = vpop.f32.mrb[0].mxu0
        %4714 = vdwg.mxu0
        %4715 = vrot.lane.b32.xlu0 %v3346, 32
        %v4716 = vpop.permute.xlu0 %4715
        %4717 = vrot.lane.b32.xlu0 %v3350, 32
        %v4718 = vpop.permute.xlu0 %4717
        %v4720 = vsel %vm736, %v4716, 0
        %v4723 = vsel %vm736, %v4718, 0
        %4725 = vmatprep.subr.bf16.mxu0 0
        %4726 = vmatpush1.bf16.xpose.msra.mxu0 %v4723
        %4727 = vmatprep.subr.bf16.mxu0 0
        %4728 = vmatpush1.bf16.xpose.msra.mxu0 0
        %4729 = vmatprep.subr.bf16.mxu0 0
        %4730 = vmatpush1.bf16.xpose.msra.mxu0 0
        %4731 = vmatprep.subr.bf16.mxu0 0
        %4732 = vmatpush1.bf16.xpose.msra.mxu0 0
        %4733 = vmatprep.subr.bf16.mxu0 0
        %4734 = vmatpush1.bf16.xpose.msra.mxu0 0
        %4735 = vmatprep.subr.bf16.mxu0 0
        %4736 = vmatpush1.bf16.xpose.msra.mxu0 0
        %4737 = vmatprep.subr.bf16.mxu0 0
        %4738 = vmatpush1.bf16.xpose.msra.mxu0 0
        %4739 = vmatprep.subr.bf16.mxu0 0
        %4740 = vmatpush1.bf16.xpose.msra.mxu0 0
        %4741 = vmatprep.subr.bf16.mxu0 0
        %4742 = vmatpush1.bf16.xpose.msra.mxu0 0
        %4743 = vmatprep.subr.bf16.mxu0 0
        %4744 = vmatpush1.bf16.xpose.msra.mxu0 0
        %4745 = vmatprep.subr.bf16.mxu0 0
        %4746 = vmatpush1.bf16.xpose.msra.mxu0 0
        %4747 = vmatprep.subr.bf16.mxu0 0
        %4748 = vmatpush1.bf16.xpose.msra.mxu0 0
        %4749 = vmatprep.subr.bf16.mxu0 0
        %4750 = vmatpush1.bf16.xpose.msra.mxu0 0
        %4751 = vmatprep.subr.bf16.mxu0 0
        %4752 = vmatpush1.bf16.xpose.msra.mxu0 0
        %4753 = vmatprep.subr.bf16.mxu0 0
        %4754 = vmatpush1.bf16.xpose.msra.mxu0 0
        %4755 = vmatprep.subr.bf16.mxu0 0
        %4756 = vmatpush1.bf16.xpose.msra.mxu0 0
        %4757 = vmatprep.mubr.bf16.mxu0 0
        %4758 = vmatmul.mubr.bf16.gmra.mrb[0].mxu0 %v4720
        %v4759 = vpop.f32.mrb[0].mxu0
        %v4760 = vadd.f32 %v868, %v4759
        %v4761 = vpop.f32.mrb[0].mxu0
        %v4762 = vpop.f32.mrb[0].mxu0
        %v4763 = vpop.f32.mrb[0].mxu0
        %4764 = vdwg.mxu0
        %4765 = vrot.lane.b32.xlu0 %v3347, 32
        %v4766 = vpop.permute.xlu0 %4765
        %4767 = vrot.lane.b32.xlu0 %v3351, 32
        %v4768 = vpop.permute.xlu0 %4767
        %v4770 = vsel %vm736, %v4766, 0
        %v4773 = vsel %vm736, %v4768, 0
        %4775 = vmatprep.subr.bf16.mxu0 0
        %4776 = vmatpush1.bf16.xpose.msra.mxu0 %v4773
        %4777 = vmatprep.subr.bf16.mxu0 0
        %4778 = vmatpush1.bf16.xpose.msra.mxu0 0
        %4779 = vmatprep.subr.bf16.mxu0 0
        %4780 = vmatpush1.bf16.xpose.msra.mxu0 0
        %4781 = vmatprep.subr.bf16.mxu0 0
        %4782 = vmatpush1.bf16.xpose.msra.mxu0 0
        %4783 = vmatprep.subr.bf16.mxu0 0
        %4784 = vmatpush1.bf16.xpose.msra.mxu0 0
        %4785 = vmatprep.subr.bf16.mxu0 0
        %4786 = vmatpush1.bf16.xpose.msra.mxu0 0
        %4787 = vmatprep.subr.bf16.mxu0 0
        %4788 = vmatpush1.bf16.xpose.msra.mxu0 0
        %4789 = vmatprep.subr.bf16.mxu0 0
        %4790 = vmatpush1.bf16.xpose.msra.mxu0 0
        %4791 = vmatprep.subr.bf16.mxu0 0
        %4792 = vmatpush1.bf16.xpose.msra.mxu0 0
        %4793 = vmatprep.subr.bf16.mxu0 0
        %4794 = vmatpush1.bf16.xpose.msra.mxu0 0
        %4795 = vmatprep.subr.bf16.mxu0 0
        %4796 = vmatpush1.bf16.xpose.msra.mxu0 0
        %4797 = vmatprep.subr.bf16.mxu0 0
        %4798 = vmatpush1.bf16.xpose.msra.mxu0 0
        %4799 = vmatprep.subr.bf16.mxu0 0
        %4800 = vmatpush1.bf16.xpose.msra.mxu0 0
        %4801 = vmatprep.subr.bf16.mxu0 0
        %4802 = vmatpush1.bf16.xpose.msra.mxu0 0
        %4803 = vmatprep.subr.bf16.mxu0 0
        %4804 = vmatpush1.bf16.xpose.msra.mxu0 0
        %4805 = vmatprep.subr.bf16.mxu0 0
        %4806 = vmatpush1.bf16.xpose.msra.mxu0 0
        %4807 = vmatprep.mubr.bf16.mxu0 0
        %4808 = vmatmul.mubr.bf16.gmra.mrb[0].mxu0 %v4770
        %v4809 = vpop.f32.mrb[0].mxu0
        %v4810 = vadd.f32 %v872, %v4809
        %v4811 = vpop.f32.mrb[0].mxu0
        %v4812 = vpop.f32.mrb[0].mxu0
        %v4813 = vpop.f32.mrb[0].mxu0
        %4814 = vdwg.mxu0
        %4815 = vrot.lane.b32.xlu0 %v3348, 32
        %v4816 = vpop.permute.xlu0 %4815
        %4817 = vrot.lane.b32.xlu0 %v3352, 32
        %v4818 = vpop.permute.xlu0 %4817
        %v4820 = vsel %vm736, %v4816, 0
        %v4823 = vsel %vm736, %v4818, 0
        %4825 = vmatprep.subr.bf16.mxu0 0
        %4826 = vmatpush1.bf16.xpose.msra.mxu0 %v4823
        %4827 = vmatprep.subr.bf16.mxu0 0
        %4828 = vmatpush1.bf16.xpose.msra.mxu0 0
        %4829 = vmatprep.subr.bf16.mxu0 0
        %4830 = vmatpush1.bf16.xpose.msra.mxu0 0
        %4831 = vmatprep.subr.bf16.mxu0 0
        %4832 = vmatpush1.bf16.xpose.msra.mxu0 0
        %4833 = vmatprep.subr.bf16.mxu0 0
        %4834 = vmatpush1.bf16.xpose.msra.mxu0 0
        %4835 = vmatprep.subr.bf16.mxu0 0
        %4836 = vmatpush1.bf16.xpose.msra.mxu0 0
        %4837 = vmatprep.subr.bf16.mxu0 0
        %4838 = vmatpush1.bf16.xpose.msra.mxu0 0
        %4839 = vmatprep.subr.bf16.mxu0 0
        %4840 = vmatpush1.bf16.xpose.msra.mxu0 0
        %4841 = vmatprep.subr.bf16.mxu0 0
        %4842 = vmatpush1.bf16.xpose.msra.mxu0 0
        %4843 = vmatprep.subr.bf16.mxu0 0
        %4844 = vmatpush1.bf16.xpose.msra.mxu0 0
        %4845 = vmatprep.subr.bf16.mxu0 0
        %4846 = vmatpush1.bf16.xpose.msra.mxu0 0
        %4847 = vmatprep.subr.bf16.mxu0 0
        %4848 = vmatpush1.bf16.xpose.msra.mxu0 0
        %4849 = vmatprep.subr.bf16.mxu0 0
        %4850 = vmatpush1.bf16.xpose.msra.mxu0 0
        %4851 = vmatprep.subr.bf16.mxu0 0
        %4852 = vmatpush1.bf16.xpose.msra.mxu0 0
        %4853 = vmatprep.subr.bf16.mxu0 0
        %4854 = vmatpush1.bf16.xpose.msra.mxu0 0
        %4855 = vmatprep.subr.bf16.mxu0 0
        %4856 = vmatpush1.bf16.xpose.msra.mxu0 0
        %4857 = vmatprep.mubr.bf16.mxu0 0
        %4858 = vmatmul.mubr.bf16.gmra.mrb[0].mxu0 %v4820
        %v4859 = vpop.f32.mrb[0].mxu0
        %v4860 = vadd.f32 %v876, %v4859
        %v4861 = vpop.f32.mrb[0].mxu0
        %v4862 = vpop.f32.mrb[0].mxu0
        %v4863 = vpop.f32.mrb[0].mxu0
        %4864 = vdwg.mxu0
        %v4865 = vsel %vm1065, %v4710, -inf
        %4866 = vmax.xlane.f32.xlu0 %v4865
        %v4867 = vpop.xlane.xlu0 %4866
        %v4868 = vsel %vm1065, %v4760, -inf
        %4869 = vmax.xlane.f32.xlu0 %v4868
        %v4870 = vpop.xlane.xlu0 %4869
        %v4871 = vsel %vm1065, %v4810, -inf
        %4872 = vmax.xlane.f32.xlu0 %v4871
        %v4873 = vpop.xlane.xlu0 %4872
        %v4874 = vsel %vm1065, %v4860, -inf
        %4875 = vmax.xlane.f32.xlu0 %v4874
        %v4876 = vpop.xlane.xlu0 %4875
        %v4877 = vsub.f32 %v4710, %v4867
        %v4878 = vsub.f32 %v4760, %v4870
        %v4879 = vsub.f32 %v4810, %v4873
        %v4880 = vsub.f32 %v4860, %v4876
        %v4881 = vmul.f32 %v4877, 1.442695
        %v4882 = vpow.pop %v4881
        %v4883 = vmul.f32 %v4878, 1.442695
        %v4884 = vpow.pop %v4883
        %v4885 = vmul.f32 %v4879, 1.442695
        %v4886 = vpow.pop %v4885
        %v4887 = vmul.f32 %v4880, 1.442695
        %v4888 = vpow.pop %v4887
        %v4889 = vsel %vm1065, %v4882, 0.0
        %4890 = vadd.xlane.f32.xlu0 %v4889
        %v4891 = vpop.xlane.xlu0 %4890
        %v4892 = vsel %vm1065, %v4884, 0.0
        %4893 = vadd.xlane.f32.xlu0 %v4892
        %v4894 = vpop.xlane.xlu0 %4893
        %v4895 = vsel %vm1065, %v4886, 0.0
        %4896 = vadd.xlane.f32.xlu0 %v4895
        %v4897 = vpop.xlane.xlu0 %4896
        %v4898 = vsel %vm1065, %v4888, 0.0
        %4899 = vadd.xlane.f32.xlu0 %v4898
        %v4900 = vpop.xlane.xlu0 %4899
        %v4901 = vrcp.pop %v4891
        %v4902 = vrcp.pop %v4894
        %v4903 = vrcp.pop %v4897
        %v4904 = vrcp.pop %v4900
        %v4905 = vmul.f32 %v4882, %v4901
        %v4906 = vmul.f32 %v4884, %v4902
        %v4907 = vmul.f32 %v4886, %v4903
        %v4908 = vmul.f32 %v4888, %v4904
        %v4909 = vpack.c.bf16 %v4905, %v4905
        %v4910 = vpack.c.bf16 %v4906, %v4906
        %v4911 = vpack.c.bf16 %v4907, %v4907
        %v4912 = vpack.c.bf16 %v4908, %v4908
        %4913 = vrot.lane.b32.xlu0 %v3353, 32
        %v4914 = vpop.permute.xlu0 %4913
        %v4916 = vsel %vm1065, %v4909, 0
        %v4919 = vsel %vm1117, %v4914, 0
        %4921 = vmatprep.subr.bf16.mxu0 0
        %4922 = vmatpush1.bf16.msra.mxu0 %v4919
        %4923 = vmatprep.subr.bf16.mxu0 0
        %4924 = vmatpush1.bf16.msra.mxu0 0
        %4925 = vmatprep.subr.bf16.mxu0 0
        %4926 = vmatpush1.bf16.msra.mxu0 0
        %4927 = vmatprep.subr.bf16.mxu0 0
        %4928 = vmatpush1.bf16.msra.mxu0 0
        %4929 = vmatprep.subr.bf16.mxu0 0
        %4930 = vmatpush1.bf16.msra.mxu0 0
        %4931 = vmatprep.subr.bf16.mxu0 0
        %4932 = vmatpush1.bf16.msra.mxu0 0
        %4933 = vmatprep.subr.bf16.mxu0 0
        %4934 = vmatpush1.bf16.msra.mxu0 0
        %4935 = vmatprep.subr.bf16.mxu0 0
        %4936 = vmatpush1.bf16.msra.mxu0 0
        %4937 = vmatprep.subr.bf16.mxu0 0
        %4938 = vmatpush1.bf16.msra.mxu0 0
        %4939 = vmatprep.subr.bf16.mxu0 0
        %4940 = vmatpush1.bf16.msra.mxu0 0
        %4941 = vmatprep.subr.bf16.mxu0 0
        %4942 = vmatpush1.bf16.msra.mxu0 0
        %4943 = vmatprep.subr.bf16.mxu0 0
        %4944 = vmatpush1.bf16.msra.mxu0 0
        %4945 = vmatprep.subr.bf16.mxu0 0
        %4946 = vmatpush1.bf16.msra.mxu0 0
        %4947 = vmatprep.subr.bf16.mxu0 0
        %4948 = vmatpush1.bf16.msra.mxu0 0
        %4949 = vmatprep.subr.bf16.mxu0 0
        %4950 = vmatpush1.bf16.msra.mxu0 0
        %4951 = vmatprep.subr.bf16.mxu0 0
        %4952 = vmatpush1.bf16.msra.mxu0 0
        %4953 = vmatprep.mubr.bf16.mxu0 0
        %4954 = vmatmul.mubr.bf16.gmra.mrb[0].mxu0 %v4916
        %v4955 = vpop.f32.mrb[0].mxu0
        %v4956 = vadd.f32 0.0, %v4955
        %v4957 = vpop.f32.mrb[0].mxu0
        %v4958 = vpop.f32.mrb[0].mxu0
        %v4959 = vpop.f32.mrb[0].mxu0
        %4960 = vdwg.mxu0
        %4961 = vrot.lane.b32.xlu0 %v3354, 32
        %v4962 = vpop.permute.xlu0 %4961
        %v4964 = vsel %vm1065, %v4910, 0
        %v4967 = vsel %vm1117, %v4962, 0
        %4969 = vmatprep.subr.bf16.mxu0 0
        %4970 = vmatpush1.bf16.msra.mxu0 %v4967
        %4971 = vmatprep.subr.bf16.mxu0 0
        %4972 = vmatpush1.bf16.msra.mxu0 0
        %4973 = vmatprep.subr.bf16.mxu0 0
        %4974 = vmatpush1.bf16.msra.mxu0 0
        %4975 = vmatprep.subr.bf16.mxu0 0
        %4976 = vmatpush1.bf16.msra.mxu0 0
        %4977 = vmatprep.subr.bf16.mxu0 0
        %4978 = vmatpush1.bf16.msra.mxu0 0
        %4979 = vmatprep.subr.bf16.mxu0 0
        %4980 = vmatpush1.bf16.msra.mxu0 0
        %4981 = vmatprep.subr.bf16.mxu0 0
        %4982 = vmatpush1.bf16.msra.mxu0 0
        %4983 = vmatprep.subr.bf16.mxu0 0
        %4984 = vmatpush1.bf16.msra.mxu0 0
        %4985 = vmatprep.subr.bf16.mxu0 0
        %4986 = vmatpush1.bf16.msra.mxu0 0
        %4987 = vmatprep.subr.bf16.mxu0 0
        %4988 = vmatpush1.bf16.msra.mxu0 0
        %4989 = vmatprep.subr.bf16.mxu0 0
        %4990 = vmatpush1.bf16.msra.mxu0 0
        %4991 = vmatprep.subr.bf16.mxu0 0
        %4992 = vmatpush1.bf16.msra.mxu0 0
        %4993 = vmatprep.subr.bf16.mxu0 0
        %4994 = vmatpush1.bf16.msra.mxu0 0
        %4995 = vmatprep.subr.bf16.mxu0 0
        %4996 = vmatpush1.bf16.msra.mxu0 0
        %4997 = vmatprep.subr.bf16.mxu0 0
        %4998 = vmatpush1.bf16.msra.mxu0 0
        %4999 = vmatprep.subr.bf16.mxu0 0
        %5000 = vmatpush1.bf16.msra.mxu0 0
        %5001 = vmatprep.mubr.bf16.mxu0 0
        %5002 = vmatmul.mubr.bf16.gmra.mrb[0].mxu0 %v4964
        %v5003 = vpop.f32.mrb[0].mxu0
        %v5004 = vadd.f32 0.0, %v5003
        %v5005 = vpop.f32.mrb[0].mxu0
        %v5006 = vpop.f32.mrb[0].mxu0
        %v5007 = vpop.f32.mrb[0].mxu0
        %5008 = vdwg.mxu0
        %5009 = vrot.lane.b32.xlu0 %v3355, 32
        %v5010 = vpop.permute.xlu0 %5009
        %v5012 = vsel %vm1065, %v4911, 0
        %v5015 = vsel %vm1117, %v5010, 0
        %5017 = vmatprep.subr.bf16.mxu0 0
        %5018 = vmatpush1.bf16.msra.mxu0 %v5015
        %5019 = vmatprep.subr.bf16.mxu0 0
        %5020 = vmatpush1.bf16.msra.mxu0 0
        %5021 = vmatprep.subr.bf16.mxu0 0
        %5022 = vmatpush1.bf16.msra.mxu0 0
        %5023 = vmatprep.subr.bf16.mxu0 0
        %5024 = vmatpush1.bf16.msra.mxu0 0
        %5025 = vmatprep.subr.bf16.mxu0 0
        %5026 = vmatpush1.bf16.msra.mxu0 0
        %5027 = vmatprep.subr.bf16.mxu0 0
        %5028 = vmatpush1.bf16.msra.mxu0 0
        %5029 = vmatprep.subr.bf16.mxu0 0
        %5030 = vmatpush1.bf16.msra.mxu0 0
        %5031 = vmatprep.subr.bf16.mxu0 0
        %5032 = vmatpush1.bf16.msra.mxu0 0
        %5033 = vmatprep.subr.bf16.mxu0 0
        %5034 = vmatpush1.bf16.msra.mxu0 0
        %5035 = vmatprep.subr.bf16.mxu0 0
        %5036 = vmatpush1.bf16.msra.mxu0 0
        %5037 = vmatprep.subr.bf16.mxu0 0
        %5038 = vmatpush1.bf16.msra.mxu0 0
        %5039 = vmatprep.subr.bf16.mxu0 0
        %5040 = vmatpush1.bf16.msra.mxu0 0
        %5041 = vmatprep.subr.bf16.mxu0 0
        %5042 = vmatpush1.bf16.msra.mxu0 0
        %5043 = vmatprep.subr.bf16.mxu0 0
        %5044 = vmatpush1.bf16.msra.mxu0 0
        %5045 = vmatprep.subr.bf16.mxu0 0
        %5046 = vmatpush1.bf16.msra.mxu0 0
        %5047 = vmatprep.subr.bf16.mxu0 0
        %5048 = vmatpush1.bf16.msra.mxu0 0
        %5049 = vmatprep.mubr.bf16.mxu0 0
        %5050 = vmatmul.mubr.bf16.gmra.mrb[0].mxu0 %v5012
        %v5051 = vpop.f32.mrb[0].mxu0
        %v5052 = vadd.f32 0.0, %v5051
        %v5053 = vpop.f32.mrb[0].mxu0
        %v5054 = vpop.f32.mrb[0].mxu0
        %v5055 = vpop.f32.mrb[0].mxu0
        %5056 = vdwg.mxu0
        %5057 = vrot.lane.b32.xlu0 %v3356, 32
        %v5058 = vpop.permute.xlu0 %5057
        %v5060 = vsel %vm1065, %v4912, 0
        %v5063 = vsel %vm1117, %v5058, 0
        %5065 = vmatprep.subr.bf16.mxu0 0
        %5066 = vmatpush1.bf16.msra.mxu0 %v5063
        %5067 = vmatprep.subr.bf16.mxu0 0
        %5068 = vmatpush1.bf16.msra.mxu0 0
        %5069 = vmatprep.subr.bf16.mxu0 0
        %5070 = vmatpush1.bf16.msra.mxu0 0
        %5071 = vmatprep.subr.bf16.mxu0 0
        %5072 = vmatpush1.bf16.msra.mxu0 0
        %5073 = vmatprep.subr.bf16.mxu0 0
        %5074 = vmatpush1.bf16.msra.mxu0 0
        %5075 = vmatprep.subr.bf16.mxu0 0
        %5076 = vmatpush1.bf16.msra.mxu0 0
        %5077 = vmatprep.subr.bf16.mxu0 0
        %5078 = vmatpush1.bf16.msra.mxu0 0
        %5079 = vmatprep.subr.bf16.mxu0 0
        %5080 = vmatpush1.bf16.msra.mxu0 0
        %5081 = vmatprep.subr.bf16.mxu0 0
        %5082 = vmatpush1.bf16.msra.mxu0 0
        %5083 = vmatprep.subr.bf16.mxu0 0
        %5084 = vmatpush1.bf16.msra.mxu0 0
        %5085 = vmatprep.subr.bf16.mxu0 0
        %5086 = vmatpush1.bf16.msra.mxu0 0
        %5087 = vmatprep.subr.bf16.mxu0 0
        %5088 = vmatpush1.bf16.msra.mxu0 0
        %5089 = vmatprep.subr.bf16.mxu0 0
        %5090 = vmatpush1.bf16.msra.mxu0 0
        %5091 = vmatprep.subr.bf16.mxu0 0
        %5092 = vmatpush1.bf16.msra.mxu0 0
        %5093 = vmatprep.subr.bf16.mxu0 0
        %5094 = vmatpush1.bf16.msra.mxu0 0
        %5095 = vmatprep.subr.bf16.mxu0 0
        %5096 = vmatpush1.bf16.msra.mxu0 0
        %5097 = vmatprep.mubr.bf16.mxu0 0
        %5098 = vmatmul.mubr.bf16.gmra.mrb[0].mxu0 %v5060
        %v5099 = vpop.f32.mrb[0].mxu0
        %v5100 = vadd.f32 0.0, %v5099
        %v5101 = vpop.f32.mrb[0].mxu0
        %v5102 = vpop.f32.mrb[0].mxu0
        %v5103 = vpop.f32.mrb[0].mxu0
        %5104 = vdwg.mxu0
        %5109 = vrot.lane.b32.xlu0 %v4073, 32
        %v5110 = vpop.permute.xlu0 %5109
        %5111 = vrot.lane.b32.xlu0 %v4122, 32
        %v5112 = vpop.permute.xlu0 %5111
        %5113 = vrot.lane.b32.xlu0 %v4171, 32
        %v5114 = vpop.permute.xlu0 %5113
        %5115 = vrot.lane.b32.xlu0 %v4220, 32
        %v5116 = vpop.permute.xlu0 %5115
        %5125 = vrot.lane.b32.xlu0 %v4516, 64
        %v5126 = vpop.permute.xlu0 %5125
        %5127 = vrot.lane.b32.xlu0 %v4564, 64
        %v5128 = vpop.permute.xlu0 %5127
        %5129 = vrot.lane.b32.xlu0 %v4612, 64
        %v5130 = vpop.permute.xlu0 %5129
        %5131 = vrot.lane.b32.xlu0 %v4660, 64
        %v5132 = vpop.permute.xlu0 %5131
        %5141 = vrot.lane.b32.xlu0 %v4956, 96
        %v5142 = vpop.permute.xlu0 %5141
        %5143 = vrot.lane.b32.xlu0 %v5004, 96
        %v5144 = vpop.permute.xlu0 %5143
        %5145 = vrot.lane.b32.xlu0 %v5052, 96
        %v5146 = vpop.permute.xlu0 %5145
        %5147 = vrot.lane.b32.xlu0 %v5100, 96
        %v5148 = vpop.permute.xlu0 %5147
        %v5153 = vsel %vm736, %v3630, %v5110
        %v5154 = vsel %vm736, %v3676, %v5112
        %v5155 = vsel %vm736, %v3722, %v5114
        %v5156 = vsel %vm736, %v3768, %v5116
        %v5157 = vsel %vm2683, %v5153, %v5126
        %v5158 = vsel %vm2683, %v5154, %v5128
        %v5159 = vsel %vm2683, %v5155, %v5130
        %v5160 = vsel %vm2683, %v5156, %v5132
        %v5161 = vsel %vm2688, %v5157, %v5142
        %v5162 = vsel %vm2688, %v5158, %v5144
        %v5163 = vsel %vm2688, %v5159, %v5146
        %v5164 = vsel %vm2688, %v5160, %v5148
        %v5165 = vpack.c.bf16 %v5162, %v5161
        %v5166 = vpack.c.bf16 %v5164, %v5163
        %s5167 = scalar_lea.vmem %s5, 64
        %v5168 = vld [vmem:[%s5167] sm:$0xf]
        %v5169 = vld [vmem:[%s5167 + $0x4] sm:$0xf]
        %v5170 = vld [vmem:[%s5167 + $0x8] sm:$0xf]
        %v5171 = vld [vmem:[%s5167 + $0xc] sm:$0xf]
        %v5172 = vld [vmem:[%s5167 + $0x10] sm:$0xf]
        %v5173 = vld [vmem:[%s5167 + $0x14] sm:$0xf]
        %v5174 = vld [vmem:[%s5167 + $0x18] sm:$0xf]
        %v5175 = vld [vmem:[%s5167 + $0x1c] sm:$0xf]
        %v5176 = vld [vmem:[%s5167 + $0x20] sm:$0xf]
        %v5177 = vld [vmem:[%s5167 + $0x24] sm:$0xf]
        %v5178 = vld [vmem:[%s5167 + $0x28] sm:$0xf]
        %v5179 = vld [vmem:[%s5167 + $0x2c] sm:$0xf]
        %v5180 = vld [vmem:[%s5167 + $0x30] sm:$0xf]
        %v5181 = vld [vmem:[%s5167 + $0x34] sm:$0xf]
        %v5182 = vld [vmem:[%s5167 + $0x38] sm:$0xf]
        %v5183 = vld [vmem:[%s5167 + $0x3c] sm:$0xf]
        %s5184 = scalar_lea.vmem %s6, 1
        %v5185 = vld [vmem:[%s5184] sm:$0x1]
        %v5187 = vlaneseq
        %v5188 = vshrl.u32 %v5187, 7
        %v5189 = vsub.s32 0, %v5188
        %v5190 = vrot.slane %v5185, %v5189
        %v5208 = vunpack.c.l.b16 %v5168
        %v5209 = vunpack.c.l.b16 %v5169
        %v5210 = vunpack.c.l.b16 %v5170
        %v5211 = vunpack.c.l.b16 %v5171
        %v5212 = vunpack.c.l.b16 %v5172
        %v5213 = vunpack.c.l.b16 %v5173
        %v5214 = vunpack.c.l.b16 %v5174
        %v5215 = vunpack.c.l.b16 %v5175
        %v5216 = vunpack.c.l.b16 %v5176
        %v5217 = vunpack.c.l.b16 %v5177
        %v5218 = vunpack.c.l.b16 %v5178
        %v5219 = vunpack.c.l.b16 %v5179
        %v5220 = vunpack.c.l.b16 %v5180
        %v5221 = vunpack.c.l.b16 %v5181
        %v5222 = vunpack.c.l.b16 %v5182
        %v5223 = vunpack.c.l.b16 %v5183
        %v5224 = vpack.c.b16 %v5209, %v5208
        %v5225 = vpack.c.b16 %v5211, %v5210
        %v5226 = vpack.c.b16 %v5213, %v5212
        %v5227 = vpack.c.b16 %v5215, %v5214
        %v5228 = vpack.c.b16 %v5217, %v5216
        %v5229 = vpack.c.b16 %v5219, %v5218
        %v5230 = vpack.c.b16 %v5221, %v5220
        %v5231 = vpack.c.b16 %v5223, %v5222
        %5240 = vmatprep.subr.bf16.mxu0 0
        %5241 = vmatpush1.bf16.msra.mxu0 %v5224
        %5242 = vmatprep.subr.bf16.mxu0 0
        %5243 = vmatpush1.bf16.msra.mxu0 %v5225
        %5244 = vmatprep.subr.bf16.mxu0 0
        %5245 = vmatpush1.bf16.msra.mxu0 %v5226
        %5246 = vmatprep.subr.bf16.mxu0 0
        %5247 = vmatpush1.bf16.msra.mxu0 %v5227
        %5248 = vmatprep.subr.bf16.mxu0 0
        %5249 = vmatpush1.bf16.msra.mxu0 %v5228
        %5250 = vmatprep.subr.bf16.mxu0 0
        %5251 = vmatpush1.bf16.msra.mxu0 %v5229
        %5252 = vmatprep.subr.bf16.mxu0 0
        %5253 = vmatpush1.bf16.msra.mxu0 %v5230
        %5254 = vmatprep.subr.bf16.mxu0 0
        %5255 = vmatpush1.bf16.msra.mxu0 %v5231
        %5256 = vmatprep.subr.bf16.mxu0 0
        %5257 = vmatpush1.bf16.msra.mxu0 0
        %5258 = vmatprep.subr.bf16.mxu0 0
        %5259 = vmatpush1.bf16.msra.mxu0 0
        %5260 = vmatprep.subr.bf16.mxu0 0
        %5261 = vmatpush1.bf16.msra.mxu0 0
        %5262 = vmatprep.subr.bf16.mxu0 0
        %5263 = vmatpush1.bf16.msra.mxu0 0
        %5264 = vmatprep.subr.bf16.mxu0 0
        %5265 = vmatpush1.bf16.msra.mxu0 0
        %5266 = vmatprep.subr.bf16.mxu0 0
        %5267 = vmatpush1.bf16.msra.mxu0 0
        %5268 = vmatprep.subr.bf16.mxu0 0
        %5269 = vmatpush1.bf16.msra.mxu0 0
        %5270 = vmatprep.subr.bf16.mxu0 0
        %5271 = vmatpush1.bf16.msra.mxu0 0
        %5272 = vmatprep.mubr.bf16.mxu0 0
        %5273 = vmatmul.mubr.bf16.gmra.mrb[0].mxu0 %v5165
        %v5274 = vpop.f32.mrb[0].mxu0
        %v5275 = vadd.f32 %v5190, %v5274
        %v5276 = vpop.f32.mrb[0].mxu0
        %v5277 = vpop.f32.mrb[0].mxu0
        %v5278 = vadd.f32 %v5190, %v5277
        %v5279 = vpop.f32.mrb[0].mxu0
        %5280 = vmatprep.mubr.bf16.mxu0 0
        %5281 = vmatmul.mubr.bf16.gmra.mrb[0].mxu0 %v5166
        %v5282 = vpop.f32.mrb[0].mxu0
        %v5283 = vadd.f32 %v5190, %v5282
        %v5284 = vpop.f32.mrb[0].mxu0
        %v5285 = vpop.f32.mrb[0].mxu0
        %v5286 = vadd.f32 %v5190, %v5285
        %v5287 = vpop.f32.mrb[0].mxu0
        %5288 = vdwg.mxu0
        %v5289 = vadd.f32 %v5275, %v3190
        %v5290 = vadd.f32 %v5278, %v3191
        %v5291 = vadd.f32 %v5283, %v3192
        %v5292 = vadd.f32 %v5286, %v3193
        %s5293 = scalar_lea.vmem %s7, 1
        %v5294 = vld [vmem:[%s5293] sm:$0x1]
        %s5295 = scalar_lea.vmem %s8, 1
        %v5296 = vld [vmem:[%s5295] sm:$0x1]
        %v5297 = vsel %vm736, %v5289, 0.0
        %5298 = vadd.xlane.f32.xlu0 %v5297
        %v5299 = vpop.xlane.xlu0 %5298
        %v5300 = vsel %vm736, %v5290, 0.0
        %5301 = vadd.xlane.f32.xlu0 %v5300
        %v5302 = vpop.xlane.xlu0 %5301
        %v5303 = vsel %vm736, %v5291, 0.0
        %5304 = vadd.xlane.f32.xlu0 %v5303
        %v5305 = vpop.xlane.xlu0 %5304
        %v5306 = vsel %vm736, %v5292, 0.0
        %5307 = vadd.xlane.f32.xlu0 %v5306
        %v5308 = vpop.xlane.xlu0 %5307
        %v5309 = vmul.f32 %v5299, %v2833
        %v5310 = vmul.f32 %v5302, %v2833
        %v5311 = vmul.f32 %v5305, %v2833
        %v5312 = vmul.f32 %v5308, %v2833
        %v5313 = vmul.f32 %v5289, %v5289
        %v5314 = vmul.f32 %v5290, %v5290
        %v5315 = vmul.f32 %v5291, %v5291
        %v5316 = vmul.f32 %v5292, %v5292
        %v5317 = vsel %vm736, %v5313, 0.0
        %5318 = vadd.xlane.f32.xlu0 %v5317
        %v5319 = vpop.xlane.xlu0 %5318
        %v5320 = vsel %vm736, %v5314, 0.0
        %5321 = vadd.xlane.f32.xlu0 %v5320
        %v5322 = vpop.xlane.xlu0 %5321
        %v5323 = vsel %vm736, %v5315, 0.0
        %5324 = vadd.xlane.f32.xlu0 %v5323
        %v5325 = vpop.xlane.xlu0 %5324
        %v5326 = vsel %vm736, %v5316, 0.0
        %5327 = vadd.xlane.f32.xlu0 %v5326
        %v5328 = vpop.xlane.xlu0 %5327
        %v5329 = vmul.f32 %v5319, %v2833
        %v5330 = vmul.f32 %v5322, %v2833
        %v5331 = vmul.f32 %v5325, %v2833
        %v5332 = vmul.f32 %v5328, %v2833
        %v5333 = vmul.f32 %v5309, %v5309
        %v5334 = vmul.f32 %v5310, %v5310
        %v5335 = vmul.f32 %v5311, %v5311
        %v5336 = vmul.f32 %v5312, %v5312
        %v5337 = vsub.f32 %v5329, %v5333
        %v5338 = vsub.f32 %v5330, %v5334
        %v5339 = vsub.f32 %v5331, %v5335
        %v5340 = vsub.f32 %v5332, %v5336
        %v5341 = vsub.f32 %v5289, %v5309
        %v5342 = vsub.f32 %v5290, %v5310
        %v5343 = vsub.f32 %v5291, %v5311
        %v5344 = vsub.f32 %v5292, %v5312
        %v5345 = vadd.f32 %v5337, 1e-05
        %v5346 = vadd.f32 %v5338, 1e-05
        %v5347 = vadd.f32 %v5339, 1e-05
        %v5348 = vadd.f32 %v5340, 1e-05
        %v5349 = vrsqrt.pop %v5345
        %v5350 = vrsqrt.pop %v5346
        %v5351 = vrsqrt.pop %v5347
        %v5352 = vrsqrt.pop %v5348
        %v5353 = vmul.f32 %v5341, %v5349
        %v5354 = vmul.f32 %v5342, %v5350
        %v5355 = vmul.f32 %v5343, %v5351
        %v5356 = vmul.f32 %v5344, %v5352
        %v5358 = vlaneseq
        %v5359 = vshrl.u32 %v5358, 7
        %v5360 = vsub.s32 0, %v5359
        %v5361 = vrot.slane %v5294, %v5360
        %v5363 = vmul.f32 %v5353, %v5361
        %v5364 = vmul.f32 %v5354, %v5361
        %v5365 = vmul.f32 %v5355, %v5361
        %v5366 = vmul.f32 %v5356, %v5361
        %v5368 = vlaneseq
        %v5369 = vshrl.u32 %v5368, 7
        %v5370 = vsub.s32 0, %v5369
        %v5371 = vrot.slane %v5296, %v5370
        %v5373 = vadd.f32 %v5363, %v5371
        %v5374 = vadd.f32 %v5364, %v5371
        %v5375 = vadd.f32 %v5365, %v5371
        %v5376 = vadd.f32 %v5366, %v5371
        %v5377 = vpack.c.bf16 %v5374, %v5373
        %v5378 = vpack.c.bf16 %v5376, %v5375
        %s5379 = scalar_lea.vmem %s9, 16
        %v5380 = vld [vmem:[%s5379] sm:$0xf]
        %v5381 = vld [vmem:[%s5379 + $0x4] sm:$0xf]
        %v5382 = vld [vmem:[%s5379 + $0x8] sm:$0xf]
        %v5383 = vld [vmem:[%s5379 + $0xc] sm:$0xf]
        %s5384 = scalar_lea.vmem %s10, 1
        %v5385 = vld [vmem:[%s5384] sm:$0x1]
        %v5387 = vlaneseq
        %v5388 = vshrl.u32 %v5387, 7
        %v5389 = vsub.s32 0, %v5388
        %v5390 = vrot.slane %v5385, %v5389
        %v5396 = vunpack.c.l.b16 %v5380
        %v5397 = vunpack.c.l.b16 %v5381
        %v5398 = vunpack.c.l.b16 %v5382
        %v5399 = vunpack.c.l.b16 %v5383
        %v5400 = vpack.c.b16 %v5397, %v5396
        %v5401 = vpack.c.b16 %v5399, %v5398
        %v5405 = vsel %vm736, %v5377, 0
        %v5408 = vsel %vm736, %v5378, 0
        %5410 = vmatprep.subr.bf16.mxu0 0
        %5411 = vmatpush1.bf16.msra.mxu0 %v5400
        %5412 = vmatprep.subr.bf16.mxu0 0
        %5413 = vmatpush1.bf16.msra.mxu0 %v5401
        %5414 = vmatprep.subr.bf16.mxu0 0
        %5415 = vmatpush1.bf16.msra.mxu0 0
        %5416 = vmatprep.subr.bf16.mxu0 0
        %5417 = vmatpush1.bf16.msra.mxu0 0
        %5418 = vmatprep.subr.bf16.mxu0 0
        %5419 = vmatpush1.bf16.msra.mxu0 0
        %5420 = vmatprep.subr.bf16.mxu0 0
        %5421 = vmatpush1.bf16.msra.mxu0 0
        %5422 = vmatprep.subr.bf16.mxu0 0
        %5423 = vmatpush1.bf16.msra.mxu0 0
        %5424 = vmatprep.subr.bf16.mxu0 0
        %5425 = vmatpush1.bf16.msra.mxu0 0
        %5426 = vmatprep.subr.bf16.mxu0 0
        %5427 = vmatpush1.bf16.msra.mxu0 0
        %5428 = vmatprep.subr.bf16.mxu0 0
        %5429 = vmatpush1.bf16.msra.mxu0 0
        %5430 = vmatprep.subr.bf16.mxu0 0
        %5431 = vmatpush1.bf16.msra.mxu0 0
        %5432 = vmatprep.subr.bf16.mxu0 0
        %5433 = vmatpush1.bf16.msra.mxu0 0
        %5434 = vmatprep.subr.bf16.mxu0 0
        %5435 = vmatpush1.bf16.msra.mxu0 0
        %5436 = vmatprep.subr.bf16.mxu0 0
        %5437 = vmatpush1.bf16.msra.mxu0 0
        %5438 = vmatprep.subr.bf16.mxu0 0
        %5439 = vmatpush1.bf16.msra.mxu0 0
        %5440 = vmatprep.subr.bf16.mxu0 0
        %5441 = vmatpush1.bf16.msra.mxu0 0
        %5442 = vmatprep.mubr.bf16.mxu0 0
        %5443 = vmatmul.mubr.bf16.gmra.mrb[0].mxu0 %v5405
        %v5444 = vpop.f32.mrb[0].mxu0
        %v5445 = vadd.f32 %v5390, %v5444
        %v5446 = vpop.f32.mrb[0].mxu0
        %v5447 = vpop.f32.mrb[0].mxu0
        %v5448 = vadd.f32 %v5390, %v5447
        %v5449 = vpop.f32.mrb[0].mxu0
        %5450 = vmatprep.mubr.bf16.mxu0 0
        %5451 = vmatmul.mubr.bf16.gmra.mrb[0].mxu0 %v5408
        %v5452 = vpop.f32.mrb[0].mxu0
        %v5453 = vadd.f32 %v5390, %v5452
        %v5454 = vpop.f32.mrb[0].mxu0
        %v5455 = vpop.f32.mrb[0].mxu0
        %v5456 = vadd.f32 %v5390, %v5455
        %v5457 = vpop.f32.mrb[0].mxu0
        %5458 = vdwg.mxu0
        %v5459 = vmax.f32 %v5445, 0.0
        %v5460 = vmax.f32 %v5448, 0.0
        %v5461 = vmax.f32 %v5453, 0.0
        %v5462 = vmax.f32 %v5456, 0.0
        %v5463 = vpack.c.bf16 %v5460, %v5459
        %v5464 = vpack.c.bf16 %v5462, %v5461
        %s5465 = scalar_lea.vmem %s11, 64
        %v5466 = vld [vmem:[%s5465] sm:$0xf]
        %v5467 = vld [vmem:[%s5465 + $0x4] sm:$0xf]
        %v5468 = vld [vmem:[%s5465 + $0x8] sm:$0xf]
        %v5469 = vld [vmem:[%s5465 + $0xc] sm:$0xf]
        %v5470 = vld [vmem:[%s5465 + $0x10] sm:$0xf]
        %v5471 = vld [vmem:[%s5465 + $0x14] sm:$0xf]
        %v5472 = vld [vmem:[%s5465 + $0x18] sm:$0xf]
        %v5473 = vld [vmem:[%s5465 + $0x1c] sm:$0xf]
        %v5474 = vld [vmem:[%s5465 + $0x20] sm:$0xf]
        %v5475 = vld [vmem:[%s5465 + $0x24] sm:$0xf]
        %v5476 = vld [vmem:[%s5465 + $0x28] sm:$0xf]
        %v5477 = vld [vmem:[%s5465 + $0x2c] sm:$0xf]
        %v5478 = vld [vmem:[%s5465 + $0x30] sm:$0xf]
        %v5479 = vld [vmem:[%s5465 + $0x34] sm:$0xf]
        %v5480 = vld [vmem:[%s5465 + $0x38] sm:$0xf]
        %v5481 = vld [vmem:[%s5465 + $0x3c] sm:$0xf]
        %s5482 = scalar_lea.vmem %s12, 1
        %v5483 = vld [vmem:[%s5482] sm:$0x1]
        %v5485 = vlaneseq
        %v5486 = vshrl.u32 %v5485, 7
        %v5487 = vsub.s32 0, %v5486
        %v5488 = vrot.slane %v5483, %v5487
        %v5506 = vunpack.c.l.b16 %v5466
        %v5507 = vunpack.c.l.b16 %v5467
        %v5508 = vunpack.c.l.b16 %v5468
        %v5509 = vunpack.c.l.b16 %v5469
        %v5510 = vunpack.c.l.b16 %v5470
        %v5511 = vunpack.c.l.b16 %v5471
        %v5512 = vunpack.c.l.b16 %v5472
        %v5513 = vunpack.c.l.b16 %v5473
        %v5514 = vunpack.c.l.b16 %v5474
        %v5515 = vunpack.c.l.b16 %v5475
        %v5516 = vunpack.c.l.b16 %v5476
        %v5517 = vunpack.c.l.b16 %v5477
        %v5518 = vunpack.c.l.b16 %v5478
        %v5519 = vunpack.c.l.b16 %v5479
        %v5520 = vunpack.c.l.b16 %v5480
        %v5521 = vunpack.c.l.b16 %v5481
        %v5522 = vpack.c.b16 %v5507, %v5506
        %v5523 = vpack.c.b16 %v5509, %v5508
        %v5524 = vpack.c.b16 %v5511, %v5510
        %v5525 = vpack.c.b16 %v5513, %v5512
        %v5526 = vpack.c.b16 %v5515, %v5514
        %v5527 = vpack.c.b16 %v5517, %v5516
        %v5528 = vpack.c.b16 %v5519, %v5518
        %v5529 = vpack.c.b16 %v5521, %v5520
        %5538 = vmatprep.subr.bf16.mxu0 0
        %5539 = vmatpush1.bf16.msra.mxu0 %v5522
        %5540 = vmatprep.subr.bf16.mxu0 0
        %5541 = vmatpush1.bf16.msra.mxu0 %v5523
        %5542 = vmatprep.subr.bf16.mxu0 0
        %5543 = vmatpush1.bf16.msra.mxu0 %v5524
        %5544 = vmatprep.subr.bf16.mxu0 0
        %5545 = vmatpush1.bf16.msra.mxu0 %v5525
        %5546 = vmatprep.subr.bf16.mxu0 0
        %5547 = vmatpush1.bf16.msra.mxu0 %v5526
        %5548 = vmatprep.subr.bf16.mxu0 0
        %5549 = vmatpush1.bf16.msra.mxu0 %v5527
        %5550 = vmatprep.subr.bf16.mxu0 0
        %5551 = vmatpush1.bf16.msra.mxu0 %v5528
        %5552 = vmatprep.subr.bf16.mxu0 0
        %5553 = vmatpush1.bf16.msra.mxu0 %v5529
        %5554 = vmatprep.subr.bf16.mxu0 0
        %5555 = vmatpush1.bf16.msra.mxu0 0
        %5556 = vmatprep.subr.bf16.mxu0 0
        %5557 = vmatpush1.bf16.msra.mxu0 0
        %5558 = vmatprep.subr.bf16.mxu0 0
        %5559 = vmatpush1.bf16.msra.mxu0 0
        %5560 = vmatprep.subr.bf16.mxu0 0
        %5561 = vmatpush1.bf16.msra.mxu0 0
        %5562 = vmatprep.subr.bf16.mxu0 0
        %5563 = vmatpush1.bf16.msra.mxu0 0
        %5564 = vmatprep.subr.bf16.mxu0 0
        %5565 = vmatpush1.bf16.msra.mxu0 0
        %5566 = vmatprep.subr.bf16.mxu0 0
        %5567 = vmatpush1.bf16.msra.mxu0 0
        %5568 = vmatprep.subr.bf16.mxu0 0
        %5569 = vmatpush1.bf16.msra.mxu0 0
        %5570 = vmatprep.mubr.bf16.mxu0 0
        %5571 = vmatmul.mubr.bf16.gmra.mrb[0].mxu0 %v5463
        %v5572 = vpop.f32.mrb[0].mxu0
        %v5573 = vadd.f32 %v5488, %v5572
        %v5574 = vpop.f32.mrb[0].mxu0
        %v5575 = vpop.f32.mrb[0].mxu0
        %v5576 = vadd.f32 %v5488, %v5575
        %v5577 = vpop.f32.mrb[0].mxu0
        %5578 = vmatprep.mubr.bf16.mxu0 0
        %5579 = vmatmul.mubr.bf16.gmra.mrb[0].mxu0 %v5464
        %v5580 = vpop.f32.mrb[0].mxu0
        %v5581 = vadd.f32 %v5488, %v5580
        %v5582 = vpop.f32.mrb[0].mxu0
        %v5583 = vpop.f32.mrb[0].mxu0
        %v5584 = vadd.f32 %v5488, %v5583
        %v5585 = vpop.f32.mrb[0].mxu0
        %5586 = vdwg.mxu0
        %v5587 = vadd.f32 %v5573, %v5373
        %v5588 = vadd.f32 %v5576, %v5374
        %v5589 = vadd.f32 %v5581, %v5375
        %v5590 = vadd.f32 %v5584, %v5376
        %s5591 = scalar_lea.vmem %s13, 1
        %v5592 = vld [vmem:[%s5591] sm:$0x1]
        %s5593 = scalar_lea.vmem %s14, 1
        %v5594 = vld [vmem:[%s5593] sm:$0x1]
        %v5595 = vsel %vm736, %v5587, 0.0
        %5596 = vadd.xlane.f32.xlu0 %v5595
        %v5597 = vpop.xlane.xlu0 %5596
        %v5598 = vsel %vm736, %v5588, 0.0
        %5599 = vadd.xlane.f32.xlu0 %v5598
        %v5600 = vpop.xlane.xlu0 %5599
        %v5601 = vsel %vm736, %v5589, 0.0
        %5602 = vadd.xlane.f32.xlu0 %v5601
        %v5603 = vpop.xlane.xlu0 %5602
        %v5604 = vsel %vm736, %v5590, 0.0
        %5605 = vadd.xlane.f32.xlu0 %v5604
        %v5606 = vpop.xlane.xlu0 %5605
        %v5607 = vmul.f32 %v5597, %v2833
        %v5608 = vmul.f32 %v5600, %v2833
        %v5609 = vmul.f32 %v5603, %v2833
        %v5610 = vmul.f32 %v5606, %v2833
        %v5611 = vmul.f32 %v5587, %v5587
        %v5612 = vmul.f32 %v5588, %v5588
        %v5613 = vmul.f32 %v5589, %v5589
        %v5614 = vmul.f32 %v5590, %v5590
        %v5615 = vsel %vm736, %v5611, 0.0
        %5616 = vadd.xlane.f32.xlu0 %v5615
        %v5617 = vpop.xlane.xlu0 %5616
        %v5618 = vsel %vm736, %v5612, 0.0
        %5619 = vadd.xlane.f32.xlu0 %v5618
        %v5620 = vpop.xlane.xlu0 %5619
        %v5621 = vsel %vm736, %v5613, 0.0
        %5622 = vadd.xlane.f32.xlu0 %v5621
        %v5623 = vpop.xlane.xlu0 %5622
        %v5624 = vsel %vm736, %v5614, 0.0
        %5625 = vadd.xlane.f32.xlu0 %v5624
        %v5626 = vpop.xlane.xlu0 %5625
        %v5627 = vmul.f32 %v5617, %v2833
        %v5628 = vmul.f32 %v5620, %v2833
        %v5629 = vmul.f32 %v5623, %v2833
        %v5630 = vmul.f32 %v5626, %v2833
        %v5631 = vmul.f32 %v5607, %v5607
        %v5632 = vmul.f32 %v5608, %v5608
        %v5633 = vmul.f32 %v5609, %v5609
        %v5634 = vmul.f32 %v5610, %v5610
        %v5635 = vsub.f32 %v5627, %v5631
        %v5636 = vsub.f32 %v5628, %v5632
        %v5637 = vsub.f32 %v5629, %v5633
        %v5638 = vsub.f32 %v5630, %v5634
        %v5639 = vsub.f32 %v5587, %v5607
        %v5640 = vsub.f32 %v5588, %v5608
        %v5641 = vsub.f32 %v5589, %v5609
        %v5642 = vsub.f32 %v5590, %v5610
        %v5643 = vadd.f32 %v5635, 1e-05
        %v5644 = vadd.f32 %v5636, 1e-05
        %v5645 = vadd.f32 %v5637, 1e-05
        %v5646 = vadd.f32 %v5638, 1e-05
        %v5647 = vrsqrt.pop %v5643
        %v5648 = vrsqrt.pop %v5644
        %v5649 = vrsqrt.pop %v5645
        %v5650 = vrsqrt.pop %v5646
        %v5651 = vmul.f32 %v5639, %v5647
        %v5652 = vmul.f32 %v5640, %v5648
        %v5653 = vmul.f32 %v5641, %v5649
        %v5654 = vmul.f32 %v5642, %v5650
        %v5656 = vlaneseq
        %v5657 = vshrl.u32 %v5656, 7
        %v5658 = vsub.s32 0, %v5657
        %v5659 = vrot.slane %v5592, %v5658
        %v5661 = vmul.f32 %v5651, %v5659
        %v5662 = vmul.f32 %v5652, %v5659
        %v5663 = vmul.f32 %v5653, %v5659
        %v5664 = vmul.f32 %v5654, %v5659
        %v5666 = vlaneseq
        %v5667 = vshrl.u32 %v5666, 7
        %v5668 = vsub.s32 0, %v5667
        %v5669 = vrot.slane %v5594, %v5668
        %v5671 = vadd.f32 %v5661, %v5669
        %v5672 = vadd.f32 %v5662, %v5669
        %v5673 = vadd.f32 %v5663, %v5669
        %v5674 = vadd.f32 %v5664, %v5669
        %v5675 = vpack.c.bf16 %v5672, %v5671
        %v5676 = vpack.c.bf16 %v5674, %v5673
        %v5677 = vld [vmem:[%s15] sm:$0xf]
        %v5678 = vld [vmem:[%s15 + $0x4] sm:$0xf]
        %v5679 = vld [vmem:[%s15 + $0x8] sm:$0xf]
        %v5680 = vld [vmem:[%s15 + $0xc] sm:$0xf]
        %v5681 = vld [vmem:[%s16] sm:$0x1]
        %v5683 = vlaneseq
        %v5684 = vshrl.u32 %v5683, 7
        %v5685 = vsub.s32 0, %v5684
        %v5686 = vrot.slane %v5681, %v5685
        %v5692 = vunpack.c.l.b16 %v5677
        %v5693 = vunpack.c.l.b16 %v5678
        %v5694 = vunpack.c.l.b16 %v5679
        %v5695 = vunpack.c.l.b16 %v5680
        %v5696 = vpack.c.b16 %v5693, %v5692
        %v5697 = vpack.c.b16 %v5695, %v5694
        %v5701 = vsel %vm736, %v5675, 0
        %v5704 = vsel %vm736, %v5676, 0
        %5706 = vmatprep.subr.bf16.mxu0 0
        %5707 = vmatpush1.bf16.msra.mxu0 %v5696
        %5708 = vmatprep.subr.bf16.mxu0 0
        %5709 = vmatpush1.bf16.msra.mxu0 %v5697
        %5710 = vmatprep.subr.bf16.mxu0 0
        %5711 = vmatpush1.bf16.msra.mxu0 0
        %5712 = vmatprep.subr.bf16.mxu0 0
        %5713 = vmatpush1.bf16.msra.mxu0 0
        %5714 = vmatprep.subr.bf16.mxu0 0
        %5715 = vmatpush1.bf16.msra.mxu0 0
        %5716 = vmatprep.subr.bf16.mxu0 0
        %5717 = vmatpush1.bf16.msra.mxu0 0
        %5718 = vmatprep.subr.bf16.mxu0 0
        %5719 = vmatpush1.bf16.msra.mxu0 0
        %5720 = vmatprep.subr.bf16.mxu0 0
        %5721 = vmatpush1.bf16.msra.mxu0 0
        %5722 = vmatprep.subr.bf16.mxu0 0
        %5723 = vmatpush1.bf16.msra.mxu0 0
        %5724 = vmatprep.subr.bf16.mxu0 0
        %5725 = vmatpush1.bf16.msra.mxu0 0
        %5726 = vmatprep.subr.bf16.mxu0 0
        %5727 = vmatpush1.bf16.msra.mxu0 0
        %5728 = vmatprep.subr.bf16.mxu0 0
        %5729 = vmatpush1.bf16.msra.mxu0 0
        %5730 = vmatprep.subr.bf16.mxu0 0
        %5731 = vmatpush1.bf16.msra.mxu0 0
        %5732 = vmatprep.subr.bf16.mxu0 0
        %5733 = vmatpush1.bf16.msra.mxu0 0
        %5734 = vmatprep.subr.bf16.mxu0 0
        %5735 = vmatpush1.bf16.msra.mxu0 0
        %5736 = vmatprep.subr.bf16.mxu0 0
        %5737 = vmatpush1.bf16.msra.mxu0 0
        %5738 = vmatprep.mubr.bf16.mxu0 0
        %5739 = vmatmul.mubr.bf16.gmra.mrb[0].mxu0 %v5701
        %v5740 = vpop.f32.mrb[0].mxu0
        %v5741 = vadd.f32 %v5686, %v5740
        %v5742 = vpop.f32.mrb[0].mxu0
        %v5743 = vpop.f32.mrb[0].mxu0
        %v5744 = vadd.f32 %v5686, %v5743
        %v5745 = vpop.f32.mrb[0].mxu0
        %5746 = vmatprep.mubr.bf16.mxu0 0
        %5747 = vmatmul.mubr.bf16.gmra.mrb[0].mxu0 %v5704
        %v5748 = vpop.f32.mrb[0].mxu0
        %v5749 = vadd.f32 %v5686, %v5748
        %v5750 = vpop.f32.mrb[0].mxu0
        %v5751 = vpop.f32.mrb[0].mxu0
        %v5752 = vadd.f32 %v5686, %v5751
        %v5753 = vpop.f32.mrb[0].mxu0
        %5754 = vdwg.mxu0
        %5755 = vst [vmem:[%s594] sm:$0xff] %v5741
        %5756 = vst [vmem:[%s594 + $0x8] sm:$0xff] %v5744
        %5757 = vst [vmem:[%s594 + $0x10] sm:$0xff] %v5749
        %5758 = vst [vmem:[%s594 + $0x18] sm:$0xff] %v5752
        %s5759 = sand.u32 %s411, 1
        %s5760 = scalar_lea.sflag [#allocation3], %s5759
        %s5761 = sand.u32 %s411, 1
        %s5762 = smul.addr %s5761, 32
        %s5763 = scalar_lea.vmem [#allocation2], %s5762
        %s5764 = sand.u32 %s437, 1
        %s5765 = scalar_lea.sflag [#allocation5], %s5764
        %s5766 = sand.u32 %s437, 1
        %s5767 = smul.addr %s5766, 32
        %s5768 = scalar_lea.vmem [#allocation4], %s5767
        // Predicated region
        $region89: #{transformer_forward.1} parent=87 // pred_check
          %p5769 = pneg %p421
        $region90: #{transformer_forward.1} parent=87 // pred_check_branch
          %5771 = sbr.rel (%p5769) target = $region92
        $region91: #{transformer_forward.1} parent=87 // pred_region
          %s5772 = smul.u32 4, %s36
          %s5774 = ssub.s32 512, 512
          %5775 = vsyncadd %s5760, %s5774
          %s5776 = smul.addr %s5772, 128
          %s5777 = scalar_lea.hbm %s17, %s5776
          %s5778 = sshll.u32 %s5763, 4
          %s5779 = int_to_ptr.vmem [resolvable:$true] %s5778
          %5784 = dma.vmem_to_hbm [thread:$0]  %s5779, 512, %s5777, %s5760, 128, 128, 8
        $region92: #{transformer_forward.1} parent=87 // pred_fallthru
          _
        // Predicated region
        $region93: #{transformer_forward.1} parent=87 // pred_check
          %p5785 = pneg %p447
        $region94: #{transformer_forward.1} parent=87 // pred_check_branch
          %5787 = sbr.rel (%p5785) target = $region96
        $region95: #{transformer_forward.1} parent=87 // pred_region
          %s5788 = smul.u32 4, %s36
          %s5790 = ssub.s32 512, 512
          %5791 = vsyncadd %s5765, %s5790
          %s5792 = smul.addr %s5788, 128
          %s5793 = scalar_lea.hbm %s18, %s5792
          %s5794 = sshll.u32 %s5768, 4
          %s5795 = int_to_ptr.vmem [resolvable:$true] %s5794
          %5800 = dma.vmem_to_hbm [thread:$0]  %s5795, 512, %s5793, %s5765, 128, 128, 8
        $region96: #{transformer_forward.1} parent=87 // pred_fallthru
          _
      $region88: #{transformer_forward.1} parent=5 // pred_fallthru
        _
      %p5801 = scmp.le.s32.totalorder 2, %s31
      // Predicated region
      $region97: #{transformer_forward.1} parent=5 // pred_check
        %p5802 = pneg %p5801
      $region98: #{transformer_forward.1} parent=5 // pred_check_branch
        %5804 = sbr.rel (%p5802) target = $region100
      $region99: #{transformer_forward.1} parent=5 // pred_region
        %s5805 = ssub.s32 %s31, 2
        // Predicated region
        $region101: #{transformer_forward.1} parent=99 // pred_check
          %p5806 = pneg %p427
        $region102: #{transformer_forward.1} parent=99 // pred_check_branch
          %5808 = sbr.rel (%p5806) target = $region104
        $region103: #{transformer_forward.1} parent=99 // pred_region
          %s5809 = sand.u32 %s412, 1
          %s5810 = scalar_lea.sflag [#allocation3], %s5809
          %s5811 = sand.u32 %s412, 1
          %s5812 = smul.addr %s5811, 32
          %s5813 = scalar_lea.vmem [#allocation2], %s5812
          %5814 = dma.done %s5810, 512
        $region104: #{transformer_forward.1} parent=99 // pred_fallthru
          _
        // Predicated region
        $region105: #{transformer_forward.1} parent=99 // pred_check
          %p5815 = pneg %p453
        $region106: #{transformer_forward.1} parent=99 // pred_check_branch
          %5817 = sbr.rel (%p5815) target = $region108
        $region107: #{transformer_forward.1} parent=99 // pred_region
          %s5818 = sand.u32 %s438, 1
          %s5819 = scalar_lea.sflag [#allocation5], %s5818
          %s5820 = sand.u32 %s438, 1
          %s5821 = smul.addr %s5820, 32
          %s5822 = scalar_lea.vmem [#allocation4], %s5821
          %5823 = dma.done %s5819, 512
        $region108: #{transformer_forward.1} parent=99 // pred_fallthru
          _
      $region100: #{transformer_forward.1} parent=5 // pred_fallthru
        _
    $region6: #{transformer_forward.1} parent=1 // loop_footer
      %s35 = sadd.s32 1, %s31
    $region7: #{transformer_forward.1} parent=1 // loop_footer_branch
      %30 = sbr.rel target = $region3
    $region8: #{transformer_forward.1} parent=1 // loop_exit
      _
    %5824 = vsyncpa [#allocation3], 1
    %s5825 = scalar_lea.sflag [#allocation3], 1
    %5826 = vsyncpa %s5825, 1
    %5827 = vsyncpa [#allocation5], 1
    %s5828 = scalar_lea.sflag [#allocation5], 1
    %5829 = vsyncpa %s5828, 1

</llo_original>
